<compile_context>
chip_gen: v7x
topology: tpu7x:2x2x1
jax: 0.10.0
libtpu: 0.0.40
codegen_flags: <defaults>
</compile_context>

<pallas_src>
import functools
import math

import jax
import jax.numpy as jnp
from jax.experimental import pallas as pl
from jax.experimental.pallas import tpu as pltpu


_COMPUTE_DTYPE = jnp.bfloat16          # MXU operands / HBM intermediates


def _round_up(x, m):
    return ((x + m - 1) // m) * m


@functools.lru_cache(maxsize=None)
def _vmem_limit_bytes():
    cap = 128 * 1024 * 1024
    try:
        info = pltpu.get_tpu_info()
        cap = int(getattr(info, "vmem_capacity_bytes", cap))
    except Exception:
        pass
    return max(32 * 1024 * 1024, min(cap * 3 // 4, 100 * 1024 * 1024))


# ---------------------------------------------------------------------------
# Kernel A (wide input, Cin >= 16): implicit GEMM, ky/kx taps resolved in the
# kernel from a height-padded flat operand, per-kx column masks replace width
# padding.  k matmuls of K = k*Cin, f32 accumulation, bias + LeakyReLU(0.01).
#
#   x_ref  : (1, Cin, Lin)  bf16   flat[pad + i*W + j] = height-padded img[i,j]
#   w_ref  : (k, Cout, k*Cin) bf16 w_ref[kx, co, ky*Cin+ci] = W[co, ci, ky, kx]
#   b_ref  : (Cout, 1) f32
#   col_ref: (1, Mp) int32         lane index mod W (precomputed constant)
#   o_ref  : (1, Cout, Mp) bf16    Mp = round_up(H*W, 128)  (lane-dense stores)
# ---------------------------------------------------------------------------
def _dilated_conv_kernel(x_ref, w_ref, b_ref, col_ref, o_ref, *,
                         k, dilation, pad, w_img, mp):
    cout = o_ref.shape[1]
    wcol = col_ref[...]                                   # (1, mp) int32
    acc = jnp.zeros((cout, mp), jnp.float32)
    for kx in range(k):
        base = kx * dilation
        # ky-stack built in VMEM (pieces of Cin rows, Cin multiple of 16):
        # keeps K = k*Cin per matmul with zero HBM band blow-up.
        win = jnp.concatenate(
            [x_ref[0, :, ky * dilation * w_img + base:
                         ky * dilation * w_img + base + mp]
             for ky in range(k)], axis=0)                 # (k*Cin, mp)
        part = jnp.dot(w_ref[kx], win, preferred_element_type=jnp.float32)
        shift = base - pad                                # static python int
        if shift == 0:
            acc = acc + part
        else:
            # column valid iff 0 <= (m % W) + shift < W
            mask = (wcol >= -shift) & (wcol < w_img - shift)
            acc = acc + jnp.where(mask, part, 0.0)
    acc = acc + b_ref[...]
    acc = jnp.where(acc > 0, acc, 0.01 * acc)             # LeakyReLU(0.01)
    o_ref[0] = acc.astype(o_ref.dtype)


# ---------------------------------------------------------------------------
# Kernel B (narrow input, Cin <= 8): single well-fed matmul of K = k*k*Cin on
# an exact (zero-padded) tap stack built cheaply in XLA.
# ---------------------------------------------------------------------------
def _stacked_conv_kernel(x_ref, w_ref, b_ref, o_ref):
    acc = jnp.dot(w_ref[...], x_ref[0], preferred_element_type=jnp.float32)
    acc = acc + b_ref[...]
    acc = jnp.where(acc > 0, acc, 0.01 * acc)             # LeakyReLU(0.01)
    o_ref[0] = acc.astype(o_ref.dtype)


def dilated_conv_lrelu(x_nchw, weight, bias, dilation, colw):
    """'same' dilated Conv2d (padding = dilation*(k-1)//2) + LeakyReLU(0.01).

    Returns the feature map on the flat, UNPADDED H*W lane grid:
    (N, Cout, Mp) bf16 with Mp = round_up(H*W, 128).
    """
    N, Cin, H, W = x_nchw.shape
    Cout, _, k, _ = weight.shape
    pad = dilation * ((k - 1) // 2)
    M = H * W
    Mp = colw.shape[1]
    b2 = bias.reshape(Cout, 1).astype(jnp.float32)
    vmem = _vmem_limit_bytes()

    if Cin <= 8:
        # exact k^2 tap stack (<= 72 rows) -> one matmul of K = k*k*Cin.
        xp = jnp.pad(x_nchw.astype(_COMPUTE_DTYPE),
                     ((0, 0), (0, 0), (pad, pad), (pad, pad)))
        taps = [xp[:, :, ky * dilation: ky * dilation + H,
                         kx * dilation: kx * dilation + W]
                for ky in range(k) for kx in range(k)]
        xs = jnp.concatenate(taps, axis=1).reshape(N, k * k * Cin, M)
        xs = jnp.pad(xs, ((0, 0), (0, 0), (0, Mp - M)))
        wk = weight.transpose(0, 2, 3, 1).reshape(Cout, k * k * Cin)
        wk = wk.astype(_COMPUTE_DTYPE)
        return pl.pallas_call(
            _stacked_conv_kernel,
            out_shape=jax.ShapeDtypeStruct((N, Cout, Mp), _COMPUTE_DTYPE),
            grid_spec=pltpu.PrefetchScalarGridSpec(
                num_scalar_prefetch=0,
                grid=(N,),
                in_specs=[
                    pl.BlockSpec((1, k * k * Cin, Mp), lambda n: (n, 0, 0)),
                    pl.BlockSpec((Cout, k * k * Cin), lambda n: (0, 0)),
                    pl.BlockSpec((Cout, 1), lambda n: (0, 0)),
                ],
                out_specs=pl.BlockSpec((1, Cout, Mp), lambda n: (n, 0, 0)),
            ),
            compiler_params=pltpu.CompilerParams(
                dimension_semantics=("parallel",), vmem_limit_bytes=vmem),
        )(xs, wk, b2)

    # wide input: height-pad only, flatten, add `pad` leading guard + lane tail.
    max_off = 2 * pad * (W + 1)
    Lin = _round_up(max(Mp + max_off, pad + (H + 2 * pad) * W), 128)
    xp = jnp.pad(x_nchw.astype(_COMPUTE_DTYPE),
                 ((0, 0), (0, 0), (pad, pad), (0, 0)))
    flat = xp.reshape(N, Cin, (H + 2 * pad) * W)
    xflat = jnp.pad(flat, ((0, 0), (0, 0), (pad, Lin - pad - flat.shape[2])))
    # (Cout, Cin, ky, kx) -> (kx, Cout, ky*Cin + ci)
    wk = weight.transpose(3, 0, 2, 1).reshape(k, Cout, k * Cin)
    wk = wk.astype(_COMPUTE_DTYPE)

    kern = functools.partial(_dilated_conv_kernel, k=k, dilation=dilation,
                             pad=pad, w_img=W, mp=Mp)
    return pl.pallas_call(
        kern,
        out_shape=jax.ShapeDtypeStruct((N, Cout, Mp), _COMPUTE_DTYPE),
        grid_spec=pltpu.PrefetchScalarGridSpec(
            num_scalar_prefetch=0,
            grid=(N,),
            in_specs=[
                pl.BlockSpec((1, Cin, Lin), lambda n: (n, 0, 0)),
                pl.BlockSpec((k, Cout, k * Cin), lambda n: (0, 0, 0)),
                pl.BlockSpec((Cout, 1), lambda n: (0, 0)),
                pl.BlockSpec((1, Mp), lambda n: (0, 0)),
            ],
            out_specs=pl.BlockSpec((1, Cout, Mp), lambda n: (n, 0, 0)),
        ),
        compiler_params=pltpu.CompilerParams(
            dimension_semantics=("parallel",), vmem_limit_bytes=vmem),
    )(xflat, wk, b2, colw)


# ---------------------------------------------------------------------------
# Fused 1x1 dense stack + residual adds + final 1x1 conv.  The first dense
# layer's contraction is split per feature group (K = 64/32/16/16), so the
# torch.cat of all 128 channels is never materialized in HBM or VMEM.
# ---------------------------------------------------------------------------
def _dense_stack_kernel(*refs, group_channels, nb_dense_layers, degressive,
                        final_relu):
    ng = len(group_channels)
    feat_refs = refs[:ng]
    wb = refs[ng:-1]                 # w0,b0, w1,b1, ..., w_final,b_final
    o_ref = refs[-1]

    def lrelu(a):
        return jnp.where(a > 0, a, 0.01 * a)

    w0 = wb[0]
    acc = wb[1][...]                                       # (C, 1) f32 bias
    start = 0
    for g, cg in enumerate(group_channels):
        acc = acc + jnp.dot(w0[:, start:start + cg], feat_refs[g][0],
                            preferred_element_type=jnp.float32)
        start += cg
    x = lrelu(acc)                                         # (C, tm) f32
    y = x
    f = 1.0
    for i in range(1, nb_dense_layers):
        a = jnp.dot(wb[2 * i][...], x.astype(_COMPUTE_DTYPE),
                    preferred_element_type=jnp.float32) + wb[2 * i + 1][...]
        x = lrelu(a)
        # last layer has nb_out_channels rows; broadcasts over C like torch.
        y = y + x if f == 1.0 else y + f * x
        if degressive:
            f = f * 0.5
    out = jnp.dot(wb[2 * nb_dense_layers][...], y.astype(_COMPUTE_DTYPE),
                  preferred_element_type=jnp.float32)
    out = out + wb[2 * nb_dense_layers + 1][...]
    if final_relu:
        out = jnp.maximum(out, 0.0)
    o_ref[0] = out.astype(o_ref.dtype)


def fused_dense_stack(feats, dense_ws, dense_bs, final_w, final_b, *,
                      h, w, degressive, final_relu, tm_max=2048):
    # feats: list of (N, Ci, Mp) bf16 on the shared flat H*W lane grid.
    N = feats[0].shape[0]
    Mp = feats[0].shape[2]
    M = h * w
    # largest power-of-two lane tile <= tm_max dividing Mp: lane-dense stores,
    # no re-padding of the conv outputs.
    tm, t = 128, 256
    while t <= tm_max and Mp % t == 0:
        tm = t
        t *= 2
    grid = (N, Mp // tm)

    operands = list(feats)
    in_specs = [pl.BlockSpec((1, int(f.shape[1]), tm), lambda n, j: (n, 0, j))
                for f in feats]
    for wgt, b in list(zip(dense_ws, dense_bs)) + [(final_w, final_b)]:
        co, ci = wgt.shape
        operands.append(wgt.astype(_COMPUTE_DTYPE))
        operands.append(b.reshape(co, 1).astype(jnp.float32))
        in_specs.append(pl.BlockSpec((co, ci), lambda n, j: (0, 0)))
        in_specs.append(pl.BlockSpec((co, 1), lambda n, j: (0, 0)))

    out_c = final_w.shape[0]
    out = pl.pallas_call(
        functools.partial(
            _dense_stack_kernel,
            group_channels=tuple(int(f.shape[1]) for f in feats),
            nb_dense_layers=len(dense_ws),
            degressive=degressive, final_relu=final_relu),
        out_shape=jax.ShapeDtypeStruct((N, out_c, Mp), jnp.float32),
        grid_spec=pltpu.PrefetchScalarGridSpec(
            num_scalar_prefetch=0,
            grid=grid,
            in_specs=in_specs,
            out_specs=pl.BlockSpec((1, out_c, tm), lambda n, j: (n, 0, j)),
        ),
        compiler_params=pltpu.CompilerParams(
            dimension_semantics=("parallel", "parallel"),
            vmem_limit_bytes=_vmem_limit_bytes()),
    )(*operands)

    return out[:, :, :M].reshape(N, out_c, h, w)


# ---------------------------------------------------------------------------
# JINetModel (forward-pass equivalent), parameters initialized deterministically.
# ---------------------------------------------------------------------------
class JINetModelPallas:
    def __init__(self, spacetime_ndim=2, nb_in_channels=1, nb_out_channels=1,
                 kernel_sizes=None, num_features=None, nb_dense_layers=3,
                 nb_channels=None, final_relu=False, degressive_residuals=False,
                 key=None):
        if spacetime_ndim != 2:
            # TODO(synk): spacetime_ndim == 3 (Conv3d path) not implemented.
            raise ValueError("only spacetime_ndim == 2 is implemented")
        self.spacetime_ndim = spacetime_ndim
        self.nb_in_channels = nb_in_channels
        self.nb_out_channels = nb_out_channels
        self.kernel_sizes = kernel_sizes or [7, 5, 3, 3, 3, 3, 3, 3]
        self.num_features = num_features or [64, 32, 16, 8, 4, 2, 1, 1]
        assert len(self.kernel_sizes) == len(self.num_features)
        self.nb_dense_layers = nb_dense_layers
        self.nb_channels = nb_channels if nb_channels is not None else sum(self.num_features)
        self.final_relu = final_relu
        self.degressive_residuals = degressive_residuals

        key = key if key is not None else jax.random.PRNGKey(0)

        def conv2d_params(key, cout, cin, k):
            kw, kb = jax.random.split(key)
            bound = 1.0 / math.sqrt(cin * k * k)
            w = jax.random.uniform(kw, (cout, cin, k, k), jnp.float32, -bound, bound)
            b = jax.random.uniform(kb, (cout,), jnp.float32, -bound, bound)
            return w, b

        def dense_params(key, cout, cin):
            kw, kb = jax.random.split(key)
            bound = 1.0 / math.sqrt(cin)
            w = jax.random.uniform(kw, (cout, cin), jnp.float32, -bound, bound)
            b = jax.random.uniform(kb, (cout,), jnp.float32, -bound, bound)
            return w, b

        # dilated conv stack (same dilation/padding schedule as the PyTorch module)
        self.dconv_w, self.dconv_b, self.dilations = [], [], []
        crf_radius = 0
        for si, k in enumerate(self.kernel_sizes):
            radius = (k - 1) // 2
            dilation = 1 + crf_radius
            cin = self.nb_in_channels if si == 0 else self.num_features[si - 1]
            cout = self.num_features[si]
            key, sub = jax.random.split(key)
            w, b = conv2d_params(sub, cout, cin, k)
            self.dconv_w.append(w)
            self.dconv_b.append(b)
            self.dilations.append(dilation)
            crf_radius += dilation * radius

        # 1x1 dense conv stack
        self.k1_w, self.k1_b = [], []
        nb_out = self.nb_channels
        for idx in range(self.nb_dense_layers):
            nb_in = nb_out
            nb_out = self.nb_out_channels if idx == self.nb_dense_layers - 1 else self.nb_channels
            key, sub = jax.random.split(key)
            w, b = dense_params(sub, nb_out, nb_in)
            self.k1_w.append(w)
            self.k1_b.append(b)

        key, sub = jax.random.split(key)
        self.final_w, self.final_b = dense_params(sub, 1, self.nb_channels)

        self._jitted = jax.jit(self._forward)

    def _forward(self, x):
        # x: (N, nb_in_channels, H, W) float32, NCHW kept end to end.
        N, _, H, W = x.shape
        M = H * W
        Mp = _round_up(M, 128)
        # lane index mod W -- shared width-mask helper for all conv layers.
        colw = (jnp.arange(Mp, dtype=jnp.int32) % W).reshape(1, Mp)

        n_layers = len(self.kernel_sizes)
        feats = []
        cur = x
        for i in range(n_layers):
            flat = dilated_conv_lrelu(cur, self.dconv_w[i], self.dconv_b[i],
                                      self.dilations[i], colw)
            feats.append(flat)                     # (N, Cout_i, Mp) bf16
            if i + 1 < n_layers:
                cur = flat[:, :, :M].reshape(N, flat.shape[1], H, W)

        # group trailing tiny features so every first-dense matmul has K >= 16
        # (order preserved; only the small tail is concatenated, ~16 channels).
        groups, g, gc = [], [], 0
        for i, c in enumerate(self.num_features):
            g.append(i)
            gc += c
            if gc >= 16:
                groups.append(g)
                g, gc = [], 0
        if g:
            groups.append(g)
        gfeats = [feats[grp[0]] if len(grp) == 1
                  else jnp.concatenate([feats[i] for i in grp], axis=1)
                  for grp in groups]

        y = fused_dense_stack(
            gfeats, self.k1_w, self.k1_b, self.final_w, self.final_b,
            h=H, w=W, degressive=self.degressive_residuals,
            final_relu=self.final_relu)
        return y                                   # (N, 1, H, W) float32

    def __call__(self, x):
        return self._jitted(x)


if __name__ == "__main__":
    key = jax.random.PRNGKey(0)
    k_in, k_model = jax.random.split(key)

    # small but module-consistent shapes: batch=2, 1 input channel, 16x16 spatial
    x = jax.random.normal(k_in, (2, 1, 16, 16), dtype=jnp.float32)

    model = JINetModelPallas(spacetime_ndim=2, key=k_model)
    out = model(x)
    out = jax.block_until_ready(out)

    assert out.shape == (2, 1, 16, 16), out.shape
    assert bool(jnp.all(jnp.isfinite(out)))
    print("KERNEL_OK")
</pallas_src>

<mosaic_0001>
module attributes {stable_mosaic.version = 11 : i64} {
  func.func @_stacked_conv_kernel(%arg0: i32, %arg1: memref<1x49x256xbf16, #tpu.memory_space<vmem>>, %arg2: memref<64x49xbf16, #tpu.memory_space<vmem>>, %arg3: memref<64x1xf32, #tpu.memory_space<vmem>>, %arg4: memref<1x64x256xbf16, #tpu.memory_space<vmem>>) attributes {dimension_semantics = [#tpu.dimension_semantics<parallel>], iteration_bounds = array<i64: 2>, scalar_prefetch = 0 : i64, scratch_operands = 0 : i64, tpu.core_type = #tpu.core_type<tc>, window_params = [{transform_indices = @transform_0, window_bounds = array<i64: 1, 49, 256>}, {pipeline_mode = #tpu.pipeline_mode<synchronous>, transform_indices = @transform_1, window_bounds = array<i64: 64, 49>}, {pipeline_mode = #tpu.pipeline_mode<synchronous>, transform_indices = @transform_2, window_bounds = array<i64: 64, 1>}, {transform_indices = @transform_3, window_bounds = array<i64: 1, 64, 256>}]} {
    %c0 = arith.constant 0 : index
    %c0_0 = arith.constant 0 : index
    %0 = vector.load %arg2[%c0, %c0_0] : memref<64x49xbf16, #tpu.memory_space<vmem>>, vector<64x49xbf16>
    %c0_1 = arith.constant 0 : index
    %c0_2 = arith.constant 0 : index
    %c0_3 = arith.constant 0 : index
    %1 = vector.load %arg1[%c0_1, %c0_2, %c0_3] : memref<1x49x256xbf16, #tpu.memory_space<vmem>>, vector<1x49x256xbf16>
    %2 = vector.shape_cast %1 : vector<1x49x256xbf16> to vector<49x256xbf16>
    %cst = arith.constant dense<0.000000e+00> : vector<64x256xf32>
    %3 = tpu.matmul %0, %2, %cst {dimension_numbers = #tpu.dot_dimension_numbers<[1], [0], [0], [1], [0, 0, 1, 1], [], []>} : vector<64x49xbf16>, vector<49x256xbf16>, vector<64x256xf32> -> vector<64x256xf32>
    %c0_4 = arith.constant 0 : index
    %c0_5 = arith.constant 0 : index
    %4 = vector.load %arg3[%c0_4, %c0_5] : memref<64x1xf32, #tpu.memory_space<vmem>>, vector<64x1xf32>
    %5 = vector.broadcast %4 : vector<64x1xf32> to vector<64x256xf32>
    %6 = arith.addf %3, %5 : vector<64x256xf32>
    %cst_6 = arith.constant 0.000000e+00 : f32
    %7 = vector.broadcast %cst_6 : f32 to vector<64x256xf32>
    %8 = arith.cmpf ogt, %6, %7 : vector<64x256xf32>
    %cst_7 = arith.constant 0.00999999977 : f32
    %9 = vector.broadcast %cst_7 : f32 to vector<64x256xf32>
    %10 = arith.mulf %9, %6 : vector<64x256xf32>
    %11 = arith.select %8, %6, %10 : vector<64x256xi1>, vector<64x256xf32>
    %12 = arith.truncf %11 : vector<64x256xf32> to vector<64x256xbf16>
    %c0_8 = arith.constant 0 : index
    %c0_9 = arith.constant 0 : index
    %c0_10 = arith.constant 0 : index
    %13 = vector.load %arg4[%c0_8, %c0_9, %c0_10] : memref<1x64x256xbf16, #tpu.memory_space<vmem>>, vector<1x64x256xbf16>
    %14 = vector.shape_cast %13 : vector<1x64x256xbf16> to vector<64x256xbf16>
    %15 = vector.shape_cast %12 : vector<64x256xbf16> to vector<1x64x256xbf16>
    tpu.vector_store %arg4[%c0_8, %c0_9, %c0_10], %15 {strides = array<i32>} : memref<1x64x256xbf16, #tpu.memory_space<vmem>>, vector<1x64x256xbf16>,
    return
  }
  func.func @transform_0(%arg0: i32) -> (i32, i32, i32) {
    %c0_i32 = arith.constant 0 : i32
    %c0_i32_0 = arith.constant 0 : i32
    %c0_i32_1 = arith.constant 0 : i32
    return %arg0, %c0_i32, %c0_i32_0 : i32, i32, i32
  }
  func.func @transform_1(%arg0: i32) -> (i32, i32) {
    %c0_i32 = arith.constant 0 : i32
    %c0_i32_0 = arith.constant 0 : i32
    %c0_i32_1 = arith.constant 0 : i32
    return %c0_i32, %c0_i32_0 : i32, i32
  }
  func.func @transform_2(%arg0: i32) -> (i32, i32) {
    %c0_i32 = arith.constant 0 : i32
    %c0_i32_0 = arith.constant 0 : i32
    %c0_i32_1 = arith.constant 0 : i32
    return %c0_i32, %c0_i32_0 : i32, i32
  }
  func.func @transform_3(%arg0: i32) -> (i32, i32, i32) {
    %c0_i32 = arith.constant 0 : i32
    %c0_i32_0 = arith.constant 0 : i32
    %c0_i32_1 = arith.constant 0 : i32
    return %arg0, %c0_i32, %c0_i32_0 : i32, i32, i32
  }
}

module attributes {stable_mosaic.version = 11 : i64} {
  func.func @_dilated_conv_kernel(%arg0: i32, %arg1: memref<1x64x640xbf16, #tpu.memory_space<vmem>>, %arg2: memref<5x32x320xbf16, #tpu.memory_space<vmem>>, %arg3: memref<32x1xf32, #tpu.memory_space<vmem>>, %arg4: memref<1x256xi32, #tpu.memory_space<vmem>>, %arg5: memref<1x32x256xbf16, #tpu.memory_space<vmem>>) attributes {dimension_semantics = [#tpu.dimension_semantics<parallel>], iteration_bounds = array<i64: 2>, scalar_prefetch = 0 : i64, scratch_operands = 0 : i64, tpu.core_type = #tpu.core_type<tc>, window_params = [{transform_indices = @transform_0, window_bounds = array<i64: 1, 64, 640>}, {pipeline_mode = #tpu.pipeline_mode<synchronous>, transform_indices = @transform_1, window_bounds = array<i64: 5, 32, 320>}, {pipeline_mode = #tpu.pipeline_mode<synchronous>, transform_indices = @transform_2, window_bounds = array<i64: 32, 1>}, {pipeline_mode = #tpu.pipeline_mode<synchronous>, transform_indices = @transform_3, window_bounds = array<i64: 1, 256>}, {transform_indices = @transform_4, window_bounds = array<i64: 1, 32, 256>}]} {
    %c0 = arith.constant 0 : index
    %c0_0 = arith.constant 0 : index
    %0 = vector.load %arg4[%c0, %c0_0] : memref<1x256xi32, #tpu.memory_space<vmem>>, vector<1x256xi32>
    %cst = arith.constant 0.000000e+00 : f32
    %1 = vector.broadcast %cst : f32 to vector<32x256xf32>
    %c0_1 = arith.constant 0 : index
    %c0_2 = arith.constant 0 : index
    %c0_3 = arith.constant 0 : index
    %2 = vector.load %arg1[%c0_1, %c0_2, %c0_3] : memref<1x64x640xbf16, #tpu.memory_space<vmem>>, vector<1x64x256xbf16>
    %3 = vector.shape_cast %2 : vector<1x64x256xbf16> to vector<64x256xbf16>
    %c0_4 = arith.constant 0 : index
    %c0_5 = arith.constant 0 : index
    %c64 = arith.constant 64 : index
    %4 = vector.load %arg1[%c0_4, %c0_5, %c64] : memref<1x64x640xbf16, #tpu.memory_space<vmem>>, vector<1x64x256xbf16>
    %5 = vector.shape_cast %4 : vector<1x64x256xbf16> to vector<64x256xbf16>
    %c0_6 = arith.constant 0 : index
    %c0_7 = arith.constant 0 : index
    %c128 = arith.constant 128 : index
    %6 = vector.load %arg1[%c0_6, %c0_7, %c128] : memref<1x64x640xbf16, #tpu.memory_space<vmem>>, vector<1x64x256xbf16>
    %7 = vector.shape_cast %6 : vector<1x64x256xbf16> to vector<64x256xbf16>
    %c0_8 = arith.constant 0 : index
    %c0_9 = arith.constant 0 : index
    %c192 = arith.constant 192 : index
    %8 = vector.load %arg1[%c0_8, %c0_9, %c192] : memref<1x64x640xbf16, #tpu.memory_space<vmem>>, vector<1x64x256xbf16>
    %9 = vector.shape_cast %8 : vector<1x64x256xbf16> to vector<64x256xbf16>
    %c0_10 = arith.constant 0 : index
    %c0_11 = arith.constant 0 : index
    %c256 = arith.constant 256 : index
    %10 = vector.load %arg1[%c0_10, %c0_11, %c256] : memref<1x64x640xbf16, #tpu.memory_space<vmem>>, vector<1x64x256xbf16>
    %11 = vector.shape_cast %10 : vector<1x64x256xbf16> to vector<64x256xbf16>
    %12 = tpu.concatenate %3, %5, %7, %9, %11 in 0 : vector<64x256xbf16>, vector<64x256xbf16>, vector<64x256xbf16>, vector<64x256xbf16>, vector<64x256xbf16> -> vector<320x256xbf16>
    %c0_12 = arith.constant 0 : index
    %c0_13 = arith.constant 0 : index
    %c0_14 = arith.constant 0 : index
    %13 = vector.load %arg2[%c0_12, %c0_13, %c0_14] : memref<5x32x320xbf16, #tpu.memory_space<vmem>>, vector<1x32x320xbf16>
    %14 = vector.shape_cast %13 : vector<1x32x320xbf16> to vector<32x320xbf16>
    %cst_15 = arith.constant dense<0.000000e+00> : vector<32x256xf32>
    %15 = tpu.matmul %14, %12, %cst_15 {dimension_numbers = #tpu.dot_dimension_numbers<[1], [0], [0], [1], [0, 0, 1, 1], [], []>} : vector<32x320xbf16>, vector<320x256xbf16>, vector<32x256xf32> -> vector<32x256xf32>
    %c8_i32 = arith.constant 8 : i32
    %16 = vector.broadcast %c8_i32 : i32 to vector<1x256xi32>
    %17 = arith.cmpi sge, %0, %16 : vector<1x256xi32>
    %c24_i32 = arith.constant 24 : i32
    %18 = vector.broadcast %c24_i32 : i32 to vector<1x256xi32>
    %19 = arith.cmpi slt, %0, %18 : vector<1x256xi32>
    %20 = arith.andi %17, %19 : vector<1x256xi1>
    %cst_16 = arith.constant 0.000000e+00 : f32
    %21 = vector.shape_cast %20 : vector<1x256xi1> to vector<1x256xi1>
    %22 = vector.broadcast %21 : vector<1x256xi1> to vector<32x256xi1>
    %23 = vector.broadcast %cst_16 : f32 to vector<32x256xf32>
    %24 = arith.select %22, %15, %23 : vector<32x256xi1>, vector<32x256xf32>
    %25 = arith.addf %1, %24 : vector<32x256xf32>
    %c0_17 = arith.constant 0 : index
    %c0_18 = arith.constant 0 : index
    %c4 = arith.constant 4 : index
    %26 = vector.load %arg1[%c0_17, %c0_18, %c4] : memref<1x64x640xbf16, #tpu.memory_space<vmem>>, vector<1x64x256xbf16>
    %27 = vector.shape_cast %26 : vector<1x64x256xbf16> to vector<64x256xbf16>
    %c0_19 = arith.constant 0 : index
    %c0_20 = arith.constant 0 : index
    %c68 = arith.constant 68 : index
    %28 = vector.load %arg1[%c0_19, %c0_20, %c68] : memref<1x64x640xbf16, #tpu.memory_space<vmem>>, vector<1x64x256xbf16>
    %29 = vector.shape_cast %28 : vector<1x64x256xbf16> to vector<64x256xbf16>
    %c0_21 = arith.constant 0 : index
    %c0_22 = arith.constant 0 : index
    %c132 = arith.constant 132 : index
    %30 = vector.load %arg1[%c0_21, %c0_22, %c132] : memref<1x64x640xbf16, #tpu.memory_space<vmem>>, vector<1x64x256xbf16>
    %31 = vector.shape_cast %30 : vector<1x64x256xbf16> to vector<64x256xbf16>
    %c0_23 = arith.constant 0 : index
    %c0_24 = arith.constant 0 : index
    %c196 = arith.constant 196 : index
    %32 = vector.load %arg1[%c0_23, %c0_24, %c196] : memref<1x64x640xbf16, #tpu.memory_space<vmem>>, vector<1x64x256xbf16>
    %33 = vector.shape_cast %32 : vector<1x64x256xbf16> to vector<64x256xbf16>
    %c0_25 = arith.constant 0 : index
    %c0_26 = arith.constant 0 : index
    %c260 = arith.constant 260 : index
    %34 = vector.load %arg1[%c0_25, %c0_26, %c260] : memref<1x64x640xbf16, #tpu.memory_space<vmem>>, vector<1x64x256xbf16>
    %35 = vector.shape_cast %34 : vector<1x64x256xbf16> to vector<64x256xbf16>
    %36 = tpu.concatenate %27, %29, %31, %33, %35 in 0 : vector<64x256xbf16>, vector<64x256xbf16>, vector<64x256xbf16>, vector<64x256xbf16>, vector<64x256xbf16> -> vector<320x256xbf16>
    %c1 = arith.constant 1 : index
    %c0_27 = arith.constant 0 : index
    %c0_28 = arith.constant 0 : index
    %37 = vector.load %arg2[%c1, %c0_27, %c0_28] : memref<5x32x320xbf16, #tpu.memory_space<vmem>>, vector<1x32x320xbf16>
    %38 = vector.shape_cast %37 : vector<1x32x320xbf16> to vector<32x320xbf16>
    %cst_29 = arith.constant dense<0.000000e+00> : vector<32x256xf32>
    %39 = tpu.matmul %38, %36, %cst_29 {dimension_numbers = #tpu.dot_dimension_numbers<[1], [0], [0], [1], [0, 0, 1, 1], [], []>} : vector<32x320xbf16>, vector<320x256xbf16>, vector<32x256xf32> -> vector<32x256xf32>
    %c4_i32 = arith.constant 4 : i32
    %40 = vector.broadcast %c4_i32 : i32 to vector<1x256xi32>
    %41 = arith.cmpi sge, %0, %40 : vector<1x256xi32>
    %c20_i32 = arith.constant 20 : i32
    %42 = vector.broadcast %c20_i32 : i32 to vector<1x256xi32>
    %43 = arith.cmpi slt, %0, %42 : vector<1x256xi32>
    %44 = arith.andi %41, %43 : vector<1x256xi1>
    %cst_30 = arith.constant 0.000000e+00 : f32
    %45 = vector.shape_cast %44 : vector<1x256xi1> to vector<1x256xi1>
    %46 = vector.broadcast %45 : vector<1x256xi1> to vector<32x256xi1>
    %47 = vector.broadcast %cst_30 : f32 to vector<32x256xf32>
    %48 = arith.select %46, %39, %47 : vector<32x256xi1>, vector<32x256xf32>
    %49 = arith.addf %25, %48 : vector<32x256xf32>
    %c0_31 = arith.constant 0 : index
    %c0_32 = arith.constant 0 : index
    %c8 = arith.constant 8 : index
    %50 = vector.load %arg1[%c0_31, %c0_32, %c8] : memref<1x64x640xbf16, #tpu.memory_space<vmem>>, vector<1x64x256xbf16>
    %51 = vector.shape_cast %50 : vector<1x64x256xbf16> to vector<64x256xbf16>
    %c0_33 = arith.constant 0 : index
    %c0_34 = arith.constant 0 : index
    %c72 = arith.constant 72 : index
    %52 = vector.load %arg1[%c0_33, %c0_34, %c72] : memref<1x64x640xbf16, #tpu.memory_space<vmem>>, vector<1x64x256xbf16>
    %53 = vector.shape_cast %52 : vector<1x64x256xbf16> to vector<64x256xbf16>
    %c0_35 = arith.constant 0 : index
    %c0_36 = arith.constant 0 : index
    %c136 = arith.constant 136 : index
    %54 = vector.load %arg1[%c0_35, %c0_36, %c136] : memref<1x64x640xbf16, #tpu.memory_space<vmem>>, vector<1x64x256xbf16>
    %55 = vector.shape_cast %54 : vector<1x64x256xbf16> to vector<64x256xbf16>
    %c0_37 = arith.constant 0 : index
    %c0_38 = arith.constant 0 : index
    %c200 = arith.constant 200 : index
    %56 = vector.load %arg1[%c0_37, %c0_38, %c200] : memref<1x64x640xbf16, #tpu.memory_space<vmem>>, vector<1x64x256xbf16>
    %57 = vector.shape_cast %56 : vector<1x64x256xbf16> to vector<64x256xbf16>
    %c0_39 = arith.constant 0 : index
    %c0_40 = arith.constant 0 : index
    %c264 = arith.constant 264 : index
    %58 = vector.load %arg1[%c0_39, %c0_40, %c264] : memref<1x64x640xbf16, #tpu.memory_space<vmem>>, vector<1x64x256xbf16>
    %59 = vector.shape_cast %58 : vector<1x64x256xbf16> to vector<64x256xbf16>
    %60 = tpu.concatenate %51, %53, %55, %57, %59 in 0 : vector<64x256xbf16>, vector<64x256xbf16>, vector<64x256xbf16>, vector<64x256xbf16>, vector<64x256xbf16> -> vector<320x256xbf16>
    %c2 = arith.constant 2 : index
    %c0_41 = arith.constant 0 : index
    %c0_42 = arith.constant 0 : index
    %61 = vector.load %arg2[%c2, %c0_41, %c0_42] : memref<5x32x320xbf16, #tpu.memory_space<vmem>>, vector<1x32x320xbf16>
    %62 = vector.shape_cast %61 : vector<1x32x320xbf16> to vector<32x320xbf16>
    %cst_43 = arith.constant dense<0.000000e+00> : vector<32x256xf32>
    %63 = tpu.matmul %62, %60, %cst_43 {dimension_numbers = #tpu.dot_dimension_numbers<[1], [0], [0], [1], [0, 0, 1, 1], [], []>} : vector<32x320xbf16>, vector<320x256xbf16>, vector<32x256xf32> -> vector<32x256xf32>
    %64 = arith.addf %49, %63 : vector<32x256xf32>
    %c0_44 = arith.constant 0 : index
    %c0_45 = arith.constant 0 : index
    %c12 = arith.constant 12 : index
    %65 = vector.load %arg1[%c0_44, %c0_45, %c12] : memref<1x64x640xbf16, #tpu.memory_space<vmem>>, vector<1x64x256xbf16>
    %66 = vector.shape_cast %65 : vector<1x64x256xbf16> to vector<64x256xbf16>
    %c0_46 = arith.constant 0 : index
    %c0_47 = arith.constant 0 : index
    %c76 = arith.constant 76 : index
    %67 = vector.load %arg1[%c0_46, %c0_47, %c76] : memref<1x64x640xbf16, #tpu.memory_space<vmem>>, vector<1x64x256xbf16>
    %68 = vector.shape_cast %67 : vector<1x64x256xbf16> to vector<64x256xbf16>
    %c0_48 = arith.constant 0 : index
    %c0_49 = arith.constant 0 : index
    %c140 = arith.constant 140 : index
    %69 = vector.load %arg1[%c0_48, %c0_49, %c140] : memref<1x64x640xbf16, #tpu.memory_space<vmem>>, vector<1x64x256xbf16>
    %70 = vector.shape_cast %69 : vector<1x64x256xbf16> to vector<64x256xbf16>
    %c0_50 = arith.constant 0 : index
    %c0_51 = arith.constant 0 : index
    %c204 = arith.constant 204 : index
    %71 = vector.load %arg1[%c0_50, %c0_51, %c204] : memref<1x64x640xbf16, #tpu.memory_space<vmem>>, vector<1x64x256xbf16>
    %72 = vector.shape_cast %71 : vector<1x64x256xbf16> to vector<64x256xbf16>
    %c0_52 = arith.constant 0 : index
    %c0_53 = arith.constant 0 : index
    %c268 = arith.constant 268 : index
    %73 = vector.load %arg1[%c0_52, %c0_53, %c268] : memref<1x64x640xbf16, #tpu.memory_space<vmem>>, vector<1x64x256xbf16>
    %74 = vector.shape_cast %73 : vector<1x64x256xbf16> to vector<64x256xbf16>
    %75 = tpu.concatenate %66, %68, %70, %72, %74 in 0 : vector<64x256xbf16>, vector<64x256xbf16>, vector<64x256xbf16>, vector<64x256xbf16>, vector<64x256xbf16> -> vector<320x256xbf16>
    %c3 = arith.constant 3 : index
    %c0_54 = arith.constant 0 : index
    %c0_55 = arith.constant 0 : index
    %76 = vector.load %arg2[%c3, %c0_54, %c0_55] : memref<5x32x320xbf16, #tpu.memory_space<vmem>>, vector<1x32x320xbf16>
    %77 = vector.shape_cast %76 : vector<1x32x320xbf16> to vector<32x320xbf16>
    %cst_56 = arith.constant dense<0.000000e+00> : vector<32x256xf32>
    %78 = tpu.matmul %77, %75, %cst_56 {dimension_numbers = #tpu.dot_dimension_numbers<[1], [0], [0], [1], [0, 0, 1, 1], [], []>} : vector<32x320xbf16>, vector<320x256xbf16>, vector<32x256xf32> -> vector<32x256xf32>
    %c-4_i32 = arith.constant -4 : i32
    %79 = vector.broadcast %c-4_i32 : i32 to vector<1x256xi32>
    %80 = arith.cmpi sge, %0, %79 : vector<1x256xi32>
    %c12_i32 = arith.constant 12 : i32
    %81 = vector.broadcast %c12_i32 : i32 to vector<1x256xi32>
    %82 = arith.cmpi slt, %0, %81 : vector<1x256xi32>
    %83 = arith.andi %80, %82 : vector<1x256xi1>
    %cst_57 = arith.constant 0.000000e+00 : f32
    %84 = vector.shape_cast %83 : vector<1x256xi1> to vector<1x256xi1>
    %85 = vector.broadcast %84 : vector<1x256xi1> to vector<32x256xi1>
    %86 = vector.broadcast %cst_57 : f32 to vector<32x256xf32>
    %87 = arith.select %85, %78, %86 : vector<32x256xi1>, vector<32x256xf32>
    %88 = arith.addf %64, %87 : vector<32x256xf32>
    %c0_58 = arith.constant 0 : index
    %c0_59 = arith.constant 0 : index
    %c16 = arith.constant 16 : index
    %89 = vector.load %arg1[%c0_58, %c0_59, %c16] : memref<1x64x640xbf16, #tpu.memory_space<vmem>>, vector<1x64x256xbf16>
    %90 = vector.shape_cast %89 : vector<1x64x256xbf16> to vector<64x256xbf16>
    %c0_60 = arith.constant 0 : index
    %c0_61 = arith.constant 0 : index
    %c80 = arith.constant 80 : index
    %91 = vector.load %arg1[%c0_60, %c0_61, %c80] : memref<1x64x640xbf16, #tpu.memory_space<vmem>>, vector<1x64x256xbf16>
    %92 = vector.shape_cast %91 : vector<1x64x256xbf16> to vector<64x256xbf16>
    %c0_62 = arith.constant 0 : index
    %c0_63 = arith.constant 0 : index
    %c144 = arith.constant 144 : index
    %93 = vector.load %arg1[%c0_62, %c0_63, %c144] : memref<1x64x640xbf16, #tpu.memory_space<vmem>>, vector<1x64x256xbf16>
    %94 = vector.shape_cast %93 : vector<1x64x256xbf16> to vector<64x256xbf16>
    %c0_64 = arith.constant 0 : index
    %c0_65 = arith.constant 0 : index
    %c208 = arith.constant 208 : index
    %95 = vector.load %arg1[%c0_64, %c0_65, %c208] : memref<1x64x640xbf16, #tpu.memory_space<vmem>>, vector<1x64x256xbf16>
    %96 = vector.shape_cast %95 : vector<1x64x256xbf16> to vector<64x256xbf16>
    %c0_66 = arith.constant 0 : index
    %c0_67 = arith.constant 0 : index
    %c272 = arith.constant 272 : index
    %97 = vector.load %arg1[%c0_66, %c0_67, %c272] : memref<1x64x640xbf16, #tpu.memory_space<vmem>>, vector<1x64x256xbf16>
    %98 = vector.shape_cast %97 : vector<1x64x256xbf16> to vector<64x256xbf16>
    %99 = tpu.concatenate %90, %92, %94, %96, %98 in 0 : vector<64x256xbf16>, vector<64x256xbf16>, vector<64x256xbf16>, vector<64x256xbf16>, vector<64x256xbf16> -> vector<320x256xbf16>
    %c4_68 = arith.constant 4 : index
    %c0_69 = arith.constant 0 : index
    %c0_70 = arith.constant 0 : index
    %100 = vector.load %arg2[%c4_68, %c0_69, %c0_70] : memref<5x32x320xbf16, #tpu.memory_space<vmem>>, vector<1x32x320xbf16>
    %101 = vector.shape_cast %100 : vector<1x32x320xbf16> to vector<32x320xbf16>
    %cst_71 = arith.constant dense<0.000000e+00> : vector<32x256xf32>
    %102 = tpu.matmul %101, %99, %cst_71 {dimension_numbers = #tpu.dot_dimension_numbers<[1], [0], [0], [1], [0, 0, 1, 1], [], []>} : vector<32x320xbf16>, vector<320x256xbf16>, vector<32x256xf32> -> vector<32x256xf32>
    %c-8_i32 = arith.constant -8 : i32
    %103 = vector.broadcast %c-8_i32 : i32 to vector<1x256xi32>
    %104 = arith.cmpi sge, %0, %103 : vector<1x256xi32>
    %c8_i32_72 = arith.constant 8 : i32
    %105 = vector.broadcast %c8_i32_72 : i32 to vector<1x256xi32>
    %106 = arith.cmpi slt, %0, %105 : vector<1x256xi32>
    %107 = arith.andi %104, %106 : vector<1x256xi1>
    %cst_73 = arith.constant 0.000000e+00 : f32
    %108 = vector.shape_cast %107 : vector<1x256xi1> to vector<1x256xi1>
    %109 = vector.broadcast %108 : vector<1x256xi1> to vector<32x256xi1>
    %110 = vector.broadcast %cst_73 : f32 to vector<32x256xf32>
    %111 = arith.select %109, %102, %110 : vector<32x256xi1>, vector<32x256xf32>
    %112 = arith.addf %88, %111 : vector<32x256xf32>
    %c0_74 = arith.constant 0 : index
    %c0_75 = arith.constant 0 : index
    %113 = vector.load %arg3[%c0_74, %c0_75] : memref<32x1xf32, #tpu.memory_space<vmem>>, vector<32x1xf32>
    %114 = vector.broadcast %113 : vector<32x1xf32> to vector<32x256xf32>
    %115 = arith.addf %112, %114 : vector<32x256xf32>
    %cst_76 = arith.constant 0.000000e+00 : f32
    %116 = vector.broadcast %cst_76 : f32 to vector<32x256xf32>
    %117 = arith.cmpf ogt, %115, %116 : vector<32x256xf32>
    %cst_77 = arith.constant 0.00999999977 : f32
    %118 = vector.broadcast %cst_77 : f32 to vector<32x256xf32>
    %119 = arith.mulf %118, %115 : vector<32x256xf32>
    %120 = arith.select %117, %115, %119 : vector<32x256xi1>, vector<32x256xf32>
    %121 = arith.truncf %120 : vector<32x256xf32> to vector<32x256xbf16>
    %c0_78 = arith.constant 0 : index
    %c0_79 = arith.constant 0 : index
    %c0_80 = arith.constant 0 : index
    %122 = vector.load %arg5[%c0_78, %c0_79, %c0_80] : memref<1x32x256xbf16, #tpu.memory_space<vmem>>, vector<1x32x256xbf16>
    %123 = vector.shape_cast %122 : vector<1x32x256xbf16> to vector<32x256xbf16>
    %124 = vector.shape_cast %121 : vector<32x256xbf16> to vector<1x32x256xbf16>
    tpu.vector_store %arg5[%c0_78, %c0_79, %c0_80], %124 {strides = array<i32>} : memref<1x32x256xbf16, #tpu.memory_space<vmem>>, vector<1x32x256xbf16>,
    return
  }
  func.func @transform_0(%arg0: i32) -> (i32, i32, i32) {
    %c0_i32 = arith.constant 0 : i32
    %c0_i32_0 = arith.constant 0 : i32
    %c0_i32_1 = arith.constant 0 : i32
    return %arg0, %c0_i32, %c0_i32_0 : i32, i32, i32
  }
  func.func @transform_1(%arg0: i32) -> (i32, i32, i32) {
    %c0_i32 = arith.constant 0 : i32
    %c0_i32_0 = arith.constant 0 : i32
    %c0_i32_1 = arith.constant 0 : i32
    %c0_i32_2 = arith.constant 0 : i32
    return %c0_i32, %c0_i32_0, %c0_i32_1 : i32, i32, i32
  }
  func.func @transform_2(%arg0: i32) -> (i32, i32) {
    %c0_i32 = arith.constant 0 : i32
    %c0_i32_0 = arith.constant 0 : i32
    %c0_i32_1 = arith.constant 0 : i32
    return %c0_i32, %c0_i32_0 : i32, i32
  }
  func.func @transform_3(%arg0: i32) -> (i32, i32) {
    %c0_i32 = arith.constant 0 : i32
    %c0_i32_0 = arith.constant 0 : i32
    %c0_i32_1 = arith.constant 0 : i32
    return %c0_i32, %c0_i32_0 : i32, i32
  }
  func.func @transform_4(%arg0: i32) -> (i32, i32, i32) {
    %c0_i32 = arith.constant 0 : i32
    %c0_i32_0 = arith.constant 0 : i32
    %c0_i32_1 = arith.constant 0 : i32
    return %arg0, %c0_i32, %c0_i32_0 : i32, i32, i32
  }
}

module attributes {stable_mosaic.version = 11 : i64} {
  func.func @_dilated_conv_kernel(%arg0: i32, %arg1: memref<1x32x768xbf16, #tpu.memory_space<vmem>>, %arg2: memref<3x16x96xbf16, #tpu.memory_space<vmem>>, %arg3: memref<16x1xf32, #tpu.memory_space<vmem>>, %arg4: memref<1x256xi32, #tpu.memory_space<vmem>>, %arg5: memref<1x16x256xbf16, #tpu.memory_space<vmem>>) attributes {dimension_semantics = [#tpu.dimension_semantics<parallel>], iteration_bounds = array<i64: 2>, scalar_prefetch = 0 : i64, scratch_operands = 0 : i64, tpu.core_type = #tpu.core_type<tc>, window_params = [{transform_indices = @transform_0, window_bounds = array<i64: 1, 32, 768>}, {pipeline_mode = #tpu.pipeline_mode<synchronous>, transform_indices = @transform_1, window_bounds = array<i64: 3, 16, 96>}, {pipeline_mode = #tpu.pipeline_mode<synchronous>, transform_indices = @transform_2, window_bounds = array<i64: 16, 1>}, {pipeline_mode = #tpu.pipeline_mode<synchronous>, transform_indices = @transform_3, window_bounds = array<i64: 1, 256>}, {transform_indices = @transform_4, window_bounds = array<i64: 1, 16, 256>}]} {
    %c0 = arith.constant 0 : index
    %c0_0 = arith.constant 0 : index
    %0 = vector.load %arg4[%c0, %c0_0] : memref<1x256xi32, #tpu.memory_space<vmem>>, vector<1x256xi32>
    %cst = arith.constant 0.000000e+00 : f32
    %1 = vector.broadcast %cst : f32 to vector<16x256xf32>
    %c0_1 = arith.constant 0 : index
    %c0_2 = arith.constant 0 : index
    %c0_3 = arith.constant 0 : index
    %2 = vector.load %arg1[%c0_1, %c0_2, %c0_3] : memref<1x32x768xbf16, #tpu.memory_space<vmem>>, vector<1x32x256xbf16>
    %3 = vector.shape_cast %2 : vector<1x32x256xbf16> to vector<32x256xbf16>
    %c0_4 = arith.constant 0 : index
    %c0_5 = arith.constant 0 : index
    %c192 = arith.constant 192 : index
    %4 = vector.load %arg1[%c0_4, %c0_5, %c192] : memref<1x32x768xbf16, #tpu.memory_space<vmem>>, vector<1x32x256xbf16>
    %5 = vector.shape_cast %4 : vector<1x32x256xbf16> to vector<32x256xbf16>
    %c0_6 = arith.constant 0 : index
    %c0_7 = arith.constant 0 : index
    %c384 = arith.constant 384 : index
    %6 = vector.load %arg1[%c0_6, %c0_7, %c384] : memref<1x32x768xbf16, #tpu.memory_space<vmem>>, vector<1x32x256xbf16>
    %7 = vector.shape_cast %6 : vector<1x32x256xbf16> to vector<32x256xbf16>
    %8 = tpu.concatenate %3, %5, %7 in 0 : vector<32x256xbf16>, vector<32x256xbf16>, vector<32x256xbf16> -> vector<96x256xbf16>
    %c0_8 = arith.constant 0 : index
    %c0_9 = arith.constant 0 : index
    %c0_10 = arith.constant 0 : index
    %9 = vector.load %arg2[%c0_8, %c0_9, %c0_10] : memref<3x16x96xbf16, #tpu.memory_space<vmem>>, vector<1x16x96xbf16>
    %10 = vector.shape_cast %9 : vector<1x16x96xbf16> to vector<16x96xbf16>
    %cst_11 = arith.constant dense<0.000000e+00> : vector<16x256xf32>
    %11 = tpu.matmul %10, %8, %cst_11 {dimension_numbers = #tpu.dot_dimension_numbers<[1], [0], [0], [1], [0, 0, 1, 1], [], []>} : vector<16x96xbf16>, vector<96x256xbf16>, vector<16x256xf32> -> vector<16x256xf32>
    %c12_i32 = arith.constant 12 : i32
    %12 = vector.broadcast %c12_i32 : i32 to vector<1x256xi32>
    %13 = arith.cmpi sge, %0, %12 : vector<1x256xi32>
    %c28_i32 = arith.constant 28 : i32
    %14 = vector.broadcast %c28_i32 : i32 to vector<1x256xi32>
    %15 = arith.cmpi slt, %0, %14 : vector<1x256xi32>
    %16 = arith.andi %13, %15 : vector<1x256xi1>
    %cst_12 = arith.constant 0.000000e+00 : f32
    %17 = vector.shape_cast %16 : vector<1x256xi1> to vector<1x256xi1>
    %18 = vector.broadcast %17 : vector<1x256xi1> to vector<16x256xi1>
    %19 = vector.broadcast %cst_12 : f32 to vector<16x256xf32>
    %20 = arith.select %18, %11, %19 : vector<16x256xi1>, vector<16x256xf32>
    %21 = arith.addf %1, %20 : vector<16x256xf32>
    %c0_13 = arith.constant 0 : index
    %c0_14 = arith.constant 0 : index
    %c12 = arith.constant 12 : index
    %22 = vector.load %arg1[%c0_13, %c0_14, %c12] : memref<1x32x768xbf16, #tpu.memory_space<vmem>>, vector<1x32x256xbf16>
    %23 = vector.shape_cast %22 : vector<1x32x256xbf16> to vector<32x256xbf16>
    %c0_15 = arith.constant 0 : index
    %c0_16 = arith.constant 0 : index
    %c204 = arith.constant 204 : index
    %24 = vector.load %arg1[%c0_15, %c0_16, %c204] : memref<1x32x768xbf16, #tpu.memory_space<vmem>>, vector<1x32x256xbf16>
    %25 = vector.shape_cast %24 : vector<1x32x256xbf16> to vector<32x256xbf16>
    %c0_17 = arith.constant 0 : index
    %c0_18 = arith.constant 0 : index
    %c396 = arith.constant 396 : index
    %26 = vector.load %arg1[%c0_17, %c0_18, %c396] : memref<1x32x768xbf16, #tpu.memory_space<vmem>>, vector<1x32x256xbf16>
    %27 = vector.shape_cast %26 : vector<1x32x256xbf16> to vector<32x256xbf16>
    %28 = tpu.concatenate %23, %25, %27 in 0 : vector<32x256xbf16>, vector<32x256xbf16>, vector<32x256xbf16> -> vector<96x256xbf16>
    %c1 = arith.constant 1 : index
    %c0_19 = arith.constant 0 : index
    %c0_20 = arith.constant 0 : index
    %29 = vector.load %arg2[%c1, %c0_19, %c0_20] : memref<3x16x96xbf16, #tpu.memory_space<vmem>>, vector<1x16x96xbf16>
    %30 = vector.shape_cast %29 : vector<1x16x96xbf16> to vector<16x96xbf16>
    %cst_21 = arith.constant dense<0.000000e+00> : vector<16x256xf32>
    %31 = tpu.matmul %30, %28, %cst_21 {dimension_numbers = #tpu.dot_dimension_numbers<[1], [0], [0], [1], [0, 0, 1, 1], [], []>} : vector<16x96xbf16>, vector<96x256xbf16>, vector<16x256xf32> -> vector<16x256xf32>
    %32 = arith.addf %21, %31 : vector<16x256xf32>
    %c0_22 = arith.constant 0 : index
    %c0_23 = arith.constant 0 : index
    %c24 = arith.constant 24 : index
    %33 = vector.load %arg1[%c0_22, %c0_23, %c24] : memref<1x32x768xbf16, #tpu.memory_space<vmem>>, vector<1x32x256xbf16>
    %34 = vector.shape_cast %33 : vector<1x32x256xbf16> to vector<32x256xbf16>
    %c0_24 = arith.constant 0 : index
    %c0_25 = arith.constant 0 : index
    %c216 = arith.constant 216 : index
    %35 = vector.load %arg1[%c0_24, %c0_25, %c216] : memref<1x32x768xbf16, #tpu.memory_space<vmem>>, vector<1x32x256xbf16>
    %36 = vector.shape_cast %35 : vector<1x32x256xbf16> to vector<32x256xbf16>
    %c0_26 = arith.constant 0 : index
    %c0_27 = arith.constant 0 : index
    %c408 = arith.constant 408 : index
    %37 = vector.load %arg1[%c0_26, %c0_27, %c408] : memref<1x32x768xbf16, #tpu.memory_space<vmem>>, vector<1x32x256xbf16>
    %38 = vector.shape_cast %37 : vector<1x32x256xbf16> to vector<32x256xbf16>
    %39 = tpu.concatenate %34, %36, %38 in 0 : vector<32x256xbf16>, vector<32x256xbf16>, vector<32x256xbf16> -> vector<96x256xbf16>
    %c2 = arith.constant 2 : index
    %c0_28 = arith.constant 0 : index
    %c0_29 = arith.constant 0 : index
    %40 = vector.load %arg2[%c2, %c0_28, %c0_29] : memref<3x16x96xbf16, #tpu.memory_space<vmem>>, vector<1x16x96xbf16>
    %41 = vector.shape_cast %40 : vector<1x16x96xbf16> to vector<16x96xbf16>
    %cst_30 = arith.constant dense<0.000000e+00> : vector<16x256xf32>
    %42 = tpu.matmul %41, %39, %cst_30 {dimension_numbers = #tpu.dot_dimension_numbers<[1], [0], [0], [1], [0, 0, 1, 1], [], []>} : vector<16x96xbf16>, vector<96x256xbf16>, vector<16x256xf32> -> vector<16x256xf32>
    %c-12_i32 = arith.constant -12 : i32
    %43 = vector.broadcast %c-12_i32 : i32 to vector<1x256xi32>
    %44 = arith.cmpi sge, %0, %43 : vector<1x256xi32>
    %c4_i32 = arith.constant 4 : i32
    %45 = vector.broadcast %c4_i32 : i32 to vector<1x256xi32>
    %46 = arith.cmpi slt, %0, %45 : vector<1x256xi32>
    %47 = arith.andi %44, %46 : vector<1x256xi1>
    %cst_31 = arith.constant 0.000000e+00 : f32
    %48 = vector.shape_cast %47 : vector<1x256xi1> to vector<1x256xi1>
    %49 = vector.broadcast %48 : vector<1x256xi1> to vector<16x256xi1>
    %50 = vector.broadcast %cst_31 : f32 to vector<16x256xf32>
    %51 = arith.select %49, %42, %50 : vector<16x256xi1>, vector<16x256xf32>
    %52 = arith.addf %32, %51 : vector<16x256xf32>
    %c0_32 = arith.constant 0 : index
    %c0_33 = arith.constant 0 : index
    %53 = vector.load %arg3[%c0_32, %c0_33] : memref<16x1xf32, #tpu.memory_space<vmem>>, vector<16x1xf32>
    %54 = vector.broadcast %53 : vector<16x1xf32> to vector<16x256xf32>
    %55 = arith.addf %52, %54 : vector<16x256xf32>
    %cst_34 = arith.constant 0.000000e+00 : f32
    %56 = vector.broadcast %cst_34 : f32 to vector<16x256xf32>
    %57 = arith.cmpf ogt, %55, %56 : vector<16x256xf32>
    %cst_35 = arith.constant 0.00999999977 : f32
    %58 = vector.broadcast %cst_35 : f32 to vector<16x256xf32>
    %59 = arith.mulf %58, %55 : vector<16x256xf32>
    %60 = arith.select %57, %55, %59 : vector<16x256xi1>, vector<16x256xf32>
    %61 = arith.truncf %60 : vector<16x256xf32> to vector<16x256xbf16>
    %c0_36 = arith.constant 0 : index
    %c0_37 = arith.constant 0 : index
    %c0_38 = arith.constant 0 : index
    %62 = vector.load %arg5[%c0_36, %c0_37, %c0_38] : memref<1x16x256xbf16, #tpu.memory_space<vmem>>, vector<1x16x256xbf16>
    %63 = vector.shape_cast %62 : vector<1x16x256xbf16> to vector<16x256xbf16>
    %64 = vector.shape_cast %61 : vector<16x256xbf16> to vector<1x16x256xbf16>
    tpu.vector_store %arg5[%c0_36, %c0_37, %c0_38], %64 {strides = array<i32>} : memref<1x16x256xbf16, #tpu.memory_space<vmem>>, vector<1x16x256xbf16>,
    return
  }
  func.func @transform_0(%arg0: i32) -> (i32, i32, i32) {
    %c0_i32 = arith.constant 0 : i32
    %c0_i32_0 = arith.constant 0 : i32
    %c0_i32_1 = arith.constant 0 : i32
    return %arg0, %c0_i32, %c0_i32_0 : i32, i32, i32
  }
  func.func @transform_1(%arg0: i32) -> (i32, i32, i32) {
    %c0_i32 = arith.constant 0 : i32
    %c0_i32_0 = arith.constant 0 : i32
    %c0_i32_1 = arith.constant 0 : i32
    %c0_i32_2 = arith.constant 0 : i32
    return %c0_i32, %c0_i32_0, %c0_i32_1 : i32, i32, i32
  }
  func.func @transform_2(%arg0: i32) -> (i32, i32) {
    %c0_i32 = arith.constant 0 : i32
    %c0_i32_0 = arith.constant 0 : i32
    %c0_i32_1 = arith.constant 0 : i32
    return %c0_i32, %c0_i32_0 : i32, i32
  }
  func.func @transform_3(%arg0: i32) -> (i32, i32) {
    %c0_i32 = arith.constant 0 : i32
    %c0_i32_0 = arith.constant 0 : i32
    %c0_i32_1 = arith.constant 0 : i32
    return %c0_i32, %c0_i32_0 : i32, i32
  }
  func.func @transform_4(%arg0: i32) -> (i32, i32, i32) {
    %c0_i32 = arith.constant 0 : i32
    %c0_i32_0 = arith.constant 0 : i32
    %c0_i32_1 = arith.constant 0 : i32
    return %arg0, %c0_i32, %c0_i32_0 : i32, i32, i32
  }
}

module attributes {stable_mosaic.version = 11 : i64} {
  func.func @_dilated_conv_kernel(%arg0: i32, %arg1: memref<1x16x1152xbf16, #tpu.memory_space<vmem>>, %arg2: memref<3x8x48xbf16, #tpu.memory_space<vmem>>, %arg3: memref<8x1xf32, #tpu.memory_space<vmem>>, %arg4: memref<1x256xi32, #tpu.memory_space<vmem>>, %arg5: memref<1x8x256xbf16, #tpu.memory_space<vmem>>) attributes {dimension_semantics = [#tpu.dimension_semantics<parallel>], iteration_bounds = array<i64: 2>, scalar_prefetch = 0 : i64, scratch_operands = 0 : i64, tpu.core_type = #tpu.core_type<tc>, window_params = [{transform_indices = @transform_0, window_bounds = array<i64: 1, 16, 1152>}, {pipeline_mode = #tpu.pipeline_mode<synchronous>, transform_indices = @transform_1, window_bounds = array<i64: 3, 8, 48>}, {pipeline_mode = #tpu.pipeline_mode<synchronous>, transform_indices = @transform_2, window_bounds = array<i64: 8, 1>}, {pipeline_mode = #tpu.pipeline_mode<synchronous>, transform_indices = @transform_3, window_bounds = array<i64: 1, 256>}, {transform_indices = @transform_4, window_bounds = array<i64: 1, 8, 256>}]} {
    %c0 = arith.constant 0 : index
    %c0_0 = arith.constant 0 : index
    %0 = vector.load %arg4[%c0, %c0_0] : memref<1x256xi32, #tpu.memory_space<vmem>>, vector<1x256xi32>
    %cst = arith.constant 0.000000e+00 : f32
    %1 = vector.broadcast %cst : f32 to vector<8x256xf32>
    %c0_1 = arith.constant 0 : index
    %c0_2 = arith.constant 0 : index
    %c0_3 = arith.constant 0 : index
    %2 = vector.load %arg1[%c0_1, %c0_2, %c0_3] : memref<1x16x1152xbf16, #tpu.memory_space<vmem>>, vector<1x16x256xbf16>
    %3 = vector.shape_cast %2 : vector<1x16x256xbf16> to vector<16x256xbf16>
    %c0_4 = arith.constant 0 : index
    %c0_5 = arith.constant 0 : index
    %c384 = arith.constant 384 : index
    %4 = vector.load %arg1[%c0_4, %c0_5, %c384] : memref<1x16x1152xbf16, #tpu.memory_space<vmem>>, vector<1x16x256xbf16>
    %5 = vector.shape_cast %4 : vector<1x16x256xbf16> to vector<16x256xbf16>
    %c0_6 = arith.constant 0 : index
    %c0_7 = arith.constant 0 : index
    %c768 = arith.constant 768 : index
    %6 = vector.load %arg1[%c0_6, %c0_7, %c768] : memref<1x16x1152xbf16, #tpu.memory_space<vmem>>, vector<1x16x256xbf16>
    %7 = vector.shape_cast %6 : vector<1x16x256xbf16> to vector<16x256xbf16>
    %8 = tpu.concatenate %3, %5, %7 in 0 : vector<16x256xbf16>, vector<16x256xbf16>, vector<16x256xbf16> -> vector<48x256xbf16>
    %c0_8 = arith.constant 0 : index
    %c0_9 = arith.constant 0 : index
    %c0_10 = arith.constant 0 : index
    %9 = vector.load %arg2[%c0_8, %c0_9, %c0_10] : memref<3x8x48xbf16, #tpu.memory_space<vmem>>, vector<1x8x48xbf16>
    %10 = vector.shape_cast %9 : vector<1x8x48xbf16> to vector<8x48xbf16>
    %cst_11 = arith.constant dense<0.000000e+00> : vector<8x256xf32>
    %11 = tpu.matmul %10, %8, %cst_11 {dimension_numbers = #tpu.dot_dimension_numbers<[1], [0], [0], [1], [0, 0, 1, 1], [], []>} : vector<8x48xbf16>, vector<48x256xbf16>, vector<8x256xf32> -> vector<8x256xf32>
    %c24_i32 = arith.constant 24 : i32
    %12 = vector.broadcast %c24_i32 : i32 to vector<1x256xi32>
    %13 = arith.cmpi sge, %0, %12 : vector<1x256xi32>
    %c40_i32 = arith.constant 40 : i32
    %14 = vector.broadcast %c40_i32 : i32 to vector<1x256xi32>
    %15 = arith.cmpi slt, %0, %14 : vector<1x256xi32>
    %16 = arith.andi %13, %15 : vector<1x256xi1>
    %cst_12 = arith.constant 0.000000e+00 : f32
    %17 = vector.shape_cast %16 : vector<1x256xi1> to vector<1x256xi1>
    %18 = vector.broadcast %17 : vector<1x256xi1> to vector<8x256xi1>
    %19 = vector.broadcast %cst_12 : f32 to vector<8x256xf32>
    %20 = arith.select %18, %11, %19 : vector<8x256xi1>, vector<8x256xf32>
    %21 = arith.addf %1, %20 : vector<8x256xf32>
    %c0_13 = arith.constant 0 : index
    %c0_14 = arith.constant 0 : index
    %c24 = arith.constant 24 : index
    %22 = vector.load %arg1[%c0_13, %c0_14, %c24] : memref<1x16x1152xbf16, #tpu.memory_space<vmem>>, vector<1x16x256xbf16>
    %23 = vector.shape_cast %22 : vector<1x16x256xbf16> to vector<16x256xbf16>
    %c0_15 = arith.constant 0 : index
    %c0_16 = arith.constant 0 : index
    %c408 = arith.constant 408 : index
    %24 = vector.load %arg1[%c0_15, %c0_16, %c408] : memref<1x16x1152xbf16, #tpu.memory_space<vmem>>, vector<1x16x256xbf16>
    %25 = vector.shape_cast %24 : vector<1x16x256xbf16> to vector<16x256xbf16>
    %c0_17 = arith.constant 0 : index
    %c0_18 = arith.constant 0 : index
    %c792 = arith.constant 792 : index
    %26 = vector.load %arg1[%c0_17, %c0_18, %c792] : memref<1x16x1152xbf16, #tpu.memory_space<vmem>>, vector<1x16x256xbf16>
    %27 = vector.shape_cast %26 : vector<1x16x256xbf16> to vector<16x256xbf16>
    %28 = tpu.concatenate %23, %25, %27 in 0 : vector<16x256xbf16>, vector<16x256xbf16>, vector<16x256xbf16> -> vector<48x256xbf16>
    %c1 = arith.constant 1 : index
    %c0_19 = arith.constant 0 : index
    %c0_20 = arith.constant 0 : index
    %29 = vector.load %arg2[%c1, %c0_19, %c0_20] : memref<3x8x48xbf16, #tpu.memory_space<vmem>>, vector<1x8x48xbf16>
    %30 = vector.shape_cast %29 : vector<1x8x48xbf16> to vector<8x48xbf16>
    %cst_21 = arith.constant dense<0.000000e+00> : vector<8x256xf32>
    %31 = tpu.matmul %30, %28, %cst_21 {dimension_numbers = #tpu.dot_dimension_numbers<[1], [0], [0], [1], [0, 0, 1, 1], [], []>} : vector<8x48xbf16>, vector<48x256xbf16>, vector<8x256xf32> -> vector<8x256xf32>
    %32 = arith.addf %21, %31 : vector<8x256xf32>
    %c0_22 = arith.constant 0 : index
    %c0_23 = arith.constant 0 : index
    %c48 = arith.constant 48 : index
    %33 = vector.load %arg1[%c0_22, %c0_23, %c48] : memref<1x16x1152xbf16, #tpu.memory_space<vmem>>, vector<1x16x256xbf16>
    %34 = vector.shape_cast %33 : vector<1x16x256xbf16> to vector<16x256xbf16>
    %c0_24 = arith.constant 0 : index
    %c0_25 = arith.constant 0 : index
    %c432 = arith.constant 432 : index
    %35 = vector.load %arg1[%c0_24, %c0_25, %c432] : memref<1x16x1152xbf16, #tpu.memory_space<vmem>>, vector<1x16x256xbf16>
    %36 = vector.shape_cast %35 : vector<1x16x256xbf16> to vector<16x256xbf16>
    %c0_26 = arith.constant 0 : index
    %c0_27 = arith.constant 0 : index
    %c816 = arith.constant 816 : index
    %37 = vector.load %arg1[%c0_26, %c0_27, %c816] : memref<1x16x1152xbf16, #tpu.memory_space<vmem>>, vector<1x16x256xbf16>
    %38 = vector.shape_cast %37 : vector<1x16x256xbf16> to vector<16x256xbf16>
    %39 = tpu.concatenate %34, %36, %38 in 0 : vector<16x256xbf16>, vector<16x256xbf16>, vector<16x256xbf16> -> vector<48x256xbf16>
    %c2 = arith.constant 2 : index
    %c0_28 = arith.constant 0 : index
    %c0_29 = arith.constant 0 : index
    %40 = vector.load %arg2[%c2, %c0_28, %c0_29] : memref<3x8x48xbf16, #tpu.memory_space<vmem>>, vector<1x8x48xbf16>
    %41 = vector.shape_cast %40 : vector<1x8x48xbf16> to vector<8x48xbf16>
    %cst_30 = arith.constant dense<0.000000e+00> : vector<8x256xf32>
    %42 = tpu.matmul %41, %39, %cst_30 {dimension_numbers = #tpu.dot_dimension_numbers<[1], [0], [0], [1], [0, 0, 1, 1], [], []>} : vector<8x48xbf16>, vector<48x256xbf16>, vector<8x256xf32> -> vector<8x256xf32>
    %c-24_i32 = arith.constant -24 : i32
    %43 = vector.broadcast %c-24_i32 : i32 to vector<1x256xi32>
    %44 = arith.cmpi sge, %0, %43 : vector<1x256xi32>
    %c-8_i32 = arith.constant -8 : i32
    %45 = vector.broadcast %c-8_i32 : i32 to vector<1x256xi32>
    %46 = arith.cmpi slt, %0, %45 : vector<1x256xi32>
    %47 = arith.andi %44, %46 : vector<1x256xi1>
    %cst_31 = arith.constant 0.000000e+00 : f32
    %48 = vector.shape_cast %47 : vector<1x256xi1> to vector<1x256xi1>
    %49 = vector.broadcast %48 : vector<1x256xi1> to vector<8x256xi1>
    %50 = vector.broadcast %cst_31 : f32 to vector<8x256xf32>
    %51 = arith.select %49, %42, %50 : vector<8x256xi1>, vector<8x256xf32>
    %52 = arith.addf %32, %51 : vector<8x256xf32>
    %c0_32 = arith.constant 0 : index
    %c0_33 = arith.constant 0 : index
    %53 = vector.load %arg3[%c0_32, %c0_33] : memref<8x1xf32, #tpu.memory_space<vmem>>, vector<8x1xf32>
    %54 = vector.broadcast %53 : vector<8x1xf32> to vector<8x256xf32>
    %55 = arith.addf %52, %54 : vector<8x256xf32>
    %cst_34 = arith.constant 0.000000e+00 : f32
    %56 = vector.broadcast %cst_34 : f32 to vector<8x256xf32>
    %57 = arith.cmpf ogt, %55, %56 : vector<8x256xf32>
    %cst_35 = arith.constant 0.00999999977 : f32
    %58 = vector.broadcast %cst_35 : f32 to vector<8x256xf32>
    %59 = arith.mulf %58, %55 : vector<8x256xf32>
    %60 = arith.select %57, %55, %59 : vector<8x256xi1>, vector<8x256xf32>
    %61 = arith.truncf %60 : vector<8x256xf32> to vector<8x256xbf16>
    %c0_36 = arith.constant 0 : index
    %c0_37 = arith.constant 0 : index
    %c0_38 = arith.constant 0 : index
    %62 = vector.load %arg5[%c0_36, %c0_37, %c0_38] : memref<1x8x256xbf16, #tpu.memory_space<vmem>>, vector<1x8x256xbf16>
    %63 = vector.shape_cast %62 : vector<1x8x256xbf16> to vector<8x256xbf16>
    %64 = vector.shape_cast %61 : vector<8x256xbf16> to vector<1x8x256xbf16>
    tpu.vector_store %arg5[%c0_36, %c0_37, %c0_38], %64 {strides = array<i32>} : memref<1x8x256xbf16, #tpu.memory_space<vmem>>, vector<1x8x256xbf16>,
    return
  }
  func.func @transform_0(%arg0: i32) -> (i32, i32, i32) {
    %c0_i32 = arith.constant 0 : i32
    %c0_i32_0 = arith.constant 0 : i32
    %c0_i32_1 = arith.constant 0 : i32
    return %arg0, %c0_i32, %c0_i32_0 : i32, i32, i32
  }
  func.func @transform_1(%arg0: i32) -> (i32, i32, i32) {
    %c0_i32 = arith.constant 0 : i32
    %c0_i32_0 = arith.constant 0 : i32
    %c0_i32_1 = arith.constant 0 : i32
    %c0_i32_2 = arith.constant 0 : i32
    return %c0_i32, %c0_i32_0, %c0_i32_1 : i32, i32, i32
  }
  func.func @transform_2(%arg0: i32) -> (i32, i32) {
    %c0_i32 = arith.constant 0 : i32
    %c0_i32_0 = arith.constant 0 : i32
    %c0_i32_1 = arith.constant 0 : i32
    return %c0_i32, %c0_i32_0 : i32, i32
  }
  func.func @transform_3(%arg0: i32) -> (i32, i32) {
    %c0_i32 = arith.constant 0 : i32
    %c0_i32_0 = arith.constant 0 : i32
    %c0_i32_1 = arith.constant 0 : i32
    return %c0_i32, %c0_i32_0 : i32, i32
  }
  func.func @transform_4(%arg0: i32) -> (i32, i32, i32) {
    %c0_i32 = arith.constant 0 : i32
    %c0_i32_0 = arith.constant 0 : i32
    %c0_i32_1 = arith.constant 0 : i32
    return %arg0, %c0_i32, %c0_i32_0 : i32, i32, i32
  }
}

module attributes {stable_mosaic.version = 11 : i64} {
  func.func @_stacked_conv_kernel(%arg0: i32, %arg1: memref<1x72x256xbf16, #tpu.memory_space<vmem>>, %arg2: memref<4x72xbf16, #tpu.memory_space<vmem>>, %arg3: memref<4x1xf32, #tpu.memory_space<vmem>>, %arg4: memref<1x4x256xbf16, #tpu.memory_space<vmem>>) attributes {dimension_semantics = [#tpu.dimension_semantics<parallel>], iteration_bounds = array<i64: 2>, scalar_prefetch = 0 : i64, scratch_operands = 0 : i64, tpu.core_type = #tpu.core_type<tc>, window_params = [{transform_indices = @transform_0, window_bounds = array<i64: 1, 72, 256>}, {pipeline_mode = #tpu.pipeline_mode<synchronous>, transform_indices = @transform_1, window_bounds = array<i64: 4, 72>}, {pipeline_mode = #tpu.pipeline_mode<synchronous>, transform_indices = @transform_2, window_bounds = array<i64: 4, 1>}, {transform_indices = @transform_3, window_bounds = array<i64: 1, 4, 256>}]} {
    %c0 = arith.constant 0 : index
    %c0_0 = arith.constant 0 : index
    %0 = vector.load %arg2[%c0, %c0_0] : memref<4x72xbf16, #tpu.memory_space<vmem>>, vector<4x72xbf16>
    %c0_1 = arith.constant 0 : index
    %c0_2 = arith.constant 0 : index
    %c0_3 = arith.constant 0 : index
    %1 = vector.load %arg1[%c0_1, %c0_2, %c0_3] : memref<1x72x256xbf16, #tpu.memory_space<vmem>>, vector<1x72x256xbf16>
    %2 = vector.shape_cast %1 : vector<1x72x256xbf16> to vector<72x256xbf16>
    %cst = arith.constant dense<0.000000e+00> : vector<4x256xf32>
    %3 = tpu.matmul %0, %2, %cst {dimension_numbers = #tpu.dot_dimension_numbers<[1], [0], [0], [1], [0, 0, 1, 1], [], []>} : vector<4x72xbf16>, vector<72x256xbf16>, vector<4x256xf32> -> vector<4x256xf32>
    %c0_4 = arith.constant 0 : index
    %c0_5 = arith.constant 0 : index
    %4 = vector.load %arg3[%c0_4, %c0_5] : memref<4x1xf32, #tpu.memory_space<vmem>>, vector<4x1xf32>
    %5 = vector.broadcast %4 : vector<4x1xf32> to vector<4x256xf32>
    %6 = arith.addf %3, %5 : vector<4x256xf32>
    %cst_6 = arith.constant 0.000000e+00 : f32
    %7 = vector.broadcast %cst_6 : f32 to vector<4x256xf32>
    %8 = arith.cmpf ogt, %6, %7 : vector<4x256xf32>
    %cst_7 = arith.constant 0.00999999977 : f32
    %9 = vector.broadcast %cst_7 : f32 to vector<4x256xf32>
    %10 = arith.mulf %9, %6 : vector<4x256xf32>
    %11 = arith.select %8, %6, %10 : vector<4x256xi1>, vector<4x256xf32>
    %12 = arith.truncf %11 : vector<4x256xf32> to vector<4x256xbf16>
    %c0_8 = arith.constant 0 : index
    %c0_9 = arith.constant 0 : index
    %c0_10 = arith.constant 0 : index
    %13 = vector.load %arg4[%c0_8, %c0_9, %c0_10] : memref<1x4x256xbf16, #tpu.memory_space<vmem>>, vector<1x4x256xbf16>
    %14 = vector.shape_cast %13 : vector<1x4x256xbf16> to vector<4x256xbf16>
    %15 = vector.shape_cast %12 : vector<4x256xbf16> to vector<1x4x256xbf16>
    tpu.vector_store %arg4[%c0_8, %c0_9, %c0_10], %15 {strides = array<i32>} : memref<1x4x256xbf16, #tpu.memory_space<vmem>>, vector<1x4x256xbf16>,
    return
  }
  func.func @transform_0(%arg0: i32) -> (i32, i32, i32) {
    %c0_i32 = arith.constant 0 : i32
    %c0_i32_0 = arith.constant 0 : i32
    %c0_i32_1 = arith.constant 0 : i32
    return %arg0, %c0_i32, %c0_i32_0 : i32, i32, i32
  }
  func.func @transform_1(%arg0: i32) -> (i32, i32) {
    %c0_i32 = arith.constant 0 : i32
    %c0_i32_0 = arith.constant 0 : i32
    %c0_i32_1 = arith.constant 0 : i32
    return %c0_i32, %c0_i32_0 : i32, i32
  }
  func.func @transform_2(%arg0: i32) -> (i32, i32) {
    %c0_i32 = arith.constant 0 : i32
    %c0_i32_0 = arith.constant 0 : i32
    %c0_i32_1 = arith.constant 0 : i32
    return %c0_i32, %c0_i32_0 : i32, i32
  }
  func.func @transform_3(%arg0: i32) -> (i32, i32, i32) {
    %c0_i32 = arith.constant 0 : i32
    %c0_i32_0 = arith.constant 0 : i32
    %c0_i32_1 = arith.constant 0 : i32
    return %arg0, %c0_i32, %c0_i32_0 : i32, i32, i32
  }
}

module attributes {stable_mosaic.version = 11 : i64} {
  func.func @_stacked_conv_kernel(%arg0: i32, %arg1: memref<1x36x256xbf16, #tpu.memory_space<vmem>>, %arg2: memref<2x36xbf16, #tpu.memory_space<vmem>>, %arg3: memref<2x1xf32, #tpu.memory_space<vmem>>, %arg4: memref<1x2x256xbf16, #tpu.memory_space<vmem>>) attributes {dimension_semantics = [#tpu.dimension_semantics<parallel>], iteration_bounds = array<i64: 2>, scalar_prefetch = 0 : i64, scratch_operands = 0 : i64, tpu.core_type = #tpu.core_type<tc>, window_params = [{transform_indices = @transform_0, window_bounds = array<i64: 1, 36, 256>}, {pipeline_mode = #tpu.pipeline_mode<synchronous>, transform_indices = @transform_1, window_bounds = array<i64: 2, 36>}, {pipeline_mode = #tpu.pipeline_mode<synchronous>, transform_indices = @transform_2, window_bounds = array<i64: 2, 1>}, {transform_indices = @transform_3, window_bounds = array<i64: 1, 2, 256>}]} {
    %c0 = arith.constant 0 : index
    %c0_0 = arith.constant 0 : index
    %0 = vector.load %arg2[%c0, %c0_0] : memref<2x36xbf16, #tpu.memory_space<vmem>>, vector<2x36xbf16>
    %c0_1 = arith.constant 0 : index
    %c0_2 = arith.constant 0 : index
    %c0_3 = arith.constant 0 : index
    %1 = vector.load %arg1[%c0_1, %c0_2, %c0_3] : memref<1x36x256xbf16, #tpu.memory_space<vmem>>, vector<1x36x256xbf16>
    %2 = vector.shape_cast %1 : vector<1x36x256xbf16> to vector<36x256xbf16>
    %cst = arith.constant dense<0.000000e+00> : vector<2x256xf32>
    %3 = tpu.matmul %0, %2, %cst {dimension_numbers = #tpu.dot_dimension_numbers<[1], [0], [0], [1], [0, 0, 1, 1], [], []>} : vector<2x36xbf16>, vector<36x256xbf16>, vector<2x256xf32> -> vector<2x256xf32>
    %c0_4 = arith.constant 0 : index
    %c0_5 = arith.constant 0 : index
    %4 = vector.load %arg3[%c0_4, %c0_5] : memref<2x1xf32, #tpu.memory_space<vmem>>, vector<2x1xf32>
    %5 = vector.broadcast %4 : vector<2x1xf32> to vector<2x256xf32>
    %6 = arith.addf %3, %5 : vector<2x256xf32>
    %cst_6 = arith.constant 0.000000e+00 : f32
    %7 = vector.broadcast %cst_6 : f32 to vector<2x256xf32>
    %8 = arith.cmpf ogt, %6, %7 : vector<2x256xf32>
    %cst_7 = arith.constant 0.00999999977 : f32
    %9 = vector.broadcast %cst_7 : f32 to vector<2x256xf32>
    %10 = arith.mulf %9, %6 : vector<2x256xf32>
    %11 = arith.select %8, %6, %10 : vector<2x256xi1>, vector<2x256xf32>
    %12 = arith.truncf %11 : vector<2x256xf32> to vector<2x256xbf16>
    %c0_8 = arith.constant 0 : index
    %c0_9 = arith.constant 0 : index
    %c0_10 = arith.constant 0 : index
    %13 = vector.load %arg4[%c0_8, %c0_9, %c0_10] : memref<1x2x256xbf16, #tpu.memory_space<vmem>>, vector<1x2x256xbf16>
    %14 = vector.shape_cast %13 : vector<1x2x256xbf16> to vector<2x256xbf16>
    %15 = vector.shape_cast %12 : vector<2x256xbf16> to vector<1x2x256xbf16>
    tpu.vector_store %arg4[%c0_8, %c0_9, %c0_10], %15 {strides = array<i32>} : memref<1x2x256xbf16, #tpu.memory_space<vmem>>, vector<1x2x256xbf16>,
    return
  }
  func.func @transform_0(%arg0: i32) -> (i32, i32, i32) {
    %c0_i32 = arith.constant 0 : i32
    %c0_i32_0 = arith.constant 0 : i32
    %c0_i32_1 = arith.constant 0 : i32
    return %arg0, %c0_i32, %c0_i32_0 : i32, i32, i32
  }
  func.func @transform_1(%arg0: i32) -> (i32, i32) {
    %c0_i32 = arith.constant 0 : i32
    %c0_i32_0 = arith.constant 0 : i32
    %c0_i32_1 = arith.constant 0 : i32
    return %c0_i32, %c0_i32_0 : i32, i32
  }
  func.func @transform_2(%arg0: i32) -> (i32, i32) {
    %c0_i32 = arith.constant 0 : i32
    %c0_i32_0 = arith.constant 0 : i32
    %c0_i32_1 = arith.constant 0 : i32
    return %c0_i32, %c0_i32_0 : i32, i32
  }
  func.func @transform_3(%arg0: i32) -> (i32, i32, i32) {
    %c0_i32 = arith.constant 0 : i32
    %c0_i32_0 = arith.constant 0 : i32
    %c0_i32_1 = arith.constant 0 : i32
    return %arg0, %c0_i32, %c0_i32_0 : i32, i32, i32
  }
}

module attributes {stable_mosaic.version = 11 : i64} {
  func.func @_stacked_conv_kernel(%arg0: i32, %arg1: memref<1x18x256xbf16, #tpu.memory_space<vmem>>, %arg2: memref<1x18xbf16, #tpu.memory_space<vmem>>, %arg3: memref<1x1xf32, #tpu.memory_space<vmem>>, %arg4: memref<1x1x256xbf16, #tpu.memory_space<vmem>>) attributes {dimension_semantics = [#tpu.dimension_semantics<parallel>], iteration_bounds = array<i64: 2>, scalar_prefetch = 0 : i64, scratch_operands = 0 : i64, tpu.core_type = #tpu.core_type<tc>, window_params = [{transform_indices = @transform_0, window_bounds = array<i64: 1, 18, 256>}, {pipeline_mode = #tpu.pipeline_mode<synchronous>, transform_indices = @transform_1, window_bounds = array<i64: 1, 18>}, {pipeline_mode = #tpu.pipeline_mode<synchronous>, transform_indices = @transform_2, window_bounds = array<i64: 1, 1>}, {transform_indices = @transform_3, window_bounds = array<i64: 1, 1, 256>}]} {
    %c0 = arith.constant 0 : index
    %c0_0 = arith.constant 0 : index
    %0 = vector.load %arg2[%c0, %c0_0] : memref<1x18xbf16, #tpu.memory_space<vmem>>, vector<1x18xbf16>
    %c0_1 = arith.constant 0 : index
    %c0_2 = arith.constant 0 : index
    %c0_3 = arith.constant 0 : index
    %1 = vector.load %arg1[%c0_1, %c0_2, %c0_3] : memref<1x18x256xbf16, #tpu.memory_space<vmem>>, vector<1x18x256xbf16>
    %2 = vector.shape_cast %1 : vector<1x18x256xbf16> to vector<18x256xbf16>
    %cst = arith.constant dense<0.000000e+00> : vector<1x256xf32>
    %3 = tpu.matmul %0, %2, %cst {dimension_numbers = #tpu.dot_dimension_numbers<[1], [0], [0], [1], [0, 0, 1, 1], [], []>} : vector<1x18xbf16>, vector<18x256xbf16>, vector<1x256xf32> -> vector<1x256xf32>
    %c0_4 = arith.constant 0 : index
    %c0_5 = arith.constant 0 : index
    %4 = vector.load %arg3[%c0_4, %c0_5] : memref<1x1xf32, #tpu.memory_space<vmem>>, vector<1x1xf32>
    %5 = vector.broadcast %4 : vector<1x1xf32> to vector<1x256xf32>
    %6 = arith.addf %3, %5 : vector<1x256xf32>
    %cst_6 = arith.constant 0.000000e+00 : f32
    %7 = vector.broadcast %cst_6 : f32 to vector<1x256xf32>
    %8 = arith.cmpf ogt, %6, %7 : vector<1x256xf32>
    %cst_7 = arith.constant 0.00999999977 : f32
    %9 = vector.broadcast %cst_7 : f32 to vector<1x256xf32>
    %10 = arith.mulf %9, %6 : vector<1x256xf32>
    %11 = arith.select %8, %6, %10 : vector<1x256xi1>, vector<1x256xf32>
    %12 = arith.truncf %11 : vector<1x256xf32> to vector<1x256xbf16>
    %c0_8 = arith.constant 0 : index
    %c0_9 = arith.constant 0 : index
    %c0_10 = arith.constant 0 : index
    %13 = vector.load %arg4[%c0_8, %c0_9, %c0_10] : memref<1x1x256xbf16, #tpu.memory_space<vmem>>, vector<1x1x256xbf16>
    %14 = vector.shape_cast %13 : vector<1x1x256xbf16> to vector<1x256xbf16>
    %15 = vector.shape_cast %12 : vector<1x256xbf16> to vector<1x1x256xbf16>
    tpu.vector_store %arg4[%c0_8, %c0_9, %c0_10], %15 {strides = array<i32>} : memref<1x1x256xbf16, #tpu.memory_space<vmem>>, vector<1x1x256xbf16>,
    return
  }
  func.func @transform_0(%arg0: i32) -> (i32, i32, i32) {
    %c0_i32 = arith.constant 0 : i32
    %c0_i32_0 = arith.constant 0 : i32
    %c0_i32_1 = arith.constant 0 : i32
    return %arg0, %c0_i32, %c0_i32_0 : i32, i32, i32
  }
  func.func @transform_1(%arg0: i32) -> (i32, i32) {
    %c0_i32 = arith.constant 0 : i32
    %c0_i32_0 = arith.constant 0 : i32
    %c0_i32_1 = arith.constant 0 : i32
    return %c0_i32, %c0_i32_0 : i32, i32
  }
  func.func @transform_2(%arg0: i32) -> (i32, i32) {
    %c0_i32 = arith.constant 0 : i32
    %c0_i32_0 = arith.constant 0 : i32
    %c0_i32_1 = arith.constant 0 : i32
    return %c0_i32, %c0_i32_0 : i32, i32
  }
  func.func @transform_3(%arg0: i32) -> (i32, i32, i32) {
    %c0_i32 = arith.constant 0 : i32
    %c0_i32_0 = arith.constant 0 : i32
    %c0_i32_1 = arith.constant 0 : i32
    return %arg0, %c0_i32, %c0_i32_0 : i32, i32, i32
  }
}

module attributes {stable_mosaic.version = 11 : i64} {
  func.func @_stacked_conv_kernel(%arg0: i32, %arg1: memref<1x9x256xbf16, #tpu.memory_space<vmem>>, %arg2: memref<1x9xbf16, #tpu.memory_space<vmem>>, %arg3: memref<1x1xf32, #tpu.memory_space<vmem>>, %arg4: memref<1x1x256xbf16, #tpu.memory_space<vmem>>) attributes {dimension_semantics = [#tpu.dimension_semantics<parallel>], iteration_bounds = array<i64: 2>, scalar_prefetch = 0 : i64, scratch_operands = 0 : i64, tpu.core_type = #tpu.core_type<tc>, window_params = [{transform_indices = @transform_0, window_bounds = array<i64: 1, 9, 256>}, {pipeline_mode = #tpu.pipeline_mode<synchronous>, transform_indices = @transform_1, window_bounds = array<i64: 1, 9>}, {pipeline_mode = #tpu.pipeline_mode<synchronous>, transform_indices = @transform_2, window_bounds = array<i64: 1, 1>}, {transform_indices = @transform_3, window_bounds = array<i64: 1, 1, 256>}]} {
    %c0 = arith.constant 0 : index
    %c0_0 = arith.constant 0 : index
    %0 = vector.load %arg2[%c0, %c0_0] : memref<1x9xbf16, #tpu.memory_space<vmem>>, vector<1x9xbf16>
    %c0_1 = arith.constant 0 : index
    %c0_2 = arith.constant 0 : index
    %c0_3 = arith.constant 0 : index
    %1 = vector.load %arg1[%c0_1, %c0_2, %c0_3] : memref<1x9x256xbf16, #tpu.memory_space<vmem>>, vector<1x9x256xbf16>
    %2 = vector.shape_cast %1 : vector<1x9x256xbf16> to vector<9x256xbf16>
    %cst = arith.constant dense<0.000000e+00> : vector<1x256xf32>
    %3 = tpu.matmul %0, %2, %cst {dimension_numbers = #tpu.dot_dimension_numbers<[1], [0], [0], [1], [0, 0, 1, 1], [], []>} : vector<1x9xbf16>, vector<9x256xbf16>, vector<1x256xf32> -> vector<1x256xf32>
    %c0_4 = arith.constant 0 : index
    %c0_5 = arith.constant 0 : index
    %4 = vector.load %arg3[%c0_4, %c0_5] : memref<1x1xf32, #tpu.memory_space<vmem>>, vector<1x1xf32>
    %5 = vector.broadcast %4 : vector<1x1xf32> to vector<1x256xf32>
    %6 = arith.addf %3, %5 : vector<1x256xf32>
    %cst_6 = arith.constant 0.000000e+00 : f32
    %7 = vector.broadcast %cst_6 : f32 to vector<1x256xf32>
    %8 = arith.cmpf ogt, %6, %7 : vector<1x256xf32>
    %cst_7 = arith.constant 0.00999999977 : f32
    %9 = vector.broadcast %cst_7 : f32 to vector<1x256xf32>
    %10 = arith.mulf %9, %6 : vector<1x256xf32>
    %11 = arith.select %8, %6, %10 : vector<1x256xi1>, vector<1x256xf32>
    %12 = arith.truncf %11 : vector<1x256xf32> to vector<1x256xbf16>
    %c0_8 = arith.constant 0 : index
    %c0_9 = arith.constant 0 : index
    %c0_10 = arith.constant 0 : index
    %13 = vector.load %arg4[%c0_8, %c0_9, %c0_10] : memref<1x1x256xbf16, #tpu.memory_space<vmem>>, vector<1x1x256xbf16>
    %14 = vector.shape_cast %13 : vector<1x1x256xbf16> to vector<1x256xbf16>
    %15 = vector.shape_cast %12 : vector<1x256xbf16> to vector<1x1x256xbf16>
    tpu.vector_store %arg4[%c0_8, %c0_9, %c0_10], %15 {strides = array<i32>} : memref<1x1x256xbf16, #tpu.memory_space<vmem>>, vector<1x1x256xbf16>,
    return
  }
  func.func @transform_0(%arg0: i32) -> (i32, i32, i32) {
    %c0_i32 = arith.constant 0 : i32
    %c0_i32_0 = arith.constant 0 : i32
    %c0_i32_1 = arith.constant 0 : i32
    return %arg0, %c0_i32, %c0_i32_0 : i32, i32, i32
  }
  func.func @transform_1(%arg0: i32) -> (i32, i32) {
    %c0_i32 = arith.constant 0 : i32
    %c0_i32_0 = arith.constant 0 : i32
    %c0_i32_1 = arith.constant 0 : i32
    return %c0_i32, %c0_i32_0 : i32, i32
  }
  func.func @transform_2(%arg0: i32) -> (i32, i32) {
    %c0_i32 = arith.constant 0 : i32
    %c0_i32_0 = arith.constant 0 : i32
    %c0_i32_1 = arith.constant 0 : i32
    return %c0_i32, %c0_i32_0 : i32, i32
  }
  func.func @transform_3(%arg0: i32) -> (i32, i32, i32) {
    %c0_i32 = arith.constant 0 : i32
    %c0_i32_0 = arith.constant 0 : i32
    %c0_i32_1 = arith.constant 0 : i32
    return %arg0, %c0_i32, %c0_i32_0 : i32, i32, i32
  }
}

module attributes {stable_mosaic.version = 11 : i64} {
  func.func @_dense_stack_kernel(%arg0: i32, %arg1: i32, %arg2: memref<1x64x256xbf16, #tpu.memory_space<vmem>>, %arg3: memref<1x32x256xbf16, #tpu.memory_space<vmem>>, %arg4: memref<1x16x256xbf16, #tpu.memory_space<vmem>>, %arg5: memref<1x16x256xbf16, #tpu.memory_space<vmem>>, %arg6: memref<128x128xbf16, #tpu.memory_space<vmem>>, %arg7: memref<128x1xf32, #tpu.memory_space<vmem>>, %arg8: memref<128x128xbf16, #tpu.memory_space<vmem>>, %arg9: memref<128x1xf32, #tpu.memory_space<vmem>>, %arg10: memref<1x128xbf16, #tpu.memory_space<vmem>>, %arg11: memref<1x1xf32, #tpu.memory_space<vmem>>, %arg12: memref<1x128xbf16, #tpu.memory_space<vmem>>, %arg13: memref<1x1xf32, #tpu.memory_space<vmem>>, %arg14: memref<1x1x256xf32, #tpu.memory_space<vmem>>) attributes {dimension_semantics = [#tpu.dimension_semantics<parallel>, #tpu.dimension_semantics<parallel>], iteration_bounds = array<i64: 2, 1>, scalar_prefetch = 0 : i64, scratch_operands = 0 : i64, tpu.core_type = #tpu.core_type<tc>, window_params = [{transform_indices = @transform_0, window_bounds = array<i64: 1, 64, 256>}, {transform_indices = @transform_1, window_bounds = array<i64: 1, 32, 256>}, {transform_indices = @transform_2, window_bounds = array<i64: 1, 16, 256>}, {transform_indices = @transform_3, window_bounds = array<i64: 1, 16, 256>}, {pipeline_mode = #tpu.pipeline_mode<synchronous>, transform_indices = @transform_4, window_bounds = array<i64: 128, 128>}, {pipeline_mode = #tpu.pipeline_mode<synchronous>, transform_indices = @transform_5, window_bounds = array<i64: 128, 1>}, {pipeline_mode = #tpu.pipeline_mode<synchronous>, transform_indices = @transform_6, window_bounds = array<i64: 128, 128>}, {pipeline_mode = #tpu.pipeline_mode<synchronous>, transform_indices = @transform_7, window_bounds = array<i64: 128, 1>}, {pipeline_mode = #tpu.pipeline_mode<synchronous>, transform_indices = @transform_8, window_bounds = array<i64: 1, 128>}, {pipeline_mode = #tpu.pipeline_mode<synchronous>, transform_indices = @transform_9, window_bounds = array<i64: 1, 1>}, {pipeline_mode = #tpu.pipeline_mode<synchronous>, transform_indices = @transform_10, window_bounds = array<i64: 1, 128>}, {pipeline_mode = #tpu.pipeline_mode<synchronous>, transform_indices = @transform_11, window_bounds = array<i64: 1, 1>}, {transform_indices = @transform_12, window_bounds = array<i64: 1, 1, 256>}]} {
    %c0 = arith.constant 0 : index
    %c0_0 = arith.constant 0 : index
    %0 = vector.load %arg7[%c0, %c0_0] : memref<128x1xf32, #tpu.memory_space<vmem>>, vector<128x1xf32>
    %c0_1 = arith.constant 0 : index
    %c0_2 = arith.constant 0 : index
    %1 = vector.load %arg6[%c0_1, %c0_2] : memref<128x128xbf16, #tpu.memory_space<vmem>>, vector<128x64xbf16>
    %c0_3 = arith.constant 0 : index
    %c0_4 = arith.constant 0 : index
    %c0_5 = arith.constant 0 : index
    %2 = vector.load %arg2[%c0_3, %c0_4, %c0_5] : memref<1x64x256xbf16, #tpu.memory_space<vmem>>, vector<1x64x256xbf16>
    %3 = vector.shape_cast %2 : vector<1x64x256xbf16> to vector<64x256xbf16>
    %cst = arith.constant dense<0.000000e+00> : vector<128x256xf32>
    %4 = tpu.matmul %1, %3, %cst {dimension_numbers = #tpu.dot_dimension_numbers<[1], [0], [0], [1], [0, 0, 1, 1], [], []>} : vector<128x64xbf16>, vector<64x256xbf16>, vector<128x256xf32> -> vector<128x256xf32>
    %5 = vector.broadcast %0 : vector<128x1xf32> to vector<128x256xf32>
    %6 = arith.addf %5, %4 : vector<128x256xf32>
    %c0_6 = arith.constant 0 : index
    %c64 = arith.constant 64 : index
    %7 = vector.load %arg6[%c0_6, %c64] : memref<128x128xbf16, #tpu.memory_space<vmem>>, vector<128x32xbf16>
    %c0_7 = arith.constant 0 : index
    %c0_8 = arith.constant 0 : index
    %c0_9 = arith.constant 0 : index
    %8 = vector.load %arg3[%c0_7, %c0_8, %c0_9] : memref<1x32x256xbf16, #tpu.memory_space<vmem>>, vector<1x32x256xbf16>
    %9 = vector.shape_cast %8 : vector<1x32x256xbf16> to vector<32x256xbf16>
    %cst_10 = arith.constant dense<0.000000e+00> : vector<128x256xf32>
    %10 = tpu.matmul %7, %9, %cst_10 {dimension_numbers = #tpu.dot_dimension_numbers<[1], [0], [0], [1], [0, 0, 1, 1], [], []>} : vector<128x32xbf16>, vector<32x256xbf16>, vector<128x256xf32> -> vector<128x256xf32>
    %11 = arith.addf %6, %10 : vector<128x256xf32>
    %c0_11 = arith.constant 0 : index
    %c96 = arith.constant 96 : index
    %12 = vector.load %arg6[%c0_11, %c96] : memref<128x128xbf16, #tpu.memory_space<vmem>>, vector<128x16xbf16>
    %c0_12 = arith.constant 0 : index
    %c0_13 = arith.constant 0 : index
    %c0_14 = arith.constant 0 : index
    %13 = vector.load %arg4[%c0_12, %c0_13, %c0_14] : memref<1x16x256xbf16, #tpu.memory_space<vmem>>, vector<1x16x256xbf16>
    %14 = vector.shape_cast %13 : vector<1x16x256xbf16> to vector<16x256xbf16>
    %cst_15 = arith.constant dense<0.000000e+00> : vector<128x256xf32>
    %15 = tpu.matmul %12, %14, %cst_15 {dimension_numbers = #tpu.dot_dimension_numbers<[1], [0], [0], [1], [0, 0, 1, 1], [], []>} : vector<128x16xbf16>, vector<16x256xbf16>, vector<128x256xf32> -> vector<128x256xf32>
    %16 = arith.addf %11, %15 : vector<128x256xf32>
    %c0_16 = arith.constant 0 : index
    %c112 = arith.constant 112 : index
    %17 = vector.load %arg6[%c0_16, %c112] : memref<128x128xbf16, #tpu.memory_space<vmem>>, vector<128x16xbf16>
    %c0_17 = arith.constant 0 : index
    %c0_18 = arith.constant 0 : index
    %c0_19 = arith.constant 0 : index
    %18 = vector.load %arg5[%c0_17, %c0_18, %c0_19] : memref<1x16x256xbf16, #tpu.memory_space<vmem>>, vector<1x16x256xbf16>
    %19 = vector.shape_cast %18 : vector<1x16x256xbf16> to vector<16x256xbf16>
    %cst_20 = arith.constant dense<0.000000e+00> : vector<128x256xf32>
    %20 = tpu.matmul %17, %19, %cst_20 {dimension_numbers = #tpu.dot_dimension_numbers<[1], [0], [0], [1], [0, 0, 1, 1], [], []>} : vector<128x16xbf16>, vector<16x256xbf16>, vector<128x256xf32> -> vector<128x256xf32>
    %21 = arith.addf %16, %20 : vector<128x256xf32>
    %cst_21 = arith.constant 0.000000e+00 : f32
    %22 = vector.broadcast %cst_21 : f32 to vector<128x256xf32>
    %23 = arith.cmpf ogt, %21, %22 : vector<128x256xf32>
    %cst_22 = arith.constant 0.00999999977 : f32
    %24 = vector.broadcast %cst_22 : f32 to vector<128x256xf32>
    %25 = arith.mulf %24, %21 : vector<128x256xf32>
    %26 = arith.select %23, %21, %25 : vector<128x256xi1>, vector<128x256xf32>
    %c0_23 = arith.constant 0 : index
    %c0_24 = arith.constant 0 : index
    %27 = vector.load %arg8[%c0_23, %c0_24] : memref<128x128xbf16, #tpu.memory_space<vmem>>, vector<128x128xbf16>
    %28 = arith.truncf %26 : vector<128x256xf32> to vector<128x256xbf16>
    %cst_25 = arith.constant dense<0.000000e+00> : vector<128x256xf32>
    %29 = tpu.matmul %27, %28, %cst_25 {dimension_numbers = #tpu.dot_dimension_numbers<[1], [0], [0], [1], [0, 0, 1, 1], [], []>} : vector<128x128xbf16>, vector<128x256xbf16>, vector<128x256xf32> -> vector<128x256xf32>
    %c0_26 = arith.constant 0 : index
    %c0_27 = arith.constant 0 : index
    %30 = vector.load %arg9[%c0_26, %c0_27] : memref<128x1xf32, #tpu.memory_space<vmem>>, vector<128x1xf32>
    %31 = vector.broadcast %30 : vector<128x1xf32> to vector<128x256xf32>
    %32 = arith.addf %29, %31 : vector<128x256xf32>
    %cst_28 = arith.constant 0.000000e+00 : f32
    %33 = vector.broadcast %cst_28 : f32 to vector<128x256xf32>
    %34 = arith.cmpf ogt, %32, %33 : vector<128x256xf32>
    %cst_29 = arith.constant 0.00999999977 : f32
    %35 = vector.broadcast %cst_29 : f32 to vector<128x256xf32>
    %36 = arith.mulf %35, %32 : vector<128x256xf32>
    %37 = arith.select %34, %32, %36 : vector<128x256xi1>, vector<128x256xf32>
    %38 = arith.addf %26, %37 : vector<128x256xf32>
    %c0_30 = arith.constant 0 : index
    %c0_31 = arith.constant 0 : index
    %39 = vector.load %arg10[%c0_30, %c0_31] : memref<1x128xbf16, #tpu.memory_space<vmem>>, vector<1x128xbf16>
    %40 = arith.truncf %37 : vector<128x256xf32> to vector<128x256xbf16>
    %cst_32 = arith.constant dense<0.000000e+00> : vector<1x256xf32>
    %41 = tpu.matmul %39, %40, %cst_32 {dimension_numbers = #tpu.dot_dimension_numbers<[1], [0], [0], [1], [0, 0, 1, 1], [], []>} : vector<1x128xbf16>, vector<128x256xbf16>, vector<1x256xf32> -> vector<1x256xf32>
    %c0_33 = arith.constant 0 : index
    %c0_34 = arith.constant 0 : index
    %42 = vector.load %arg11[%c0_33, %c0_34] : memref<1x1xf32, #tpu.memory_space<vmem>>, vector<1x1xf32>
    %43 = vector.broadcast %42 : vector<1x1xf32> to vector<1x256xf32>
    %44 = arith.addf %41, %43 : vector<1x256xf32>
    %cst_35 = arith.constant 0.000000e+00 : f32
    %45 = vector.broadcast %cst_35 : f32 to vector<1x256xf32>
    %46 = arith.cmpf ogt, %44, %45 : vector<1x256xf32>
    %cst_36 = arith.constant 0.00999999977 : f32
    %47 = vector.broadcast %cst_36 : f32 to vector<1x256xf32>
    %48 = arith.mulf %47, %44 : vector<1x256xf32>
    %49 = arith.select %46, %44, %48 : vector<1x256xi1>, vector<1x256xf32>
    %50 = vector.broadcast %49 : vector<1x256xf32> to vector<128x256xf32>
    %51 = arith.addf %38, %50 : vector<128x256xf32>
    %c0_37 = arith.constant 0 : index
    %c0_38 = arith.constant 0 : index
    %52 = vector.load %arg12[%c0_37, %c0_38] : memref<1x128xbf16, #tpu.memory_space<vmem>>, vector<1x128xbf16>
    %53 = arith.truncf %51 : vector<128x256xf32> to vector<128x256xbf16>
    %cst_39 = arith.constant dense<0.000000e+00> : vector<1x256xf32>
    %54 = tpu.matmul %52, %53, %cst_39 {dimension_numbers = #tpu.dot_dimension_numbers<[1], [0], [0], [1], [0, 0, 1, 1], [], []>} : vector<1x128xbf16>, vector<128x256xbf16>, vector<1x256xf32> -> vector<1x256xf32>
    %c0_40 = arith.constant 0 : index
    %c0_41 = arith.constant 0 : index
    %55 = vector.load %arg13[%c0_40, %c0_41] : memref<1x1xf32, #tpu.memory_space<vmem>>, vector<1x1xf32>
    %56 = vector.broadcast %55 : vector<1x1xf32> to vector<1x256xf32>
    %57 = arith.addf %54, %56 : vector<1x256xf32>
    %c0_42 = arith.constant 0 : index
    %c0_43 = arith.constant 0 : index
    %c0_44 = arith.constant 0 : index
    %58 = vector.load %arg14[%c0_42, %c0_43, %c0_44] : memref<1x1x256xf32, #tpu.memory_space<vmem>>, vector<1x1x256xf32>
    %59 = vector.shape_cast %58 : vector<1x1x256xf32> to vector<1x256xf32>
    %60 = vector.shape_cast %57 : vector<1x256xf32> to vector<1x1x256xf32>
    tpu.vector_store %arg14[%c0_42, %c0_43, %c0_44], %60 {strides = array<i32>} : memref<1x1x256xf32, #tpu.memory_space<vmem>>, vector<1x1x256xf32>,
    return
  }
  func.func @transform_0(%arg0: i32, %arg1: i32) -> (i32, i32, i32) {
    %c0_i32 = arith.constant 0 : i32
    %c0_i32_0 = arith.constant 0 : i32
    return %arg0, %c0_i32, %arg1 : i32, i32, i32
  }
  func.func @transform_1(%arg0: i32, %arg1: i32) -> (i32, i32, i32) {
    %c0_i32 = arith.constant 0 : i32
    %c0_i32_0 = arith.constant 0 : i32
    return %arg0, %c0_i32, %arg1 : i32, i32, i32
  }
  func.func @transform_2(%arg0: i32, %arg1: i32) -> (i32, i32, i32) {
    %c0_i32 = arith.constant 0 : i32
    %c0_i32_0 = arith.constant 0 : i32
    return %arg0, %c0_i32, %arg1 : i32, i32, i32
  }
  func.func @transform_3(%arg0: i32, %arg1: i32) -> (i32, i32, i32) {
    %c0_i32 = arith.constant 0 : i32
    %c0_i32_0 = arith.constant 0 : i32
    return %arg0, %c0_i32, %arg1 : i32, i32, i32
  }
  func.func @transform_4(%arg0: i32, %arg1: i32) -> (i32, i32) {
    %c0_i32 = arith.constant 0 : i32
    %c0_i32_0 = arith.constant 0 : i32
    %c0_i32_1 = arith.constant 0 : i32
    return %c0_i32, %c0_i32_0 : i32, i32
  }
  func.func @transform_5(%arg0: i32, %arg1: i32) -> (i32, i32) {
    %c0_i32 = arith.constant 0 : i32
    %c0_i32_0 = arith.constant 0 : i32
    %c0_i32_1 = arith.constant 0 : i32
    return %c0_i32, %c0_i32_0 : i32, i32
  }
  func.func @transform_6(%arg0: i32, %arg1: i32) -> (i32, i32) {
    %c0_i32 = arith.constant 0 : i32
    %c0_i32_0 = arith.constant 0 : i32
    %c0_i32_1 = arith.constant 0 : i32
    return %c0_i32, %c0_i32_0 : i32, i32
  }
  func.func @transform_7(%arg0: i32, %arg1: i32) -> (i32, i32) {
    %c0_i32 = arith.constant 0 : i32
    %c0_i32_0 = arith.constant 0 : i32
    %c0_i32_1 = arith.constant 0 : i32
    return %c0_i32, %c0_i32_0 : i32, i32
  }
  func.func @transform_8(%arg0: i32, %arg1: i32) -> (i32, i32) {
    %c0_i32 = arith.constant 0 : i32
    %c0_i32_0 = arith.constant 0 : i32
    %c0_i32_1 = arith.constant 0 : i32
    return %c0_i32, %c0_i32_0 : i32, i32
  }
  func.func @transform_9(%arg0: i32, %arg1: i32) -> (i32, i32) {
    %c0_i32 = arith.constant 0 : i32
    %c0_i32_0 = arith.constant 0 : i32
    %c0_i32_1 = arith.constant 0 : i32
    return %c0_i32, %c0_i32_0 : i32, i32
  }
  func.func @transform_10(%arg0: i32, %arg1: i32) -> (i32, i32) {
    %c0_i32 = arith.constant 0 : i32
    %c0_i32_0 = arith.constant 0 : i32
    %c0_i32_1 = arith.constant 0 : i32
    return %c0_i32, %c0_i32_0 : i32, i32
  }
  func.func @transform_11(%arg0: i32, %arg1: i32) -> (i32, i32) {
    %c0_i32 = arith.constant 0 : i32
    %c0_i32_0 = arith.constant 0 : i32
    %c0_i32_1 = arith.constant 0 : i32
    return %c0_i32, %c0_i32_0 : i32, i32
  }
  func.func @transform_12(%arg0: i32, %arg1: i32) -> (i32, i32, i32) {
    %c0_i32 = arith.constant 0 : i32
    %c0_i32_0 = arith.constant 0 : i32
    return %arg0, %c0_i32, %arg1 : i32, i32, i32
  }
}

</mosaic_0001>

<llo_original>
// kernel: _forward.9
$region0: #{_forward.9}
  #allocation0 [shape = 'u32[]', space=smem, size = 0x4, offset = 0x4, fixed_abs, tag = 'smem constant byte address 0x4 - core index']
  #allocation1 [shape = 'u32[144,128]{1,0:T(1,128)}', space=vmem, size = 0x12000, scoped, tag = 'internal scratch']
  %s0 = inlined_call_operand.hbm [shape: bf16[2,49,256], index: 0, kind: input, shape index: {}]
  %s1 = inlined_call_operand.hbm [shape: bf16[64,49], index: 1, kind: input, shape index: {}]
  %s2 = inlined_call_operand.hbm [shape: f32[64,1], index: 2, kind: input, shape index: {}]
  %s3 = inlined_call_operand.hbm [shape: bf16[2,64,256], index: 3, kind: output, shape index: {}]
  %s4 = sld [smem:[#allocation0]]
  $region57: #{_forward.9} parent=0
    _
  %s6 = ssub.s32 1, %s4
  %s7 = scalar_select 0, %s6, %s4
  $region1: #{_forward.9} parent=0
    #allocation2 [shape = 'u8[57344]{0}', space=vmem, size = 0xe000, scoped, tag = 'input window, operand 0']
    #allocation3 [shape = 's32[2]{0}', space=sflag, size = 0x8, scoped, tag = 'scoped memory for _forward.9']
    #allocation4 [shape = 's32[2]{0}', space=sflag, size = 0x8, scoped, tag = 'scoped memory for _forward.9']
    #allocation5 [shape = 'u8[16384]{0}', space=vmem, size = 0x4000, scoped, tag = 'input window, operand 1, single buffered']
    #allocation6 [shape = 's32[1]{0}', space=sflag, size = 0x4, scoped, tag = 'scoped memory for _forward.9']
    #allocation7 [shape = 'u8[32768]{0}', space=vmem, size = 0x8000, scoped, tag = 'input window, operand 2, single buffered']
    #allocation8 [shape = 'u8[65536]{0}', space=vmem, size = 0x10000, scoped, tag = 'output window, operand 0']
    %8 = vsyncpa [#allocation3], 0
    %s9 = scalar_lea.sflag [#allocation3], 1
    %10 = vsyncpa %s9, 0
    %11 = vsyncpa [#allocation6], 0
    %12 = vsyncpa [#allocation4], 0
    %s13 = scalar_lea.sflag [#allocation4], 1
    %14 = vsyncpa %s13, 0
    loop: start=0, step=1, limit=4
    $region2: #{_forward.9} parent=1 // loop_pre_header
      _
    $region3: #{_forward.9} parent=1 // loop_header
      %s16 = sphi 0, %s20
      %p17 = scmp.ge.s32.totalorder %s16, 4
      %s26 = sphi 0, %s28
      %s29 = sphi 0, %s26
      %s30 = sphi 0, %s29
      %s46 = sphi 0, %s30
      %s50 = sphi 0, %s50
      %s52 = sphi 0, %s50
      %s53 = sphi 0, %s52
      %s67 = sphi 0, %s53
      %s71 = sphi 0, %s71
      %s73 = sphi 0, %s71
      %s74 = sphi 0, %s73
      %s88 = sphi 0, %s74
      %s94 = sphi 0, %s96
      %s97 = sphi 0, %s94
      %s98 = sphi 0, %s97
      %s114 = sphi 0, %s98
    $region4: #{_forward.9} parent=1 // loop_header_branch
      %19 = sbr.rel (%p17) target = $region8
    $region5: #{_forward.9} parent=1 // loop_body
      %s21 = ssub.s32 %s16, 1
      %s22 = ssub.s32 %s16, 2
      %s23 = sadd.s32 %s16, 1
      %s24 = ssub.s32 %s16, %s23
      %p25 = scmp.eq.s32.totalorder %s24, 0
      %s27 = sadd.s32 %s26, 1
      %s28 = scalar_select %p25, %s26, %s27
      %p31 = pneg %p25
      %p32 = scmp.eq.s32.totalorder %s16, 1
      %p33 = por %p31, %p32
      %p34 = scmp.ne.s32.totalorder %s26, %s29
      %p35 = scmp.eq.s32.totalorder %s16, 0
      %p36 = por %p34, %p35
      %p37 = scmp.ne.s32.totalorder %s26, %s29
      %p38 = scmp.eq.s32.totalorder %s21, 1
      %p39 = por %p37, %p38
      %p40 = scmp.ne.s32.totalorder %s29, %s30
      %p41 = scmp.eq.s32.totalorder %s21, 0
      %p42 = por %p40, %p41
      %p43 = scmp.ne.s32.totalorder %s29, %s30
      %p44 = scmp.eq.s32.totalorder %s22, 1
      %p45 = por %p43, %p44
      %p47 = scmp.ne.s32.totalorder %s30, %s46
      %p48 = scmp.eq.s32.totalorder %s22, 0
      %p49 = por %p47, %p48
      %s51 = sadd.s32 %s50, 1
      %p54 = scmp.eq.s32.totalorder %s16, 1
      %p55 = scmp.ne.s32.totalorder %s50, %s52
      %p56 = scmp.eq.s32.totalorder %s16, 0
      %p57 = por %p55, %p56
      %p58 = scmp.ne.s32.totalorder %s50, %s52
      %p59 = scmp.eq.s32.totalorder %s21, 1
      %p60 = por %p58, %p59
      %p61 = scmp.ne.s32.totalorder %s52, %s53
      %p62 = scmp.eq.s32.totalorder %s21, 0
      %p63 = por %p61, %p62
      %p64 = scmp.ne.s32.totalorder %s52, %s53
      %p65 = scmp.eq.s32.totalorder %s22, 1
      %p66 = por %p64, %p65
      %p68 = scmp.ne.s32.totalorder %s53, %s67
      %p69 = scmp.eq.s32.totalorder %s22, 0
      %p70 = por %p68, %p69
      %s72 = sadd.s32 %s71, 1
      %p75 = scmp.eq.s32.totalorder %s16, 1
      %p76 = scmp.ne.s32.totalorder %s71, %s73
      %p77 = scmp.eq.s32.totalorder %s16, 0
      %p78 = por %p76, %p77
      %p79 = scmp.ne.s32.totalorder %s71, %s73
      %p80 = scmp.eq.s32.totalorder %s21, 1
      %p81 = por %p79, %p80
      %p82 = scmp.ne.s32.totalorder %s73, %s74
      %p83 = scmp.eq.s32.totalorder %s21, 0
      %p84 = por %p82, %p83
      %p85 = scmp.ne.s32.totalorder %s73, %s74
      %p86 = scmp.eq.s32.totalorder %s22, 1
      %p87 = por %p85, %p86
      %p89 = scmp.ne.s32.totalorder %s74, %s88
      %p90 = scmp.eq.s32.totalorder %s22, 0
      %p91 = por %p89, %p90
      %s92 = ssub.s32 %s16, %s23
      %p93 = scmp.eq.s32.totalorder %s92, 0
      %s95 = sadd.s32 %s94, 1
      %s96 = scalar_select %p93, %s94, %s95
      %p99 = pneg %p93
      %p100 = scmp.eq.s32.totalorder %s16, 1
      %p101 = por %p99, %p100
      %p102 = scmp.ne.s32.totalorder %s94, %s97
      %p103 = scmp.eq.s32.totalorder %s16, 0
      %p104 = por %p102, %p103
      %p105 = scmp.ne.s32.totalorder %s94, %s97
      %p106 = scmp.eq.s32.totalorder %s21, 1
      %p107 = por %p105, %p106
      %p108 = scmp.ne.s32.totalorder %s97, %s98
      %p109 = scmp.eq.s32.totalorder %s21, 0
      %p110 = por %p108, %p109
      %p111 = scmp.ne.s32.totalorder %s97, %s98
      %p112 = scmp.eq.s32.totalorder %s22, 1
      %p113 = por %p111, %p112
      %p115 = scmp.ne.s32.totalorder %s98, %s114
      %p116 = scmp.eq.s32.totalorder %s22, 0
      %p117 = por %p115, %p116
      %p118 = scmp.le.s32.totalorder 1, %s16
      %p119 = scmp.lt.s32.totalorder %s16, 3
      %p120 = pnand %p118, %p119
      %p121 = pneg %p120
      // Predicated region
      $region9: #{_forward.9} parent=5 // pred_check
        _
      $region10: #{_forward.9} parent=5 // pred_check_branch
        %123 = sbr.rel (%p120) target = $region12
      $region11: #{_forward.9} parent=5 // pred_region
        %s124 = ssub.s32 %s16, 1
        // Predicated region
        $region13: #{_forward.9} parent=11 // pred_check
          %p125 = pneg %p63
        $region14: #{_forward.9} parent=11 // pred_check_branch
          %127 = sbr.rel (%p125) target = $region16
        $region15: #{_forward.9} parent=11 // pred_region
          %s129 = ssub.s32 512, 512
          %130 = vsyncadd [#allocation6], %s129
          %s131 = sshll.u32 [#allocation5], 4
          %s132 = int_to_ptr.vmem [resolvable:$true] %s131
          %137 = dma.hbm_to_vmem [thread:$0]  %s1, 512, %s132, [#allocation6], 64, 64, 4
        $region16: #{_forward.9} parent=11 // pred_fallthru
          _
        // Predicated region
        $region17: #{_forward.9} parent=11 // pred_check
          %p138 = pneg %p84
        $region18: #{_forward.9} parent=11 // pred_check_branch
          %140 = sbr.rel (%p138) target = $region20
        $region19: #{_forward.9} parent=11 // pred_region
          %s142 = ssub.s32 1024, 1024
          %143 = vsyncadd [#allocation6], %s142
          %s144 = sshll.u32 [#allocation7], 4
          %s145 = int_to_ptr.vmem [resolvable:$true] %s144
          %150 = dma.hbm_to_vmem [thread:$0]  %s2, 1024, %s145, [#allocation6], 128, 128, 8
        $region20: #{_forward.9} parent=11 // pred_fallthru
          _
      $region12: #{_forward.9} parent=5 // pred_fallthru
        _
      %p151 = scmp.lt.s32.totalorder %s16, 2
      // Predicated region
      $region21: #{_forward.9} parent=5 // pred_check
        %p152 = pneg %p151
      $region22: #{_forward.9} parent=5 // pred_check_branch
        %154 = sbr.rel (%p152) target = $region24
      $region23: #{_forward.9} parent=5 // pred_region
        // Predicated region
        $region25: #{_forward.9} parent=23 // pred_check
          %p155 = pneg %p36
        $region26: #{_forward.9} parent=23 // pred_check_branch
          %157 = sbr.rel (%p155) target = $region28
        $region27: #{_forward.9} parent=23 // pred_region
          %s158 = sand.u32 %s26, 1
          %s159 = scalar_lea.sflag [#allocation3], %s158
          %s160 = sand.u32 %s26, 1
          %s161 = smul.addr %s160, 56
          %s162 = scalar_lea.vmem [#allocation2], %s161
          %s164 = ssub.s32 896, 896
          %165 = vsyncadd %s159, %s164
          %s166 = smul.addr %s16, 14
          %s167 = smul.addr %s166, 64
          %s168 = scalar_lea.hbm %s0, %s167
          %s169 = sshll.u32 %s162, 4
          %s170 = int_to_ptr.vmem [resolvable:$true] %s169
          %175 = dma.hbm_to_vmem [thread:$0]  %s168, 896, %s170, %s159, 128, 128, 8
        $region28: #{_forward.9} parent=23 // pred_fallthru
          _
      $region24: #{_forward.9} parent=5 // pred_fallthru
        _
      %p176 = scmp.le.s32.totalorder 1, %s16
      %p177 = scmp.lt.s32.totalorder %s16, 3
      %p178 = pnand %p176, %p177
      %p179 = pneg %p178
      // Predicated region
      $region29: #{_forward.9} parent=5 // pred_check
        _
      $region30: #{_forward.9} parent=5 // pred_check_branch
        %181 = sbr.rel (%p178) target = $region32
      $region31: #{_forward.9} parent=5 // pred_region
        %s182 = ssub.s32 %s16, 1
        %s183 = sand.u32 %s29, 1
        %s184 = scalar_lea.sflag [#allocation3], %s183
        %s185 = sand.u32 %s29, 1
        %s186 = smul.addr %s185, 56
        %s187 = scalar_lea.vmem [#allocation2], %s186
        // Predicated region
        $region33: #{_forward.9} parent=31 // pred_check
          %p188 = pneg %p42
        $region34: #{_forward.9} parent=31 // pred_check_branch
          %190 = sbr.rel (%p188) target = $region36
        $region35: #{_forward.9} parent=31 // pred_region
          %191 = dma.done %s184, 896
        $region36: #{_forward.9} parent=31 // pred_fallthru
          _
        // Predicated region
        $region37: #{_forward.9} parent=31 // pred_check
          %p192 = pneg %p63
        $region38: #{_forward.9} parent=31 // pred_check_branch
          %194 = sbr.rel (%p192) target = $region40
        $region39: #{_forward.9} parent=31 // pred_region
          %195 = dma.done [#allocation6], 512
        $region40: #{_forward.9} parent=31 // pred_fallthru
          _
        // Predicated region
        $region41: #{_forward.9} parent=31 // pred_check
          %p196 = pneg %p84
        $region42: #{_forward.9} parent=31 // pred_check_branch
          %198 = sbr.rel (%p196) target = $region44
        $region43: #{_forward.9} parent=31 // pred_region
          %199 = dma.done [#allocation6], 1024
        $region44: #{_forward.9} parent=31 // pred_fallthru
          _
        %s200 = sand.u32 %s29, 1
        %s201 = scalar_lea.sflag [#allocation3], %s200
        %s202 = sand.u32 %s29, 1
        %s203 = smul.addr %s202, 56
        %s204 = scalar_lea.vmem [#allocation2], %s203
        %p205 = pneg %p42
        %p206 = pneg %p39
        %p207 = pneg %p63
        %p208 = pneg %p60
        %p209 = pneg %p84
        %p210 = pneg %p81
        %p211 = pneg %p110
        %p212 = pneg %p107
        %s213 = sand.u32 %s97, 1
        %s214 = scalar_lea.sflag [#allocation4], %s213
        %s215 = sand.u32 %s97, 1
        %s216 = smul.addr %s215, 64
        %s217 = scalar_lea.vmem [#allocation8], %s216
        %v219 = vld [vmem:[#allocation5] sm:$0xf]
        %v220 = vld [vmem:[#allocation5 + $0x4] sm:$0xf]
        %v221 = vld [vmem:[#allocation5 + $0x8] sm:$0xf]
        %v222 = vld [vmem:[#allocation5 + $0xc] sm:$0xf]
        %v223 = vld [vmem:[#allocation5 + $0x10] sm:$0xf]
        %v224 = vld [vmem:[#allocation5 + $0x14] sm:$0xf]
        %v225 = vld [vmem:[#allocation5 + $0x18] sm:$0xf]
        %v226 = vld [vmem:[#allocation5 + $0x1c] sm:$0xf]
        %v227 = vld [vmem:[%s187] sm:$0xff]
        %v228 = vld [vmem:[%s187 + $0x8] sm:$0xff]
        %v229 = vld [vmem:[%s187 + $0x10] sm:$0xff]
        %v230 = vld [vmem:[%s187 + $0x18] sm:$0xff]
        %v231 = vld [vmem:[%s187 + $0x20] sm:$0xff]
        %v232 = vld [vmem:[%s187 + $0x28] sm:$0xff]
        %v233 = vld [vmem:[%s187 + $0x30] sm:$0x11]
        %v234 = vld [vmem:[#allocation7] sm:$0xff]
        %v235 = vld [vmem:[#allocation7 + $0x8] sm:$0xff]
        %v236 = vld [vmem:[#allocation7 + $0x10] sm:$0xff]
        %v237 = vld [vmem:[#allocation7 + $0x18] sm:$0xff]
        %v238 = vld [vmem:[#allocation7 + $0x20] sm:$0xff]
        %v239 = vld [vmem:[#allocation7 + $0x28] sm:$0xff]
        %v240 = vld [vmem:[#allocation7 + $0x30] sm:$0xff]
        %v241 = vld [vmem:[#allocation7 + $0x38] sm:$0xff]
        %243 = vset.pattern.permute.xlu0 0
        %244 = vperm.xlu0 %243, %v234
        %v245 = vpop.permute.xlu0 %244
        %248 = vset.pattern.permute.xlu0 0
        %249 = vperm.xlu0 %248, %v235
        %v250 = vpop.permute.xlu0 %249
        %253 = vset.pattern.permute.xlu0 0
        %254 = vperm.xlu0 %253, %v236
        %v255 = vpop.permute.xlu0 %254
        %258 = vset.pattern.permute.xlu0 0
        %259 = vperm.xlu0 %258, %v237
        %v260 = vpop.permute.xlu0 %259
        %263 = vset.pattern.permute.xlu0 0
        %264 = vperm.xlu0 %263, %v238
        %v265 = vpop.permute.xlu0 %264
        %268 = vset.pattern.permute.xlu0 0
        %269 = vperm.xlu0 %268, %v239
        %v270 = vpop.permute.xlu0 %269
        %273 = vset.pattern.permute.xlu0 0
        %274 = vperm.xlu0 %273, %v240
        %v275 = vpop.permute.xlu0 %274
        %278 = vset.pattern.permute.xlu0 0
        %279 = vperm.xlu0 %278, %v241
        %v280 = vpop.permute.xlu0 %279
        %v290 = vunpack.c.l.b16 %v219
        %v291 = vunpack.c.l.b16 %v220
        %v292 = vunpack.c.l.b16 %v221
        %v293 = vunpack.c.l.b16 %v222
        %v294 = vunpack.c.l.b16 %v223
        %v295 = vunpack.c.l.b16 %v224
        %v296 = vunpack.c.l.b16 %v225
        %v297 = vunpack.c.l.b16 %v226
        %v298 = vpack.c.b16 %v291, %v290
        %v299 = vpack.c.b16 %v293, %v292
        %v300 = vpack.c.b16 %v295, %v294
        %v301 = vpack.c.b16 %v297, %v296
        %v309 = vunpack.c.l.b16 %v227
        %v310 = vunpack.c.h.b16 %v227
        %v311 = vunpack.c.l.b16 %v228
        %v312 = vunpack.c.h.b16 %v228
        %v313 = vunpack.c.l.b16 %v229
        %v314 = vunpack.c.h.b16 %v229
        %v315 = vunpack.c.l.b16 %v230
        %v316 = vunpack.c.h.b16 %v230
        %v317 = vunpack.c.l.b16 %v231
        %v318 = vunpack.c.h.b16 %v231
        %v319 = vunpack.c.l.b16 %v232
        %v320 = vunpack.c.h.b16 %v232
        %v321 = vunpack.c.l.b16 %v233
        %v322 = vunpack.c.h.b16 %v233
        %v323 = vpack.c.b16 %v311, %v309
        %v324 = vpack.c.b16 %v312, %v310
        %v325 = vpack.c.b16 %v315, %v313
        %v326 = vpack.c.b16 %v316, %v314
        %v327 = vpack.c.b16 %v319, %v317
        %v328 = vpack.c.b16 %v320, %v318
        %v329 = vpack.c.b16 %v321, %v321
        %v330 = vpack.c.b16 %v322, %v322
        %vm337 = vcmask 400384
        %v339 = vsel %vm337, %v298, 0
        %v342 = vsel %vm337, %v299, 0
        %v345 = vsel %vm337, %v300, 0
        %v348 = vsel %vm337, %v301, 0
        %vm350 = vcmask 1040384
        %v351 = vsel 0, 4294967295, 65535
        %v352 = vsel %vm350, %v351, 0
        %v354 = vand.u32 %v329, %v352
        %v357 = vand.u32 %v330, %v352
        %359 = vmatprep.subr.bf16.mxu0 %v324
        %360 = vmatpush1.bf16.msra.mxu0 %v323
        %361 = vmatprep.subr.bf16.mxu0 %v326
        %362 = vmatpush1.bf16.msra.mxu0 %v325
        %363 = vmatprep.subr.bf16.mxu0 %v328
        %364 = vmatpush1.bf16.msra.mxu0 %v327
        %365 = vmatprep.subr.bf16.mxu0 %v357
        %366 = vmatpush1.bf16.msra.mxu0 %v354
        %367 = vmatprep.subr.bf16.mxu0 0
        %368 = vmatpush1.bf16.msra.mxu0 0
        %369 = vmatprep.subr.bf16.mxu0 0
        %370 = vmatpush1.bf16.msra.mxu0 0
        %371 = vmatprep.subr.bf16.mxu0 0
        %372 = vmatpush1.bf16.msra.mxu0 0
        %373 = vmatprep.subr.bf16.mxu0 0
        %374 = vmatpush1.bf16.msra.mxu0 0
        %375 = vmatprep.subr.bf16.mxu0 0
        %376 = vmatpush1.bf16.msra.mxu0 0
        %377 = vmatprep.subr.bf16.mxu0 0
        %378 = vmatpush1.bf16.msra.mxu0 0
        %379 = vmatprep.subr.bf16.mxu0 0
        %380 = vmatpush1.bf16.msra.mxu0 0
        %381 = vmatprep.subr.bf16.mxu0 0
        %382 = vmatpush1.bf16.msra.mxu0 0
        %383 = vmatprep.subr.bf16.mxu0 0
        %384 = vmatpush1.bf16.msra.mxu0 0
        %385 = vmatprep.subr.bf16.mxu0 0
        %386 = vmatpush1.bf16.msra.mxu0 0
        %387 = vmatprep.subr.bf16.mxu0 0
        %388 = vmatpush1.bf16.msra.mxu0 0
        %389 = vmatprep.subr.bf16.mxu0 0
        %390 = vmatpush1.bf16.msra.mxu0 0
        %391 = vmatprep.mubr.bf16.mxu0 0
        %392 = vmatmul.mubr.bf16.gmra.mrb[0].mxu0 %v339
        %v393 = vpop.f32.mrb[0].mxu0
        %v394 = vadd.f32 %v245, %v393
        %v395 = vpop.f32.mrb[0].mxu0
        %v396 = vadd.f32 %v245, %v395
        %v397 = vpop.f32.mrb[0].mxu0
        %v398 = vadd.f32 %v250, %v397
        %v399 = vpop.f32.mrb[0].mxu0
        %v400 = vadd.f32 %v250, %v399
        %401 = vmatprep.mubr.bf16.mxu0 0
        %402 = vmatmul.mubr.bf16.gmra.mrb[0].mxu0 %v342
        %v403 = vpop.f32.mrb[0].mxu0
        %v404 = vadd.f32 %v255, %v403
        %v405 = vpop.f32.mrb[0].mxu0
        %v406 = vadd.f32 %v255, %v405
        %v407 = vpop.f32.mrb[0].mxu0
        %v408 = vadd.f32 %v260, %v407
        %v409 = vpop.f32.mrb[0].mxu0
        %v410 = vadd.f32 %v260, %v409
        %411 = vmatprep.mubr.bf16.mxu0 0
        %412 = vmatmul.mubr.bf16.gmra.mrb[0].mxu0 %v345
        %v413 = vpop.f32.mrb[0].mxu0
        %v414 = vadd.f32 %v265, %v413
        %v415 = vpop.f32.mrb[0].mxu0
        %v416 = vadd.f32 %v265, %v415
        %v417 = vpop.f32.mrb[0].mxu0
        %v418 = vadd.f32 %v270, %v417
        %v419 = vpop.f32.mrb[0].mxu0
        %v420 = vadd.f32 %v270, %v419
        %421 = vmatprep.mubr.bf16.mxu0 0
        %422 = vmatmul.mubr.bf16.gmra.mrb[0].mxu0 %v348
        %v423 = vpop.f32.mrb[0].mxu0
        %v424 = vadd.f32 %v275, %v423
        %v425 = vpop.f32.mrb[0].mxu0
        %v426 = vadd.f32 %v275, %v425
        %v427 = vpop.f32.mrb[0].mxu0
        %v428 = vadd.f32 %v280, %v427
        %v429 = vpop.f32.mrb[0].mxu0
        %v430 = vadd.f32 %v280, %v429
        %431 = vdwg.mxu0
        %vm432 = vcmp.gt.f32.partialorder %v394, 0.0
        %vm433 = vcmp.gt.f32.partialorder %v396, 0.0
        %vm434 = vcmp.gt.f32.partialorder %v398, 0.0
        %vm435 = vcmp.gt.f32.partialorder %v400, 0.0
        %vm436 = vcmp.gt.f32.partialorder %v404, 0.0
        %vm437 = vcmp.gt.f32.partialorder %v406, 0.0
        %vm438 = vcmp.gt.f32.partialorder %v408, 0.0
        %vm439 = vcmp.gt.f32.partialorder %v410, 0.0
        %vm440 = vcmp.gt.f32.partialorder %v414, 0.0
        %vm441 = vcmp.gt.f32.partialorder %v416, 0.0
        %vm442 = vcmp.gt.f32.partialorder %v418, 0.0
        %vm443 = vcmp.gt.f32.partialorder %v420, 0.0
        %vm444 = vcmp.gt.f32.partialorder %v424, 0.0
        %vm445 = vcmp.gt.f32.partialorder %v426, 0.0
        %vm446 = vcmp.gt.f32.partialorder %v428, 0.0
        %vm447 = vcmp.gt.f32.partialorder %v430, 0.0
        %v448 = vmul.f32 %v394, 0.01
        %v449 = vmul.f32 %v396, 0.01
        %v450 = vmul.f32 %v398, 0.01
        %v451 = vmul.f32 %v400, 0.01
        %v452 = vmul.f32 %v404, 0.01
        %v453 = vmul.f32 %v406, 0.01
        %v454 = vmul.f32 %v408, 0.01
        %v455 = vmul.f32 %v410, 0.01
        %v456 = vmul.f32 %v414, 0.01
        %v457 = vmul.f32 %v416, 0.01
        %v458 = vmul.f32 %v418, 0.01
        %v459 = vmul.f32 %v420, 0.01
        %v460 = vmul.f32 %v424, 0.01
        %v461 = vmul.f32 %v426, 0.01
        %v462 = vmul.f32 %v428, 0.01
        %v463 = vmul.f32 %v430, 0.01
        %v464 = vsel %vm432, %v394, %v448
        %v465 = vsel %vm433, %v396, %v449
        %v466 = vsel %vm434, %v398, %v450
        %v467 = vsel %vm435, %v400, %v451
        %v468 = vsel %vm436, %v404, %v452
        %v469 = vsel %vm437, %v406, %v453
        %v470 = vsel %vm438, %v408, %v454
        %v471 = vsel %vm439, %v410, %v455
        %v472 = vsel %vm440, %v414, %v456
        %v473 = vsel %vm441, %v416, %v457
        %v474 = vsel %vm442, %v418, %v458
        %v475 = vsel %vm443, %v420, %v459
        %v476 = vsel %vm444, %v424, %v460
        %v477 = vsel %vm445, %v426, %v461
        %v478 = vsel %vm446, %v428, %v462
        %v479 = vsel %vm447, %v430, %v463
        %v480 = vpack.c.bf16 %v466, %v464
        %v481 = vpack.c.bf16 %v467, %v465
        %v482 = vpack.c.bf16 %v470, %v468
        %v483 = vpack.c.bf16 %v471, %v469
        %v484 = vpack.c.bf16 %v474, %v472
        %v485 = vpack.c.bf16 %v475, %v473
        %v486 = vpack.c.bf16 %v478, %v476
        %v487 = vpack.c.bf16 %v479, %v477
        %v496 = vunpack.c.l.b16 %v480
        %v497 = vunpack.c.l.b16 %v481
        %v498 = vunpack.c.h.b16 %v480
        %v499 = vunpack.c.h.b16 %v481
        %v500 = vunpack.c.l.b16 %v482
        %v501 = vunpack.c.l.b16 %v483
        %v502 = vunpack.c.h.b16 %v482
        %v503 = vunpack.c.h.b16 %v483
        %v504 = vunpack.c.l.b16 %v484
        %v505 = vunpack.c.l.b16 %v485
        %v506 = vunpack.c.h.b16 %v484
        %v507 = vunpack.c.h.b16 %v485
        %v508 = vunpack.c.l.b16 %v486
        %v509 = vunpack.c.l.b16 %v487
        %v510 = vunpack.c.h.b16 %v486
        %v511 = vunpack.c.h.b16 %v487
        %v512 = vpack.c.b16 %v497, %v496
        %v513 = vpack.c.b16 %v499, %v498
        %v514 = vpack.c.b16 %v501, %v500
        %v515 = vpack.c.b16 %v503, %v502
        %v516 = vpack.c.b16 %v505, %v504
        %v517 = vpack.c.b16 %v507, %v506
        %v518 = vpack.c.b16 %v509, %v508
        %v519 = vpack.c.b16 %v511, %v510
        %528 = vst [vmem:[%s217] sm:$0xff] %v512
        %529 = vst [vmem:[%s217 + $0x8] sm:$0xff] %v513
        %530 = vst [vmem:[%s217 + $0x10] sm:$0xff] %v514
        %531 = vst [vmem:[%s217 + $0x18] sm:$0xff] %v515
        %532 = vst [vmem:[%s217 + $0x20] sm:$0xff] %v516
        %533 = vst [vmem:[%s217 + $0x28] sm:$0xff] %v517
        %534 = vst [vmem:[%s217 + $0x30] sm:$0xff] %v518
        %535 = vst [vmem:[%s217 + $0x38] sm:$0xff] %v519
        %s536 = sand.u32 %s97, 1
        %s537 = scalar_lea.sflag [#allocation4], %s536
        %s538 = sand.u32 %s97, 1
        %s539 = smul.addr %s538, 64
        %s540 = scalar_lea.vmem [#allocation8], %s539
        // Predicated region
        $region45: #{_forward.9} parent=31 // pred_check
          %p541 = pneg %p107
        $region46: #{_forward.9} parent=31 // pred_check_branch
          %543 = sbr.rel (%p541) target = $region48
        $region47: #{_forward.9} parent=31 // pred_region
          %s545 = ssub.s32 1024, 1024
          %546 = vsyncadd %s537, %s545
          %s547 = smul.addr %s21, 16
          %s548 = smul.addr %s547, 64
          %s549 = scalar_lea.hbm %s3, %s548
          %s550 = sshll.u32 %s540, 4
          %s551 = int_to_ptr.vmem [resolvable:$true] %s550
          %556 = dma.vmem_to_hbm [thread:$0]  %s551, 1024, %s549, %s537, 128, 128, 8
        $region48: #{_forward.9} parent=31 // pred_fallthru
          _
      $region32: #{_forward.9} parent=5 // pred_fallthru
        _
      %p557 = scmp.le.s32.totalorder 2, %s16
      // Predicated region
      $region49: #{_forward.9} parent=5 // pred_check
        %p558 = pneg %p557
      $region50: #{_forward.9} parent=5 // pred_check_branch
        %560 = sbr.rel (%p558) target = $region52
      $region51: #{_forward.9} parent=5 // pred_region
        %s561 = ssub.s32 %s16, 2
        // Predicated region
        $region53: #{_forward.9} parent=51 // pred_check
          %p562 = pneg %p113
        $region54: #{_forward.9} parent=51 // pred_check_branch
          %564 = sbr.rel (%p562) target = $region56
        $region55: #{_forward.9} parent=51 // pred_region
          %s565 = sand.u32 %s98, 1
          %s566 = scalar_lea.sflag [#allocation4], %s565
          %s567 = sand.u32 %s98, 1
          %s568 = smul.addr %s567, 64
          %s569 = scalar_lea.vmem [#allocation8], %s568
          %570 = dma.done %s566, 1024
        $region56: #{_forward.9} parent=51 // pred_fallthru
          _
      $region52: #{_forward.9} parent=5 // pred_fallthru
        _
    $region6: #{_forward.9} parent=1 // loop_footer
      %s20 = sadd.s32 1, %s16
    $region7: #{_forward.9} parent=1 // loop_footer_branch
      %15 = sbr.rel target = $region3
    $region8: #{_forward.9} parent=1 // loop_exit
      _
    %571 = vsyncpa [#allocation3], 1
    %s572 = scalar_lea.sflag [#allocation3], 1
    %573 = vsyncpa %s572, 1
    %574 = vsyncpa [#allocation6], 1
    %575 = vsyncpa [#allocation4], 1
    %s576 = scalar_lea.sflag [#allocation4], 1
    %577 = vsyncpa %s576, 1

// kernel: _forward.10
$region0: #{_forward.10}
  #allocation0 [shape = 'u32[]', space=smem, size = 0x4, offset = 0x4, fixed_abs, tag = 'smem constant byte address 0x4 - core index']
  #allocation1 [shape = 'u32[144,128]{1,0:T(1,128)}', space=vmem, size = 0x12000, scoped, tag = 'internal scratch']
  %s0 = inlined_call_operand.hbm [shape: bf16[2,64,640], index: 0, kind: input, shape index: {}]
  %s1 = inlined_call_operand.hbm [shape: bf16[5,32,320], index: 1, kind: input, shape index: {}]
  %s2 = inlined_call_operand.hbm [shape: f32[32,1], index: 2, kind: input, shape index: {}]
  %s3 = inlined_call_operand.hbm [shape: s32[1,256], index: 3, kind: input, shape index: {}]
  %s4 = inlined_call_operand.hbm [shape: bf16[2,32,256], index: 4, kind: output, shape index: {}]
  %s5 = sld [smem:[#allocation0]]
  $region65: #{_forward.10} parent=0
    _
  %s7 = ssub.s32 1, %s5
  %s8 = scalar_select 0, %s7, %s5
  $region1: #{_forward.10} parent=0
    #allocation2 [shape = 'u8[163840]{0}', space=vmem, size = 0x28000, scoped, tag = 'input window, operand 0']
    #allocation3 [shape = 's32[2]{0}', space=sflag, size = 0x8, scoped, tag = 'scoped memory for _forward.10']
    #allocation4 [shape = 's32[2]{0}', space=sflag, size = 0x8, scoped, tag = 'scoped memory for _forward.10']
    #allocation5 [shape = 'u8[122880]{0}', space=vmem, size = 0x1e000, scoped, tag = 'input window, operand 1, single buffered']
    #allocation6 [shape = 's32[1]{0}', space=sflag, size = 0x4, scoped, tag = 'scoped memory for _forward.10']
    #allocation7 [shape = 'u8[16384]{0}', space=vmem, size = 0x4000, scoped, tag = 'input window, operand 2, single buffered']
    #allocation8 [shape = 'u8[1024]{0}', space=vmem, size = 0x400, scoped, tag = 'input window, operand 3, single buffered']
    #allocation9 [shape = 's32[1]{0}', space=sflag, size = 0x4, scoped, tag = 'scoped memory for _forward.10']
    #allocation10 [shape = 'u8[32768]{0}', space=vmem, size = 0x8000, scoped, tag = 'output window, operand 0']
    %9 = vsyncpa [#allocation3], 0
    %s10 = scalar_lea.sflag [#allocation3], 1
    %11 = vsyncpa %s10, 0
    %12 = vsyncpa [#allocation6], 0
    %13 = vsyncpa [#allocation9], 0
    %14 = vsyncpa [#allocation4], 0
    %s15 = scalar_lea.sflag [#allocation4], 1
    %16 = vsyncpa %s15, 0
    loop: start=0, step=1, limit=4
    $region2: #{_forward.10} parent=1 // loop_pre_header
      _
    $region3: #{_forward.10} parent=1 // loop_header
      %s18 = sphi 0, %s22
      %p19 = scmp.ge.s32.totalorder %s18, 4
      %s28 = sphi 0, %s30
      %s31 = sphi 0, %s28
      %s32 = sphi 0, %s31
      %s48 = sphi 0, %s32
      %s52 = sphi 0, %s52
      %s54 = sphi 0, %s52
      %s55 = sphi 0, %s54
      %s69 = sphi 0, %s55
      %s73 = sphi 0, %s73
      %s75 = sphi 0, %s73
      %s76 = sphi 0, %s75
      %s90 = sphi 0, %s76
      %s94 = sphi 0, %s94
      %s96 = sphi 0, %s94
      %s97 = sphi 0, %s96
      %s111 = sphi 0, %s97
      %s117 = sphi 0, %s119
      %s120 = sphi 0, %s117
      %s121 = sphi 0, %s120
      %s137 = sphi 0, %s121
    $region4: #{_forward.10} parent=1 // loop_header_branch
      %21 = sbr.rel (%p19) target = $region8
    $region5: #{_forward.10} parent=1 // loop_body
      %s23 = ssub.s32 %s18, 1
      %s24 = ssub.s32 %s18, 2
      %s25 = sadd.s32 %s18, 1
      %s26 = ssub.s32 %s18, %s25
      %p27 = scmp.eq.s32.totalorder %s26, 0
      %s29 = sadd.s32 %s28, 1
      %s30 = scalar_select %p27, %s28, %s29
      %p33 = pneg %p27
      %p34 = scmp.eq.s32.totalorder %s18, 1
      %p35 = por %p33, %p34
      %p36 = scmp.ne.s32.totalorder %s28, %s31
      %p37 = scmp.eq.s32.totalorder %s18, 0
      %p38 = por %p36, %p37
      %p39 = scmp.ne.s32.totalorder %s28, %s31
      %p40 = scmp.eq.s32.totalorder %s23, 1
      %p41 = por %p39, %p40
      %p42 = scmp.ne.s32.totalorder %s31, %s32
      %p43 = scmp.eq.s32.totalorder %s23, 0
      %p44 = por %p42, %p43
      %p45 = scmp.ne.s32.totalorder %s31, %s32
      %p46 = scmp.eq.s32.totalorder %s24, 1
      %p47 = por %p45, %p46
      %p49 = scmp.ne.s32.totalorder %s32, %s48
      %p50 = scmp.eq.s32.totalorder %s24, 0
      %p51 = por %p49, %p50
      %s53 = sadd.s32 %s52, 1
      %p56 = scmp.eq.s32.totalorder %s18, 1
      %p57 = scmp.ne.s32.totalorder %s52, %s54
      %p58 = scmp.eq.s32.totalorder %s18, 0
      %p59 = por %p57, %p58
      %p60 = scmp.ne.s32.totalorder %s52, %s54
      %p61 = scmp.eq.s32.totalorder %s23, 1
      %p62 = por %p60, %p61
      %p63 = scmp.ne.s32.totalorder %s54, %s55
      %p64 = scmp.eq.s32.totalorder %s23, 0
      %p65 = por %p63, %p64
      %p66 = scmp.ne.s32.totalorder %s54, %s55
      %p67 = scmp.eq.s32.totalorder %s24, 1
      %p68 = por %p66, %p67
      %p70 = scmp.ne.s32.totalorder %s55, %s69
      %p71 = scmp.eq.s32.totalorder %s24, 0
      %p72 = por %p70, %p71
      %s74 = sadd.s32 %s73, 1
      %p77 = scmp.eq.s32.totalorder %s18, 1
      %p78 = scmp.ne.s32.totalorder %s73, %s75
      %p79 = scmp.eq.s32.totalorder %s18, 0
      %p80 = por %p78, %p79
      %p81 = scmp.ne.s32.totalorder %s73, %s75
      %p82 = scmp.eq.s32.totalorder %s23, 1
      %p83 = por %p81, %p82
      %p84 = scmp.ne.s32.totalorder %s75, %s76
      %p85 = scmp.eq.s32.totalorder %s23, 0
      %p86 = por %p84, %p85
      %p87 = scmp.ne.s32.totalorder %s75, %s76
      %p88 = scmp.eq.s32.totalorder %s24, 1
      %p89 = por %p87, %p88
      %p91 = scmp.ne.s32.totalorder %s76, %s90
      %p92 = scmp.eq.s32.totalorder %s24, 0
      %p93 = por %p91, %p92
      %s95 = sadd.s32 %s94, 1
      %p98 = scmp.eq.s32.totalorder %s18, 1
      %p99 = scmp.ne.s32.totalorder %s94, %s96
      %p100 = scmp.eq.s32.totalorder %s18, 0
      %p101 = por %p99, %p100
      %p102 = scmp.ne.s32.totalorder %s94, %s96
      %p103 = scmp.eq.s32.totalorder %s23, 1
      %p104 = por %p102, %p103
      %p105 = scmp.ne.s32.totalorder %s96, %s97
      %p106 = scmp.eq.s32.totalorder %s23, 0
      %p107 = por %p105, %p106
      %p108 = scmp.ne.s32.totalorder %s96, %s97
      %p109 = scmp.eq.s32.totalorder %s24, 1
      %p110 = por %p108, %p109
      %p112 = scmp.ne.s32.totalorder %s97, %s111
      %p113 = scmp.eq.s32.totalorder %s24, 0
      %p114 = por %p112, %p113
      %s115 = ssub.s32 %s18, %s25
      %p116 = scmp.eq.s32.totalorder %s115, 0
      %s118 = sadd.s32 %s117, 1
      %s119 = scalar_select %p116, %s117, %s118
      %p122 = pneg %p116
      %p123 = scmp.eq.s32.totalorder %s18, 1
      %p124 = por %p122, %p123
      %p125 = scmp.ne.s32.totalorder %s117, %s120
      %p126 = scmp.eq.s32.totalorder %s18, 0
      %p127 = por %p125, %p126
      %p128 = scmp.ne.s32.totalorder %s117, %s120
      %p129 = scmp.eq.s32.totalorder %s23, 1
      %p130 = por %p128, %p129
      %p131 = scmp.ne.s32.totalorder %s120, %s121
      %p132 = scmp.eq.s32.totalorder %s23, 0
      %p133 = por %p131, %p132
      %p134 = scmp.ne.s32.totalorder %s120, %s121
      %p135 = scmp.eq.s32.totalorder %s24, 1
      %p136 = por %p134, %p135
      %p138 = scmp.ne.s32.totalorder %s121, %s137
      %p139 = scmp.eq.s32.totalorder %s24, 0
      %p140 = por %p138, %p139
      %p141 = scmp.le.s32.totalorder 1, %s18
      %p142 = scmp.lt.s32.totalorder %s18, 3
      %p143 = pnand %p141, %p142
      %p144 = pneg %p143
      // Predicated region
      $region9: #{_forward.10} parent=5 // pred_check
        _
      $region10: #{_forward.10} parent=5 // pred_check_branch
        %146 = sbr.rel (%p143) target = $region12
      $region11: #{_forward.10} parent=5 // pred_region
        %s147 = ssub.s32 %s18, 1
        // Predicated region
        $region13: #{_forward.10} parent=11 // pred_check
          %p148 = pneg %p65
        $region14: #{_forward.10} parent=11 // pred_check_branch
          %150 = sbr.rel (%p148) target = $region16
        $region15: #{_forward.10} parent=11 // pred_region
          %s152 = ssub.s32 3840, 3840
          %153 = vsyncadd [#allocation6], %s152
          %s154 = sshll.u32 [#allocation5], 4
          %s155 = int_to_ptr.vmem [resolvable:$true] %s154
          %160 = dma.hbm_to_vmem [thread:$0]  %s1, 3840, %s155, [#allocation6], 192, 192, 12
        $region16: #{_forward.10} parent=11 // pred_fallthru
          _
        // Predicated region
        $region17: #{_forward.10} parent=11 // pred_check
          %p161 = pneg %p86
        $region18: #{_forward.10} parent=11 // pred_check_branch
          %163 = sbr.rel (%p161) target = $region20
        $region19: #{_forward.10} parent=11 // pred_region
          %s165 = ssub.s32 512, 512
          %166 = vsyncadd [#allocation6], %s165
          %s167 = sshll.u32 [#allocation7], 4
          %s168 = int_to_ptr.vmem [resolvable:$true] %s167
          %173 = dma.hbm_to_vmem [thread:$0]  %s2, 512, %s168, [#allocation6], 128, 128, 8
        $region20: #{_forward.10} parent=11 // pred_fallthru
          _
        // Predicated region
        $region21: #{_forward.10} parent=11 // pred_check
          %p174 = pneg %p107
        $region22: #{_forward.10} parent=11 // pred_check_branch
          %176 = sbr.rel (%p174) target = $region24
        $region23: #{_forward.10} parent=11 // pred_region
          %s178 = ssub.s32 32, 32
          %179 = vsyncadd [#allocation9], %s178
          %s181 = sshll.u32 [#allocation8], 4
          %s182 = int_to_ptr.vmem [resolvable:$true] %s181
          %184 = dma.hbm_to_vmem [thread:$0]  %s3, 32, %s182, [#allocation9]
        $region24: #{_forward.10} parent=11 // pred_fallthru
          _
      $region12: #{_forward.10} parent=5 // pred_fallthru
        _
      %p185 = scmp.lt.s32.totalorder %s18, 2
      // Predicated region
      $region25: #{_forward.10} parent=5 // pred_check
        %p186 = pneg %p185
      $region26: #{_forward.10} parent=5 // pred_check_branch
        %188 = sbr.rel (%p186) target = $region28
      $region27: #{_forward.10} parent=5 // pred_region
        // Predicated region
        $region29: #{_forward.10} parent=27 // pred_check
          %p189 = pneg %p38
        $region30: #{_forward.10} parent=27 // pred_check_branch
          %191 = sbr.rel (%p189) target = $region32
        $region31: #{_forward.10} parent=27 // pred_region
          %s192 = sand.u32 %s28, 1
          %s193 = scalar_lea.sflag [#allocation3], %s192
          %s194 = sand.u32 %s28, 1
          %s195 = smul.addr %s194, 160
          %s196 = scalar_lea.vmem [#allocation2], %s195
          %s198 = ssub.s32 2560, 2560
          %199 = vsyncadd %s193, %s198
          %s200 = smul.addr %s18, 40
          %s201 = smul.addr %s200, 64
          %s202 = scalar_lea.hbm %s0, %s201
          %s203 = sshll.u32 %s196, 4
          %s204 = int_to_ptr.vmem [resolvable:$true] %s203
          %209 = dma.hbm_to_vmem [thread:$0]  %s202, 2560, %s204, %s193, 320, 320, 20
        $region32: #{_forward.10} parent=27 // pred_fallthru
          _
      $region28: #{_forward.10} parent=5 // pred_fallthru
        _
      %p210 = scmp.le.s32.totalorder 1, %s18
      %p211 = scmp.lt.s32.totalorder %s18, 3
      %p212 = pnand %p210, %p211
      %p213 = pneg %p212
      // Predicated region
      $region33: #{_forward.10} parent=5 // pred_check
        _
      $region34: #{_forward.10} parent=5 // pred_check_branch
        %215 = sbr.rel (%p212) target = $region36
      $region35: #{_forward.10} parent=5 // pred_region
        %s216 = ssub.s32 %s18, 1
        %s217 = sand.u32 %s31, 1
        %s218 = scalar_lea.sflag [#allocation3], %s217
        %s219 = sand.u32 %s31, 1
        %s220 = smul.addr %s219, 160
        %s221 = scalar_lea.vmem [#allocation2], %s220
        // Predicated region
        $region37: #{_forward.10} parent=35 // pred_check
          %p222 = pneg %p44
        $region38: #{_forward.10} parent=35 // pred_check_branch
          %224 = sbr.rel (%p222) target = $region40
        $region39: #{_forward.10} parent=35 // pred_region
          %225 = dma.done %s218, 2560
        $region40: #{_forward.10} parent=35 // pred_fallthru
          _
        // Predicated region
        $region41: #{_forward.10} parent=35 // pred_check
          %p226 = pneg %p65
        $region42: #{_forward.10} parent=35 // pred_check_branch
          %228 = sbr.rel (%p226) target = $region44
        $region43: #{_forward.10} parent=35 // pred_region
          %229 = dma.done [#allocation6], 3840
        $region44: #{_forward.10} parent=35 // pred_fallthru
          _
        // Predicated region
        $region45: #{_forward.10} parent=35 // pred_check
          %p230 = pneg %p86
        $region46: #{_forward.10} parent=35 // pred_check_branch
          %232 = sbr.rel (%p230) target = $region48
        $region47: #{_forward.10} parent=35 // pred_region
          %233 = dma.done [#allocation6], 512
        $region48: #{_forward.10} parent=35 // pred_fallthru
          _
        // Predicated region
        $region49: #{_forward.10} parent=35 // pred_check
          %p234 = pneg %p107
        $region50: #{_forward.10} parent=35 // pred_check_branch
          %236 = sbr.rel (%p234) target = $region52
        $region51: #{_forward.10} parent=35 // pred_region
          %237 = dma.done [#allocation9], 32
        $region52: #{_forward.10} parent=35 // pred_fallthru
          _
        %s238 = sand.u32 %s31, 1
        %s239 = scalar_lea.sflag [#allocation3], %s238
        %s240 = sand.u32 %s31, 1
        %s241 = smul.addr %s240, 160
        %s242 = scalar_lea.vmem [#allocation2], %s241
        %p243 = pneg %p44
        %p244 = pneg %p41
        %p245 = pneg %p65
        %p246 = pneg %p62
        %p247 = pneg %p86
        %p248 = pneg %p83
        %p249 = pneg %p107
        %p250 = pneg %p104
        %p251 = pneg %p133
        %p252 = pneg %p130
        %s253 = sand.u32 %s120, 1
        %s254 = scalar_lea.sflag [#allocation4], %s253
        %s255 = sand.u32 %s120, 1
        %s256 = smul.addr %s255, 32
        %s257 = scalar_lea.vmem [#allocation10], %s256
        %v259 = vld [vmem:[#allocation8] sm:$0x3]
        %v260 = vld [vmem:[%s221] sm:$0xff]
        %v261 = vld [vmem:[%s221 + $0x14] sm:$0xff]
        %v262 = vld [vmem:[%s221 + $0x28] sm:$0xff]
        %v263 = vld [vmem:[%s221 + $0x3c] sm:$0xff]
        %v264 = vld [vmem:[%s221 + $0x50] sm:$0xff]
        %v265 = vld [vmem:[%s221 + $0x64] sm:$0xff]
        %v266 = vld [vmem:[%s221 + $0x78] sm:$0xff]
        %v267 = vld [vmem:[%s221 + $0x8c] sm:$0xff]
        %v268 = vld [vmem:[%s221 + $0x8] sm:$0xf]
        %v269 = vld [vmem:[%s221 + $0x1c] sm:$0xf]
        %v270 = vld [vmem:[%s221 + $0x30] sm:$0xf]
        %v271 = vld [vmem:[%s221 + $0x44] sm:$0xf]
        %v272 = vld [vmem:[%s221 + $0x58] sm:$0xf]
        %v273 = vld [vmem:[%s221 + $0x6c] sm:$0xf]
        %v274 = vld [vmem:[%s221 + $0x80] sm:$0xf]
        %v275 = vld [vmem:[%s221 + $0x94] sm:$0xf]
        %v276 = vld [vmem:[%s221 + $0x4] sm:$0xff]
        %v277 = vld [vmem:[%s221 + $0x18] sm:$0xff]
        %v278 = vld [vmem:[%s221 + $0x2c] sm:$0xff]
        %v279 = vld [vmem:[%s221 + $0x40] sm:$0xff]
        %v280 = vld [vmem:[%s221 + $0x54] sm:$0xff]
        %v281 = vld [vmem:[%s221 + $0x68] sm:$0xff]
        %v282 = vld [vmem:[%s221 + $0x7c] sm:$0xff]
        %v283 = vld [vmem:[%s221 + $0x90] sm:$0xff]
        %v284 = vld [vmem:[%s221 + $0xc] sm:$0xf]
        %v285 = vld [vmem:[%s221 + $0x20] sm:$0xf]
        %v286 = vld [vmem:[%s221 + $0x34] sm:$0xf]
        %v287 = vld [vmem:[%s221 + $0x48] sm:$0xf]
        %v288 = vld [vmem:[%s221 + $0x5c] sm:$0xf]
        %v289 = vld [vmem:[%s221 + $0x70] sm:$0xf]
        %v290 = vld [vmem:[%s221 + $0x84] sm:$0xf]
        %v291 = vld [vmem:[%s221 + $0x98] sm:$0xf]
        %v292 = vld [vmem:[%s221 + $0x8] sm:$0xff]
        %v293 = vld [vmem:[%s221 + $0x1c] sm:$0xff]
        %v294 = vld [vmem:[%s221 + $0x30] sm:$0xff]
        %v295 = vld [vmem:[%s221 + $0x44] sm:$0xff]
        %v296 = vld [vmem:[%s221 + $0x58] sm:$0xff]
        %v297 = vld [vmem:[%s221 + $0x6c] sm:$0xff]
        %v298 = vld [vmem:[%s221 + $0x80] sm:$0xff]
        %v299 = vld [vmem:[%s221 + $0x94] sm:$0xff]
        %v308 = vunpack.c.l.b16 %v260
        %v309 = vunpack.c.h.b16 %v260
        %v310 = vunpack.c.l.b16 %v261
        %v311 = vunpack.c.h.b16 %v261
        %v312 = vunpack.c.l.b16 %v262
        %v313 = vunpack.c.h.b16 %v262
        %v314 = vunpack.c.l.b16 %v263
        %v315 = vunpack.c.h.b16 %v263
        %v316 = vunpack.c.l.b16 %v264
        %v317 = vunpack.c.h.b16 %v264
        %v318 = vunpack.c.l.b16 %v265
        %v319 = vunpack.c.h.b16 %v265
        %v320 = vunpack.c.l.b16 %v266
        %v321 = vunpack.c.h.b16 %v266
        %v322 = vunpack.c.l.b16 %v267
        %v323 = vunpack.c.h.b16 %v267
        %v324 = vpack.c.b16 %v310, %v308
        %v325 = vpack.c.b16 %v311, %v309
        %v326 = vpack.c.b16 %v314, %v312
        %v327 = vpack.c.b16 %v315, %v313
        %v328 = vpack.c.b16 %v318, %v316
        %v329 = vpack.c.b16 %v319, %v317
        %v330 = vpack.c.b16 %v322, %v320
        %v331 = vpack.c.b16 %v323, %v321
        %v348 = vunpack.c.l.b16 %v268
        %v349 = vunpack.c.l.b16 %v269
        %v350 = vunpack.c.l.b16 %v270
        %v351 = vunpack.c.l.b16 %v271
        %v352 = vunpack.c.l.b16 %v272
        %v353 = vunpack.c.l.b16 %v273
        %v354 = vunpack.c.l.b16 %v274
        %v355 = vunpack.c.l.b16 %v275
        %v356 = vpack.c.b16 %v349, %v348
        %v357 = vpack.c.b16 %v351, %v350
        %v358 = vpack.c.b16 %v353, %v352
        %v359 = vpack.c.b16 %v355, %v354
        %360 = vrot.lane.b32.xlu0 %v324, 64
        %v361 = vpop.permute.xlu0 %360
        %362 = vrot.lane.b32.xlu0 %v325, 64
        %v363 = vpop.permute.xlu0 %362
        %364 = vrot.lane.b32.xlu0 %v356, 64
        %v365 = vpop.permute.xlu0 %364
        %366 = vrot.lane.b32.xlu0 %v326, 64
        %v367 = vpop.permute.xlu0 %366
        %368 = vrot.lane.b32.xlu0 %v327, 64
        %v369 = vpop.permute.xlu0 %368
        %370 = vrot.lane.b32.xlu0 %v357, 64
        %v371 = vpop.permute.xlu0 %370
        %372 = vrot.lane.b32.xlu0 %v328, 64
        %v373 = vpop.permute.xlu0 %372
        %374 = vrot.lane.b32.xlu0 %v329, 64
        %v375 = vpop.permute.xlu0 %374
        %376 = vrot.lane.b32.xlu0 %v358, 64
        %v377 = vpop.permute.xlu0 %376
        %378 = vrot.lane.b32.xlu0 %v330, 64
        %v379 = vpop.permute.xlu0 %378
        %380 = vrot.lane.b32.xlu0 %v331, 64
        %v381 = vpop.permute.xlu0 %380
        %382 = vrot.lane.b32.xlu0 %v359, 64
        %v383 = vpop.permute.xlu0 %382
        %vm384 = vcmask 523264
        %v385 = vsel %vm384, %v361, %v363
        %v386 = vsel %vm384, %v363, %v365
        %v387 = vsel %vm384, %v367, %v369
        %v388 = vsel %vm384, %v369, %v371
        %v389 = vsel %vm384, %v373, %v375
        %v390 = vsel %vm384, %v375, %v377
        %v391 = vsel %vm384, %v379, %v381
        %v392 = vsel %vm384, %v381, %v383
        %v409 = vunpack.c.l.b16 %v276
        %v410 = vunpack.c.h.b16 %v276
        %v411 = vunpack.c.l.b16 %v277
        %v412 = vunpack.c.h.b16 %v277
        %v413 = vunpack.c.l.b16 %v278
        %v414 = vunpack.c.h.b16 %v278
        %v415 = vunpack.c.l.b16 %v279
        %v416 = vunpack.c.h.b16 %v279
        %v417 = vunpack.c.l.b16 %v280
        %v418 = vunpack.c.h.b16 %v280
        %v419 = vunpack.c.l.b16 %v281
        %v420 = vunpack.c.h.b16 %v281
        %v421 = vunpack.c.l.b16 %v282
        %v422 = vunpack.c.h.b16 %v282
        %v423 = vunpack.c.l.b16 %v283
        %v424 = vunpack.c.h.b16 %v283
        %v425 = vpack.c.b16 %v411, %v409
        %v426 = vpack.c.b16 %v412, %v410
        %v427 = vpack.c.b16 %v415, %v413
        %v428 = vpack.c.b16 %v416, %v414
        %v429 = vpack.c.b16 %v419, %v417
        %v430 = vpack.c.b16 %v420, %v418
        %v431 = vpack.c.b16 %v423, %v421
        %v432 = vpack.c.b16 %v424, %v422
        %v449 = vunpack.c.l.b16 %v284
        %v450 = vunpack.c.l.b16 %v285
        %v451 = vunpack.c.l.b16 %v286
        %v452 = vunpack.c.l.b16 %v287
        %v453 = vunpack.c.l.b16 %v288
        %v454 = vunpack.c.l.b16 %v289
        %v455 = vunpack.c.l.b16 %v290
        %v456 = vunpack.c.l.b16 %v291
        %v457 = vpack.c.b16 %v450, %v449
        %v458 = vpack.c.b16 %v452, %v451
        %v459 = vpack.c.b16 %v454, %v453
        %v460 = vpack.c.b16 %v456, %v455
        %461 = vrot.lane.b32.xlu0 %v425, 64
        %v462 = vpop.permute.xlu0 %461
        %463 = vrot.lane.b32.xlu0 %v426, 64
        %v464 = vpop.permute.xlu0 %463
        %465 = vrot.lane.b32.xlu0 %v457, 64
        %v466 = vpop.permute.xlu0 %465
        %467 = vrot.lane.b32.xlu0 %v427, 64
        %v468 = vpop.permute.xlu0 %467
        %469 = vrot.lane.b32.xlu0 %v428, 64
        %v470 = vpop.permute.xlu0 %469
        %471 = vrot.lane.b32.xlu0 %v458, 64
        %v472 = vpop.permute.xlu0 %471
        %473 = vrot.lane.b32.xlu0 %v429, 64
        %v474 = vpop.permute.xlu0 %473
        %475 = vrot.lane.b32.xlu0 %v430, 64
        %v476 = vpop.permute.xlu0 %475
        %477 = vrot.lane.b32.xlu0 %v459, 64
        %v478 = vpop.permute.xlu0 %477
        %479 = vrot.lane.b32.xlu0 %v431, 64
        %v480 = vpop.permute.xlu0 %479
        %481 = vrot.lane.b32.xlu0 %v432, 64
        %v482 = vpop.permute.xlu0 %481
        %483 = vrot.lane.b32.xlu0 %v460, 64
        %v484 = vpop.permute.xlu0 %483
        %v485 = vsel %vm384, %v462, %v464
        %v486 = vsel %vm384, %v464, %v466
        %v487 = vsel %vm384, %v468, %v470
        %v488 = vsel %vm384, %v470, %v472
        %v489 = vsel %vm384, %v474, %v476
        %v490 = vsel %vm384, %v476, %v478
        %v491 = vsel %vm384, %v480, %v482
        %v492 = vsel %vm384, %v482, %v484
        %v509 = vunpack.c.l.b16 %v292
        %v510 = vunpack.c.h.b16 %v292
        %v511 = vunpack.c.l.b16 %v293
        %v512 = vunpack.c.h.b16 %v293
        %v513 = vunpack.c.l.b16 %v294
        %v514 = vunpack.c.h.b16 %v294
        %v515 = vunpack.c.l.b16 %v295
        %v516 = vunpack.c.h.b16 %v295
        %v517 = vunpack.c.l.b16 %v296
        %v518 = vunpack.c.h.b16 %v296
        %v519 = vunpack.c.l.b16 %v297
        %v520 = vunpack.c.h.b16 %v297
        %v521 = vunpack.c.l.b16 %v298
        %v522 = vunpack.c.h.b16 %v298
        %v523 = vunpack.c.l.b16 %v299
        %v524 = vunpack.c.h.b16 %v299
        %v525 = vpack.c.b16 %v511, %v509
        %v526 = vpack.c.b16 %v512, %v510
        %v527 = vpack.c.b16 %v515, %v513
        %v528 = vpack.c.b16 %v516, %v514
        %v529 = vpack.c.b16 %v519, %v517
        %v530 = vpack.c.b16 %v520, %v518
        %v531 = vpack.c.b16 %v523, %v521
        %v532 = vpack.c.b16 %v524, %v522
        %v541 = vld [vmem:[#allocation5] sm:$0xff]
        %v542 = vld [vmem:[#allocation5 + $0x8] sm:$0xf]
        %v543 = vld [vmem:[#allocation5 + $0xc] sm:$0xff]
        %v544 = vld [vmem:[#allocation5 + $0x14] sm:$0xf]
        %v545 = vld [vmem:[#allocation5 + $0x18] sm:$0xff]
        %v546 = vld [vmem:[#allocation5 + $0x20] sm:$0xf]
        %v547 = vld [vmem:[#allocation5 + $0x24] sm:$0xff]
        %v548 = vld [vmem:[#allocation5 + $0x2c] sm:$0xf]
        %v557 = vunpack.c.l.b16 %v541
        %v558 = vunpack.c.h.b16 %v541
        %v559 = vunpack.c.l.b16 %v542
        %v560 = vunpack.c.l.b16 %v543
        %v561 = vunpack.c.h.b16 %v543
        %v562 = vunpack.c.l.b16 %v544
        %v563 = vunpack.c.l.b16 %v545
        %v564 = vunpack.c.h.b16 %v545
        %v565 = vunpack.c.l.b16 %v546
        %v566 = vunpack.c.l.b16 %v547
        %v567 = vunpack.c.h.b16 %v547
        %v568 = vunpack.c.l.b16 %v548
        %v569 = vpack.c.b16 %v560, %v557
        %v570 = vpack.c.b16 %v561, %v558
        %v571 = vpack.c.b16 %v562, %v559
        %v572 = vpack.c.b16 %v566, %v563
        %v573 = vpack.c.b16 %v567, %v564
        %v574 = vpack.c.b16 %v568, %v565
        %vm579 = vcmask 523264
        %v581 = vsel %vm579, %v571, 0
        %v584 = vsel %vm579, %v574, 0
        %586 = vmatprep.subr.bf16.mxu0 %v325
        %587 = vmatpush1.bf16.msra.mxu0 %v324
        %588 = vmatprep.subr.bf16.mxu0 %v327
        %589 = vmatpush1.bf16.msra.mxu0 %v326
        %590 = vmatprep.subr.bf16.mxu0 %v329
        %591 = vmatpush1.bf16.msra.mxu0 %v328
        %592 = vmatprep.subr.bf16.mxu0 %v331
        %593 = vmatpush1.bf16.msra.mxu0 %v330
        %594 = vmatprep.subr.bf16.mxu0 %v386
        %595 = vmatpush1.bf16.msra.mxu0 %v385
        %596 = vmatprep.subr.bf16.mxu0 %v388
        %597 = vmatpush1.bf16.msra.mxu0 %v387
        %598 = vmatprep.subr.bf16.mxu0 %v390
        %599 = vmatpush1.bf16.msra.mxu0 %v389
        %600 = vmatprep.subr.bf16.mxu0 %v392
        %601 = vmatpush1.bf16.msra.mxu0 %v391
        %602 = vmatprep.subr.bf16.mxu0 %v426
        %603 = vmatpush1.bf16.msra.mxu0 %v425
        %604 = vmatprep.subr.bf16.mxu0 %v428
        %605 = vmatpush1.bf16.msra.mxu0 %v427
        %606 = vmatprep.subr.bf16.mxu0 %v430
        %607 = vmatpush1.bf16.msra.mxu0 %v429
        %608 = vmatprep.subr.bf16.mxu0 %v432
        %609 = vmatpush1.bf16.msra.mxu0 %v431
        %610 = vmatprep.subr.bf16.mxu0 %v486
        %611 = vmatpush1.bf16.msra.mxu0 %v485
        %612 = vmatprep.subr.bf16.mxu0 %v488
        %613 = vmatpush1.bf16.msra.mxu0 %v487
        %614 = vmatprep.subr.bf16.mxu0 %v490
        %615 = vmatpush1.bf16.msra.mxu0 %v489
        %616 = vmatprep.subr.bf16.mxu0 %v492
        %617 = vmatpush1.bf16.msra.mxu0 %v491
        %618 = vmatprep.mubr.bf16.mxu0 %v570
        %619 = vmatmul.mubr.bf16.gmra.mrb[0].mxu0 %v569
        %v620 = vpop.f32.mrb[0].mxu0
        %v621 = vadd.f32 0.0, %v620
        %v622 = vpop.f32.mrb[0].mxu0
        %v623 = vadd.f32 0.0, %v622
        %v624 = vpop.f32.mrb[0].mxu0
        %v625 = vadd.f32 0.0, %v624
        %v626 = vpop.f32.mrb[0].mxu0
        %v627 = vadd.f32 0.0, %v626
        %628 = vmatprep.mubr.bf16.mxu0 %v573
        %629 = vmatmul.mubr.bf16.gmra.mrb[0].mxu0 %v572
        %v630 = vpop.f32.mrb[0].mxu0
        %v631 = vadd.f32 0.0, %v630
        %v632 = vpop.f32.mrb[0].mxu0
        %v633 = vadd.f32 0.0, %v632
        %v634 = vpop.f32.mrb[0].mxu0
        %v635 = vadd.f32 0.0, %v634
        %v636 = vpop.f32.mrb[0].mxu0
        %v637 = vadd.f32 0.0, %v636
        %638 = vdwg.mxu0
        %639 = vmatprep.subr.bf16.mxu0 %v526
        %640 = vmatpush1.bf16.msra.mxu0 %v525
        %641 = vmatprep.subr.bf16.mxu0 %v528
        %642 = vmatpush1.bf16.msra.mxu0 %v527
        %643 = vmatprep.subr.bf16.mxu0 %v530
        %644 = vmatpush1.bf16.msra.mxu0 %v529
        %645 = vmatprep.subr.bf16.mxu0 %v532
        %646 = vmatpush1.bf16.msra.mxu0 %v531
        %647 = vmatprep.subr.bf16.mxu0 0
        %648 = vmatpush1.bf16.msra.mxu0 0
        %649 = vmatprep.subr.bf16.mxu0 0
        %650 = vmatpush1.bf16.msra.mxu0 0
        %651 = vmatprep.subr.bf16.mxu0 0
        %652 = vmatpush1.bf16.msra.mxu0 0
        %653 = vmatprep.subr.bf16.mxu0 0
        %654 = vmatpush1.bf16.msra.mxu0 0
        %655 = vmatprep.subr.bf16.mxu0 0
        %656 = vmatpush1.bf16.msra.mxu0 0
        %657 = vmatprep.subr.bf16.mxu0 0
        %658 = vmatpush1.bf16.msra.mxu0 0
        %659 = vmatprep.subr.bf16.mxu0 0
        %660 = vmatpush1.bf16.msra.mxu0 0
        %661 = vmatprep.subr.bf16.mxu0 0
        %662 = vmatpush1.bf16.msra.mxu0 0
        %663 = vmatprep.subr.bf16.mxu0 0
        %664 = vmatpush1.bf16.msra.mxu0 0
        %665 = vmatprep.subr.bf16.mxu0 0
        %666 = vmatpush1.bf16.msra.mxu0 0
        %667 = vmatprep.subr.bf16.mxu0 0
        %668 = vmatpush1.bf16.msra.mxu0 0
        %669 = vmatprep.subr.bf16.mxu0 0
        %670 = vmatpush1.bf16.msra.mxu0 0
        %671 = vmatprep.mubr.bf16.mxu0 0
        %672 = vmatmul.mubr.bf16.gmra.mrb[0].mxu0 %v581
        %v673 = vpop.f32.mrb[0].mxu0
        %v674 = vadd.f32 %v621, %v673
        %v675 = vpop.f32.mrb[0].mxu0
        %v676 = vadd.f32 %v623, %v675
        %v677 = vpop.f32.mrb[0].mxu0
        %v678 = vadd.f32 %v625, %v677
        %v679 = vpop.f32.mrb[0].mxu0
        %v680 = vadd.f32 %v627, %v679
        %681 = vmatprep.mubr.bf16.mxu0 0
        %682 = vmatmul.mubr.bf16.gmra.mrb[0].mxu0 %v584
        %v683 = vpop.f32.mrb[0].mxu0
        %v684 = vadd.f32 %v631, %v683
        %v685 = vpop.f32.mrb[0].mxu0
        %v686 = vadd.f32 %v633, %v685
        %v687 = vpop.f32.mrb[0].mxu0
        %v688 = vadd.f32 %v635, %v687
        %v689 = vpop.f32.mrb[0].mxu0
        %v690 = vadd.f32 %v637, %v689
        %691 = vdwg.mxu0
        %vm692 = vcmp.ge.s32.totalorder %v259, 8
        %vm693 = vcmp.lt.s32.totalorder %v259, 24
        %vm694 = vmand %vm692, %vm693
        %v695 = vsel %vm694, 1, 0
        %v696 = vlaneseq
        %v697 = vshrl.u32 %v696, 7
        %v698 = vsub.s32 0, %v697
        %v699 = vrot.slane %v695, %v698
        %v700 = vlaneseq
        %v701 = vshrl.u32 %v700, 7
        %v702 = vsub.s32 1, %v701
        %v703 = vrot.slane %v695, %v702
        %vm704 = vcmp.eq.s32.totalorder %v699, 1
        %vm705 = vcmp.eq.s32.totalorder %v703, 1
        %v706 = vsel %vm704, %v674, 0.0
        %v707 = vsel %vm705, %v676, 0.0
        %v708 = vsel %vm704, %v678, 0.0
        %v709 = vsel %vm705, %v680, 0.0
        %v710 = vsel %vm704, %v684, 0.0
        %v711 = vsel %vm705, %v686, 0.0
        %v712 = vsel %vm704, %v688, 0.0
        %v713 = vsel %vm705, %v690, 0.0
        %v714 = vadd.f32 %v706, 0.0
        %v715 = vadd.f32 %v707, 0.0
        %v716 = vadd.f32 %v708, 0.0
        %v717 = vadd.f32 %v709, 0.0
        %v718 = vadd.f32 %v710, 0.0
        %v719 = vadd.f32 %v711, 0.0
        %v720 = vadd.f32 %v712, 0.0
        %v721 = vadd.f32 %v713, 0.0
        %v722 = vld [vmem:[%s221 + $0x8] sm:$0xff]
        %v723 = vld [vmem:[%s221 + $0x10] sm:$0xf]
        %v724 = vld [vmem:[%s221 + $0x1c] sm:$0xff]
        %v725 = vld [vmem:[%s221 + $0x24] sm:$0xf]
        %v726 = vld [vmem:[%s221 + $0x30] sm:$0xff]
        %v727 = vld [vmem:[%s221 + $0x38] sm:$0xf]
        %v728 = vld [vmem:[%s221 + $0x44] sm:$0xff]
        %v729 = vld [vmem:[%s221 + $0x4c] sm:$0xf]
        %v730 = vld [vmem:[%s221 + $0x58] sm:$0xff]
        %v731 = vld [vmem:[%s221 + $0x60] sm:$0xf]
        %v732 = vld [vmem:[%s221 + $0x6c] sm:$0xff]
        %v733 = vld [vmem:[%s221 + $0x74] sm:$0xf]
        %v734 = vld [vmem:[%s221 + $0x80] sm:$0xff]
        %v735 = vld [vmem:[%s221 + $0x88] sm:$0xf]
        %v736 = vld [vmem:[%s221 + $0x94] sm:$0xff]
        %v737 = vld [vmem:[%s221 + $0x9c] sm:$0xf]
        %v754 = vunpack.c.l.b16 %v722
        %v755 = vunpack.c.h.b16 %v722
        %v756 = vunpack.c.l.b16 %v723
        %v757 = vunpack.c.l.b16 %v724
        %v758 = vunpack.c.h.b16 %v724
        %v759 = vunpack.c.l.b16 %v725
        %v760 = vunpack.c.l.b16 %v726
        %v761 = vunpack.c.h.b16 %v726
        %v762 = vunpack.c.l.b16 %v727
        %v763 = vunpack.c.l.b16 %v728
        %v764 = vunpack.c.h.b16 %v728
        %v765 = vunpack.c.l.b16 %v729
        %v766 = vunpack.c.l.b16 %v730
        %v767 = vunpack.c.h.b16 %v730
        %v768 = vunpack.c.l.b16 %v731
        %v769 = vunpack.c.l.b16 %v732
        %v770 = vunpack.c.h.b16 %v732
        %v771 = vunpack.c.l.b16 %v733
        %v772 = vunpack.c.l.b16 %v734
        %v773 = vunpack.c.h.b16 %v734
        %v774 = vunpack.c.l.b16 %v735
        %v775 = vunpack.c.l.b16 %v736
        %v776 = vunpack.c.h.b16 %v736
        %v777 = vunpack.c.l.b16 %v737
        %v778 = vpack.c.b16 %v757, %v754
        %v779 = vpack.c.b16 %v758, %v755
        %v780 = vpack.c.b16 %v759, %v756
        %v781 = vpack.c.b16 %v763, %v760
        %v782 = vpack.c.b16 %v764, %v761
        %v783 = vpack.c.b16 %v765, %v762
        %v784 = vpack.c.b16 %v769, %v766
        %v785 = vpack.c.b16 %v770, %v767
        %v786 = vpack.c.b16 %v771, %v768
        %v787 = vpack.c.b16 %v775, %v772
        %v788 = vpack.c.b16 %v776, %v773
        %v789 = vpack.c.b16 %v777, %v774
        %s790 = scalar_lea.vmem [#allocation5], 48
        %v791 = vld [vmem:[%s790] sm:$0xff]
        %v792 = vld [vmem:[%s790 + $0x8] sm:$0xf]
        %v793 = vld [vmem:[%s790 + $0xc] sm:$0xff]
        %v794 = vld [vmem:[%s790 + $0x14] sm:$0xf]
        %v795 = vld [vmem:[%s790 + $0x18] sm:$0xff]
        %v796 = vld [vmem:[%s790 + $0x20] sm:$0xf]
        %v797 = vld [vmem:[%s790 + $0x24] sm:$0xff]
        %v798 = vld [vmem:[%s790 + $0x2c] sm:$0xf]
        %v807 = vunpack.c.l.b16 %v791
        %v808 = vunpack.c.h.b16 %v791
        %v809 = vunpack.c.l.b16 %v792
        %v810 = vunpack.c.l.b16 %v793
        %v811 = vunpack.c.h.b16 %v793
        %v812 = vunpack.c.l.b16 %v794
        %v813 = vunpack.c.l.b16 %v795
        %v814 = vunpack.c.h.b16 %v795
        %v815 = vunpack.c.l.b16 %v796
        %v816 = vunpack.c.l.b16 %v797
        %v817 = vunpack.c.h.b16 %v797
        %v818 = vunpack.c.l.b16 %v798
        %v819 = vpack.c.b16 %v810, %v807
        %v820 = vpack.c.b16 %v811, %v808
        %v821 = vpack.c.b16 %v812, %v809
        %v822 = vpack.c.b16 %v816, %v813
        %v823 = vpack.c.b16 %v817, %v814
        %v824 = vpack.c.b16 %v818, %v815
        %829 = vrot.lane.b32.xlu0 %v324, 124
        %v830 = vpop.permute.xlu0 %829
        %831 = vrot.lane.b32.xlu0 %v325, 124
        %v832 = vpop.permute.xlu0 %831
        %833 = vrot.lane.b32.xlu0 %v356, 124
        %v834 = vpop.permute.xlu0 %833
        %835 = vrot.lane.b32.xlu0 %v326, 124
        %v836 = vpop.permute.xlu0 %835
        %837 = vrot.lane.b32.xlu0 %v327, 124
        %v838 = vpop.permute.xlu0 %837
        %839 = vrot.lane.b32.xlu0 %v357, 124
        %v840 = vpop.permute.xlu0 %839
        %841 = vrot.lane.b32.xlu0 %v328, 124
        %v842 = vpop.permute.xlu0 %841
        %843 = vrot.lane.b32.xlu0 %v329, 124
        %v844 = vpop.permute.xlu0 %843
        %845 = vrot.lane.b32.xlu0 %v358, 124
        %v846 = vpop.permute.xlu0 %845
        %847 = vrot.lane.b32.xlu0 %v330, 124
        %v848 = vpop.permute.xlu0 %847
        %849 = vrot.lane.b32.xlu0 %v331, 124
        %v850 = vpop.permute.xlu0 %849
        %851 = vrot.lane.b32.xlu0 %v359, 124
        %v852 = vpop.permute.xlu0 %851
        %853 = vrot.lane.b32.xlu0 %v385, 124
        %v854 = vpop.permute.xlu0 %853
        %855 = vrot.lane.b32.xlu0 %v386, 124
        %v856 = vpop.permute.xlu0 %855
        %857 = vrot.lane.b32.xlu0 %v365, 124
        %v858 = vpop.permute.xlu0 %857
        %859 = vrot.lane.b32.xlu0 %v387, 124
        %v860 = vpop.permute.xlu0 %859
        %861 = vrot.lane.b32.xlu0 %v388, 124
        %v862 = vpop.permute.xlu0 %861
        %863 = vrot.lane.b32.xlu0 %v371, 124
        %v864 = vpop.permute.xlu0 %863
        %865 = vrot.lane.b32.xlu0 %v389, 124
        %v866 = vpop.permute.xlu0 %865
        %867 = vrot.lane.b32.xlu0 %v390, 124
        %v868 = vpop.permute.xlu0 %867
        %869 = vrot.lane.b32.xlu0 %v377, 124
        %v870 = vpop.permute.xlu0 %869
        %871 = vrot.lane.b32.xlu0 %v391, 124
        %v872 = vpop.permute.xlu0 %871
        %873 = vrot.lane.b32.xlu0 %v392, 124
        %v874 = vpop.permute.xlu0 %873
        %875 = vrot.lane.b32.xlu0 %v383, 124
        %v876 = vpop.permute.xlu0 %875
        %877 = vrot.lane.b32.xlu0 %v425, 124
        %v878 = vpop.permute.xlu0 %877
        %879 = vrot.lane.b32.xlu0 %v426, 124
        %v880 = vpop.permute.xlu0 %879
        %881 = vrot.lane.b32.xlu0 %v457, 124
        %v882 = vpop.permute.xlu0 %881
        %883 = vrot.lane.b32.xlu0 %v427, 124
        %v884 = vpop.permute.xlu0 %883
        %885 = vrot.lane.b32.xlu0 %v428, 124
        %v886 = vpop.permute.xlu0 %885
        %887 = vrot.lane.b32.xlu0 %v458, 124
        %v888 = vpop.permute.xlu0 %887
        %889 = vrot.lane.b32.xlu0 %v429, 124
        %v890 = vpop.permute.xlu0 %889
        %891 = vrot.lane.b32.xlu0 %v430, 124
        %v892 = vpop.permute.xlu0 %891
        %893 = vrot.lane.b32.xlu0 %v459, 124
        %v894 = vpop.permute.xlu0 %893
        %895 = vrot.lane.b32.xlu0 %v431, 124
        %v896 = vpop.permute.xlu0 %895
        %897 = vrot.lane.b32.xlu0 %v432, 124
        %v898 = vpop.permute.xlu0 %897
        %899 = vrot.lane.b32.xlu0 %v460, 124
        %v900 = vpop.permute.xlu0 %899
        %901 = vrot.lane.b32.xlu0 %v485, 124
        %v902 = vpop.permute.xlu0 %901
        %903 = vrot.lane.b32.xlu0 %v486, 124
        %v904 = vpop.permute.xlu0 %903
        %905 = vrot.lane.b32.xlu0 %v466, 124
        %v906 = vpop.permute.xlu0 %905
        %907 = vrot.lane.b32.xlu0 %v487, 124
        %v908 = vpop.permute.xlu0 %907
        %909 = vrot.lane.b32.xlu0 %v488, 124
        %v910 = vpop.permute.xlu0 %909
        %911 = vrot.lane.b32.xlu0 %v472, 124
        %v912 = vpop.permute.xlu0 %911
        %913 = vrot.lane.b32.xlu0 %v489, 124
        %v914 = vpop.permute.xlu0 %913
        %915 = vrot.lane.b32.xlu0 %v490, 124
        %v916 = vpop.permute.xlu0 %915
        %917 = vrot.lane.b32.xlu0 %v478, 124
        %v918 = vpop.permute.xlu0 %917
        %919 = vrot.lane.b32.xlu0 %v491, 124
        %v920 = vpop.permute.xlu0 %919
        %921 = vrot.lane.b32.xlu0 %v492, 124
        %v922 = vpop.permute.xlu0 %921
        %923 = vrot.lane.b32.xlu0 %v484, 124
        %v924 = vpop.permute.xlu0 %923
        %925 = vrot.lane.b32.xlu0 %v778, 124
        %v926 = vpop.permute.xlu0 %925
        %927 = vrot.lane.b32.xlu0 %v779, 124
        %v928 = vpop.permute.xlu0 %927
        %929 = vrot.lane.b32.xlu0 %v780, 124
        %v930 = vpop.permute.xlu0 %929
        %931 = vrot.lane.b32.xlu0 %v781, 124
        %v932 = vpop.permute.xlu0 %931
        %933 = vrot.lane.b32.xlu0 %v782, 124
        %v934 = vpop.permute.xlu0 %933
        %935 = vrot.lane.b32.xlu0 %v783, 124
        %v936 = vpop.permute.xlu0 %935
        %937 = vrot.lane.b32.xlu0 %v784, 124
        %v938 = vpop.permute.xlu0 %937
        %939 = vrot.lane.b32.xlu0 %v785, 124
        %v940 = vpop.permute.xlu0 %939
        %941 = vrot.lane.b32.xlu0 %v786, 124
        %v942 = vpop.permute.xlu0 %941
        %943 = vrot.lane.b32.xlu0 %v787, 124
        %v944 = vpop.permute.xlu0 %943
        %945 = vrot.lane.b32.xlu0 %v788, 124
        %v946 = vpop.permute.xlu0 %945
        %947 = vrot.lane.b32.xlu0 %v789, 124
        %v948 = vpop.permute.xlu0 %947
        %vm949 = vcmask 1014784
        %v950 = vsel %vm949, %v830, %v832
        %v951 = vsel %vm949, %v832, %v834
        %v952 = vsel %vm949, %v836, %v838
        %v953 = vsel %vm949, %v838, %v840
        %v954 = vsel %vm949, %v842, %v844
        %v955 = vsel %vm949, %v844, %v846
        %v956 = vsel %vm949, %v848, %v850
        %v957 = vsel %vm949, %v850, %v852
        %v958 = vsel %vm949, %v854, %v856
        %v959 = vsel %vm949, %v856, %v858
        %v960 = vsel %vm949, %v860, %v862
        %v961 = vsel %vm949, %v862, %v864
        %v962 = vsel %vm949, %v866, %v868
        %v963 = vsel %vm949, %v868, %v870
        %v964 = vsel %vm949, %v872, %v874
        %v965 = vsel %vm949, %v874, %v876
        %v966 = vsel %vm949, %v878, %v880
        %v967 = vsel %vm949, %v880, %v882
        %v968 = vsel %vm949, %v884, %v886
        %v969 = vsel %vm949, %v886, %v888
        %v970 = vsel %vm949, %v890, %v892
        %v971 = vsel %vm949, %v892, %v894
        %v972 = vsel %vm949, %v896, %v898
        %v973 = vsel %vm949, %v898, %v900
        %v974 = vsel %vm949, %v902, %v904
        %v975 = vsel %vm949, %v904, %v906
        %v976 = vsel %vm949, %v908, %v910
        %v977 = vsel %vm949, %v910, %v912
        %v978 = vsel %vm949, %v914, %v916
        %v979 = vsel %vm949, %v916, %v918
        %v980 = vsel %vm949, %v920, %v922
        %v981 = vsel %vm949, %v922, %v924
        %v982 = vsel %vm949, %v926, %v928
        %v983 = vsel %vm949, %v928, %v930
        %v984 = vsel %vm949, %v932, %v934
        %v985 = vsel %vm949, %v934, %v936
        %v986 = vsel %vm949, %v938, %v940
        %v987 = vsel %vm949, %v940, %v942
        %v988 = vsel %vm949, %v944, %v946
        %v989 = vsel %vm949, %v946, %v948
        %v1031 = vsel %vm579, %v821, 0
        %v1034 = vsel %vm579, %v824, 0
        %1036 = vmatprep.subr.bf16.mxu0 %v951
        %1037 = vmatpush1.bf16.msra.mxu0 %v950
        %1038 = vmatprep.subr.bf16.mxu0 %v953
        %1039 = vmatpush1.bf16.msra.mxu0 %v952
        %1040 = vmatprep.subr.bf16.mxu0 %v955
        %1041 = vmatpush1.bf16.msra.mxu0 %v954
        %1042 = vmatprep.subr.bf16.mxu0 %v957
        %1043 = vmatpush1.bf16.msra.mxu0 %v956
        %1044 = vmatprep.subr.bf16.mxu0 %v959
        %1045 = vmatpush1.bf16.msra.mxu0 %v958
        %1046 = vmatprep.subr.bf16.mxu0 %v961
        %1047 = vmatpush1.bf16.msra.mxu0 %v960
        %1048 = vmatprep.subr.bf16.mxu0 %v963
        %1049 = vmatpush1.bf16.msra.mxu0 %v962
        %1050 = vmatprep.subr.bf16.mxu0 %v965
        %1051 = vmatpush1.bf16.msra.mxu0 %v964
        %1052 = vmatprep.subr.bf16.mxu0 %v967
        %1053 = vmatpush1.bf16.msra.mxu0 %v966
        %1054 = vmatprep.subr.bf16.mxu0 %v969
        %1055 = vmatpush1.bf16.msra.mxu0 %v968
        %1056 = vmatprep.subr.bf16.mxu0 %v971
        %1057 = vmatpush1.bf16.msra.mxu0 %v970
        %1058 = vmatprep.subr.bf16.mxu0 %v973
        %1059 = vmatpush1.bf16.msra.mxu0 %v972
        %1060 = vmatprep.subr.bf16.mxu0 %v975
        %1061 = vmatpush1.bf16.msra.mxu0 %v974
        %1062 = vmatprep.subr.bf16.mxu0 %v977
        %1063 = vmatpush1.bf16.msra.mxu0 %v976
        %1064 = vmatprep.subr.bf16.mxu0 %v979
        %1065 = vmatpush1.bf16.msra.mxu0 %v978
        %1066 = vmatprep.subr.bf16.mxu0 %v981
        %1067 = vmatpush1.bf16.msra.mxu0 %v980
        %1068 = vmatprep.mubr.bf16.mxu0 %v820
        %1069 = vmatmul.mubr.bf16.gmra.mrb[0].mxu0 %v819
        %v1070 = vpop.f32.mrb[0].mxu0
        %v1071 = vadd.f32 0.0, %v1070
        %v1072 = vpop.f32.mrb[0].mxu0
        %v1073 = vadd.f32 0.0, %v1072
        %v1074 = vpop.f32.mrb[0].mxu0
        %v1075 = vadd.f32 0.0, %v1074
        %v1076 = vpop.f32.mrb[0].mxu0
        %v1077 = vadd.f32 0.0, %v1076
        %1078 = vmatprep.mubr.bf16.mxu0 %v823
        %1079 = vmatmul.mubr.bf16.gmra.mrb[0].mxu0 %v822
        %v1080 = vpop.f32.mrb[0].mxu0
        %v1081 = vadd.f32 0.0, %v1080
        %v1082 = vpop.f32.mrb[0].mxu0
        %v1083 = vadd.f32 0.0, %v1082
        %v1084 = vpop.f32.mrb[0].mxu0
        %v1085 = vadd.f32 0.0, %v1084
        %v1086 = vpop.f32.mrb[0].mxu0
        %v1087 = vadd.f32 0.0, %v1086
        %1088 = vdwg.mxu0
        %1089 = vmatprep.subr.bf16.mxu0 %v983
        %1090 = vmatpush1.bf16.msra.mxu0 %v982
        %1091 = vmatprep.subr.bf16.mxu0 %v985
        %1092 = vmatpush1.bf16.msra.mxu0 %v984
        %1093 = vmatprep.subr.bf16.mxu0 %v987
        %1094 = vmatpush1.bf16.msra.mxu0 %v986
        %1095 = vmatprep.subr.bf16.mxu0 %v989
        %1096 = vmatpush1.bf16.msra.mxu0 %v988
        %1097 = vmatprep.subr.bf16.mxu0 0
        %1098 = vmatpush1.bf16.msra.mxu0 0
        %1099 = vmatprep.subr.bf16.mxu0 0
        %1100 = vmatpush1.bf16.msra.mxu0 0
        %1101 = vmatprep.subr.bf16.mxu0 0
        %1102 = vmatpush1.bf16.msra.mxu0 0
        %1103 = vmatprep.subr.bf16.mxu0 0
        %1104 = vmatpush1.bf16.msra.mxu0 0
        %1105 = vmatprep.subr.bf16.mxu0 0
        %1106 = vmatpush1.bf16.msra.mxu0 0
        %1107 = vmatprep.subr.bf16.mxu0 0
        %1108 = vmatpush1.bf16.msra.mxu0 0
        %1109 = vmatprep.subr.bf16.mxu0 0
        %1110 = vmatpush1.bf16.msra.mxu0 0
        %1111 = vmatprep.subr.bf16.mxu0 0
        %1112 = vmatpush1.bf16.msra.mxu0 0
        %1113 = vmatprep.subr.bf16.mxu0 0
        %1114 = vmatpush1.bf16.msra.mxu0 0
        %1115 = vmatprep.subr.bf16.mxu0 0
        %1116 = vmatpush1.bf16.msra.mxu0 0
        %1117 = vmatprep.subr.bf16.mxu0 0
        %1118 = vmatpush1.bf16.msra.mxu0 0
        %1119 = vmatprep.subr.bf16.mxu0 0
        %1120 = vmatpush1.bf16.msra.mxu0 0
        %1121 = vmatprep.mubr.bf16.mxu0 0
        %1122 = vmatmul.mubr.bf16.gmra.mrb[0].mxu0 %v1031
        %v1123 = vpop.f32.mrb[0].mxu0
        %v1124 = vadd.f32 %v1071, %v1123
        %v1125 = vpop.f32.mrb[0].mxu0
        %v1126 = vadd.f32 %v1073, %v1125
        %v1127 = vpop.f32.mrb[0].mxu0
        %v1128 = vadd.f32 %v1075, %v1127
        %v1129 = vpop.f32.mrb[0].mxu0
        %v1130 = vadd.f32 %v1077, %v1129
        %1131 = vmatprep.mubr.bf16.mxu0 0
        %1132 = vmatmul.mubr.bf16.gmra.mrb[0].mxu0 %v1034
        %v1133 = vpop.f32.mrb[0].mxu0
        %v1134 = vadd.f32 %v1081, %v1133
        %v1135 = vpop.f32.mrb[0].mxu0
        %v1136 = vadd.f32 %v1083, %v1135
        %v1137 = vpop.f32.mrb[0].mxu0
        %v1138 = vadd.f32 %v1085, %v1137
        %v1139 = vpop.f32.mrb[0].mxu0
        %v1140 = vadd.f32 %v1087, %v1139
        %1141 = vdwg.mxu0
        %vm1142 = vcmp.ge.s32.totalorder %v259, 4
        %vm1143 = vcmp.lt.s32.totalorder %v259, 20
        %vm1144 = vmand %vm1142, %vm1143
        %v1145 = vsel %vm1144, 1, 0
        %v1146 = vlaneseq
        %v1147 = vshrl.u32 %v1146, 7
        %v1148 = vsub.s32 0, %v1147
        %v1149 = vrot.slane %v1145, %v1148
        %v1150 = vlaneseq
        %v1151 = vshrl.u32 %v1150, 7
        %v1152 = vsub.s32 1, %v1151
        %v1153 = vrot.slane %v1145, %v1152
        %vm1154 = vcmp.eq.s32.totalorder %v1149, 1
        %vm1155 = vcmp.eq.s32.totalorder %v1153, 1
        %v1156 = vsel %vm1154, %v1124, 0.0
        %v1157 = vsel %vm1155, %v1126, 0.0
        %v1158 = vsel %vm1154, %v1128, 0.0
        %v1159 = vsel %vm1155, %v1130, 0.0
        %v1160 = vsel %vm1154, %v1134, 0.0
        %v1161 = vsel %vm1155, %v1136, 0.0
        %v1162 = vsel %vm1154, %v1138, 0.0
        %v1163 = vsel %vm1155, %v1140, 0.0
        %v1164 = vadd.f32 %v714, %v1156
        %v1165 = vadd.f32 %v715, %v1157
        %v1166 = vadd.f32 %v716, %v1158
        %v1167 = vadd.f32 %v717, %v1159
        %v1168 = vadd.f32 %v718, %v1160
        %v1169 = vadd.f32 %v719, %v1161
        %v1170 = vadd.f32 %v720, %v1162
        %v1171 = vadd.f32 %v721, %v1163
        %s1172 = scalar_lea.vmem [#allocation5], 96
        %v1173 = vld [vmem:[%s1172] sm:$0xff]
        %v1174 = vld [vmem:[%s1172 + $0x8] sm:$0xf]
        %v1175 = vld [vmem:[%s1172 + $0xc] sm:$0xff]
        %v1176 = vld [vmem:[%s1172 + $0x14] sm:$0xf]
        %v1177 = vld [vmem:[%s1172 + $0x18] sm:$0xff]
        %v1178 = vld [vmem:[%s1172 + $0x20] sm:$0xf]
        %v1179 = vld [vmem:[%s1172 + $0x24] sm:$0xff]
        %v1180 = vld [vmem:[%s1172 + $0x2c] sm:$0xf]
        %v1189 = vunpack.c.l.b16 %v1173
        %v1190 = vunpack.c.h.b16 %v1173
        %v1191 = vunpack.c.l.b16 %v1174
        %v1192 = vunpack.c.l.b16 %v1175
        %v1193 = vunpack.c.h.b16 %v1175
        %v1194 = vunpack.c.l.b16 %v1176
        %v1195 = vunpack.c.l.b16 %v1177
        %v1196 = vunpack.c.h.b16 %v1177
        %v1197 = vunpack.c.l.b16 %v1178
        %v1198 = vunpack.c.l.b16 %v1179
        %v1199 = vunpack.c.h.b16 %v1179
        %v1200 = vunpack.c.l.b16 %v1180
        %v1201 = vpack.c.b16 %v1192, %v1189
        %v1202 = vpack.c.b16 %v1193, %v1190
        %v1203 = vpack.c.b16 %v1194, %v1191
        %v1204 = vpack.c.b16 %v1198, %v1195
        %v1205 = vpack.c.b16 %v1199, %v1196
        %v1206 = vpack.c.b16 %v1200, %v1197
        %1211 = vrot.lane.b32.xlu0 %v324, 120
        %v1212 = vpop.permute.xlu0 %1211
        %1213 = vrot.lane.b32.xlu0 %v325, 120
        %v1214 = vpop.permute.xlu0 %1213
        %1215 = vrot.lane.b32.xlu0 %v356, 120
        %v1216 = vpop.permute.xlu0 %1215
        %1217 = vrot.lane.b32.xlu0 %v326, 120
        %v1218 = vpop.permute.xlu0 %1217
        %1219 = vrot.lane.b32.xlu0 %v327, 120
        %v1220 = vpop.permute.xlu0 %1219
        %1221 = vrot.lane.b32.xlu0 %v357, 120
        %v1222 = vpop.permute.xlu0 %1221
        %1223 = vrot.lane.b32.xlu0 %v328, 120
        %v1224 = vpop.permute.xlu0 %1223
        %1225 = vrot.lane.b32.xlu0 %v329, 120
        %v1226 = vpop.permute.xlu0 %1225
        %1227 = vrot.lane.b32.xlu0 %v358, 120
        %v1228 = vpop.permute.xlu0 %1227
        %1229 = vrot.lane.b32.xlu0 %v330, 120
        %v1230 = vpop.permute.xlu0 %1229
        %1231 = vrot.lane.b32.xlu0 %v331, 120
        %v1232 = vpop.permute.xlu0 %1231
        %1233 = vrot.lane.b32.xlu0 %v359, 120
        %v1234 = vpop.permute.xlu0 %1233
        %1235 = vrot.lane.b32.xlu0 %v385, 120
        %v1236 = vpop.permute.xlu0 %1235
        %1237 = vrot.lane.b32.xlu0 %v386, 120
        %v1238 = vpop.permute.xlu0 %1237
        %1239 = vrot.lane.b32.xlu0 %v365, 120
        %v1240 = vpop.permute.xlu0 %1239
        %1241 = vrot.lane.b32.xlu0 %v387, 120
        %v1242 = vpop.permute.xlu0 %1241
        %1243 = vrot.lane.b32.xlu0 %v388, 120
        %v1244 = vpop.permute.xlu0 %1243
        %1245 = vrot.lane.b32.xlu0 %v371, 120
        %v1246 = vpop.permute.xlu0 %1245
        %1247 = vrot.lane.b32.xlu0 %v389, 120
        %v1248 = vpop.permute.xlu0 %1247
        %1249 = vrot.lane.b32.xlu0 %v390, 120
        %v1250 = vpop.permute.xlu0 %1249
        %1251 = vrot.lane.b32.xlu0 %v377, 120
        %v1252 = vpop.permute.xlu0 %1251
        %1253 = vrot.lane.b32.xlu0 %v391, 120
        %v1254 = vpop.permute.xlu0 %1253
        %1255 = vrot.lane.b32.xlu0 %v392, 120
        %v1256 = vpop.permute.xlu0 %1255
        %1257 = vrot.lane.b32.xlu0 %v383, 120
        %v1258 = vpop.permute.xlu0 %1257
        %1259 = vrot.lane.b32.xlu0 %v425, 120
        %v1260 = vpop.permute.xlu0 %1259
        %1261 = vrot.lane.b32.xlu0 %v426, 120
        %v1262 = vpop.permute.xlu0 %1261
        %1263 = vrot.lane.b32.xlu0 %v457, 120
        %v1264 = vpop.permute.xlu0 %1263
        %1265 = vrot.lane.b32.xlu0 %v427, 120
        %v1266 = vpop.permute.xlu0 %1265
        %1267 = vrot.lane.b32.xlu0 %v428, 120
        %v1268 = vpop.permute.xlu0 %1267
        %1269 = vrot.lane.b32.xlu0 %v458, 120
        %v1270 = vpop.permute.xlu0 %1269
        %1271 = vrot.lane.b32.xlu0 %v429, 120
        %v1272 = vpop.permute.xlu0 %1271
        %1273 = vrot.lane.b32.xlu0 %v430, 120
        %v1274 = vpop.permute.xlu0 %1273
        %1275 = vrot.lane.b32.xlu0 %v459, 120
        %v1276 = vpop.permute.xlu0 %1275
        %1277 = vrot.lane.b32.xlu0 %v431, 120
        %v1278 = vpop.permute.xlu0 %1277
        %1279 = vrot.lane.b32.xlu0 %v432, 120
        %v1280 = vpop.permute.xlu0 %1279
        %1281 = vrot.lane.b32.xlu0 %v460, 120
        %v1282 = vpop.permute.xlu0 %1281
        %1283 = vrot.lane.b32.xlu0 %v485, 120
        %v1284 = vpop.permute.xlu0 %1283
        %1285 = vrot.lane.b32.xlu0 %v486, 120
        %v1286 = vpop.permute.xlu0 %1285
        %1287 = vrot.lane.b32.xlu0 %v466, 120
        %v1288 = vpop.permute.xlu0 %1287
        %1289 = vrot.lane.b32.xlu0 %v487, 120
        %v1290 = vpop.permute.xlu0 %1289
        %1291 = vrot.lane.b32.xlu0 %v488, 120
        %v1292 = vpop.permute.xlu0 %1291
        %1293 = vrot.lane.b32.xlu0 %v472, 120
        %v1294 = vpop.permute.xlu0 %1293
        %1295 = vrot.lane.b32.xlu0 %v489, 120
        %v1296 = vpop.permute.xlu0 %1295
        %1297 = vrot.lane.b32.xlu0 %v490, 120
        %v1298 = vpop.permute.xlu0 %1297
        %1299 = vrot.lane.b32.xlu0 %v478, 120
        %v1300 = vpop.permute.xlu0 %1299
        %1301 = vrot.lane.b32.xlu0 %v491, 120
        %v1302 = vpop.permute.xlu0 %1301
        %1303 = vrot.lane.b32.xlu0 %v492, 120
        %v1304 = vpop.permute.xlu0 %1303
        %1305 = vrot.lane.b32.xlu0 %v484, 120
        %v1306 = vpop.permute.xlu0 %1305
        %1307 = vrot.lane.b32.xlu0 %v778, 120
        %v1308 = vpop.permute.xlu0 %1307
        %1309 = vrot.lane.b32.xlu0 %v779, 120
        %v1310 = vpop.permute.xlu0 %1309
        %1311 = vrot.lane.b32.xlu0 %v780, 120
        %v1312 = vpop.permute.xlu0 %1311
        %1313 = vrot.lane.b32.xlu0 %v781, 120
        %v1314 = vpop.permute.xlu0 %1313
        %1315 = vrot.lane.b32.xlu0 %v782, 120
        %v1316 = vpop.permute.xlu0 %1315
        %1317 = vrot.lane.b32.xlu0 %v783, 120
        %v1318 = vpop.permute.xlu0 %1317
        %1319 = vrot.lane.b32.xlu0 %v784, 120
        %v1320 = vpop.permute.xlu0 %1319
        %1321 = vrot.lane.b32.xlu0 %v785, 120
        %v1322 = vpop.permute.xlu0 %1321
        %1323 = vrot.lane.b32.xlu0 %v786, 120
        %v1324 = vpop.permute.xlu0 %1323
        %1325 = vrot.lane.b32.xlu0 %v787, 120
        %v1326 = vpop.permute.xlu0 %1325
        %1327 = vrot.lane.b32.xlu0 %v788, 120
        %v1328 = vpop.permute.xlu0 %1327
        %1329 = vrot.lane.b32.xlu0 %v789, 120
        %v1330 = vpop.permute.xlu0 %1329
        %vm1331 = vcmask 982016
        %v1332 = vsel %vm1331, %v1212, %v1214
        %v1333 = vsel %vm1331, %v1214, %v1216
        %v1334 = vsel %vm1331, %v1218, %v1220
        %v1335 = vsel %vm1331, %v1220, %v1222
        %v1336 = vsel %vm1331, %v1224, %v1226
        %v1337 = vsel %vm1331, %v1226, %v1228
        %v1338 = vsel %vm1331, %v1230, %v1232
        %v1339 = vsel %vm1331, %v1232, %v1234
        %v1340 = vsel %vm1331, %v1236, %v1238
        %v1341 = vsel %vm1331, %v1238, %v1240
        %v1342 = vsel %vm1331, %v1242, %v1244
        %v1343 = vsel %vm1331, %v1244, %v1246
        %v1344 = vsel %vm1331, %v1248, %v1250
        %v1345 = vsel %vm1331, %v1250, %v1252
        %v1346 = vsel %vm1331, %v1254, %v1256
        %v1347 = vsel %vm1331, %v1256, %v1258
        %v1348 = vsel %vm1331, %v1260, %v1262
        %v1349 = vsel %vm1331, %v1262, %v1264
        %v1350 = vsel %vm1331, %v1266, %v1268
        %v1351 = vsel %vm1331, %v1268, %v1270
        %v1352 = vsel %vm1331, %v1272, %v1274
        %v1353 = vsel %vm1331, %v1274, %v1276
        %v1354 = vsel %vm1331, %v1278, %v1280
        %v1355 = vsel %vm1331, %v1280, %v1282
        %v1356 = vsel %vm1331, %v1284, %v1286
        %v1357 = vsel %vm1331, %v1286, %v1288
        %v1358 = vsel %vm1331, %v1290, %v1292
        %v1359 = vsel %vm1331, %v1292, %v1294
        %v1360 = vsel %vm1331, %v1296, %v1298
        %v1361 = vsel %vm1331, %v1298, %v1300
        %v1362 = vsel %vm1331, %v1302, %v1304
        %v1363 = vsel %vm1331, %v1304, %v1306
        %v1364 = vsel %vm1331, %v1308, %v1310
        %v1365 = vsel %vm1331, %v1310, %v1312
        %v1366 = vsel %vm1331, %v1314, %v1316
        %v1367 = vsel %vm1331, %v1316, %v1318
        %v1368 = vsel %vm1331, %v1320, %v1322
        %v1369 = vsel %vm1331, %v1322, %v1324
        %v1370 = vsel %vm1331, %v1326, %v1328
        %v1371 = vsel %vm1331, %v1328, %v1330
        %v1413 = vsel %vm579, %v1203, 0
        %v1416 = vsel %vm579, %v1206, 0
        %1418 = vmatprep.subr.bf16.mxu0 %v1333
        %1419 = vmatpush1.bf16.msra.mxu0 %v1332
        %1420 = vmatprep.subr.bf16.mxu0 %v1335
        %1421 = vmatpush1.bf16.msra.mxu0 %v1334
        %1422 = vmatprep.subr.bf16.mxu0 %v1337
        %1423 = vmatpush1.bf16.msra.mxu0 %v1336
        %1424 = vmatprep.subr.bf16.mxu0 %v1339
        %1425 = vmatpush1.bf16.msra.mxu0 %v1338
        %1426 = vmatprep.subr.bf16.mxu0 %v1341
        %1427 = vmatpush1.bf16.msra.mxu0 %v1340
        %1428 = vmatprep.subr.bf16.mxu0 %v1343
        %1429 = vmatpush1.bf16.msra.mxu0 %v1342
        %1430 = vmatprep.subr.bf16.mxu0 %v1345
        %1431 = vmatpush1.bf16.msra.mxu0 %v1344
        %1432 = vmatprep.subr.bf16.mxu0 %v1347
        %1433 = vmatpush1.bf16.msra.mxu0 %v1346
        %1434 = vmatprep.subr.bf16.mxu0 %v1349
        %1435 = vmatpush1.bf16.msra.mxu0 %v1348
        %1436 = vmatprep.subr.bf16.mxu0 %v1351
        %1437 = vmatpush1.bf16.msra.mxu0 %v1350
        %1438 = vmatprep.subr.bf16.mxu0 %v1353
        %1439 = vmatpush1.bf16.msra.mxu0 %v1352
        %1440 = vmatprep.subr.bf16.mxu0 %v1355
        %1441 = vmatpush1.bf16.msra.mxu0 %v1354
        %1442 = vmatprep.subr.bf16.mxu0 %v1357
        %1443 = vmatpush1.bf16.msra.mxu0 %v1356
        %1444 = vmatprep.subr.bf16.mxu0 %v1359
        %1445 = vmatpush1.bf16.msra.mxu0 %v1358
        %1446 = vmatprep.subr.bf16.mxu0 %v1361
        %1447 = vmatpush1.bf16.msra.mxu0 %v1360
        %1448 = vmatprep.subr.bf16.mxu0 %v1363
        %1449 = vmatpush1.bf16.msra.mxu0 %v1362
        %1450 = vmatprep.mubr.bf16.mxu0 %v1202
        %1451 = vmatmul.mubr.bf16.gmra.mrb[0].mxu0 %v1201
        %v1452 = vpop.f32.mrb[0].mxu0
        %v1453 = vadd.f32 0.0, %v1452
        %v1454 = vpop.f32.mrb[0].mxu0
        %v1455 = vadd.f32 0.0, %v1454
        %v1456 = vpop.f32.mrb[0].mxu0
        %v1457 = vadd.f32 0.0, %v1456
        %v1458 = vpop.f32.mrb[0].mxu0
        %v1459 = vadd.f32 0.0, %v1458
        %1460 = vmatprep.mubr.bf16.mxu0 %v1205
        %1461 = vmatmul.mubr.bf16.gmra.mrb[0].mxu0 %v1204
        %v1462 = vpop.f32.mrb[0].mxu0
        %v1463 = vadd.f32 0.0, %v1462
        %v1464 = vpop.f32.mrb[0].mxu0
        %v1465 = vadd.f32 0.0, %v1464
        %v1466 = vpop.f32.mrb[0].mxu0
        %v1467 = vadd.f32 0.0, %v1466
        %v1468 = vpop.f32.mrb[0].mxu0
        %v1469 = vadd.f32 0.0, %v1468
        %1470 = vdwg.mxu0
        %1471 = vmatprep.subr.bf16.mxu0 %v1365
        %1472 = vmatpush1.bf16.msra.mxu0 %v1364
        %1473 = vmatprep.subr.bf16.mxu0 %v1367
        %1474 = vmatpush1.bf16.msra.mxu0 %v1366
        %1475 = vmatprep.subr.bf16.mxu0 %v1369
        %1476 = vmatpush1.bf16.msra.mxu0 %v1368
        %1477 = vmatprep.subr.bf16.mxu0 %v1371
        %1478 = vmatpush1.bf16.msra.mxu0 %v1370
        %1479 = vmatprep.subr.bf16.mxu0 0
        %1480 = vmatpush1.bf16.msra.mxu0 0
        %1481 = vmatprep.subr.bf16.mxu0 0
        %1482 = vmatpush1.bf16.msra.mxu0 0
        %1483 = vmatprep.subr.bf16.mxu0 0
        %1484 = vmatpush1.bf16.msra.mxu0 0
        %1485 = vmatprep.subr.bf16.mxu0 0
        %1486 = vmatpush1.bf16.msra.mxu0 0
        %1487 = vmatprep.subr.bf16.mxu0 0
        %1488 = vmatpush1.bf16.msra.mxu0 0
        %1489 = vmatprep.subr.bf16.mxu0 0
        %1490 = vmatpush1.bf16.msra.mxu0 0
        %1491 = vmatprep.subr.bf16.mxu0 0
        %1492 = vmatpush1.bf16.msra.mxu0 0
        %1493 = vmatprep.subr.bf16.mxu0 0
        %1494 = vmatpush1.bf16.msra.mxu0 0
        %1495 = vmatprep.subr.bf16.mxu0 0
        %1496 = vmatpush1.bf16.msra.mxu0 0
        %1497 = vmatprep.subr.bf16.mxu0 0
        %1498 = vmatpush1.bf16.msra.mxu0 0
        %1499 = vmatprep.subr.bf16.mxu0 0
        %1500 = vmatpush1.bf16.msra.mxu0 0
        %1501 = vmatprep.subr.bf16.mxu0 0
        %1502 = vmatpush1.bf16.msra.mxu0 0
        %1503 = vmatprep.mubr.bf16.mxu0 0
        %1504 = vmatmul.mubr.bf16.gmra.mrb[0].mxu0 %v1413
        %v1505 = vpop.f32.mrb[0].mxu0
        %v1506 = vadd.f32 %v1453, %v1505
        %v1507 = vpop.f32.mrb[0].mxu0
        %v1508 = vadd.f32 %v1455, %v1507
        %v1509 = vpop.f32.mrb[0].mxu0
        %v1510 = vadd.f32 %v1457, %v1509
        %v1511 = vpop.f32.mrb[0].mxu0
        %v1512 = vadd.f32 %v1459, %v1511
        %1513 = vmatprep.mubr.bf16.mxu0 0
        %1514 = vmatmul.mubr.bf16.gmra.mrb[0].mxu0 %v1416
        %v1515 = vpop.f32.mrb[0].mxu0
        %v1516 = vadd.f32 %v1463, %v1515
        %v1517 = vpop.f32.mrb[0].mxu0
        %v1518 = vadd.f32 %v1465, %v1517
        %v1519 = vpop.f32.mrb[0].mxu0
        %v1520 = vadd.f32 %v1467, %v1519
        %v1521 = vpop.f32.mrb[0].mxu0
        %v1522 = vadd.f32 %v1469, %v1521
        %1523 = vdwg.mxu0
        %v1524 = vadd.f32 %v1164, %v1506
        %v1525 = vadd.f32 %v1165, %v1508
        %v1526 = vadd.f32 %v1166, %v1510
        %v1527 = vadd.f32 %v1167, %v1512
        %v1528 = vadd.f32 %v1168, %v1516
        %v1529 = vadd.f32 %v1169, %v1518
        %v1530 = vadd.f32 %v1170, %v1520
        %v1531 = vadd.f32 %v1171, %v1522
        %s1532 = scalar_lea.vmem [#allocation5], 144
        %v1533 = vld [vmem:[%s1532] sm:$0xff]
        %v1534 = vld [vmem:[%s1532 + $0x8] sm:$0xf]
        %v1535 = vld [vmem:[%s1532 + $0xc] sm:$0xff]
        %v1536 = vld [vmem:[%s1532 + $0x14] sm:$0xf]
        %v1537 = vld [vmem:[%s1532 + $0x18] sm:$0xff]
        %v1538 = vld [vmem:[%s1532 + $0x20] sm:$0xf]
        %v1539 = vld [vmem:[%s1532 + $0x24] sm:$0xff]
        %v1540 = vld [vmem:[%s1532 + $0x2c] sm:$0xf]
        %v1549 = vunpack.c.l.b16 %v1533
        %v1550 = vunpack.c.h.b16 %v1533
        %v1551 = vunpack.c.l.b16 %v1534
        %v1552 = vunpack.c.l.b16 %v1535
        %v1553 = vunpack.c.h.b16 %v1535
        %v1554 = vunpack.c.l.b16 %v1536
        %v1555 = vunpack.c.l.b16 %v1537
        %v1556 = vunpack.c.h.b16 %v1537
        %v1557 = vunpack.c.l.b16 %v1538
        %v1558 = vunpack.c.l.b16 %v1539
        %v1559 = vunpack.c.h.b16 %v1539
        %v1560 = vunpack.c.l.b16 %v1540
        %v1561 = vpack.c.b16 %v1552, %v1549
        %v1562 = vpack.c.b16 %v1553, %v1550
        %v1563 = vpack.c.b16 %v1554, %v1551
        %v1564 = vpack.c.b16 %v1558, %v1555
        %v1565 = vpack.c.b16 %v1559, %v1556
        %v1566 = vpack.c.b16 %v1560, %v1557
        %1571 = vrot.lane.b32.xlu0 %v324, 116
        %v1572 = vpop.permute.xlu0 %1571
        %1573 = vrot.lane.b32.xlu0 %v325, 116
        %v1574 = vpop.permute.xlu0 %1573
        %1575 = vrot.lane.b32.xlu0 %v356, 116
        %v1576 = vpop.permute.xlu0 %1575
        %1577 = vrot.lane.b32.xlu0 %v326, 116
        %v1578 = vpop.permute.xlu0 %1577
        %1579 = vrot.lane.b32.xlu0 %v327, 116
        %v1580 = vpop.permute.xlu0 %1579
        %1581 = vrot.lane.b32.xlu0 %v357, 116
        %v1582 = vpop.permute.xlu0 %1581
        %1583 = vrot.lane.b32.xlu0 %v328, 116
        %v1584 = vpop.permute.xlu0 %1583
        %1585 = vrot.lane.b32.xlu0 %v329, 116
        %v1586 = vpop.permute.xlu0 %1585
        %1587 = vrot.lane.b32.xlu0 %v358, 116
        %v1588 = vpop.permute.xlu0 %1587
        %1589 = vrot.lane.b32.xlu0 %v330, 116
        %v1590 = vpop.permute.xlu0 %1589
        %1591 = vrot.lane.b32.xlu0 %v331, 116
        %v1592 = vpop.permute.xlu0 %1591
        %1593 = vrot.lane.b32.xlu0 %v359, 116
        %v1594 = vpop.permute.xlu0 %1593
        %1595 = vrot.lane.b32.xlu0 %v385, 116
        %v1596 = vpop.permute.xlu0 %1595
        %1597 = vrot.lane.b32.xlu0 %v386, 116
        %v1598 = vpop.permute.xlu0 %1597
        %1599 = vrot.lane.b32.xlu0 %v365, 116
        %v1600 = vpop.permute.xlu0 %1599
        %1601 = vrot.lane.b32.xlu0 %v387, 116
        %v1602 = vpop.permute.xlu0 %1601
        %1603 = vrot.lane.b32.xlu0 %v388, 116
        %v1604 = vpop.permute.xlu0 %1603
        %1605 = vrot.lane.b32.xlu0 %v371, 116
        %v1606 = vpop.permute.xlu0 %1605
        %1607 = vrot.lane.b32.xlu0 %v389, 116
        %v1608 = vpop.permute.xlu0 %1607
        %1609 = vrot.lane.b32.xlu0 %v390, 116
        %v1610 = vpop.permute.xlu0 %1609
        %1611 = vrot.lane.b32.xlu0 %v377, 116
        %v1612 = vpop.permute.xlu0 %1611
        %1613 = vrot.lane.b32.xlu0 %v391, 116
        %v1614 = vpop.permute.xlu0 %1613
        %1615 = vrot.lane.b32.xlu0 %v392, 116
        %v1616 = vpop.permute.xlu0 %1615
        %1617 = vrot.lane.b32.xlu0 %v383, 116
        %v1618 = vpop.permute.xlu0 %1617
        %1619 = vrot.lane.b32.xlu0 %v425, 116
        %v1620 = vpop.permute.xlu0 %1619
        %1621 = vrot.lane.b32.xlu0 %v426, 116
        %v1622 = vpop.permute.xlu0 %1621
        %1623 = vrot.lane.b32.xlu0 %v457, 116
        %v1624 = vpop.permute.xlu0 %1623
        %1625 = vrot.lane.b32.xlu0 %v427, 116
        %v1626 = vpop.permute.xlu0 %1625
        %1627 = vrot.lane.b32.xlu0 %v428, 116
        %v1628 = vpop.permute.xlu0 %1627
        %1629 = vrot.lane.b32.xlu0 %v458, 116
        %v1630 = vpop.permute.xlu0 %1629
        %1631 = vrot.lane.b32.xlu0 %v429, 116
        %v1632 = vpop.permute.xlu0 %1631
        %1633 = vrot.lane.b32.xlu0 %v430, 116
        %v1634 = vpop.permute.xlu0 %1633
        %1635 = vrot.lane.b32.xlu0 %v459, 116
        %v1636 = vpop.permute.xlu0 %1635
        %1637 = vrot.lane.b32.xlu0 %v431, 116
        %v1638 = vpop.permute.xlu0 %1637
        %1639 = vrot.lane.b32.xlu0 %v432, 116
        %v1640 = vpop.permute.xlu0 %1639
        %1641 = vrot.lane.b32.xlu0 %v460, 116
        %v1642 = vpop.permute.xlu0 %1641
        %1643 = vrot.lane.b32.xlu0 %v485, 116
        %v1644 = vpop.permute.xlu0 %1643
        %1645 = vrot.lane.b32.xlu0 %v486, 116
        %v1646 = vpop.permute.xlu0 %1645
        %1647 = vrot.lane.b32.xlu0 %v466, 116
        %v1648 = vpop.permute.xlu0 %1647
        %1649 = vrot.lane.b32.xlu0 %v487, 116
        %v1650 = vpop.permute.xlu0 %1649
        %1651 = vrot.lane.b32.xlu0 %v488, 116
        %v1652 = vpop.permute.xlu0 %1651
        %1653 = vrot.lane.b32.xlu0 %v472, 116
        %v1654 = vpop.permute.xlu0 %1653
        %1655 = vrot.lane.b32.xlu0 %v489, 116
        %v1656 = vpop.permute.xlu0 %1655
        %1657 = vrot.lane.b32.xlu0 %v490, 116
        %v1658 = vpop.permute.xlu0 %1657
        %1659 = vrot.lane.b32.xlu0 %v478, 116
        %v1660 = vpop.permute.xlu0 %1659
        %1661 = vrot.lane.b32.xlu0 %v491, 116
        %v1662 = vpop.permute.xlu0 %1661
        %1663 = vrot.lane.b32.xlu0 %v492, 116
        %v1664 = vpop.permute.xlu0 %1663
        %1665 = vrot.lane.b32.xlu0 %v484, 116
        %v1666 = vpop.permute.xlu0 %1665
        %1667 = vrot.lane.b32.xlu0 %v778, 116
        %v1668 = vpop.permute.xlu0 %1667
        %1669 = vrot.lane.b32.xlu0 %v779, 116
        %v1670 = vpop.permute.xlu0 %1669
        %1671 = vrot.lane.b32.xlu0 %v780, 116
        %v1672 = vpop.permute.xlu0 %1671
        %1673 = vrot.lane.b32.xlu0 %v781, 116
        %v1674 = vpop.permute.xlu0 %1673
        %1675 = vrot.lane.b32.xlu0 %v782, 116
        %v1676 = vpop.permute.xlu0 %1675
        %1677 = vrot.lane.b32.xlu0 %v783, 116
        %v1678 = vpop.permute.xlu0 %1677
        %1679 = vrot.lane.b32.xlu0 %v784, 116
        %v1680 = vpop.permute.xlu0 %1679
        %1681 = vrot.lane.b32.xlu0 %v785, 116
        %v1682 = vpop.permute.xlu0 %1681
        %1683 = vrot.lane.b32.xlu0 %v786, 116
        %v1684 = vpop.permute.xlu0 %1683
        %1685 = vrot.lane.b32.xlu0 %v787, 116
        %v1686 = vpop.permute.xlu0 %1685
        %1687 = vrot.lane.b32.xlu0 %v788, 116
        %v1688 = vpop.permute.xlu0 %1687
        %1689 = vrot.lane.b32.xlu0 %v789, 116
        %v1690 = vpop.permute.xlu0 %1689
        %vm1691 = vcmask 949248
        %v1692 = vsel %vm1691, %v1572, %v1574
        %v1693 = vsel %vm1691, %v1574, %v1576
        %v1694 = vsel %vm1691, %v1578, %v1580
        %v1695 = vsel %vm1691, %v1580, %v1582
        %v1696 = vsel %vm1691, %v1584, %v1586
        %v1697 = vsel %vm1691, %v1586, %v1588
        %v1698 = vsel %vm1691, %v1590, %v1592
        %v1699 = vsel %vm1691, %v1592, %v1594
        %v1700 = vsel %vm1691, %v1596, %v1598
        %v1701 = vsel %vm1691, %v1598, %v1600
        %v1702 = vsel %vm1691, %v1602, %v1604
        %v1703 = vsel %vm1691, %v1604, %v1606
        %v1704 = vsel %vm1691, %v1608, %v1610
        %v1705 = vsel %vm1691, %v1610, %v1612
        %v1706 = vsel %vm1691, %v1614, %v1616
        %v1707 = vsel %vm1691, %v1616, %v1618
        %v1708 = vsel %vm1691, %v1620, %v1622
        %v1709 = vsel %vm1691, %v1622, %v1624
        %v1710 = vsel %vm1691, %v1626, %v1628
        %v1711 = vsel %vm1691, %v1628, %v1630
        %v1712 = vsel %vm1691, %v1632, %v1634
        %v1713 = vsel %vm1691, %v1634, %v1636
        %v1714 = vsel %vm1691, %v1638, %v1640
        %v1715 = vsel %vm1691, %v1640, %v1642
        %v1716 = vsel %vm1691, %v1644, %v1646
        %v1717 = vsel %vm1691, %v1646, %v1648
        %v1718 = vsel %vm1691, %v1650, %v1652
        %v1719 = vsel %vm1691, %v1652, %v1654
        %v1720 = vsel %vm1691, %v1656, %v1658
        %v1721 = vsel %vm1691, %v1658, %v1660
        %v1722 = vsel %vm1691, %v1662, %v1664
        %v1723 = vsel %vm1691, %v1664, %v1666
        %v1724 = vsel %vm1691, %v1668, %v1670
        %v1725 = vsel %vm1691, %v1670, %v1672
        %v1726 = vsel %vm1691, %v1674, %v1676
        %v1727 = vsel %vm1691, %v1676, %v1678
        %v1728 = vsel %vm1691, %v1680, %v1682
        %v1729 = vsel %vm1691, %v1682, %v1684
        %v1730 = vsel %vm1691, %v1686, %v1688
        %v1731 = vsel %vm1691, %v1688, %v1690
        %v1773 = vsel %vm579, %v1563, 0
        %v1776 = vsel %vm579, %v1566, 0
        %1778 = vmatprep.subr.bf16.mxu0 %v1693
        %1779 = vmatpush1.bf16.msra.mxu0 %v1692
        %1780 = vmatprep.subr.bf16.mxu0 %v1695
        %1781 = vmatpush1.bf16.msra.mxu0 %v1694
        %1782 = vmatprep.subr.bf16.mxu0 %v1697
        %1783 = vmatpush1.bf16.msra.mxu0 %v1696
        %1784 = vmatprep.subr.bf16.mxu0 %v1699
        %1785 = vmatpush1.bf16.msra.mxu0 %v1698
        %1786 = vmatprep.subr.bf16.mxu0 %v1701
        %1787 = vmatpush1.bf16.msra.mxu0 %v1700
        %1788 = vmatprep.subr.bf16.mxu0 %v1703
        %1789 = vmatpush1.bf16.msra.mxu0 %v1702
        %1790 = vmatprep.subr.bf16.mxu0 %v1705
        %1791 = vmatpush1.bf16.msra.mxu0 %v1704
        %1792 = vmatprep.subr.bf16.mxu0 %v1707
        %1793 = vmatpush1.bf16.msra.mxu0 %v1706
        %1794 = vmatprep.subr.bf16.mxu0 %v1709
        %1795 = vmatpush1.bf16.msra.mxu0 %v1708
        %1796 = vmatprep.subr.bf16.mxu0 %v1711
        %1797 = vmatpush1.bf16.msra.mxu0 %v1710
        %1798 = vmatprep.subr.bf16.mxu0 %v1713
        %1799 = vmatpush1.bf16.msra.mxu0 %v1712
        %1800 = vmatprep.subr.bf16.mxu0 %v1715
        %1801 = vmatpush1.bf16.msra.mxu0 %v1714
        %1802 = vmatprep.subr.bf16.mxu0 %v1717
        %1803 = vmatpush1.bf16.msra.mxu0 %v1716
        %1804 = vmatprep.subr.bf16.mxu0 %v1719
        %1805 = vmatpush1.bf16.msra.mxu0 %v1718
        %1806 = vmatprep.subr.bf16.mxu0 %v1721
        %1807 = vmatpush1.bf16.msra.mxu0 %v1720
        %1808 = vmatprep.subr.bf16.mxu0 %v1723
        %1809 = vmatpush1.bf16.msra.mxu0 %v1722
        %1810 = vmatprep.mubr.bf16.mxu0 %v1562
        %1811 = vmatmul.mubr.bf16.gmra.mrb[0].mxu0 %v1561
        %v1812 = vpop.f32.mrb[0].mxu0
        %v1813 = vadd.f32 0.0, %v1812
        %v1814 = vpop.f32.mrb[0].mxu0
        %v1815 = vadd.f32 0.0, %v1814
        %v1816 = vpop.f32.mrb[0].mxu0
        %v1817 = vadd.f32 0.0, %v1816
        %v1818 = vpop.f32.mrb[0].mxu0
        %v1819 = vadd.f32 0.0, %v1818
        %1820 = vmatprep.mubr.bf16.mxu0 %v1565
        %1821 = vmatmul.mubr.bf16.gmra.mrb[0].mxu0 %v1564
        %v1822 = vpop.f32.mrb[0].mxu0
        %v1823 = vadd.f32 0.0, %v1822
        %v1824 = vpop.f32.mrb[0].mxu0
        %v1825 = vadd.f32 0.0, %v1824
        %v1826 = vpop.f32.mrb[0].mxu0
        %v1827 = vadd.f32 0.0, %v1826
        %v1828 = vpop.f32.mrb[0].mxu0
        %v1829 = vadd.f32 0.0, %v1828
        %1830 = vdwg.mxu0
        %1831 = vmatprep.subr.bf16.mxu0 %v1725
        %1832 = vmatpush1.bf16.msra.mxu0 %v1724
        %1833 = vmatprep.subr.bf16.mxu0 %v1727
        %1834 = vmatpush1.bf16.msra.mxu0 %v1726
        %1835 = vmatprep.subr.bf16.mxu0 %v1729
        %1836 = vmatpush1.bf16.msra.mxu0 %v1728
        %1837 = vmatprep.subr.bf16.mxu0 %v1731
        %1838 = vmatpush1.bf16.msra.mxu0 %v1730
        %1839 = vmatprep.subr.bf16.mxu0 0
        %1840 = vmatpush1.bf16.msra.mxu0 0
        %1841 = vmatprep.subr.bf16.mxu0 0
        %1842 = vmatpush1.bf16.msra.mxu0 0
        %1843 = vmatprep.subr.bf16.mxu0 0
        %1844 = vmatpush1.bf16.msra.mxu0 0
        %1845 = vmatprep.subr.bf16.mxu0 0
        %1846 = vmatpush1.bf16.msra.mxu0 0
        %1847 = vmatprep.subr.bf16.mxu0 0
        %1848 = vmatpush1.bf16.msra.mxu0 0
        %1849 = vmatprep.subr.bf16.mxu0 0
        %1850 = vmatpush1.bf16.msra.mxu0 0
        %1851 = vmatprep.subr.bf16.mxu0 0
        %1852 = vmatpush1.bf16.msra.mxu0 0
        %1853 = vmatprep.subr.bf16.mxu0 0
        %1854 = vmatpush1.bf16.msra.mxu0 0
        %1855 = vmatprep.subr.bf16.mxu0 0
        %1856 = vmatpush1.bf16.msra.mxu0 0
        %1857 = vmatprep.subr.bf16.mxu0 0
        %1858 = vmatpush1.bf16.msra.mxu0 0
        %1859 = vmatprep.subr.bf16.mxu0 0
        %1860 = vmatpush1.bf16.msra.mxu0 0
        %1861 = vmatprep.subr.bf16.mxu0 0
        %1862 = vmatpush1.bf16.msra.mxu0 0
        %1863 = vmatprep.mubr.bf16.mxu0 0
        %1864 = vmatmul.mubr.bf16.gmra.mrb[0].mxu0 %v1773
        %v1865 = vpop.f32.mrb[0].mxu0
        %v1866 = vadd.f32 %v1813, %v1865
        %v1867 = vpop.f32.mrb[0].mxu0
        %v1868 = vadd.f32 %v1815, %v1867
        %v1869 = vpop.f32.mrb[0].mxu0
        %v1870 = vadd.f32 %v1817, %v1869
        %v1871 = vpop.f32.mrb[0].mxu0
        %v1872 = vadd.f32 %v1819, %v1871
        %1873 = vmatprep.mubr.bf16.mxu0 0
        %1874 = vmatmul.mubr.bf16.gmra.mrb[0].mxu0 %v1776
        %v1875 = vpop.f32.mrb[0].mxu0
        %v1876 = vadd.f32 %v1823, %v1875
        %v1877 = vpop.f32.mrb[0].mxu0
        %v1878 = vadd.f32 %v1825, %v1877
        %v1879 = vpop.f32.mrb[0].mxu0
        %v1880 = vadd.f32 %v1827, %v1879
        %v1881 = vpop.f32.mrb[0].mxu0
        %v1882 = vadd.f32 %v1829, %v1881
        %1883 = vdwg.mxu0
        %vm1884 = vcmp.ge.s32.totalorder %v259, 4294967292
        %vm1885 = vcmp.lt.s32.totalorder %v259, 12
        %vm1886 = vmand %vm1884, %vm1885
        %v1887 = vsel %vm1886, 1, 0
        %v1888 = vlaneseq
        %v1889 = vshrl.u32 %v1888, 7
        %v1890 = vsub.s32 0, %v1889
        %v1891 = vrot.slane %v1887, %v1890
        %v1892 = vlaneseq
        %v1893 = vshrl.u32 %v1892, 7
        %v1894 = vsub.s32 1, %v1893
        %v1895 = vrot.slane %v1887, %v1894
        %vm1896 = vcmp.eq.s32.totalorder %v1891, 1
        %vm1897 = vcmp.eq.s32.totalorder %v1895, 1
        %v1898 = vsel %vm1896, %v1866, 0.0
        %v1899 = vsel %vm1897, %v1868, 0.0
        %v1900 = vsel %vm1896, %v1870, 0.0
        %v1901 = vsel %vm1897, %v1872, 0.0
        %v1902 = vsel %vm1896, %v1876, 0.0
        %v1903 = vsel %vm1897, %v1878, 0.0
        %v1904 = vsel %vm1896, %v1880, 0.0
        %v1905 = vsel %vm1897, %v1882, 0.0
        %v1906 = vadd.f32 %v1524, %v1898
        %v1907 = vadd.f32 %v1525, %v1899
        %v1908 = vadd.f32 %v1526, %v1900
        %v1909 = vadd.f32 %v1527, %v1901
        %v1910 = vadd.f32 %v1528, %v1902
        %v1911 = vadd.f32 %v1529, %v1903
        %v1912 = vadd.f32 %v1530, %v1904
        %v1913 = vadd.f32 %v1531, %v1905
        %s1914 = scalar_lea.vmem [#allocation5], 192
        %v1915 = vld [vmem:[%s1914] sm:$0xff]
        %v1916 = vld [vmem:[%s1914 + $0x8] sm:$0xf]
        %v1917 = vld [vmem:[%s1914 + $0xc] sm:$0xff]
        %v1918 = vld [vmem:[%s1914 + $0x14] sm:$0xf]
        %v1919 = vld [vmem:[%s1914 + $0x18] sm:$0xff]
        %v1920 = vld [vmem:[%s1914 + $0x20] sm:$0xf]
        %v1921 = vld [vmem:[%s1914 + $0x24] sm:$0xff]
        %v1922 = vld [vmem:[%s1914 + $0x2c] sm:$0xf]
        %v1931 = vunpack.c.l.b16 %v1915
        %v1932 = vunpack.c.h.b16 %v1915
        %v1933 = vunpack.c.l.b16 %v1916
        %v1934 = vunpack.c.l.b16 %v1917
        %v1935 = vunpack.c.h.b16 %v1917
        %v1936 = vunpack.c.l.b16 %v1918
        %v1937 = vunpack.c.l.b16 %v1919
        %v1938 = vunpack.c.h.b16 %v1919
        %v1939 = vunpack.c.l.b16 %v1920
        %v1940 = vunpack.c.l.b16 %v1921
        %v1941 = vunpack.c.h.b16 %v1921
        %v1942 = vunpack.c.l.b16 %v1922
        %v1943 = vpack.c.b16 %v1934, %v1931
        %v1944 = vpack.c.b16 %v1935, %v1932
        %v1945 = vpack.c.b16 %v1936, %v1933
        %v1946 = vpack.c.b16 %v1940, %v1937
        %v1947 = vpack.c.b16 %v1941, %v1938
        %v1948 = vpack.c.b16 %v1942, %v1939
        %1953 = vrot.lane.b32.xlu0 %v324, 112
        %v1954 = vpop.permute.xlu0 %1953
        %1955 = vrot.lane.b32.xlu0 %v325, 112
        %v1956 = vpop.permute.xlu0 %1955
        %1957 = vrot.lane.b32.xlu0 %v356, 112
        %v1958 = vpop.permute.xlu0 %1957
        %1959 = vrot.lane.b32.xlu0 %v326, 112
        %v1960 = vpop.permute.xlu0 %1959
        %1961 = vrot.lane.b32.xlu0 %v327, 112
        %v1962 = vpop.permute.xlu0 %1961
        %1963 = vrot.lane.b32.xlu0 %v357, 112
        %v1964 = vpop.permute.xlu0 %1963
        %1965 = vrot.lane.b32.xlu0 %v328, 112
        %v1966 = vpop.permute.xlu0 %1965
        %1967 = vrot.lane.b32.xlu0 %v329, 112
        %v1968 = vpop.permute.xlu0 %1967
        %1969 = vrot.lane.b32.xlu0 %v358, 112
        %v1970 = vpop.permute.xlu0 %1969
        %1971 = vrot.lane.b32.xlu0 %v330, 112
        %v1972 = vpop.permute.xlu0 %1971
        %1973 = vrot.lane.b32.xlu0 %v331, 112
        %v1974 = vpop.permute.xlu0 %1973
        %1975 = vrot.lane.b32.xlu0 %v359, 112
        %v1976 = vpop.permute.xlu0 %1975
        %1977 = vrot.lane.b32.xlu0 %v385, 112
        %v1978 = vpop.permute.xlu0 %1977
        %1979 = vrot.lane.b32.xlu0 %v386, 112
        %v1980 = vpop.permute.xlu0 %1979
        %1981 = vrot.lane.b32.xlu0 %v365, 112
        %v1982 = vpop.permute.xlu0 %1981
        %1983 = vrot.lane.b32.xlu0 %v387, 112
        %v1984 = vpop.permute.xlu0 %1983
        %1985 = vrot.lane.b32.xlu0 %v388, 112
        %v1986 = vpop.permute.xlu0 %1985
        %1987 = vrot.lane.b32.xlu0 %v371, 112
        %v1988 = vpop.permute.xlu0 %1987
        %1989 = vrot.lane.b32.xlu0 %v389, 112
        %v1990 = vpop.permute.xlu0 %1989
        %1991 = vrot.lane.b32.xlu0 %v390, 112
        %v1992 = vpop.permute.xlu0 %1991
        %1993 = vrot.lane.b32.xlu0 %v377, 112
        %v1994 = vpop.permute.xlu0 %1993
        %1995 = vrot.lane.b32.xlu0 %v391, 112
        %v1996 = vpop.permute.xlu0 %1995
        %1997 = vrot.lane.b32.xlu0 %v392, 112
        %v1998 = vpop.permute.xlu0 %1997
        %1999 = vrot.lane.b32.xlu0 %v383, 112
        %v2000 = vpop.permute.xlu0 %1999
        %2001 = vrot.lane.b32.xlu0 %v425, 112
        %v2002 = vpop.permute.xlu0 %2001
        %2003 = vrot.lane.b32.xlu0 %v426, 112
        %v2004 = vpop.permute.xlu0 %2003
        %2005 = vrot.lane.b32.xlu0 %v457, 112
        %v2006 = vpop.permute.xlu0 %2005
        %2007 = vrot.lane.b32.xlu0 %v427, 112
        %v2008 = vpop.permute.xlu0 %2007
        %2009 = vrot.lane.b32.xlu0 %v428, 112
        %v2010 = vpop.permute.xlu0 %2009
        %2011 = vrot.lane.b32.xlu0 %v458, 112
        %v2012 = vpop.permute.xlu0 %2011
        %2013 = vrot.lane.b32.xlu0 %v429, 112
        %v2014 = vpop.permute.xlu0 %2013
        %2015 = vrot.lane.b32.xlu0 %v430, 112
        %v2016 = vpop.permute.xlu0 %2015
        %2017 = vrot.lane.b32.xlu0 %v459, 112
        %v2018 = vpop.permute.xlu0 %2017
        %2019 = vrot.lane.b32.xlu0 %v431, 112
        %v2020 = vpop.permute.xlu0 %2019
        %2021 = vrot.lane.b32.xlu0 %v432, 112
        %v2022 = vpop.permute.xlu0 %2021
        %2023 = vrot.lane.b32.xlu0 %v460, 112
        %v2024 = vpop.permute.xlu0 %2023
        %2025 = vrot.lane.b32.xlu0 %v485, 112
        %v2026 = vpop.permute.xlu0 %2025
        %2027 = vrot.lane.b32.xlu0 %v486, 112
        %v2028 = vpop.permute.xlu0 %2027
        %2029 = vrot.lane.b32.xlu0 %v466, 112
        %v2030 = vpop.permute.xlu0 %2029
        %2031 = vrot.lane.b32.xlu0 %v487, 112
        %v2032 = vpop.permute.xlu0 %2031
        %2033 = vrot.lane.b32.xlu0 %v488, 112
        %v2034 = vpop.permute.xlu0 %2033
        %2035 = vrot.lane.b32.xlu0 %v472, 112
        %v2036 = vpop.permute.xlu0 %2035
        %2037 = vrot.lane.b32.xlu0 %v489, 112
        %v2038 = vpop.permute.xlu0 %2037
        %2039 = vrot.lane.b32.xlu0 %v490, 112
        %v2040 = vpop.permute.xlu0 %2039
        %2041 = vrot.lane.b32.xlu0 %v478, 112
        %v2042 = vpop.permute.xlu0 %2041
        %2043 = vrot.lane.b32.xlu0 %v491, 112
        %v2044 = vpop.permute.xlu0 %2043
        %2045 = vrot.lane.b32.xlu0 %v492, 112
        %v2046 = vpop.permute.xlu0 %2045
        %2047 = vrot.lane.b32.xlu0 %v484, 112
        %v2048 = vpop.permute.xlu0 %2047
        %2049 = vrot.lane.b32.xlu0 %v778, 112
        %v2050 = vpop.permute.xlu0 %2049
        %2051 = vrot.lane.b32.xlu0 %v779, 112
        %v2052 = vpop.permute.xlu0 %2051
        %2053 = vrot.lane.b32.xlu0 %v780, 112
        %v2054 = vpop.permute.xlu0 %2053
        %2055 = vrot.lane.b32.xlu0 %v781, 112
        %v2056 = vpop.permute.xlu0 %2055
        %2057 = vrot.lane.b32.xlu0 %v782, 112
        %v2058 = vpop.permute.xlu0 %2057
        %2059 = vrot.lane.b32.xlu0 %v783, 112
        %v2060 = vpop.permute.xlu0 %2059
        %2061 = vrot.lane.b32.xlu0 %v784, 112
        %v2062 = vpop.permute.xlu0 %2061
        %2063 = vrot.lane.b32.xlu0 %v785, 112
        %v2064 = vpop.permute.xlu0 %2063
        %2065 = vrot.lane.b32.xlu0 %v786, 112
        %v2066 = vpop.permute.xlu0 %2065
        %2067 = vrot.lane.b32.xlu0 %v787, 112
        %v2068 = vpop.permute.xlu0 %2067
        %2069 = vrot.lane.b32.xlu0 %v788, 112
        %v2070 = vpop.permute.xlu0 %2069
        %2071 = vrot.lane.b32.xlu0 %v789, 112
        %v2072 = vpop.permute.xlu0 %2071
        %vm2073 = vcmask 916480
        %v2074 = vsel %vm2073, %v1954, %v1956
        %v2075 = vsel %vm2073, %v1956, %v1958
        %v2076 = vsel %vm2073, %v1960, %v1962
        %v2077 = vsel %vm2073, %v1962, %v1964
        %v2078 = vsel %vm2073, %v1966, %v1968
        %v2079 = vsel %vm2073, %v1968, %v1970
        %v2080 = vsel %vm2073, %v1972, %v1974
        %v2081 = vsel %vm2073, %v1974, %v1976
        %v2082 = vsel %vm2073, %v1978, %v1980
        %v2083 = vsel %vm2073, %v1980, %v1982
        %v2084 = vsel %vm2073, %v1984, %v1986
        %v2085 = vsel %vm2073, %v1986, %v1988
        %v2086 = vsel %vm2073, %v1990, %v1992
        %v2087 = vsel %vm2073, %v1992, %v1994
        %v2088 = vsel %vm2073, %v1996, %v1998
        %v2089 = vsel %vm2073, %v1998, %v2000
        %v2090 = vsel %vm2073, %v2002, %v2004
        %v2091 = vsel %vm2073, %v2004, %v2006
        %v2092 = vsel %vm2073, %v2008, %v2010
        %v2093 = vsel %vm2073, %v2010, %v2012
        %v2094 = vsel %vm2073, %v2014, %v2016
        %v2095 = vsel %vm2073, %v2016, %v2018
        %v2096 = vsel %vm2073, %v2020, %v2022
        %v2097 = vsel %vm2073, %v2022, %v2024
        %v2098 = vsel %vm2073, %v2026, %v2028
        %v2099 = vsel %vm2073, %v2028, %v2030
        %v2100 = vsel %vm2073, %v2032, %v2034
        %v2101 = vsel %vm2073, %v2034, %v2036
        %v2102 = vsel %vm2073, %v2038, %v2040
        %v2103 = vsel %vm2073, %v2040, %v2042
        %v2104 = vsel %vm2073, %v2044, %v2046
        %v2105 = vsel %vm2073, %v2046, %v2048
        %v2106 = vsel %vm2073, %v2050, %v2052
        %v2107 = vsel %vm2073, %v2052, %v2054
        %v2108 = vsel %vm2073, %v2056, %v2058
        %v2109 = vsel %vm2073, %v2058, %v2060
        %v2110 = vsel %vm2073, %v2062, %v2064
        %v2111 = vsel %vm2073, %v2064, %v2066
        %v2112 = vsel %vm2073, %v2068, %v2070
        %v2113 = vsel %vm2073, %v2070, %v2072
        %v2155 = vsel %vm579, %v1945, 0
        %v2158 = vsel %vm579, %v1948, 0
        %2160 = vmatprep.subr.bf16.mxu0 %v2075
        %2161 = vmatpush1.bf16.msra.mxu0 %v2074
        %2162 = vmatprep.subr.bf16.mxu0 %v2077
        %2163 = vmatpush1.bf16.msra.mxu0 %v2076
        %2164 = vmatprep.subr.bf16.mxu0 %v2079
        %2165 = vmatpush1.bf16.msra.mxu0 %v2078
        %2166 = vmatprep.subr.bf16.mxu0 %v2081
        %2167 = vmatpush1.bf16.msra.mxu0 %v2080
        %2168 = vmatprep.subr.bf16.mxu0 %v2083
        %2169 = vmatpush1.bf16.msra.mxu0 %v2082
        %2170 = vmatprep.subr.bf16.mxu0 %v2085
        %2171 = vmatpush1.bf16.msra.mxu0 %v2084
        %2172 = vmatprep.subr.bf16.mxu0 %v2087
        %2173 = vmatpush1.bf16.msra.mxu0 %v2086
        %2174 = vmatprep.subr.bf16.mxu0 %v2089
        %2175 = vmatpush1.bf16.msra.mxu0 %v2088
        %2176 = vmatprep.subr.bf16.mxu0 %v2091
        %2177 = vmatpush1.bf16.msra.mxu0 %v2090
        %2178 = vmatprep.subr.bf16.mxu0 %v2093
        %2179 = vmatpush1.bf16.msra.mxu0 %v2092
        %2180 = vmatprep.subr.bf16.mxu0 %v2095
        %2181 = vmatpush1.bf16.msra.mxu0 %v2094
        %2182 = vmatprep.subr.bf16.mxu0 %v2097
        %2183 = vmatpush1.bf16.msra.mxu0 %v2096
        %2184 = vmatprep.subr.bf16.mxu0 %v2099
        %2185 = vmatpush1.bf16.msra.mxu0 %v2098
        %2186 = vmatprep.subr.bf16.mxu0 %v2101
        %2187 = vmatpush1.bf16.msra.mxu0 %v2100
        %2188 = vmatprep.subr.bf16.mxu0 %v2103
        %2189 = vmatpush1.bf16.msra.mxu0 %v2102
        %2190 = vmatprep.subr.bf16.mxu0 %v2105
        %2191 = vmatpush1.bf16.msra.mxu0 %v2104
        %2192 = vmatprep.mubr.bf16.mxu0 %v1944
        %2193 = vmatmul.mubr.bf16.gmra.mrb[0].mxu0 %v1943
        %v2194 = vpop.f32.mrb[0].mxu0
        %v2195 = vadd.f32 0.0, %v2194
        %v2196 = vpop.f32.mrb[0].mxu0
        %v2197 = vadd.f32 0.0, %v2196
        %v2198 = vpop.f32.mrb[0].mxu0
        %v2199 = vadd.f32 0.0, %v2198
        %v2200 = vpop.f32.mrb[0].mxu0
        %v2201 = vadd.f32 0.0, %v2200
        %2202 = vmatprep.mubr.bf16.mxu0 %v1947
        %2203 = vmatmul.mubr.bf16.gmra.mrb[0].mxu0 %v1946
        %v2204 = vpop.f32.mrb[0].mxu0
        %v2205 = vadd.f32 0.0, %v2204
        %v2206 = vpop.f32.mrb[0].mxu0
        %v2207 = vadd.f32 0.0, %v2206
        %v2208 = vpop.f32.mrb[0].mxu0
        %v2209 = vadd.f32 0.0, %v2208
        %v2210 = vpop.f32.mrb[0].mxu0
        %v2211 = vadd.f32 0.0, %v2210
        %2212 = vdwg.mxu0
        %2213 = vmatprep.subr.bf16.mxu0 %v2107
        %2214 = vmatpush1.bf16.msra.mxu0 %v2106
        %2215 = vmatprep.subr.bf16.mxu0 %v2109
        %2216 = vmatpush1.bf16.msra.mxu0 %v2108
        %2217 = vmatprep.subr.bf16.mxu0 %v2111
        %2218 = vmatpush1.bf16.msra.mxu0 %v2110
        %2219 = vmatprep.subr.bf16.mxu0 %v2113
        %2220 = vmatpush1.bf16.msra.mxu0 %v2112
        %2221 = vmatprep.subr.bf16.mxu0 0
        %2222 = vmatpush1.bf16.msra.mxu0 0
        %2223 = vmatprep.subr.bf16.mxu0 0
        %2224 = vmatpush1.bf16.msra.mxu0 0
        %2225 = vmatprep.subr.bf16.mxu0 0
        %2226 = vmatpush1.bf16.msra.mxu0 0
        %2227 = vmatprep.subr.bf16.mxu0 0
        %2228 = vmatpush1.bf16.msra.mxu0 0
        %2229 = vmatprep.subr.bf16.mxu0 0
        %2230 = vmatpush1.bf16.msra.mxu0 0
        %2231 = vmatprep.subr.bf16.mxu0 0
        %2232 = vmatpush1.bf16.msra.mxu0 0
        %2233 = vmatprep.subr.bf16.mxu0 0
        %2234 = vmatpush1.bf16.msra.mxu0 0
        %2235 = vmatprep.subr.bf16.mxu0 0
        %2236 = vmatpush1.bf16.msra.mxu0 0
        %2237 = vmatprep.subr.bf16.mxu0 0
        %2238 = vmatpush1.bf16.msra.mxu0 0
        %2239 = vmatprep.subr.bf16.mxu0 0
        %2240 = vmatpush1.bf16.msra.mxu0 0
        %2241 = vmatprep.subr.bf16.mxu0 0
        %2242 = vmatpush1.bf16.msra.mxu0 0
        %2243 = vmatprep.subr.bf16.mxu0 0
        %2244 = vmatpush1.bf16.msra.mxu0 0
        %2245 = vmatprep.mubr.bf16.mxu0 0
        %2246 = vmatmul.mubr.bf16.gmra.mrb[0].mxu0 %v2155
        %v2247 = vpop.f32.mrb[0].mxu0
        %v2248 = vadd.f32 %v2195, %v2247
        %v2249 = vpop.f32.mrb[0].mxu0
        %v2250 = vadd.f32 %v2197, %v2249
        %v2251 = vpop.f32.mrb[0].mxu0
        %v2252 = vadd.f32 %v2199, %v2251
        %v2253 = vpop.f32.mrb[0].mxu0
        %v2254 = vadd.f32 %v2201, %v2253
        %2255 = vmatprep.mubr.bf16.mxu0 0
        %2256 = vmatmul.mubr.bf16.gmra.mrb[0].mxu0 %v2158
        %v2257 = vpop.f32.mrb[0].mxu0
        %v2258 = vadd.f32 %v2205, %v2257
        %v2259 = vpop.f32.mrb[0].mxu0
        %v2260 = vadd.f32 %v2207, %v2259
        %v2261 = vpop.f32.mrb[0].mxu0
        %v2262 = vadd.f32 %v2209, %v2261
        %v2263 = vpop.f32.mrb[0].mxu0
        %v2264 = vadd.f32 %v2211, %v2263
        %2265 = vdwg.mxu0
        %vm2266 = vcmp.ge.s32.totalorder %v259, 4294967288
        %vm2267 = vcmp.lt.s32.totalorder %v259, 8
        %vm2268 = vmand %vm2266, %vm2267
        %v2269 = vsel %vm2268, 1, 0
        %v2270 = vlaneseq
        %v2271 = vshrl.u32 %v2270, 7
        %v2272 = vsub.s32 0, %v2271
        %v2273 = vrot.slane %v2269, %v2272
        %v2274 = vlaneseq
        %v2275 = vshrl.u32 %v2274, 7
        %v2276 = vsub.s32 1, %v2275
        %v2277 = vrot.slane %v2269, %v2276
        %vm2278 = vcmp.eq.s32.totalorder %v2273, 1
        %vm2279 = vcmp.eq.s32.totalorder %v2277, 1
        %v2280 = vsel %vm2278, %v2248, 0.0
        %v2281 = vsel %vm2279, %v2250, 0.0
        %v2282 = vsel %vm2278, %v2252, 0.0
        %v2283 = vsel %vm2279, %v2254, 0.0
        %v2284 = vsel %vm2278, %v2258, 0.0
        %v2285 = vsel %vm2279, %v2260, 0.0
        %v2286 = vsel %vm2278, %v2262, 0.0
        %v2287 = vsel %vm2279, %v2264, 0.0
        %v2288 = vadd.f32 %v1906, %v2280
        %v2289 = vadd.f32 %v1907, %v2281
        %v2290 = vadd.f32 %v1908, %v2282
        %v2291 = vadd.f32 %v1909, %v2283
        %v2292 = vadd.f32 %v1910, %v2284
        %v2293 = vadd.f32 %v1911, %v2285
        %v2294 = vadd.f32 %v1912, %v2286
        %v2295 = vadd.f32 %v1913, %v2287
        %v2296 = vld [vmem:[#allocation7] sm:$0xff]
        %v2297 = vld [vmem:[#allocation7 + $0x8] sm:$0xff]
        %v2298 = vld [vmem:[#allocation7 + $0x10] sm:$0xff]
        %v2299 = vld [vmem:[#allocation7 + $0x18] sm:$0xff]
        %2301 = vset.pattern.permute.xlu0 0
        %2302 = vperm.xlu0 %2301, %v2296
        %v2303 = vpop.permute.xlu0 %2302
        %2306 = vset.pattern.permute.xlu0 0
        %2307 = vperm.xlu0 %2306, %v2297
        %v2308 = vpop.permute.xlu0 %2307
        %2311 = vset.pattern.permute.xlu0 0
        %2312 = vperm.xlu0 %2311, %v2298
        %v2313 = vpop.permute.xlu0 %2312
        %2316 = vset.pattern.permute.xlu0 0
        %2317 = vperm.xlu0 %2316, %v2299
        %v2318 = vpop.permute.xlu0 %2317
        %v2320 = vadd.f32 %v2288, %v2303
        %v2321 = vadd.f32 %v2289, %v2303
        %v2322 = vadd.f32 %v2290, %v2308
        %v2323 = vadd.f32 %v2291, %v2308
        %v2324 = vadd.f32 %v2292, %v2313
        %v2325 = vadd.f32 %v2293, %v2313
        %v2326 = vadd.f32 %v2294, %v2318
        %v2327 = vadd.f32 %v2295, %v2318
        %vm2328 = vcmp.gt.f32.partialorder %v2320, 0.0
        %vm2329 = vcmp.gt.f32.partialorder %v2321, 0.0
        %vm2330 = vcmp.gt.f32.partialorder %v2322, 0.0
        %vm2331 = vcmp.gt.f32.partialorder %v2323, 0.0
        %vm2332 = vcmp.gt.f32.partialorder %v2324, 0.0
        %vm2333 = vcmp.gt.f32.partialorder %v2325, 0.0
        %vm2334 = vcmp.gt.f32.partialorder %v2326, 0.0
        %vm2335 = vcmp.gt.f32.partialorder %v2327, 0.0
        %v2336 = vmul.f32 %v2320, 0.01
        %v2337 = vmul.f32 %v2321, 0.01
        %v2338 = vmul.f32 %v2322, 0.01
        %v2339 = vmul.f32 %v2323, 0.01
        %v2340 = vmul.f32 %v2324, 0.01
        %v2341 = vmul.f32 %v2325, 0.01
        %v2342 = vmul.f32 %v2326, 0.01
        %v2343 = vmul.f32 %v2327, 0.01
        %v2344 = vsel %vm2328, %v2320, %v2336
        %v2345 = vsel %vm2329, %v2321, %v2337
        %v2346 = vsel %vm2330, %v2322, %v2338
        %v2347 = vsel %vm2331, %v2323, %v2339
        %v2348 = vsel %vm2332, %v2324, %v2340
        %v2349 = vsel %vm2333, %v2325, %v2341
        %v2350 = vsel %vm2334, %v2326, %v2342
        %v2351 = vsel %vm2335, %v2327, %v2343
        %v2352 = vpack.c.bf16 %v2346, %v2344
        %v2353 = vpack.c.bf16 %v2347, %v2345
        %v2354 = vpack.c.bf16 %v2350, %v2348
        %v2355 = vpack.c.bf16 %v2351, %v2349
        %v2360 = vunpack.c.l.b16 %v2352
        %v2361 = vunpack.c.l.b16 %v2353
        %v2362 = vunpack.c.h.b16 %v2352
        %v2363 = vunpack.c.h.b16 %v2353
        %v2364 = vunpack.c.l.b16 %v2354
        %v2365 = vunpack.c.l.b16 %v2355
        %v2366 = vunpack.c.h.b16 %v2354
        %v2367 = vunpack.c.h.b16 %v2355
        %v2368 = vpack.c.b16 %v2361, %v2360
        %v2369 = vpack.c.b16 %v2363, %v2362
        %v2370 = vpack.c.b16 %v2365, %v2364
        %v2371 = vpack.c.b16 %v2367, %v2366
        %2376 = vst [vmem:[%s257] sm:$0xff] %v2368
        %2377 = vst [vmem:[%s257 + $0x8] sm:$0xff] %v2369
        %2378 = vst [vmem:[%s257 + $0x10] sm:$0xff] %v2370
        %2379 = vst [vmem:[%s257 + $0x18] sm:$0xff] %v2371
        %s2380 = sand.u32 %s120, 1
        %s2381 = scalar_lea.sflag [#allocation4], %s2380
        %s2382 = sand.u32 %s120, 1
        %s2383 = smul.addr %s2382, 32
        %s2384 = scalar_lea.vmem [#allocation10], %s2383
        // Predicated region
        $region53: #{_forward.10} parent=35 // pred_check
          %p2385 = pneg %p130
        $region54: #{_forward.10} parent=35 // pred_check_branch
          %2387 = sbr.rel (%p2385) target = $region56
        $region55: #{_forward.10} parent=35 // pred_region
          %s2389 = ssub.s32 512, 512
          %2390 = vsyncadd %s2381, %s2389
          %s2391 = smul.addr %s23, 8
          %s2392 = smul.addr %s2391, 64
          %s2393 = scalar_lea.hbm %s4, %s2392
          %s2394 = sshll.u32 %s2384, 4
          %s2395 = int_to_ptr.vmem [resolvable:$true] %s2394
          %2400 = dma.vmem_to_hbm [thread:$0]  %s2395, 512, %s2393, %s2381, 128, 128, 8
        $region56: #{_forward.10} parent=35 // pred_fallthru
          _
      $region36: #{_forward.10} parent=5 // pred_fallthru
        _
      %p2401 = scmp.le.s32.totalorder 2, %s18
      // Predicated region
      $region57: #{_forward.10} parent=5 // pred_check
        %p2402 = pneg %p2401
      $region58: #{_forward.10} parent=5 // pred_check_branch
        %2404 = sbr.rel (%p2402) target = $region60
      $region59: #{_forward.10} parent=5 // pred_region
        %s2405 = ssub.s32 %s18, 2
        // Predicated region
        $region61: #{_forward.10} parent=59 // pred_check
          %p2406 = pneg %p136
        $region62: #{_forward.10} parent=59 // pred_check_branch
          %2408 = sbr.rel (%p2406) target = $region64
        $region63: #{_forward.10} parent=59 // pred_region
          %s2409 = sand.u32 %s121, 1
          %s2410 = scalar_lea.sflag [#allocation4], %s2409
          %s2411 = sand.u32 %s121, 1
          %s2412 = smul.addr %s2411, 32
          %s2413 = scalar_lea.vmem [#allocation10], %s2412
          %2414 = dma.done %s2410, 512
        $region64: #{_forward.10} parent=59 // pred_fallthru
          _
      $region60: #{_forward.10} parent=5 // pred_fallthru
        _
    $region6: #{_forward.10} parent=1 // loop_footer
      %s22 = sadd.s32 1, %s18
    $region7: #{_forward.10} parent=1 // loop_footer_branch
      %17 = sbr.rel target = $region3
    $region8: #{_forward.10} parent=1 // loop_exit
      _
    %2415 = vsyncpa [#allocation3], 1
    %s2416 = scalar_lea.sflag [#allocation3], 1
    %2417 = vsyncpa %s2416, 1
    %2418 = vsyncpa [#allocation6], 1
    %2419 = vsyncpa [#allocation9], 1
    %2420 = vsyncpa [#allocation4], 1
    %s2421 = scalar_lea.sflag [#allocation4], 1
    %2422 = vsyncpa %s2421, 1

// kernel: _forward.11
$region0: #{_forward.11}
  #allocation0 [shape = 'u32[]', space=smem, size = 0x4, offset = 0x4, fixed_abs, tag = 'smem constant byte address 0x4 - core index']
  #allocation1 [shape = 'u32[144,128]{1,0:T(1,128)}', space=vmem, size = 0x12000, scoped, tag = 'internal scratch']
  %s0 = inlined_call_operand.hbm [shape: bf16[2,32,768], index: 0, kind: input, shape index: {}]
  %s1 = inlined_call_operand.hbm [shape: bf16[3,16,96], index: 1, kind: input, shape index: {}]
  %s2 = inlined_call_operand.hbm [shape: f32[16,1], index: 2, kind: input, shape index: {}]
  %s3 = inlined_call_operand.hbm [shape: s32[1,256], index: 3, kind: input, shape index: {}]
  %s4 = inlined_call_operand.hbm [shape: bf16[2,16,256], index: 4, kind: output, shape index: {}]
  %s5 = sld [smem:[#allocation0]]
  $region65: #{_forward.11} parent=0
    _
  %s7 = ssub.s32 1, %s5
  %s8 = scalar_select 0, %s7, %s5
  $region1: #{_forward.11} parent=0
    #allocation2 [shape = 'u8[98304]{0}', space=vmem, size = 0x18000, scoped, tag = 'input window, operand 0']
    #allocation3 [shape = 's32[2]{0}', space=sflag, size = 0x8, scoped, tag = 'scoped memory for _forward.11']
    #allocation4 [shape = 's32[2]{0}', space=sflag, size = 0x8, scoped, tag = 'scoped memory for _forward.11']
    #allocation5 [shape = 'u8[12288]{0}', space=vmem, size = 0x3000, scoped, tag = 'input window, operand 1, single buffered']
    #allocation6 [shape = 's32[1]{0}', space=sflag, size = 0x4, scoped, tag = 'scoped memory for _forward.11']
    #allocation7 [shape = 'u8[8192]{0}', space=vmem, size = 0x2000, scoped, tag = 'input window, operand 2, single buffered']
    #allocation8 [shape = 'u8[1024]{0}', space=vmem, size = 0x400, scoped, tag = 'input window, operand 3, single buffered']
    #allocation9 [shape = 's32[1]{0}', space=sflag, size = 0x4, scoped, tag = 'scoped memory for _forward.11']
    #allocation10 [shape = 'u8[16384]{0}', space=vmem, size = 0x4000, scoped, tag = 'output window, operand 0']
    %9 = vsyncpa [#allocation3], 0
    %s10 = scalar_lea.sflag [#allocation3], 1
    %11 = vsyncpa %s10, 0
    %12 = vsyncpa [#allocation6], 0
    %13 = vsyncpa [#allocation9], 0
    %14 = vsyncpa [#allocation4], 0
    %s15 = scalar_lea.sflag [#allocation4], 1
    %16 = vsyncpa %s15, 0
    loop: start=0, step=1, limit=4
    $region2: #{_forward.11} parent=1 // loop_pre_header
      _
    $region3: #{_forward.11} parent=1 // loop_header
      %s18 = sphi 0, %s22
      %p19 = scmp.ge.s32.totalorder %s18, 4
      %s28 = sphi 0, %s30
      %s31 = sphi 0, %s28
      %s32 = sphi 0, %s31
      %s48 = sphi 0, %s32
      %s52 = sphi 0, %s52
      %s54 = sphi 0, %s52
      %s55 = sphi 0, %s54
      %s69 = sphi 0, %s55
      %s73 = sphi 0, %s73
      %s75 = sphi 0, %s73
      %s76 = sphi 0, %s75
      %s90 = sphi 0, %s76
      %s94 = sphi 0, %s94
      %s96 = sphi 0, %s94
      %s97 = sphi 0, %s96
      %s111 = sphi 0, %s97
      %s117 = sphi 0, %s119
      %s120 = sphi 0, %s117
      %s121 = sphi 0, %s120
      %s137 = sphi 0, %s121
    $region4: #{_forward.11} parent=1 // loop_header_branch
      %21 = sbr.rel (%p19) target = $region8
    $region5: #{_forward.11} parent=1 // loop_body
      %s23 = ssub.s32 %s18, 1
      %s24 = ssub.s32 %s18, 2
      %s25 = sadd.s32 %s18, 1
      %s26 = ssub.s32 %s18, %s25
      %p27 = scmp.eq.s32.totalorder %s26, 0
      %s29 = sadd.s32 %s28, 1
      %s30 = scalar_select %p27, %s28, %s29
      %p33 = pneg %p27
      %p34 = scmp.eq.s32.totalorder %s18, 1
      %p35 = por %p33, %p34
      %p36 = scmp.ne.s32.totalorder %s28, %s31
      %p37 = scmp.eq.s32.totalorder %s18, 0
      %p38 = por %p36, %p37
      %p39 = scmp.ne.s32.totalorder %s28, %s31
      %p40 = scmp.eq.s32.totalorder %s23, 1
      %p41 = por %p39, %p40
      %p42 = scmp.ne.s32.totalorder %s31, %s32
      %p43 = scmp.eq.s32.totalorder %s23, 0
      %p44 = por %p42, %p43
      %p45 = scmp.ne.s32.totalorder %s31, %s32
      %p46 = scmp.eq.s32.totalorder %s24, 1
      %p47 = por %p45, %p46
      %p49 = scmp.ne.s32.totalorder %s32, %s48
      %p50 = scmp.eq.s32.totalorder %s24, 0
      %p51 = por %p49, %p50
      %s53 = sadd.s32 %s52, 1
      %p56 = scmp.eq.s32.totalorder %s18, 1
      %p57 = scmp.ne.s32.totalorder %s52, %s54
      %p58 = scmp.eq.s32.totalorder %s18, 0
      %p59 = por %p57, %p58
      %p60 = scmp.ne.s32.totalorder %s52, %s54
      %p61 = scmp.eq.s32.totalorder %s23, 1
      %p62 = por %p60, %p61
      %p63 = scmp.ne.s32.totalorder %s54, %s55
      %p64 = scmp.eq.s32.totalorder %s23, 0
      %p65 = por %p63, %p64
      %p66 = scmp.ne.s32.totalorder %s54, %s55
      %p67 = scmp.eq.s32.totalorder %s24, 1
      %p68 = por %p66, %p67
      %p70 = scmp.ne.s32.totalorder %s55, %s69
      %p71 = scmp.eq.s32.totalorder %s24, 0
      %p72 = por %p70, %p71
      %s74 = sadd.s32 %s73, 1
      %p77 = scmp.eq.s32.totalorder %s18, 1
      %p78 = scmp.ne.s32.totalorder %s73, %s75
      %p79 = scmp.eq.s32.totalorder %s18, 0
      %p80 = por %p78, %p79
      %p81 = scmp.ne.s32.totalorder %s73, %s75
      %p82 = scmp.eq.s32.totalorder %s23, 1
      %p83 = por %p81, %p82
      %p84 = scmp.ne.s32.totalorder %s75, %s76
      %p85 = scmp.eq.s32.totalorder %s23, 0
      %p86 = por %p84, %p85
      %p87 = scmp.ne.s32.totalorder %s75, %s76
      %p88 = scmp.eq.s32.totalorder %s24, 1
      %p89 = por %p87, %p88
      %p91 = scmp.ne.s32.totalorder %s76, %s90
      %p92 = scmp.eq.s32.totalorder %s24, 0
      %p93 = por %p91, %p92
      %s95 = sadd.s32 %s94, 1
      %p98 = scmp.eq.s32.totalorder %s18, 1
      %p99 = scmp.ne.s32.totalorder %s94, %s96
      %p100 = scmp.eq.s32.totalorder %s18, 0
      %p101 = por %p99, %p100
      %p102 = scmp.ne.s32.totalorder %s94, %s96
      %p103 = scmp.eq.s32.totalorder %s23, 1
      %p104 = por %p102, %p103
      %p105 = scmp.ne.s32.totalorder %s96, %s97
      %p106 = scmp.eq.s32.totalorder %s23, 0
      %p107 = por %p105, %p106
      %p108 = scmp.ne.s32.totalorder %s96, %s97
      %p109 = scmp.eq.s32.totalorder %s24, 1
      %p110 = por %p108, %p109
      %p112 = scmp.ne.s32.totalorder %s97, %s111
      %p113 = scmp.eq.s32.totalorder %s24, 0
      %p114 = por %p112, %p113
      %s115 = ssub.s32 %s18, %s25
      %p116 = scmp.eq.s32.totalorder %s115, 0
      %s118 = sadd.s32 %s117, 1
      %s119 = scalar_select %p116, %s117, %s118
      %p122 = pneg %p116
      %p123 = scmp.eq.s32.totalorder %s18, 1
      %p124 = por %p122, %p123
      %p125 = scmp.ne.s32.totalorder %s117, %s120
      %p126 = scmp.eq.s32.totalorder %s18, 0
      %p127 = por %p125, %p126
      %p128 = scmp.ne.s32.totalorder %s117, %s120
      %p129 = scmp.eq.s32.totalorder %s23, 1
      %p130 = por %p128, %p129
      %p131 = scmp.ne.s32.totalorder %s120, %s121
      %p132 = scmp.eq.s32.totalorder %s23, 0
      %p133 = por %p131, %p132
      %p134 = scmp.ne.s32.totalorder %s120, %s121
      %p135 = scmp.eq.s32.totalorder %s24, 1
      %p136 = por %p134, %p135
      %p138 = scmp.ne.s32.totalorder %s121, %s137
      %p139 = scmp.eq.s32.totalorder %s24, 0
      %p140 = por %p138, %p139
      %p141 = scmp.le.s32.totalorder 1, %s18
      %p142 = scmp.lt.s32.totalorder %s18, 3
      %p143 = pnand %p141, %p142
      %p144 = pneg %p143
      // Predicated region
      $region9: #{_forward.11} parent=5 // pred_check
        _
      $region10: #{_forward.11} parent=5 // pred_check_branch
        %146 = sbr.rel (%p143) target = $region12
      $region11: #{_forward.11} parent=5 // pred_region
        %s147 = ssub.s32 %s18, 1
        // Predicated region
        $region13: #{_forward.11} parent=11 // pred_check
          %p148 = pneg %p65
        $region14: #{_forward.11} parent=11 // pred_check_branch
          %150 = sbr.rel (%p148) target = $region16
        $region15: #{_forward.11} parent=11 // pred_region
          %s152 = ssub.s32 384, 384
          %153 = vsyncadd [#allocation6], %s152
          %s154 = sshll.u32 [#allocation5], 4
          %s155 = int_to_ptr.vmem [resolvable:$true] %s154
          %160 = dma.hbm_to_vmem [thread:$0]  %s1, 384, %s155, [#allocation6], 64, 64, 4
        $region16: #{_forward.11} parent=11 // pred_fallthru
          _
        // Predicated region
        $region17: #{_forward.11} parent=11 // pred_check
          %p161 = pneg %p86
        $region18: #{_forward.11} parent=11 // pred_check_branch
          %163 = sbr.rel (%p161) target = $region20
        $region19: #{_forward.11} parent=11 // pred_region
          %s165 = ssub.s32 256, 256
          %166 = vsyncadd [#allocation6], %s165
          %s167 = sshll.u32 [#allocation7], 4
          %s168 = int_to_ptr.vmem [resolvable:$true] %s167
          %173 = dma.hbm_to_vmem [thread:$0]  %s2, 256, %s168, [#allocation6], 128, 128, 8
        $region20: #{_forward.11} parent=11 // pred_fallthru
          _
        // Predicated region
        $region21: #{_forward.11} parent=11 // pred_check
          %p174 = pneg %p107
        $region22: #{_forward.11} parent=11 // pred_check_branch
          %176 = sbr.rel (%p174) target = $region24
        $region23: #{_forward.11} parent=11 // pred_region
          %s178 = ssub.s32 32, 32
          %179 = vsyncadd [#allocation9], %s178
          %s181 = sshll.u32 [#allocation8], 4
          %s182 = int_to_ptr.vmem [resolvable:$true] %s181
          %184 = dma.hbm_to_vmem [thread:$0]  %s3, 32, %s182, [#allocation9]
        $region24: #{_forward.11} parent=11 // pred_fallthru
          _
      $region12: #{_forward.11} parent=5 // pred_fallthru
        _
      %p185 = scmp.lt.s32.totalorder %s18, 2
      // Predicated region
      $region25: #{_forward.11} parent=5 // pred_check
        %p186 = pneg %p185
      $region26: #{_forward.11} parent=5 // pred_check_branch
        %188 = sbr.rel (%p186) target = $region28
      $region27: #{_forward.11} parent=5 // pred_region
        // Predicated region
        $region29: #{_forward.11} parent=27 // pred_check
          %p189 = pneg %p38
        $region30: #{_forward.11} parent=27 // pred_check_branch
          %191 = sbr.rel (%p189) target = $region32
        $region31: #{_forward.11} parent=27 // pred_region
          %s192 = sand.u32 %s28, 1
          %s193 = scalar_lea.sflag [#allocation3], %s192
          %s194 = sand.u32 %s28, 1
          %s195 = smul.addr %s194, 96
          %s196 = scalar_lea.vmem [#allocation2], %s195
          %s198 = ssub.s32 1536, 1536
          %199 = vsyncadd %s193, %s198
          %s200 = smul.addr %s18, 24
          %s201 = smul.addr %s200, 64
          %s202 = scalar_lea.hbm %s0, %s201
          %s203 = sshll.u32 %s196, 4
          %s204 = int_to_ptr.vmem [resolvable:$true] %s203
          %209 = dma.hbm_to_vmem [thread:$0]  %s202, 1536, %s204, %s193, 384, 384, 24
        $region32: #{_forward.11} parent=27 // pred_fallthru
          _
      $region28: #{_forward.11} parent=5 // pred_fallthru
        _
      %p210 = scmp.le.s32.totalorder 1, %s18
      %p211 = scmp.lt.s32.totalorder %s18, 3
      %p212 = pnand %p210, %p211
      %p213 = pneg %p212
      // Predicated region
      $region33: #{_forward.11} parent=5 // pred_check
        _
      $region34: #{_forward.11} parent=5 // pred_check_branch
        %215 = sbr.rel (%p212) target = $region36
      $region35: #{_forward.11} parent=5 // pred_region
        %s216 = ssub.s32 %s18, 1
        %s217 = sand.u32 %s31, 1
        %s218 = scalar_lea.sflag [#allocation3], %s217
        %s219 = sand.u32 %s31, 1
        %s220 = smul.addr %s219, 96
        %s221 = scalar_lea.vmem [#allocation2], %s220
        // Predicated region
        $region37: #{_forward.11} parent=35 // pred_check
          %p222 = pneg %p44
        $region38: #{_forward.11} parent=35 // pred_check_branch
          %224 = sbr.rel (%p222) target = $region40
        $region39: #{_forward.11} parent=35 // pred_region
          %225 = dma.done %s218, 1536
        $region40: #{_forward.11} parent=35 // pred_fallthru
          _
        // Predicated region
        $region41: #{_forward.11} parent=35 // pred_check
          %p226 = pneg %p65
        $region42: #{_forward.11} parent=35 // pred_check_branch
          %228 = sbr.rel (%p226) target = $region44
        $region43: #{_forward.11} parent=35 // pred_region
          %229 = dma.done [#allocation6], 384
        $region44: #{_forward.11} parent=35 // pred_fallthru
          _
        // Predicated region
        $region45: #{_forward.11} parent=35 // pred_check
          %p230 = pneg %p86
        $region46: #{_forward.11} parent=35 // pred_check_branch
          %232 = sbr.rel (%p230) target = $region48
        $region47: #{_forward.11} parent=35 // pred_region
          %233 = dma.done [#allocation6], 256
        $region48: #{_forward.11} parent=35 // pred_fallthru
          _
        // Predicated region
        $region49: #{_forward.11} parent=35 // pred_check
          %p234 = pneg %p107
        $region50: #{_forward.11} parent=35 // pred_check_branch
          %236 = sbr.rel (%p234) target = $region52
        $region51: #{_forward.11} parent=35 // pred_region
          %237 = dma.done [#allocation9], 32
        $region52: #{_forward.11} parent=35 // pred_fallthru
          _
        %s238 = sand.u32 %s31, 1
        %s239 = scalar_lea.sflag [#allocation3], %s238
        %s240 = sand.u32 %s31, 1
        %s241 = smul.addr %s240, 96
        %s242 = scalar_lea.vmem [#allocation2], %s241
        %p243 = pneg %p44
        %p244 = pneg %p41
        %p245 = pneg %p65
        %p246 = pneg %p62
        %p247 = pneg %p86
        %p248 = pneg %p83
        %p249 = pneg %p107
        %p250 = pneg %p104
        %p251 = pneg %p133
        %p252 = pneg %p130
        %s253 = sand.u32 %s120, 1
        %s254 = scalar_lea.sflag [#allocation4], %s253
        %s255 = sand.u32 %s120, 1
        %s256 = smul.addr %s255, 16
        %s257 = scalar_lea.vmem [#allocation10], %s256
        %v259 = vld [vmem:[#allocation8] sm:$0x3]
        %v260 = vld [vmem:[%s221] sm:$0xff]
        %v261 = vld [vmem:[%s221 + $0x18] sm:$0xff]
        %v262 = vld [vmem:[%s221 + $0x30] sm:$0xff]
        %v263 = vld [vmem:[%s221 + $0x48] sm:$0xff]
        %v264 = vld [vmem:[%s221 + $0x4] sm:$0xff]
        %v265 = vld [vmem:[%s221 + $0xc] sm:$0xf]
        %v266 = vld [vmem:[%s221 + $0x1c] sm:$0xff]
        %v267 = vld [vmem:[%s221 + $0x24] sm:$0xf]
        %v268 = vld [vmem:[%s221 + $0x34] sm:$0xff]
        %v269 = vld [vmem:[%s221 + $0x3c] sm:$0xf]
        %v270 = vld [vmem:[%s221 + $0x4c] sm:$0xff]
        %v271 = vld [vmem:[%s221 + $0x54] sm:$0xf]
        %v272 = vld [vmem:[%s221 + $0xc] sm:$0xff]
        %v273 = vld [vmem:[%s221 + $0x24] sm:$0xff]
        %v274 = vld [vmem:[%s221 + $0x3c] sm:$0xff]
        %v275 = vld [vmem:[%s221 + $0x54] sm:$0xff]
        %v280 = vunpack.c.l.b16 %v260
        %v281 = vunpack.c.h.b16 %v260
        %v282 = vunpack.c.l.b16 %v261
        %v283 = vunpack.c.h.b16 %v261
        %v284 = vunpack.c.l.b16 %v262
        %v285 = vunpack.c.h.b16 %v262
        %v286 = vunpack.c.l.b16 %v263
        %v287 = vunpack.c.h.b16 %v263
        %v288 = vpack.c.b16 %v282, %v280
        %v289 = vpack.c.b16 %v283, %v281
        %v290 = vpack.c.b16 %v286, %v284
        %v291 = vpack.c.b16 %v287, %v285
        %v304 = vunpack.c.l.b16 %v264
        %v305 = vunpack.c.h.b16 %v264
        %v306 = vunpack.c.l.b16 %v265
        %v307 = vunpack.c.l.b16 %v266
        %v308 = vunpack.c.h.b16 %v266
        %v309 = vunpack.c.l.b16 %v267
        %v310 = vunpack.c.l.b16 %v268
        %v311 = vunpack.c.h.b16 %v268
        %v312 = vunpack.c.l.b16 %v269
        %v313 = vunpack.c.l.b16 %v270
        %v314 = vunpack.c.h.b16 %v270
        %v315 = vunpack.c.l.b16 %v271
        %v316 = vpack.c.b16 %v307, %v304
        %v317 = vpack.c.b16 %v308, %v305
        %v318 = vpack.c.b16 %v309, %v306
        %v319 = vpack.c.b16 %v313, %v310
        %v320 = vpack.c.b16 %v314, %v311
        %v321 = vpack.c.b16 %v315, %v312
        %322 = vrot.lane.b32.xlu0 %v316, 64
        %v323 = vpop.permute.xlu0 %322
        %324 = vrot.lane.b32.xlu0 %v317, 64
        %v325 = vpop.permute.xlu0 %324
        %326 = vrot.lane.b32.xlu0 %v318, 64
        %v327 = vpop.permute.xlu0 %326
        %328 = vrot.lane.b32.xlu0 %v319, 64
        %v329 = vpop.permute.xlu0 %328
        %330 = vrot.lane.b32.xlu0 %v320, 64
        %v331 = vpop.permute.xlu0 %330
        %332 = vrot.lane.b32.xlu0 %v321, 64
        %v333 = vpop.permute.xlu0 %332
        %vm334 = vcmask 523264
        %v335 = vsel %vm334, %v323, %v325
        %v336 = vsel %vm334, %v325, %v327
        %v337 = vsel %vm334, %v329, %v331
        %v338 = vsel %vm334, %v331, %v333
        %v347 = vunpack.c.l.b16 %v272
        %v348 = vunpack.c.h.b16 %v272
        %v349 = vunpack.c.l.b16 %v273
        %v350 = vunpack.c.h.b16 %v273
        %v351 = vunpack.c.l.b16 %v274
        %v352 = vunpack.c.h.b16 %v274
        %v353 = vunpack.c.l.b16 %v275
        %v354 = vunpack.c.h.b16 %v275
        %v355 = vpack.c.b16 %v349, %v347
        %v356 = vpack.c.b16 %v350, %v348
        %v357 = vpack.c.b16 %v353, %v351
        %v358 = vpack.c.b16 %v354, %v352
        %v363 = vld [vmem:[#allocation5] sm:$0xf]
        %v364 = vld [vmem:[#allocation5 + $0x4] sm:$0xf]
        %v367 = vunpack.c.l.b16 %v363
        %v368 = vunpack.c.l.b16 %v364
        %v369 = vpack.c.b16 %v368, %v367
        %vm370 = vcmask 785408
        %v372 = vsel %vm370, %v369, 0
        %374 = vmatprep.subr.bf16.mxu0 %v289
        %375 = vmatpush1.bf16.msra.mxu0 %v288
        %376 = vmatprep.subr.bf16.mxu0 %v291
        %377 = vmatpush1.bf16.msra.mxu0 %v290
        %378 = vmatprep.subr.bf16.mxu0 %v336
        %379 = vmatpush1.bf16.msra.mxu0 %v335
        %380 = vmatprep.subr.bf16.mxu0 %v338
        %381 = vmatpush1.bf16.msra.mxu0 %v337
        %382 = vmatprep.subr.bf16.mxu0 %v356
        %383 = vmatpush1.bf16.msra.mxu0 %v355
        %384 = vmatprep.subr.bf16.mxu0 %v358
        %385 = vmatpush1.bf16.msra.mxu0 %v357
        %386 = vmatprep.subr.bf16.mxu0 0
        %387 = vmatpush1.bf16.msra.mxu0 0
        %388 = vmatprep.subr.bf16.mxu0 0
        %389 = vmatpush1.bf16.msra.mxu0 0
        %390 = vmatprep.subr.bf16.mxu0 0
        %391 = vmatpush1.bf16.msra.mxu0 0
        %392 = vmatprep.subr.bf16.mxu0 0
        %393 = vmatpush1.bf16.msra.mxu0 0
        %394 = vmatprep.subr.bf16.mxu0 0
        %395 = vmatpush1.bf16.msra.mxu0 0
        %396 = vmatprep.subr.bf16.mxu0 0
        %397 = vmatpush1.bf16.msra.mxu0 0
        %398 = vmatprep.subr.bf16.mxu0 0
        %399 = vmatpush1.bf16.msra.mxu0 0
        %400 = vmatprep.subr.bf16.mxu0 0
        %401 = vmatpush1.bf16.msra.mxu0 0
        %402 = vmatprep.subr.bf16.mxu0 0
        %403 = vmatpush1.bf16.msra.mxu0 0
        %404 = vmatprep.subr.bf16.mxu0 0
        %405 = vmatpush1.bf16.msra.mxu0 0
        %406 = vmatprep.mubr.bf16.mxu0 0
        %407 = vmatmul.mubr.bf16.gmra.mrb[0].mxu0 %v372
        %v408 = vpop.f32.mrb[0].mxu0
        %v409 = vadd.f32 0.0, %v408
        %v410 = vpop.f32.mrb[0].mxu0
        %v411 = vadd.f32 0.0, %v410
        %v412 = vpop.f32.mrb[0].mxu0
        %v413 = vadd.f32 0.0, %v412
        %v414 = vpop.f32.mrb[0].mxu0
        %v415 = vadd.f32 0.0, %v414
        %416 = vdwg.mxu0
        %vm417 = vcmp.ge.s32.totalorder %v259, 12
        %vm418 = vcmp.lt.s32.totalorder %v259, 28
        %vm419 = vmand %vm417, %vm418
        %v420 = vsel %vm419, 1, 0
        %v421 = vlaneseq
        %v422 = vshrl.u32 %v421, 7
        %v423 = vsub.s32 0, %v422
        %v424 = vrot.slane %v420, %v423
        %v425 = vlaneseq
        %v426 = vshrl.u32 %v425, 7
        %v427 = vsub.s32 1, %v426
        %v428 = vrot.slane %v420, %v427
        %vm429 = vcmp.eq.s32.totalorder %v424, 1
        %vm430 = vcmp.eq.s32.totalorder %v428, 1
        %v431 = vsel %vm429, %v409, 0.0
        %v432 = vsel %vm430, %v411, 0.0
        %v433 = vsel %vm429, %v413, 0.0
        %v434 = vsel %vm430, %v415, 0.0
        %v435 = vadd.f32 %v431, 0.0
        %v436 = vadd.f32 %v432, 0.0
        %v437 = vadd.f32 %v433, 0.0
        %v438 = vadd.f32 %v434, 0.0
        %v439 = vld [vmem:[%s221] sm:$0xff]
        %v440 = vld [vmem:[%s221 + $0x8] sm:$0xf]
        %v441 = vld [vmem:[%s221 + $0x18] sm:$0xff]
        %v442 = vld [vmem:[%s221 + $0x20] sm:$0xf]
        %v443 = vld [vmem:[%s221 + $0x30] sm:$0xff]
        %v444 = vld [vmem:[%s221 + $0x38] sm:$0xf]
        %v445 = vld [vmem:[%s221 + $0x48] sm:$0xff]
        %v446 = vld [vmem:[%s221 + $0x50] sm:$0xf]
        %v447 = vld [vmem:[%s221 + $0xc] sm:$0xff]
        %v448 = vld [vmem:[%s221 + $0x14] sm:$0xf]
        %v449 = vld [vmem:[%s221 + $0x24] sm:$0xff]
        %v450 = vld [vmem:[%s221 + $0x2c] sm:$0xf]
        %v451 = vld [vmem:[%s221 + $0x3c] sm:$0xff]
        %v452 = vld [vmem:[%s221 + $0x44] sm:$0xf]
        %v453 = vld [vmem:[%s221 + $0x54] sm:$0xff]
        %v454 = vld [vmem:[%s221 + $0x5c] sm:$0xf]
        %v463 = vunpack.c.l.b16 %v439
        %v464 = vunpack.c.h.b16 %v439
        %v465 = vunpack.c.l.b16 %v440
        %v466 = vunpack.c.l.b16 %v441
        %v467 = vunpack.c.h.b16 %v441
        %v468 = vunpack.c.l.b16 %v442
        %v469 = vunpack.c.l.b16 %v443
        %v470 = vunpack.c.h.b16 %v443
        %v471 = vunpack.c.l.b16 %v444
        %v472 = vunpack.c.l.b16 %v445
        %v473 = vunpack.c.h.b16 %v445
        %v474 = vunpack.c.l.b16 %v446
        %v475 = vpack.c.b16 %v466, %v463
        %v476 = vpack.c.b16 %v467, %v464
        %v477 = vpack.c.b16 %v468, %v465
        %v478 = vpack.c.b16 %v472, %v469
        %v479 = vpack.c.b16 %v473, %v470
        %v480 = vpack.c.b16 %v474, %v471
        %v489 = vunpack.c.l.b16 %v447
        %v490 = vunpack.c.h.b16 %v447
        %v491 = vunpack.c.l.b16 %v448
        %v492 = vunpack.c.l.b16 %v449
        %v493 = vunpack.c.h.b16 %v449
        %v494 = vunpack.c.l.b16 %v450
        %v495 = vunpack.c.l.b16 %v451
        %v496 = vunpack.c.h.b16 %v451
        %v497 = vunpack.c.l.b16 %v452
        %v498 = vunpack.c.l.b16 %v453
        %v499 = vunpack.c.h.b16 %v453
        %v500 = vunpack.c.l.b16 %v454
        %v501 = vpack.c.b16 %v492, %v489
        %v502 = vpack.c.b16 %v493, %v490
        %v503 = vpack.c.b16 %v494, %v491
        %v504 = vpack.c.b16 %v498, %v495
        %v505 = vpack.c.b16 %v499, %v496
        %v506 = vpack.c.b16 %v500, %v497
        %s507 = scalar_lea.vmem [#allocation5], 8
        %v508 = vld [vmem:[%s507] sm:$0xf]
        %v509 = vld [vmem:[%s507 + $0x4] sm:$0xf]
        %v512 = vunpack.c.l.b16 %v508
        %v513 = vunpack.c.l.b16 %v509
        %v514 = vpack.c.b16 %v513, %v512
        %515 = vrot.lane.b32.xlu0 %v475, 116
        %v516 = vpop.permute.xlu0 %515
        %517 = vrot.lane.b32.xlu0 %v476, 116
        %v518 = vpop.permute.xlu0 %517
        %519 = vrot.lane.b32.xlu0 %v477, 116
        %v520 = vpop.permute.xlu0 %519
        %521 = vrot.lane.b32.xlu0 %v478, 116
        %v522 = vpop.permute.xlu0 %521
        %523 = vrot.lane.b32.xlu0 %v479, 116
        %v524 = vpop.permute.xlu0 %523
        %525 = vrot.lane.b32.xlu0 %v480, 116
        %v526 = vpop.permute.xlu0 %525
        %527 = vrot.lane.b32.xlu0 %v335, 116
        %v528 = vpop.permute.xlu0 %527
        %529 = vrot.lane.b32.xlu0 %v336, 116
        %v530 = vpop.permute.xlu0 %529
        %531 = vrot.lane.b32.xlu0 %v327, 116
        %v532 = vpop.permute.xlu0 %531
        %533 = vrot.lane.b32.xlu0 %v337, 116
        %v534 = vpop.permute.xlu0 %533
        %535 = vrot.lane.b32.xlu0 %v338, 116
        %v536 = vpop.permute.xlu0 %535
        %537 = vrot.lane.b32.xlu0 %v333, 116
        %v538 = vpop.permute.xlu0 %537
        %539 = vrot.lane.b32.xlu0 %v501, 116
        %v540 = vpop.permute.xlu0 %539
        %541 = vrot.lane.b32.xlu0 %v502, 116
        %v542 = vpop.permute.xlu0 %541
        %543 = vrot.lane.b32.xlu0 %v503, 116
        %v544 = vpop.permute.xlu0 %543
        %545 = vrot.lane.b32.xlu0 %v504, 116
        %v546 = vpop.permute.xlu0 %545
        %547 = vrot.lane.b32.xlu0 %v505, 116
        %v548 = vpop.permute.xlu0 %547
        %549 = vrot.lane.b32.xlu0 %v506, 116
        %v550 = vpop.permute.xlu0 %549
        %vm551 = vcmask 949248
        %v552 = vsel %vm551, %v516, %v518
        %v553 = vsel %vm551, %v518, %v520
        %v554 = vsel %vm551, %v522, %v524
        %v555 = vsel %vm551, %v524, %v526
        %v556 = vsel %vm551, %v528, %v530
        %v557 = vsel %vm551, %v530, %v532
        %v558 = vsel %vm551, %v534, %v536
        %v559 = vsel %vm551, %v536, %v538
        %v560 = vsel %vm551, %v540, %v542
        %v561 = vsel %vm551, %v542, %v544
        %v562 = vsel %vm551, %v546, %v548
        %v563 = vsel %vm551, %v548, %v550
        %v577 = vsel %vm370, %v514, 0
        %579 = vmatprep.subr.bf16.mxu0 %v553
        %580 = vmatpush1.bf16.msra.mxu0 %v552
        %581 = vmatprep.subr.bf16.mxu0 %v555
        %582 = vmatpush1.bf16.msra.mxu0 %v554
        %583 = vmatprep.subr.bf16.mxu0 %v557
        %584 = vmatpush1.bf16.msra.mxu0 %v556
        %585 = vmatprep.subr.bf16.mxu0 %v559
        %586 = vmatpush1.bf16.msra.mxu0 %v558
        %587 = vmatprep.subr.bf16.mxu0 %v561
        %588 = vmatpush1.bf16.msra.mxu0 %v560
        %589 = vmatprep.subr.bf16.mxu0 %v563
        %590 = vmatpush1.bf16.msra.mxu0 %v562
        %591 = vmatprep.subr.bf16.mxu0 0
        %592 = vmatpush1.bf16.msra.mxu0 0
        %593 = vmatprep.subr.bf16.mxu0 0
        %594 = vmatpush1.bf16.msra.mxu0 0
        %595 = vmatprep.subr.bf16.mxu0 0
        %596 = vmatpush1.bf16.msra.mxu0 0
        %597 = vmatprep.subr.bf16.mxu0 0
        %598 = vmatpush1.bf16.msra.mxu0 0
        %599 = vmatprep.subr.bf16.mxu0 0
        %600 = vmatpush1.bf16.msra.mxu0 0
        %601 = vmatprep.subr.bf16.mxu0 0
        %602 = vmatpush1.bf16.msra.mxu0 0
        %603 = vmatprep.subr.bf16.mxu0 0
        %604 = vmatpush1.bf16.msra.mxu0 0
        %605 = vmatprep.subr.bf16.mxu0 0
        %606 = vmatpush1.bf16.msra.mxu0 0
        %607 = vmatprep.subr.bf16.mxu0 0
        %608 = vmatpush1.bf16.msra.mxu0 0
        %609 = vmatprep.subr.bf16.mxu0 0
        %610 = vmatpush1.bf16.msra.mxu0 0
        %611 = vmatprep.mubr.bf16.mxu0 0
        %612 = vmatmul.mubr.bf16.gmra.mrb[0].mxu0 %v577
        %v613 = vpop.f32.mrb[0].mxu0
        %v614 = vadd.f32 0.0, %v613
        %v615 = vpop.f32.mrb[0].mxu0
        %v616 = vadd.f32 0.0, %v615
        %v617 = vpop.f32.mrb[0].mxu0
        %v618 = vadd.f32 0.0, %v617
        %v619 = vpop.f32.mrb[0].mxu0
        %v620 = vadd.f32 0.0, %v619
        %621 = vdwg.mxu0
        %v622 = vadd.f32 %v435, %v614
        %v623 = vadd.f32 %v436, %v616
        %v624 = vadd.f32 %v437, %v618
        %v625 = vadd.f32 %v438, %v620
        %s626 = scalar_lea.vmem [#allocation5], 16
        %v627 = vld [vmem:[%s626] sm:$0xf]
        %v628 = vld [vmem:[%s626 + $0x4] sm:$0xf]
        %v631 = vunpack.c.l.b16 %v627
        %v632 = vunpack.c.l.b16 %v628
        %v633 = vpack.c.b16 %v632, %v631
        %634 = vrot.lane.b32.xlu0 %v475, 104
        %v635 = vpop.permute.xlu0 %634
        %636 = vrot.lane.b32.xlu0 %v476, 104
        %v637 = vpop.permute.xlu0 %636
        %638 = vrot.lane.b32.xlu0 %v477, 104
        %v639 = vpop.permute.xlu0 %638
        %640 = vrot.lane.b32.xlu0 %v478, 104
        %v641 = vpop.permute.xlu0 %640
        %642 = vrot.lane.b32.xlu0 %v479, 104
        %v643 = vpop.permute.xlu0 %642
        %644 = vrot.lane.b32.xlu0 %v480, 104
        %v645 = vpop.permute.xlu0 %644
        %646 = vrot.lane.b32.xlu0 %v335, 104
        %v647 = vpop.permute.xlu0 %646
        %648 = vrot.lane.b32.xlu0 %v336, 104
        %v649 = vpop.permute.xlu0 %648
        %650 = vrot.lane.b32.xlu0 %v327, 104
        %v651 = vpop.permute.xlu0 %650
        %652 = vrot.lane.b32.xlu0 %v337, 104
        %v653 = vpop.permute.xlu0 %652
        %654 = vrot.lane.b32.xlu0 %v338, 104
        %v655 = vpop.permute.xlu0 %654
        %656 = vrot.lane.b32.xlu0 %v333, 104
        %v657 = vpop.permute.xlu0 %656
        %658 = vrot.lane.b32.xlu0 %v501, 104
        %v659 = vpop.permute.xlu0 %658
        %660 = vrot.lane.b32.xlu0 %v502, 104
        %v661 = vpop.permute.xlu0 %660
        %662 = vrot.lane.b32.xlu0 %v503, 104
        %v663 = vpop.permute.xlu0 %662
        %664 = vrot.lane.b32.xlu0 %v504, 104
        %v665 = vpop.permute.xlu0 %664
        %666 = vrot.lane.b32.xlu0 %v505, 104
        %v667 = vpop.permute.xlu0 %666
        %668 = vrot.lane.b32.xlu0 %v506, 104
        %v669 = vpop.permute.xlu0 %668
        %vm670 = vcmask 850944
        %v671 = vsel %vm670, %v635, %v637
        %v672 = vsel %vm670, %v637, %v639
        %v673 = vsel %vm670, %v641, %v643
        %v674 = vsel %vm670, %v643, %v645
        %v675 = vsel %vm670, %v647, %v649
        %v676 = vsel %vm670, %v649, %v651
        %v677 = vsel %vm670, %v653, %v655
        %v678 = vsel %vm670, %v655, %v657
        %v679 = vsel %vm670, %v659, %v661
        %v680 = vsel %vm670, %v661, %v663
        %v681 = vsel %vm670, %v665, %v667
        %v682 = vsel %vm670, %v667, %v669
        %v696 = vsel %vm370, %v633, 0
        %698 = vmatprep.subr.bf16.mxu0 %v672
        %699 = vmatpush1.bf16.msra.mxu0 %v671
        %700 = vmatprep.subr.bf16.mxu0 %v674
        %701 = vmatpush1.bf16.msra.mxu0 %v673
        %702 = vmatprep.subr.bf16.mxu0 %v676
        %703 = vmatpush1.bf16.msra.mxu0 %v675
        %704 = vmatprep.subr.bf16.mxu0 %v678
        %705 = vmatpush1.bf16.msra.mxu0 %v677
        %706 = vmatprep.subr.bf16.mxu0 %v680
        %707 = vmatpush1.bf16.msra.mxu0 %v679
        %708 = vmatprep.subr.bf16.mxu0 %v682
        %709 = vmatpush1.bf16.msra.mxu0 %v681
        %710 = vmatprep.subr.bf16.mxu0 0
        %711 = vmatpush1.bf16.msra.mxu0 0
        %712 = vmatprep.subr.bf16.mxu0 0
        %713 = vmatpush1.bf16.msra.mxu0 0
        %714 = vmatprep.subr.bf16.mxu0 0
        %715 = vmatpush1.bf16.msra.mxu0 0
        %716 = vmatprep.subr.bf16.mxu0 0
        %717 = vmatpush1.bf16.msra.mxu0 0
        %718 = vmatprep.subr.bf16.mxu0 0
        %719 = vmatpush1.bf16.msra.mxu0 0
        %720 = vmatprep.subr.bf16.mxu0 0
        %721 = vmatpush1.bf16.msra.mxu0 0
        %722 = vmatprep.subr.bf16.mxu0 0
        %723 = vmatpush1.bf16.msra.mxu0 0
        %724 = vmatprep.subr.bf16.mxu0 0
        %725 = vmatpush1.bf16.msra.mxu0 0
        %726 = vmatprep.subr.bf16.mxu0 0
        %727 = vmatpush1.bf16.msra.mxu0 0
        %728 = vmatprep.subr.bf16.mxu0 0
        %729 = vmatpush1.bf16.msra.mxu0 0
        %730 = vmatprep.mubr.bf16.mxu0 0
        %731 = vmatmul.mubr.bf16.gmra.mrb[0].mxu0 %v696
        %v732 = vpop.f32.mrb[0].mxu0
        %v733 = vadd.f32 0.0, %v732
        %v734 = vpop.f32.mrb[0].mxu0
        %v735 = vadd.f32 0.0, %v734
        %v736 = vpop.f32.mrb[0].mxu0
        %v737 = vadd.f32 0.0, %v736
        %v738 = vpop.f32.mrb[0].mxu0
        %v739 = vadd.f32 0.0, %v738
        %740 = vdwg.mxu0
        %vm741 = vcmp.ge.s32.totalorder %v259, 4294967284
        %vm742 = vcmp.lt.s32.totalorder %v259, 4
        %vm743 = vmand %vm741, %vm742
        %v744 = vsel %vm743, 1, 0
        %v745 = vlaneseq
        %v746 = vshrl.u32 %v745, 7
        %v747 = vsub.s32 0, %v746
        %v748 = vrot.slane %v744, %v747
        %v749 = vlaneseq
        %v750 = vshrl.u32 %v749, 7
        %v751 = vsub.s32 1, %v750
        %v752 = vrot.slane %v744, %v751
        %vm753 = vcmp.eq.s32.totalorder %v748, 1
        %vm754 = vcmp.eq.s32.totalorder %v752, 1
        %v755 = vsel %vm753, %v733, 0.0
        %v756 = vsel %vm754, %v735, 0.0
        %v757 = vsel %vm753, %v737, 0.0
        %v758 = vsel %vm754, %v739, 0.0
        %v759 = vadd.f32 %v622, %v755
        %v760 = vadd.f32 %v623, %v756
        %v761 = vadd.f32 %v624, %v757
        %v762 = vadd.f32 %v625, %v758
        %v763 = vld [vmem:[#allocation7] sm:$0xff]
        %v764 = vld [vmem:[#allocation7 + $0x8] sm:$0xff]
        %766 = vset.pattern.permute.xlu0 0
        %767 = vperm.xlu0 %766, %v763
        %v768 = vpop.permute.xlu0 %767
        %771 = vset.pattern.permute.xlu0 0
        %772 = vperm.xlu0 %771, %v764
        %v773 = vpop.permute.xlu0 %772
        %v775 = vadd.f32 %v759, %v768
        %v776 = vadd.f32 %v760, %v768
        %v777 = vadd.f32 %v761, %v773
        %v778 = vadd.f32 %v762, %v773
        %vm779 = vcmp.gt.f32.partialorder %v775, 0.0
        %vm780 = vcmp.gt.f32.partialorder %v776, 0.0
        %vm781 = vcmp.gt.f32.partialorder %v777, 0.0
        %vm782 = vcmp.gt.f32.partialorder %v778, 0.0
        %v783 = vmul.f32 %v775, 0.01
        %v784 = vmul.f32 %v776, 0.01
        %v785 = vmul.f32 %v777, 0.01
        %v786 = vmul.f32 %v778, 0.01
        %v787 = vsel %vm779, %v775, %v783
        %v788 = vsel %vm780, %v776, %v784
        %v789 = vsel %vm781, %v777, %v785
        %v790 = vsel %vm782, %v778, %v786
        %v791 = vpack.c.bf16 %v789, %v787
        %v792 = vpack.c.bf16 %v790, %v788
        %v795 = vunpack.c.l.b16 %v791
        %v796 = vunpack.c.l.b16 %v792
        %v797 = vunpack.c.h.b16 %v791
        %v798 = vunpack.c.h.b16 %v792
        %v799 = vpack.c.b16 %v796, %v795
        %v800 = vpack.c.b16 %v798, %v797
        %803 = vst [vmem:[%s257] sm:$0xff] %v799
        %804 = vst [vmem:[%s257 + $0x8] sm:$0xff] %v800
        %s805 = sand.u32 %s120, 1
        %s806 = scalar_lea.sflag [#allocation4], %s805
        %s807 = sand.u32 %s120, 1
        %s808 = smul.addr %s807, 16
        %s809 = scalar_lea.vmem [#allocation10], %s808
        // Predicated region
        $region53: #{_forward.11} parent=35 // pred_check
          %p810 = pneg %p130
        $region54: #{_forward.11} parent=35 // pred_check_branch
          %812 = sbr.rel (%p810) target = $region56
        $region55: #{_forward.11} parent=35 // pred_region
          %s814 = ssub.s32 256, 256
          %815 = vsyncadd %s806, %s814
          %s816 = smul.addr %s23, 4
          %s817 = smul.addr %s816, 64
          %s818 = scalar_lea.hbm %s4, %s817
          %s819 = sshll.u32 %s809, 4
          %s820 = int_to_ptr.vmem [resolvable:$true] %s819
          %825 = dma.vmem_to_hbm [thread:$0]  %s820, 256, %s818, %s806, 128, 128, 8
        $region56: #{_forward.11} parent=35 // pred_fallthru
          _
      $region36: #{_forward.11} parent=5 // pred_fallthru
        _
      %p826 = scmp.le.s32.totalorder 2, %s18
      // Predicated region
      $region57: #{_forward.11} parent=5 // pred_check
        %p827 = pneg %p826
      $region58: #{_forward.11} parent=5 // pred_check_branch
        %829 = sbr.rel (%p827) target = $region60
      $region59: #{_forward.11} parent=5 // pred_region
        %s830 = ssub.s32 %s18, 2
        // Predicated region
        $region61: #{_forward.11} parent=59 // pred_check
          %p831 = pneg %p136
        $region62: #{_forward.11} parent=59 // pred_check_branch
          %833 = sbr.rel (%p831) target = $region64
        $region63: #{_forward.11} parent=59 // pred_region
          %s834 = sand.u32 %s121, 1
          %s835 = scalar_lea.sflag [#allocation4], %s834
          %s836 = sand.u32 %s121, 1
          %s837 = smul.addr %s836, 16
          %s838 = scalar_lea.vmem [#allocation10], %s837
          %839 = dma.done %s835, 256
        $region64: #{_forward.11} parent=59 // pred_fallthru
          _
      $region60: #{_forward.11} parent=5 // pred_fallthru
        _
    $region6: #{_forward.11} parent=1 // loop_footer
      %s22 = sadd.s32 1, %s18
    $region7: #{_forward.11} parent=1 // loop_footer_branch
      %17 = sbr.rel target = $region3
    $region8: #{_forward.11} parent=1 // loop_exit
      _
    %840 = vsyncpa [#allocation3], 1
    %s841 = scalar_lea.sflag [#allocation3], 1
    %842 = vsyncpa %s841, 1
    %843 = vsyncpa [#allocation6], 1
    %844 = vsyncpa [#allocation9], 1
    %845 = vsyncpa [#allocation4], 1
    %s846 = scalar_lea.sflag [#allocation4], 1
    %847 = vsyncpa %s846, 1

// kernel: _forward.12
$region0: #{_forward.12}
  #allocation0 [shape = 'u32[]', space=smem, size = 0x4, offset = 0x4, fixed_abs, tag = 'smem constant byte address 0x4 - core index']
  #allocation1 [shape = 'u32[144,128]{1,0:T(1,128)}', space=vmem, size = 0x12000, scoped, tag = 'internal scratch']
  %s0 = inlined_call_operand.hbm [shape: bf16[2,16,1152], index: 0, kind: input, shape index: {}]
  %s1 = inlined_call_operand.hbm [shape: bf16[3,8,48], index: 1, kind: input, shape index: {}]
  %s2 = inlined_call_operand.hbm [shape: f32[8,1], index: 2, kind: input, shape index: {}]
  %s3 = inlined_call_operand.hbm [shape: s32[1,256], index: 3, kind: input, shape index: {}]
  %s4 = inlined_call_operand.hbm [shape: bf16[2,8,256], index: 4, kind: output, shape index: {}]
  %s5 = sld [smem:[#allocation0]]
  $region65: #{_forward.12} parent=0
    _
  %s7 = ssub.s32 1, %s5
  %s8 = scalar_select 0, %s7, %s5
  $region1: #{_forward.12} parent=0
    #allocation2 [shape = 'u8[73728]{0}', space=vmem, size = 0x12000, scoped, tag = 'input window, operand 0']
    #allocation3 [shape = 's32[2]{0}', space=sflag, size = 0x8, scoped, tag = 'scoped memory for _forward.12']
    #allocation4 [shape = 's32[2]{0}', space=sflag, size = 0x8, scoped, tag = 'scoped memory for _forward.12']
    #allocation5 [shape = 'u8[6144]{0}', space=vmem, size = 0x1800, scoped, tag = 'input window, operand 1, single buffered']
    #allocation6 [shape = 's32[1]{0}', space=sflag, size = 0x4, scoped, tag = 'scoped memory for _forward.12']
    #allocation7 [shape = 'u8[4096]{0}', space=vmem, size = 0x1000, scoped, tag = 'input window, operand 2, single buffered']
    #allocation8 [shape = 'u8[1024]{0}', space=vmem, size = 0x400, scoped, tag = 'input window, operand 3, single buffered']
    #allocation9 [shape = 's32[1]{0}', space=sflag, size = 0x4, scoped, tag = 'scoped memory for _forward.12']
    #allocation10 [shape = 'u8[8192]{0}', space=vmem, size = 0x2000, scoped, tag = 'output window, operand 0']
    %9 = vsyncpa [#allocation3], 0
    %s10 = scalar_lea.sflag [#allocation3], 1
    %11 = vsyncpa %s10, 0
    %12 = vsyncpa [#allocation6], 0
    %13 = vsyncpa [#allocation9], 0
    %14 = vsyncpa [#allocation4], 0
    %s15 = scalar_lea.sflag [#allocation4], 1
    %16 = vsyncpa %s15, 0
    loop: start=0, step=1, limit=4
    $region2: #{_forward.12} parent=1 // loop_pre_header
      _
    $region3: #{_forward.12} parent=1 // loop_header
      %s18 = sphi 0, %s22
      %p19 = scmp.ge.s32.totalorder %s18, 4
      %s28 = sphi 0, %s30
      %s31 = sphi 0, %s28
      %s32 = sphi 0, %s31
      %s48 = sphi 0, %s32
      %s52 = sphi 0, %s52
      %s54 = sphi 0, %s52
      %s55 = sphi 0, %s54
      %s69 = sphi 0, %s55
      %s73 = sphi 0, %s73
      %s75 = sphi 0, %s73
      %s76 = sphi 0, %s75
      %s90 = sphi 0, %s76
      %s94 = sphi 0, %s94
      %s96 = sphi 0, %s94
      %s97 = sphi 0, %s96
      %s111 = sphi 0, %s97
      %s117 = sphi 0, %s119
      %s120 = sphi 0, %s117
      %s121 = sphi 0, %s120
      %s137 = sphi 0, %s121
    $region4: #{_forward.12} parent=1 // loop_header_branch
      %21 = sbr.rel (%p19) target = $region8
    $region5: #{_forward.12} parent=1 // loop_body
      %s23 = ssub.s32 %s18, 1
      %s24 = ssub.s32 %s18, 2
      %s25 = sadd.s32 %s18, 1
      %s26 = ssub.s32 %s18, %s25
      %p27 = scmp.eq.s32.totalorder %s26, 0
      %s29 = sadd.s32 %s28, 1
      %s30 = scalar_select %p27, %s28, %s29
      %p33 = pneg %p27
      %p34 = scmp.eq.s32.totalorder %s18, 1
      %p35 = por %p33, %p34
      %p36 = scmp.ne.s32.totalorder %s28, %s31
      %p37 = scmp.eq.s32.totalorder %s18, 0
      %p38 = por %p36, %p37
      %p39 = scmp.ne.s32.totalorder %s28, %s31
      %p40 = scmp.eq.s32.totalorder %s23, 1
      %p41 = por %p39, %p40
      %p42 = scmp.ne.s32.totalorder %s31, %s32
      %p43 = scmp.eq.s32.totalorder %s23, 0
      %p44 = por %p42, %p43
      %p45 = scmp.ne.s32.totalorder %s31, %s32
      %p46 = scmp.eq.s32.totalorder %s24, 1
      %p47 = por %p45, %p46
      %p49 = scmp.ne.s32.totalorder %s32, %s48
      %p50 = scmp.eq.s32.totalorder %s24, 0
      %p51 = por %p49, %p50
      %s53 = sadd.s32 %s52, 1
      %p56 = scmp.eq.s32.totalorder %s18, 1
      %p57 = scmp.ne.s32.totalorder %s52, %s54
      %p58 = scmp.eq.s32.totalorder %s18, 0
      %p59 = por %p57, %p58
      %p60 = scmp.ne.s32.totalorder %s52, %s54
      %p61 = scmp.eq.s32.totalorder %s23, 1
      %p62 = por %p60, %p61
      %p63 = scmp.ne.s32.totalorder %s54, %s55
      %p64 = scmp.eq.s32.totalorder %s23, 0
      %p65 = por %p63, %p64
      %p66 = scmp.ne.s32.totalorder %s54, %s55
      %p67 = scmp.eq.s32.totalorder %s24, 1
      %p68 = por %p66, %p67
      %p70 = scmp.ne.s32.totalorder %s55, %s69
      %p71 = scmp.eq.s32.totalorder %s24, 0
      %p72 = por %p70, %p71
      %s74 = sadd.s32 %s73, 1
      %p77 = scmp.eq.s32.totalorder %s18, 1
      %p78 = scmp.ne.s32.totalorder %s73, %s75
      %p79 = scmp.eq.s32.totalorder %s18, 0
      %p80 = por %p78, %p79
      %p81 = scmp.ne.s32.totalorder %s73, %s75
      %p82 = scmp.eq.s32.totalorder %s23, 1
      %p83 = por %p81, %p82
      %p84 = scmp.ne.s32.totalorder %s75, %s76
      %p85 = scmp.eq.s32.totalorder %s23, 0
      %p86 = por %p84, %p85
      %p87 = scmp.ne.s32.totalorder %s75, %s76
      %p88 = scmp.eq.s32.totalorder %s24, 1
      %p89 = por %p87, %p88
      %p91 = scmp.ne.s32.totalorder %s76, %s90
      %p92 = scmp.eq.s32.totalorder %s24, 0
      %p93 = por %p91, %p92
      %s95 = sadd.s32 %s94, 1
      %p98 = scmp.eq.s32.totalorder %s18, 1
      %p99 = scmp.ne.s32.totalorder %s94, %s96
      %p100 = scmp.eq.s32.totalorder %s18, 0
      %p101 = por %p99, %p100
      %p102 = scmp.ne.s32.totalorder %s94, %s96
      %p103 = scmp.eq.s32.totalorder %s23, 1
      %p104 = por %p102, %p103
      %p105 = scmp.ne.s32.totalorder %s96, %s97
      %p106 = scmp.eq.s32.totalorder %s23, 0
      %p107 = por %p105, %p106
      %p108 = scmp.ne.s32.totalorder %s96, %s97
      %p109 = scmp.eq.s32.totalorder %s24, 1
      %p110 = por %p108, %p109
      %p112 = scmp.ne.s32.totalorder %s97, %s111
      %p113 = scmp.eq.s32.totalorder %s24, 0
      %p114 = por %p112, %p113
      %s115 = ssub.s32 %s18, %s25
      %p116 = scmp.eq.s32.totalorder %s115, 0
      %s118 = sadd.s32 %s117, 1
      %s119 = scalar_select %p116, %s117, %s118
      %p122 = pneg %p116
      %p123 = scmp.eq.s32.totalorder %s18, 1
      %p124 = por %p122, %p123
      %p125 = scmp.ne.s32.totalorder %s117, %s120
      %p126 = scmp.eq.s32.totalorder %s18, 0
      %p127 = por %p125, %p126
      %p128 = scmp.ne.s32.totalorder %s117, %s120
      %p129 = scmp.eq.s32.totalorder %s23, 1
      %p130 = por %p128, %p129
      %p131 = scmp.ne.s32.totalorder %s120, %s121
      %p132 = scmp.eq.s32.totalorder %s23, 0
      %p133 = por %p131, %p132
      %p134 = scmp.ne.s32.totalorder %s120, %s121
      %p135 = scmp.eq.s32.totalorder %s24, 1
      %p136 = por %p134, %p135
      %p138 = scmp.ne.s32.totalorder %s121, %s137
      %p139 = scmp.eq.s32.totalorder %s24, 0
      %p140 = por %p138, %p139
      %p141 = scmp.le.s32.totalorder 1, %s18
      %p142 = scmp.lt.s32.totalorder %s18, 3
      %p143 = pnand %p141, %p142
      %p144 = pneg %p143
      // Predicated region
      $region9: #{_forward.12} parent=5 // pred_check
        _
      $region10: #{_forward.12} parent=5 // pred_check_branch
        %146 = sbr.rel (%p143) target = $region12
      $region11: #{_forward.12} parent=5 // pred_region
        %s147 = ssub.s32 %s18, 1
        // Predicated region
        $region13: #{_forward.12} parent=11 // pred_check
          %p148 = pneg %p65
        $region14: #{_forward.12} parent=11 // pred_check_branch
          %150 = sbr.rel (%p148) target = $region16
        $region15: #{_forward.12} parent=11 // pred_region
          %s152 = ssub.s32 192, 192
          %153 = vsyncadd [#allocation6], %s152
          %s154 = sshll.u32 [#allocation5], 4
          %s155 = int_to_ptr.vmem [resolvable:$true] %s154
          %160 = dma.hbm_to_vmem [thread:$0]  %s1, 192, %s155, [#allocation6], 64, 64, 4
        $region16: #{_forward.12} parent=11 // pred_fallthru
          _
        // Predicated region
        $region17: #{_forward.12} parent=11 // pred_check
          %p161 = pneg %p86
        $region18: #{_forward.12} parent=11 // pred_check_branch
          %163 = sbr.rel (%p161) target = $region20
        $region19: #{_forward.12} parent=11 // pred_region
          %s165 = ssub.s32 128, 128
          %166 = vsyncadd [#allocation6], %s165
          %s168 = sshll.u32 [#allocation7], 4
          %s169 = int_to_ptr.vmem [resolvable:$true] %s168
          %171 = dma.hbm_to_vmem [thread:$0]  %s2, 128, %s169, [#allocation6]
        $region20: #{_forward.12} parent=11 // pred_fallthru
          _
        // Predicated region
        $region21: #{_forward.12} parent=11 // pred_check
          %p172 = pneg %p107
        $region22: #{_forward.12} parent=11 // pred_check_branch
          %174 = sbr.rel (%p172) target = $region24
        $region23: #{_forward.12} parent=11 // pred_region
          %s176 = ssub.s32 32, 32
          %177 = vsyncadd [#allocation9], %s176
          %s179 = sshll.u32 [#allocation8], 4
          %s180 = int_to_ptr.vmem [resolvable:$true] %s179
          %182 = dma.hbm_to_vmem [thread:$0]  %s3, 32, %s180, [#allocation9]
        $region24: #{_forward.12} parent=11 // pred_fallthru
          _
      $region12: #{_forward.12} parent=5 // pred_fallthru
        _
      %p183 = scmp.lt.s32.totalorder %s18, 2
      // Predicated region
      $region25: #{_forward.12} parent=5 // pred_check
        %p184 = pneg %p183
      $region26: #{_forward.12} parent=5 // pred_check_branch
        %186 = sbr.rel (%p184) target = $region28
      $region27: #{_forward.12} parent=5 // pred_region
        // Predicated region
        $region29: #{_forward.12} parent=27 // pred_check
          %p187 = pneg %p38
        $region30: #{_forward.12} parent=27 // pred_check_branch
          %189 = sbr.rel (%p187) target = $region32
        $region31: #{_forward.12} parent=27 // pred_region
          %s190 = sand.u32 %s28, 1
          %s191 = scalar_lea.sflag [#allocation3], %s190
          %s192 = sand.u32 %s28, 1
          %s193 = smul.addr %s192, 72
          %s194 = scalar_lea.vmem [#allocation2], %s193
          %s196 = ssub.s32 1152, 1152
          %197 = vsyncadd %s191, %s196
          %s198 = smul.addr %s18, 18
          %s199 = smul.addr %s198, 64
          %s200 = scalar_lea.hbm %s0, %s199
          %s201 = sshll.u32 %s194, 4
          %s202 = int_to_ptr.vmem [resolvable:$true] %s201
          %207 = dma.hbm_to_vmem [thread:$0]  %s200, 1152, %s202, %s191, 576, 576, 36
        $region32: #{_forward.12} parent=27 // pred_fallthru
          _
      $region28: #{_forward.12} parent=5 // pred_fallthru
        _
      %p208 = scmp.le.s32.totalorder 1, %s18
      %p209 = scmp.lt.s32.totalorder %s18, 3
      %p210 = pnand %p208, %p209
      %p211 = pneg %p210
      // Predicated region
      $region33: #{_forward.12} parent=5 // pred_check
        _
      $region34: #{_forward.12} parent=5 // pred_check_branch
        %213 = sbr.rel (%p210) target = $region36
      $region35: #{_forward.12} parent=5 // pred_region
        %s214 = ssub.s32 %s18, 1
        %s215 = sand.u32 %s31, 1
        %s216 = scalar_lea.sflag [#allocation3], %s215
        %s217 = sand.u32 %s31, 1
        %s218 = smul.addr %s217, 72
        %s219 = scalar_lea.vmem [#allocation2], %s218
        // Predicated region
        $region37: #{_forward.12} parent=35 // pred_check
          %p220 = pneg %p44
        $region38: #{_forward.12} parent=35 // pred_check_branch
          %222 = sbr.rel (%p220) target = $region40
        $region39: #{_forward.12} parent=35 // pred_region
          %223 = dma.done %s216, 1152
        $region40: #{_forward.12} parent=35 // pred_fallthru
          _
        // Predicated region
        $region41: #{_forward.12} parent=35 // pred_check
          %p224 = pneg %p65
        $region42: #{_forward.12} parent=35 // pred_check_branch
          %226 = sbr.rel (%p224) target = $region44
        $region43: #{_forward.12} parent=35 // pred_region
          %227 = dma.done [#allocation6], 192
        $region44: #{_forward.12} parent=35 // pred_fallthru
          _
        // Predicated region
        $region45: #{_forward.12} parent=35 // pred_check
          %p228 = pneg %p86
        $region46: #{_forward.12} parent=35 // pred_check_branch
          %230 = sbr.rel (%p228) target = $region48
        $region47: #{_forward.12} parent=35 // pred_region
          %231 = dma.done [#allocation6], 128
        $region48: #{_forward.12} parent=35 // pred_fallthru
          _
        // Predicated region
        $region49: #{_forward.12} parent=35 // pred_check
          %p232 = pneg %p107
        $region50: #{_forward.12} parent=35 // pred_check_branch
          %234 = sbr.rel (%p232) target = $region52
        $region51: #{_forward.12} parent=35 // pred_region
          %235 = dma.done [#allocation9], 32
        $region52: #{_forward.12} parent=35 // pred_fallthru
          _
        %s236 = sand.u32 %s31, 1
        %s237 = scalar_lea.sflag [#allocation3], %s236
        %s238 = sand.u32 %s31, 1
        %s239 = smul.addr %s238, 72
        %s240 = scalar_lea.vmem [#allocation2], %s239
        %p241 = pneg %p44
        %p242 = pneg %p41
        %p243 = pneg %p65
        %p244 = pneg %p62
        %p245 = pneg %p86
        %p246 = pneg %p83
        %p247 = pneg %p107
        %p248 = pneg %p104
        %p249 = pneg %p133
        %p250 = pneg %p130
        %s251 = sand.u32 %s120, 1
        %s252 = scalar_lea.sflag [#allocation4], %s251
        %s253 = sand.u32 %s120, 1
        %s254 = smul.addr %s253, 8
        %s255 = scalar_lea.vmem [#allocation10], %s254
        %v257 = vld [vmem:[#allocation8] sm:$0x3]
        %v258 = vld [vmem:[%s219] sm:$0xff]
        %v259 = vld [vmem:[%s219 + $0x24] sm:$0xff]
        %v260 = vld [vmem:[%s219 + $0xc] sm:$0xff]
        %v261 = vld [vmem:[%s219 + $0x30] sm:$0xff]
        %v262 = vld [vmem:[%s219 + $0x18] sm:$0xff]
        %v263 = vld [vmem:[%s219 + $0x3c] sm:$0xff]
        %v266 = vunpack.c.l.b16 %v258
        %v267 = vunpack.c.h.b16 %v258
        %v268 = vunpack.c.l.b16 %v259
        %v269 = vunpack.c.h.b16 %v259
        %v270 = vpack.c.b16 %v268, %v266
        %v271 = vpack.c.b16 %v269, %v267
        %v276 = vunpack.c.l.b16 %v260
        %v277 = vunpack.c.h.b16 %v260
        %v278 = vunpack.c.l.b16 %v261
        %v279 = vunpack.c.h.b16 %v261
        %v280 = vpack.c.b16 %v278, %v276
        %v281 = vpack.c.b16 %v279, %v277
        %v286 = vunpack.c.l.b16 %v262
        %v287 = vunpack.c.h.b16 %v262
        %v288 = vunpack.c.l.b16 %v263
        %v289 = vunpack.c.h.b16 %v263
        %v290 = vpack.c.b16 %v288, %v286
        %v291 = vpack.c.b16 %v289, %v287
        %v294 = vld [vmem:[#allocation5] sm:$0xf]
        %vm295 = vcmask 392192
        %v297 = vsel %vm295, %v294, 0
        %299 = vmatprep.subr.bf16.mxu0 %v271
        %300 = vmatpush1.bf16.msra.mxu0 %v270
        %301 = vmatprep.subr.bf16.mxu0 %v281
        %302 = vmatpush1.bf16.msra.mxu0 %v280
        %303 = vmatprep.subr.bf16.mxu0 %v291
        %304 = vmatpush1.bf16.msra.mxu0 %v290
        %305 = vmatprep.subr.bf16.mxu0 0
        %306 = vmatpush1.bf16.msra.mxu0 0
        %307 = vmatprep.subr.bf16.mxu0 0
        %308 = vmatpush1.bf16.msra.mxu0 0
        %309 = vmatprep.subr.bf16.mxu0 0
        %310 = vmatpush1.bf16.msra.mxu0 0
        %311 = vmatprep.subr.bf16.mxu0 0
        %312 = vmatpush1.bf16.msra.mxu0 0
        %313 = vmatprep.subr.bf16.mxu0 0
        %314 = vmatpush1.bf16.msra.mxu0 0
        %315 = vmatprep.subr.bf16.mxu0 0
        %316 = vmatpush1.bf16.msra.mxu0 0
        %317 = vmatprep.subr.bf16.mxu0 0
        %318 = vmatpush1.bf16.msra.mxu0 0
        %319 = vmatprep.subr.bf16.mxu0 0
        %320 = vmatpush1.bf16.msra.mxu0 0
        %321 = vmatprep.subr.bf16.mxu0 0
        %322 = vmatpush1.bf16.msra.mxu0 0
        %323 = vmatprep.subr.bf16.mxu0 0
        %324 = vmatpush1.bf16.msra.mxu0 0
        %325 = vmatprep.subr.bf16.mxu0 0
        %326 = vmatpush1.bf16.msra.mxu0 0
        %327 = vmatprep.subr.bf16.mxu0 0
        %328 = vmatpush1.bf16.msra.mxu0 0
        %329 = vmatprep.subr.bf16.mxu0 0
        %330 = vmatpush1.bf16.msra.mxu0 0
        %331 = vmatprep.mubr.bf16.mxu0 0
        %332 = vmatmul.mubr.bf16.gmra.mrb[0].mxu0 %v297
        %v333 = vpop.f32.mrb[0].mxu0
        %v334 = vadd.f32 0.0, %v333
        %v335 = vpop.f32.mrb[0].mxu0
        %v336 = vadd.f32 0.0, %v335
        %v337 = vpop.f32.mrb[0].mxu0
        %v338 = vpop.f32.mrb[0].mxu0
        %339 = vdwg.mxu0
        %vm340 = vcmp.ge.s32.totalorder %v257, 24
        %vm341 = vcmp.lt.s32.totalorder %v257, 40
        %vm342 = vmand %vm340, %vm341
        %v343 = vsel %vm342, 1, 0
        %v344 = vlaneseq
        %v345 = vshrl.u32 %v344, 7
        %v346 = vsub.s32 0, %v345
        %v347 = vrot.slane %v343, %v346
        %v348 = vlaneseq
        %v349 = vshrl.u32 %v348, 7
        %v350 = vsub.s32 1, %v349
        %v351 = vrot.slane %v343, %v350
        %vm352 = vcmp.eq.s32.totalorder %v347, 1
        %vm353 = vcmp.eq.s32.totalorder %v351, 1
        %v354 = vsel %vm352, %v334, 0.0
        %v355 = vsel %vm353, %v336, 0.0
        %v356 = vadd.f32 %v354, 0.0
        %v357 = vadd.f32 %v355, 0.0
        %v358 = vld [vmem:[%s219] sm:$0xff]
        %v359 = vld [vmem:[%s219 + $0x8] sm:$0xf]
        %v360 = vld [vmem:[%s219 + $0x24] sm:$0xff]
        %v361 = vld [vmem:[%s219 + $0x2c] sm:$0xf]
        %v362 = vld [vmem:[%s219 + $0xc] sm:$0xff]
        %v363 = vld [vmem:[%s219 + $0x14] sm:$0xf]
        %v364 = vld [vmem:[%s219 + $0x30] sm:$0xff]
        %v365 = vld [vmem:[%s219 + $0x38] sm:$0xf]
        %v366 = vld [vmem:[%s219 + $0x18] sm:$0xff]
        %v367 = vld [vmem:[%s219 + $0x20] sm:$0xf]
        %v368 = vld [vmem:[%s219 + $0x3c] sm:$0xff]
        %v369 = vld [vmem:[%s219 + $0x44] sm:$0xf]
        %v374 = vunpack.c.l.b16 %v358
        %v375 = vunpack.c.h.b16 %v358
        %v376 = vunpack.c.l.b16 %v359
        %v377 = vunpack.c.l.b16 %v360
        %v378 = vunpack.c.h.b16 %v360
        %v379 = vunpack.c.l.b16 %v361
        %v380 = vpack.c.b16 %v377, %v374
        %v381 = vpack.c.b16 %v378, %v375
        %v382 = vpack.c.b16 %v379, %v376
        %v387 = vunpack.c.l.b16 %v362
        %v388 = vunpack.c.h.b16 %v362
        %v389 = vunpack.c.l.b16 %v363
        %v390 = vunpack.c.l.b16 %v364
        %v391 = vunpack.c.h.b16 %v364
        %v392 = vunpack.c.l.b16 %v365
        %v393 = vpack.c.b16 %v390, %v387
        %v394 = vpack.c.b16 %v391, %v388
        %v395 = vpack.c.b16 %v392, %v389
        %v400 = vunpack.c.l.b16 %v366
        %v401 = vunpack.c.h.b16 %v366
        %v402 = vunpack.c.l.b16 %v367
        %v403 = vunpack.c.l.b16 %v368
        %v404 = vunpack.c.h.b16 %v368
        %v405 = vunpack.c.l.b16 %v369
        %v406 = vpack.c.b16 %v403, %v400
        %v407 = vpack.c.b16 %v404, %v401
        %v408 = vpack.c.b16 %v405, %v402
        %s409 = scalar_lea.vmem [#allocation5], 4
        %v410 = vld [vmem:[%s409] sm:$0xf]
        %411 = vrot.lane.b32.xlu0 %v380, 104
        %v412 = vpop.permute.xlu0 %411
        %413 = vrot.lane.b32.xlu0 %v381, 104
        %v414 = vpop.permute.xlu0 %413
        %415 = vrot.lane.b32.xlu0 %v382, 104
        %v416 = vpop.permute.xlu0 %415
        %417 = vrot.lane.b32.xlu0 %v393, 104
        %v418 = vpop.permute.xlu0 %417
        %419 = vrot.lane.b32.xlu0 %v394, 104
        %v420 = vpop.permute.xlu0 %419
        %421 = vrot.lane.b32.xlu0 %v395, 104
        %v422 = vpop.permute.xlu0 %421
        %423 = vrot.lane.b32.xlu0 %v406, 104
        %v424 = vpop.permute.xlu0 %423
        %425 = vrot.lane.b32.xlu0 %v407, 104
        %v426 = vpop.permute.xlu0 %425
        %427 = vrot.lane.b32.xlu0 %v408, 104
        %v428 = vpop.permute.xlu0 %427
        %vm429 = vcmask 850944
        %v430 = vsel %vm429, %v412, %v414
        %v431 = vsel %vm429, %v414, %v416
        %v432 = vsel %vm429, %v418, %v420
        %v433 = vsel %vm429, %v420, %v422
        %v434 = vsel %vm429, %v424, %v426
        %v435 = vsel %vm429, %v426, %v428
        %v443 = vsel %vm295, %v410, 0
        %445 = vmatprep.subr.bf16.mxu0 %v431
        %446 = vmatpush1.bf16.msra.mxu0 %v430
        %447 = vmatprep.subr.bf16.mxu0 %v433
        %448 = vmatpush1.bf16.msra.mxu0 %v432
        %449 = vmatprep.subr.bf16.mxu0 %v435
        %450 = vmatpush1.bf16.msra.mxu0 %v434
        %451 = vmatprep.subr.bf16.mxu0 0
        %452 = vmatpush1.bf16.msra.mxu0 0
        %453 = vmatprep.subr.bf16.mxu0 0
        %454 = vmatpush1.bf16.msra.mxu0 0
        %455 = vmatprep.subr.bf16.mxu0 0
        %456 = vmatpush1.bf16.msra.mxu0 0
        %457 = vmatprep.subr.bf16.mxu0 0
        %458 = vmatpush1.bf16.msra.mxu0 0
        %459 = vmatprep.subr.bf16.mxu0 0
        %460 = vmatpush1.bf16.msra.mxu0 0
        %461 = vmatprep.subr.bf16.mxu0 0
        %462 = vmatpush1.bf16.msra.mxu0 0
        %463 = vmatprep.subr.bf16.mxu0 0
        %464 = vmatpush1.bf16.msra.mxu0 0
        %465 = vmatprep.subr.bf16.mxu0 0
        %466 = vmatpush1.bf16.msra.mxu0 0
        %467 = vmatprep.subr.bf16.mxu0 0
        %468 = vmatpush1.bf16.msra.mxu0 0
        %469 = vmatprep.subr.bf16.mxu0 0
        %470 = vmatpush1.bf16.msra.mxu0 0
        %471 = vmatprep.subr.bf16.mxu0 0
        %472 = vmatpush1.bf16.msra.mxu0 0
        %473 = vmatprep.subr.bf16.mxu0 0
        %474 = vmatpush1.bf16.msra.mxu0 0
        %475 = vmatprep.subr.bf16.mxu0 0
        %476 = vmatpush1.bf16.msra.mxu0 0
        %477 = vmatprep.mubr.bf16.mxu0 0
        %478 = vmatmul.mubr.bf16.gmra.mrb[0].mxu0 %v443
        %v479 = vpop.f32.mrb[0].mxu0
        %v480 = vadd.f32 0.0, %v479
        %v481 = vpop.f32.mrb[0].mxu0
        %v482 = vadd.f32 0.0, %v481
        %v483 = vpop.f32.mrb[0].mxu0
        %v484 = vpop.f32.mrb[0].mxu0
        %485 = vdwg.mxu0
        %v486 = vadd.f32 %v356, %v480
        %v487 = vadd.f32 %v357, %v482
        %s488 = scalar_lea.vmem [#allocation5], 8
        %v489 = vld [vmem:[%s488] sm:$0xf]
        %490 = vrot.lane.b32.xlu0 %v380, 80
        %v491 = vpop.permute.xlu0 %490
        %492 = vrot.lane.b32.xlu0 %v381, 80
        %v493 = vpop.permute.xlu0 %492
        %494 = vrot.lane.b32.xlu0 %v382, 80
        %v495 = vpop.permute.xlu0 %494
        %496 = vrot.lane.b32.xlu0 %v393, 80
        %v497 = vpop.permute.xlu0 %496
        %498 = vrot.lane.b32.xlu0 %v394, 80
        %v499 = vpop.permute.xlu0 %498
        %500 = vrot.lane.b32.xlu0 %v395, 80
        %v501 = vpop.permute.xlu0 %500
        %502 = vrot.lane.b32.xlu0 %v406, 80
        %v503 = vpop.permute.xlu0 %502
        %504 = vrot.lane.b32.xlu0 %v407, 80
        %v505 = vpop.permute.xlu0 %504
        %506 = vrot.lane.b32.xlu0 %v408, 80
        %v507 = vpop.permute.xlu0 %506
        %vm508 = vcmask 654336
        %v509 = vsel %vm508, %v491, %v493
        %v510 = vsel %vm508, %v493, %v495
        %v511 = vsel %vm508, %v497, %v499
        %v512 = vsel %vm508, %v499, %v501
        %v513 = vsel %vm508, %v503, %v505
        %v514 = vsel %vm508, %v505, %v507
        %v522 = vsel %vm295, %v489, 0
        %524 = vmatprep.subr.bf16.mxu0 %v510
        %525 = vmatpush1.bf16.msra.mxu0 %v509
        %526 = vmatprep.subr.bf16.mxu0 %v512
        %527 = vmatpush1.bf16.msra.mxu0 %v511
        %528 = vmatprep.subr.bf16.mxu0 %v514
        %529 = vmatpush1.bf16.msra.mxu0 %v513
        %530 = vmatprep.subr.bf16.mxu0 0
        %531 = vmatpush1.bf16.msra.mxu0 0
        %532 = vmatprep.subr.bf16.mxu0 0
        %533 = vmatpush1.bf16.msra.mxu0 0
        %534 = vmatprep.subr.bf16.mxu0 0
        %535 = vmatpush1.bf16.msra.mxu0 0
        %536 = vmatprep.subr.bf16.mxu0 0
        %537 = vmatpush1.bf16.msra.mxu0 0
        %538 = vmatprep.subr.bf16.mxu0 0
        %539 = vmatpush1.bf16.msra.mxu0 0
        %540 = vmatprep.subr.bf16.mxu0 0
        %541 = vmatpush1.bf16.msra.mxu0 0
        %542 = vmatprep.subr.bf16.mxu0 0
        %543 = vmatpush1.bf16.msra.mxu0 0
        %544 = vmatprep.subr.bf16.mxu0 0
        %545 = vmatpush1.bf16.msra.mxu0 0
        %546 = vmatprep.subr.bf16.mxu0 0
        %547 = vmatpush1.bf16.msra.mxu0 0
        %548 = vmatprep.subr.bf16.mxu0 0
        %549 = vmatpush1.bf16.msra.mxu0 0
        %550 = vmatprep.subr.bf16.mxu0 0
        %551 = vmatpush1.bf16.msra.mxu0 0
        %552 = vmatprep.subr.bf16.mxu0 0
        %553 = vmatpush1.bf16.msra.mxu0 0
        %554 = vmatprep.subr.bf16.mxu0 0
        %555 = vmatpush1.bf16.msra.mxu0 0
        %556 = vmatprep.mubr.bf16.mxu0 0
        %557 = vmatmul.mubr.bf16.gmra.mrb[0].mxu0 %v522
        %v558 = vpop.f32.mrb[0].mxu0
        %v559 = vadd.f32 0.0, %v558
        %v560 = vpop.f32.mrb[0].mxu0
        %v561 = vadd.f32 0.0, %v560
        %v562 = vpop.f32.mrb[0].mxu0
        %v563 = vpop.f32.mrb[0].mxu0
        %564 = vdwg.mxu0
        %vm565 = vcmp.ge.s32.totalorder %v257, 4294967272
        %vm566 = vcmp.lt.s32.totalorder %v257, 4294967288
        %vm567 = vmand %vm565, %vm566
        %v568 = vsel %vm567, 1, 0
        %v569 = vlaneseq
        %v570 = vshrl.u32 %v569, 7
        %v571 = vsub.s32 0, %v570
        %v572 = vrot.slane %v568, %v571
        %v573 = vlaneseq
        %v574 = vshrl.u32 %v573, 7
        %v575 = vsub.s32 1, %v574
        %v576 = vrot.slane %v568, %v575
        %vm577 = vcmp.eq.s32.totalorder %v572, 1
        %vm578 = vcmp.eq.s32.totalorder %v576, 1
        %v579 = vsel %vm577, %v559, 0.0
        %v580 = vsel %vm578, %v561, 0.0
        %v581 = vadd.f32 %v486, %v579
        %v582 = vadd.f32 %v487, %v580
        %v583 = vld [vmem:[#allocation7] sm:$0xff]
        %585 = vset.pattern.permute.xlu0 0
        %586 = vperm.xlu0 %585, %v583
        %v587 = vpop.permute.xlu0 %586
        %v589 = vadd.f32 %v581, %v587
        %v590 = vadd.f32 %v582, %v587
        %vm591 = vcmp.gt.f32.partialorder %v589, 0.0
        %vm592 = vcmp.gt.f32.partialorder %v590, 0.0
        %v593 = vmul.f32 %v589, 0.01
        %v594 = vmul.f32 %v590, 0.01
        %v595 = vsel %vm591, %v589, %v593
        %v596 = vsel %vm592, %v590, %v594
        %v597 = vpack.c.bf16 %v595, %v595
        %v598 = vpack.c.bf16 %v596, %v596
        %v601 = vunpack.c.l.b16 %v597
        %v602 = vunpack.c.l.b16 %v598
        %v603 = vpack.c.b16 %v602, %v601
        %605 = vst [vmem:[%s255] sm:$0xff] %v603
        %s606 = sand.u32 %s120, 1
        %s607 = scalar_lea.sflag [#allocation4], %s606
        %s608 = sand.u32 %s120, 1
        %s609 = smul.addr %s608, 8
        %s610 = scalar_lea.vmem [#allocation10], %s609
        // Predicated region
        $region53: #{_forward.12} parent=35 // pred_check
          %p611 = pneg %p130
        $region54: #{_forward.12} parent=35 // pred_check_branch
          %613 = sbr.rel (%p611) target = $region56
        $region55: #{_forward.12} parent=35 // pred_region
          %s615 = ssub.s32 128, 128
          %616 = vsyncadd %s607, %s615
          %s617 = smul.addr %s23, 2
          %s618 = smul.addr %s617, 64
          %s619 = scalar_lea.hbm %s4, %s618
          %s621 = sshll.u32 %s610, 4
          %s622 = int_to_ptr.vmem [resolvable:$true] %s621
          %624 = dma.vmem_to_hbm [thread:$0]  %s622, 128, %s619, %s607
        $region56: #{_forward.12} parent=35 // pred_fallthru
          _
      $region36: #{_forward.12} parent=5 // pred_fallthru
        _
      %p625 = scmp.le.s32.totalorder 2, %s18
      // Predicated region
      $region57: #{_forward.12} parent=5 // pred_check
        %p626 = pneg %p625
      $region58: #{_forward.12} parent=5 // pred_check_branch
        %628 = sbr.rel (%p626) target = $region60
      $region59: #{_forward.12} parent=5 // pred_region
        %s629 = ssub.s32 %s18, 2
        // Predicated region
        $region61: #{_forward.12} parent=59 // pred_check
          %p630 = pneg %p136
        $region62: #{_forward.12} parent=59 // pred_check_branch
          %632 = sbr.rel (%p630) target = $region64
        $region63: #{_forward.12} parent=59 // pred_region
          %s633 = sand.u32 %s121, 1
          %s634 = scalar_lea.sflag [#allocation4], %s633
          %s635 = sand.u32 %s121, 1
          %s636 = smul.addr %s635, 8
          %s637 = scalar_lea.vmem [#allocation10], %s636
          %638 = dma.done %s634, 128
        $region64: #{_forward.12} parent=59 // pred_fallthru
          _
      $region60: #{_forward.12} parent=5 // pred_fallthru
        _
    $region6: #{_forward.12} parent=1 // loop_footer
      %s22 = sadd.s32 1, %s18
    $region7: #{_forward.12} parent=1 // loop_footer_branch
      %17 = sbr.rel target = $region3
    $region8: #{_forward.12} parent=1 // loop_exit
      _
    %639 = vsyncpa [#allocation3], 1
    %s640 = scalar_lea.sflag [#allocation3], 1
    %641 = vsyncpa %s640, 1
    %642 = vsyncpa [#allocation6], 1
    %643 = vsyncpa [#allocation9], 1
    %644 = vsyncpa [#allocation4], 1
    %s645 = scalar_lea.sflag [#allocation4], 1
    %646 = vsyncpa %s645, 1

// kernel: _forward.13
$region0: #{_forward.13}
  #allocation0 [shape = 'u32[]', space=smem, size = 0x4, offset = 0x4, fixed_abs, tag = 'smem constant byte address 0x4 - core index']
  #allocation1 [shape = 'u32[144,128]{1,0:T(1,128)}', space=vmem, size = 0x12000, scoped, tag = 'internal scratch']
  %s0 = inlined_call_operand.hbm [shape: bf16[2,72,256], index: 0, kind: input, shape index: {}]
  %s1 = inlined_call_operand.hbm [shape: bf16[4,72], index: 1, kind: input, shape index: {}]
  %s2 = inlined_call_operand.hbm [shape: f32[4,1], index: 2, kind: input, shape index: {}]
  %s3 = inlined_call_operand.hbm [shape: bf16[2,4,256], index: 3, kind: output, shape index: {}]
  %s4 = sld [smem:[#allocation0]]
  $region57: #{_forward.13} parent=0
    _
  %s6 = ssub.s32 1, %s4
  %s7 = scalar_select 0, %s6, %s4
  $region1: #{_forward.13} parent=0
    #allocation2 [shape = 'u8[73728]{0}', space=vmem, size = 0x12000, scoped, tag = 'input window, operand 0']
    #allocation3 [shape = 's32[2]{0}', space=sflag, size = 0x8, scoped, tag = 'scoped memory for _forward.13']
    #allocation4 [shape = 's32[2]{0}', space=sflag, size = 0x8, scoped, tag = 'scoped memory for _forward.13']
    #allocation5 [shape = 'u8[1024]{0}', space=vmem, size = 0x400, scoped, tag = 'input window, operand 1, single buffered']
    #allocation6 [shape = 's32[1]{0}', space=sflag, size = 0x4, scoped, tag = 'scoped memory for _forward.13']
    #allocation7 [shape = 'u8[2048]{0}', space=vmem, size = 0x800, scoped, tag = 'input window, operand 2, single buffered']
    #allocation8 [shape = 'u8[4096]{0}', space=vmem, size = 0x1000, scoped, tag = 'output window, operand 0']
    %8 = vsyncpa [#allocation3], 0
    %s9 = scalar_lea.sflag [#allocation3], 1
    %10 = vsyncpa %s9, 0
    %11 = vsyncpa [#allocation6], 0
    %12 = vsyncpa [#allocation4], 0
    %s13 = scalar_lea.sflag [#allocation4], 1
    %14 = vsyncpa %s13, 0
    loop: start=0, step=1, limit=4
    $region2: #{_forward.13} parent=1 // loop_pre_header
      _
    $region3: #{_forward.13} parent=1 // loop_header
      %s16 = sphi 0, %s20
      %p17 = scmp.ge.s32.totalorder %s16, 4
      %s26 = sphi 0, %s28
      %s29 = sphi 0, %s26
      %s30 = sphi 0, %s29
      %s46 = sphi 0, %s30
      %s50 = sphi 0, %s50
      %s52 = sphi 0, %s50
      %s53 = sphi 0, %s52
      %s67 = sphi 0, %s53
      %s71 = sphi 0, %s71
      %s73 = sphi 0, %s71
      %s74 = sphi 0, %s73
      %s88 = sphi 0, %s74
      %s94 = sphi 0, %s96
      %s97 = sphi 0, %s94
      %s98 = sphi 0, %s97
      %s114 = sphi 0, %s98
    $region4: #{_forward.13} parent=1 // loop_header_branch
      %19 = sbr.rel (%p17) target = $region8
    $region5: #{_forward.13} parent=1 // loop_body
      %s21 = ssub.s32 %s16, 1
      %s22 = ssub.s32 %s16, 2
      %s23 = sadd.s32 %s16, 1
      %s24 = ssub.s32 %s16, %s23
      %p25 = scmp.eq.s32.totalorder %s24, 0
      %s27 = sadd.s32 %s26, 1
      %s28 = scalar_select %p25, %s26, %s27
      %p31 = pneg %p25
      %p32 = scmp.eq.s32.totalorder %s16, 1
      %p33 = por %p31, %p32
      %p34 = scmp.ne.s32.totalorder %s26, %s29
      %p35 = scmp.eq.s32.totalorder %s16, 0
      %p36 = por %p34, %p35
      %p37 = scmp.ne.s32.totalorder %s26, %s29
      %p38 = scmp.eq.s32.totalorder %s21, 1
      %p39 = por %p37, %p38
      %p40 = scmp.ne.s32.totalorder %s29, %s30
      %p41 = scmp.eq.s32.totalorder %s21, 0
      %p42 = por %p40, %p41
      %p43 = scmp.ne.s32.totalorder %s29, %s30
      %p44 = scmp.eq.s32.totalorder %s22, 1
      %p45 = por %p43, %p44
      %p47 = scmp.ne.s32.totalorder %s30, %s46
      %p48 = scmp.eq.s32.totalorder %s22, 0
      %p49 = por %p47, %p48
      %s51 = sadd.s32 %s50, 1
      %p54 = scmp.eq.s32.totalorder %s16, 1
      %p55 = scmp.ne.s32.totalorder %s50, %s52
      %p56 = scmp.eq.s32.totalorder %s16, 0
      %p57 = por %p55, %p56
      %p58 = scmp.ne.s32.totalorder %s50, %s52
      %p59 = scmp.eq.s32.totalorder %s21, 1
      %p60 = por %p58, %p59
      %p61 = scmp.ne.s32.totalorder %s52, %s53
      %p62 = scmp.eq.s32.totalorder %s21, 0
      %p63 = por %p61, %p62
      %p64 = scmp.ne.s32.totalorder %s52, %s53
      %p65 = scmp.eq.s32.totalorder %s22, 1
      %p66 = por %p64, %p65
      %p68 = scmp.ne.s32.totalorder %s53, %s67
      %p69 = scmp.eq.s32.totalorder %s22, 0
      %p70 = por %p68, %p69
      %s72 = sadd.s32 %s71, 1
      %p75 = scmp.eq.s32.totalorder %s16, 1
      %p76 = scmp.ne.s32.totalorder %s71, %s73
      %p77 = scmp.eq.s32.totalorder %s16, 0
      %p78 = por %p76, %p77
      %p79 = scmp.ne.s32.totalorder %s71, %s73
      %p80 = scmp.eq.s32.totalorder %s21, 1
      %p81 = por %p79, %p80
      %p82 = scmp.ne.s32.totalorder %s73, %s74
      %p83 = scmp.eq.s32.totalorder %s21, 0
      %p84 = por %p82, %p83
      %p85 = scmp.ne.s32.totalorder %s73, %s74
      %p86 = scmp.eq.s32.totalorder %s22, 1
      %p87 = por %p85, %p86
      %p89 = scmp.ne.s32.totalorder %s74, %s88
      %p90 = scmp.eq.s32.totalorder %s22, 0
      %p91 = por %p89, %p90
      %s92 = ssub.s32 %s16, %s23
      %p93 = scmp.eq.s32.totalorder %s92, 0
      %s95 = sadd.s32 %s94, 1
      %s96 = scalar_select %p93, %s94, %s95
      %p99 = pneg %p93
      %p100 = scmp.eq.s32.totalorder %s16, 1
      %p101 = por %p99, %p100
      %p102 = scmp.ne.s32.totalorder %s94, %s97
      %p103 = scmp.eq.s32.totalorder %s16, 0
      %p104 = por %p102, %p103
      %p105 = scmp.ne.s32.totalorder %s94, %s97
      %p106 = scmp.eq.s32.totalorder %s21, 1
      %p107 = por %p105, %p106
      %p108 = scmp.ne.s32.totalorder %s97, %s98
      %p109 = scmp.eq.s32.totalorder %s21, 0
      %p110 = por %p108, %p109
      %p111 = scmp.ne.s32.totalorder %s97, %s98
      %p112 = scmp.eq.s32.totalorder %s22, 1
      %p113 = por %p111, %p112
      %p115 = scmp.ne.s32.totalorder %s98, %s114
      %p116 = scmp.eq.s32.totalorder %s22, 0
      %p117 = por %p115, %p116
      %p118 = scmp.le.s32.totalorder 1, %s16
      %p119 = scmp.lt.s32.totalorder %s16, 3
      %p120 = pnand %p118, %p119
      %p121 = pneg %p120
      // Predicated region
      $region9: #{_forward.13} parent=5 // pred_check
        _
      $region10: #{_forward.13} parent=5 // pred_check_branch
        %123 = sbr.rel (%p120) target = $region12
      $region11: #{_forward.13} parent=5 // pred_region
        %s124 = ssub.s32 %s16, 1
        // Predicated region
        $region13: #{_forward.13} parent=11 // pred_check
          %p125 = pneg %p63
        $region14: #{_forward.13} parent=11 // pred_check_branch
          %127 = sbr.rel (%p125) target = $region16
        $region15: #{_forward.13} parent=11 // pred_region
          %s129 = ssub.s32 32, 32
          %130 = vsyncadd [#allocation6], %s129
          %s132 = sshll.u32 [#allocation5], 4
          %s133 = int_to_ptr.vmem [resolvable:$true] %s132
          %135 = dma.hbm_to_vmem [thread:$0]  %s1, 32, %s133, [#allocation6]
        $region16: #{_forward.13} parent=11 // pred_fallthru
          _
        // Predicated region
        $region17: #{_forward.13} parent=11 // pred_check
          %p136 = pneg %p84
        $region18: #{_forward.13} parent=11 // pred_check_branch
          %138 = sbr.rel (%p136) target = $region20
        $region19: #{_forward.13} parent=11 // pred_region
          %s140 = ssub.s32 64, 64
          %141 = vsyncadd [#allocation6], %s140
          %s143 = sshll.u32 [#allocation7], 4
          %s144 = int_to_ptr.vmem [resolvable:$true] %s143
          %146 = dma.hbm_to_vmem [thread:$0]  %s2, 64, %s144, [#allocation6]
        $region20: #{_forward.13} parent=11 // pred_fallthru
          _
      $region12: #{_forward.13} parent=5 // pred_fallthru
        _
      %p147 = scmp.lt.s32.totalorder %s16, 2
      // Predicated region
      $region21: #{_forward.13} parent=5 // pred_check
        %p148 = pneg %p147
      $region22: #{_forward.13} parent=5 // pred_check_branch
        %150 = sbr.rel (%p148) target = $region24
      $region23: #{_forward.13} parent=5 // pred_region
        // Predicated region
        $region25: #{_forward.13} parent=23 // pred_check
          %p151 = pneg %p36
        $region26: #{_forward.13} parent=23 // pred_check_branch
          %153 = sbr.rel (%p151) target = $region28
        $region27: #{_forward.13} parent=23 // pred_region
          %s154 = sand.u32 %s26, 1
          %s155 = scalar_lea.sflag [#allocation3], %s154
          %s156 = sand.u32 %s26, 1
          %s157 = smul.addr %s156, 72
          %s158 = scalar_lea.vmem [#allocation2], %s157
          %s160 = ssub.s32 1152, 1152
          %161 = vsyncadd %s155, %s160
          %s162 = smul.addr %s16, 18
          %s163 = smul.addr %s162, 64
          %s164 = scalar_lea.hbm %s0, %s163
          %s165 = sshll.u32 %s158, 4
          %s166 = int_to_ptr.vmem [resolvable:$true] %s165
          %171 = dma.hbm_to_vmem [thread:$0]  %s164, 1152, %s166, %s155, 128, 128, 8
        $region28: #{_forward.13} parent=23 // pred_fallthru
          _
      $region24: #{_forward.13} parent=5 // pred_fallthru
        _
      %p172 = scmp.le.s32.totalorder 1, %s16
      %p173 = scmp.lt.s32.totalorder %s16, 3
      %p174 = pnand %p172, %p173
      %p175 = pneg %p174
      // Predicated region
      $region29: #{_forward.13} parent=5 // pred_check
        _
      $region30: #{_forward.13} parent=5 // pred_check_branch
        %177 = sbr.rel (%p174) target = $region32
      $region31: #{_forward.13} parent=5 // pred_region
        %s178 = ssub.s32 %s16, 1
        %s179 = sand.u32 %s29, 1
        %s180 = scalar_lea.sflag [#allocation3], %s179
        %s181 = sand.u32 %s29, 1
        %s182 = smul.addr %s181, 72
        %s183 = scalar_lea.vmem [#allocation2], %s182
        // Predicated region
        $region33: #{_forward.13} parent=31 // pred_check
          %p184 = pneg %p42
        $region34: #{_forward.13} parent=31 // pred_check_branch
          %186 = sbr.rel (%p184) target = $region36
        $region35: #{_forward.13} parent=31 // pred_region
          %187 = dma.done %s180, 1152
        $region36: #{_forward.13} parent=31 // pred_fallthru
          _
        // Predicated region
        $region37: #{_forward.13} parent=31 // pred_check
          %p188 = pneg %p63
        $region38: #{_forward.13} parent=31 // pred_check_branch
          %190 = sbr.rel (%p188) target = $region40
        $region39: #{_forward.13} parent=31 // pred_region
          %191 = dma.done [#allocation6], 32
        $region40: #{_forward.13} parent=31 // pred_fallthru
          _
        // Predicated region
        $region41: #{_forward.13} parent=31 // pred_check
          %p192 = pneg %p84
        $region42: #{_forward.13} parent=31 // pred_check_branch
          %194 = sbr.rel (%p192) target = $region44
        $region43: #{_forward.13} parent=31 // pred_region
          %195 = dma.done [#allocation6], 64
        $region44: #{_forward.13} parent=31 // pred_fallthru
          _
        %s196 = sand.u32 %s29, 1
        %s197 = scalar_lea.sflag [#allocation3], %s196
        %s198 = sand.u32 %s29, 1
        %s199 = smul.addr %s198, 72
        %s200 = scalar_lea.vmem [#allocation2], %s199
        %p201 = pneg %p42
        %p202 = pneg %p39
        %p203 = pneg %p63
        %p204 = pneg %p60
        %p205 = pneg %p84
        %p206 = pneg %p81
        %p207 = pneg %p110
        %p208 = pneg %p107
        %s209 = sand.u32 %s97, 1
        %s210 = scalar_lea.sflag [#allocation4], %s209
        %s211 = sand.u32 %s97, 1
        %s212 = smul.addr %s211, 4
        %s213 = scalar_lea.vmem [#allocation8], %s212
        %v215 = vld [vmem:[#allocation5] sm:$0x3]
        %v216 = vld [vmem:[%s183] sm:$0xff]
        %v217 = vld [vmem:[%s183 + $0x8] sm:$0xff]
        %v218 = vld [vmem:[%s183 + $0x10] sm:$0xff]
        %v219 = vld [vmem:[%s183 + $0x18] sm:$0xff]
        %v220 = vld [vmem:[%s183 + $0x20] sm:$0xff]
        %v221 = vld [vmem:[%s183 + $0x28] sm:$0xff]
        %v222 = vld [vmem:[%s183 + $0x30] sm:$0xff]
        %v223 = vld [vmem:[%s183 + $0x38] sm:$0xff]
        %v224 = vld [vmem:[%s183 + $0x40] sm:$0xff]
        %v225 = vld [vmem:[#allocation7] sm:$0xf]
        %227 = vset.pattern.permute.xlu0 0
        %228 = vperm.xlu0 %227, %v225
        %v229 = vpop.permute.xlu0 %228
        %v240 = vunpack.c.l.b16 %v216
        %v241 = vunpack.c.h.b16 %v216
        %v242 = vunpack.c.l.b16 %v217
        %v243 = vunpack.c.h.b16 %v217
        %v244 = vunpack.c.l.b16 %v218
        %v245 = vunpack.c.h.b16 %v218
        %v246 = vunpack.c.l.b16 %v219
        %v247 = vunpack.c.h.b16 %v219
        %v248 = vunpack.c.l.b16 %v220
        %v249 = vunpack.c.h.b16 %v220
        %v250 = vunpack.c.l.b16 %v221
        %v251 = vunpack.c.h.b16 %v221
        %v252 = vunpack.c.l.b16 %v222
        %v253 = vunpack.c.h.b16 %v222
        %v254 = vunpack.c.l.b16 %v223
        %v255 = vunpack.c.h.b16 %v223
        %v256 = vunpack.c.l.b16 %v224
        %v257 = vunpack.c.h.b16 %v224
        %v258 = vpack.c.b16 %v242, %v240
        %v259 = vpack.c.b16 %v243, %v241
        %v260 = vpack.c.b16 %v246, %v244
        %v261 = vpack.c.b16 %v247, %v245
        %v262 = vpack.c.b16 %v250, %v248
        %v263 = vpack.c.b16 %v251, %v249
        %v264 = vpack.c.b16 %v254, %v252
        %v265 = vpack.c.b16 %v255, %v253
        %v266 = vpack.c.b16 %v256, %v256
        %v267 = vpack.c.b16 %v257, %v257
        %vm276 = vcmask 588800
        %v278 = vsel %vm276, %v215, 0
        %vm280 = vcmask 1043456
        %v282 = vsel %vm280, %v266, 0
        %v285 = vsel %vm280, %v267, 0
        %287 = vmatprep.subr.bf16.mxu0 %v259
        %288 = vmatpush1.bf16.msra.mxu0 %v258
        %289 = vmatprep.subr.bf16.mxu0 %v261
        %290 = vmatpush1.bf16.msra.mxu0 %v260
        %291 = vmatprep.subr.bf16.mxu0 %v263
        %292 = vmatpush1.bf16.msra.mxu0 %v262
        %293 = vmatprep.subr.bf16.mxu0 %v265
        %294 = vmatpush1.bf16.msra.mxu0 %v264
        %295 = vmatprep.subr.bf16.mxu0 %v285
        %296 = vmatpush1.bf16.msra.mxu0 %v282
        %297 = vmatprep.subr.bf16.mxu0 0
        %298 = vmatpush1.bf16.msra.mxu0 0
        %299 = vmatprep.subr.bf16.mxu0 0
        %300 = vmatpush1.bf16.msra.mxu0 0
        %301 = vmatprep.subr.bf16.mxu0 0
        %302 = vmatpush1.bf16.msra.mxu0 0
        %303 = vmatprep.subr.bf16.mxu0 0
        %304 = vmatpush1.bf16.msra.mxu0 0
        %305 = vmatprep.subr.bf16.mxu0 0
        %306 = vmatpush1.bf16.msra.mxu0 0
        %307 = vmatprep.subr.bf16.mxu0 0
        %308 = vmatpush1.bf16.msra.mxu0 0
        %309 = vmatprep.subr.bf16.mxu0 0
        %310 = vmatpush1.bf16.msra.mxu0 0
        %311 = vmatprep.subr.bf16.mxu0 0
        %312 = vmatpush1.bf16.msra.mxu0 0
        %313 = vmatprep.subr.bf16.mxu0 0
        %314 = vmatpush1.bf16.msra.mxu0 0
        %315 = vmatprep.subr.bf16.mxu0 0
        %316 = vmatpush1.bf16.msra.mxu0 0
        %317 = vmatprep.subr.bf16.mxu0 0
        %318 = vmatpush1.bf16.msra.mxu0 0
        %319 = vmatprep.mubr.bf16.mxu0 0
        %320 = vmatmul.mubr.bf16.gmra.mrb[0].mxu0 %v278
        %v321 = vpop.f32.mrb[0].mxu0
        %v322 = vadd.f32 %v229, %v321
        %v323 = vpop.f32.mrb[0].mxu0
        %v324 = vadd.f32 %v229, %v323
        %v325 = vpop.f32.mrb[0].mxu0
        %v326 = vpop.f32.mrb[0].mxu0
        %327 = vdwg.mxu0
        %vm328 = vcmp.gt.f32.partialorder %v322, 0.0
        %vm329 = vcmp.gt.f32.partialorder %v324, 0.0
        %v330 = vmul.f32 %v322, 0.01
        %v331 = vmul.f32 %v324, 0.01
        %v332 = vsel %vm328, %v322, %v330
        %v333 = vsel %vm329, %v324, %v331
        %v334 = vpack.c.bf16 %v332, %v332
        %v335 = vpack.c.bf16 %v333, %v333
        %v338 = vcombine.low %v334, %v335
        %v340 = vunpack.c.l.s4 1983009808
        %v341 = vunpack.c.0.s8 %v340
        %v342 = vlaneseq
        %v343 = vshrl.u32 %v342, 7
        %v344 = vsub.s32 %v341, %v343
        %v345 = vrot.slane %v338, %v344
        %347 = vst [vmem:[%s213] sm:$0xf] %v345
        %s348 = sand.u32 %s97, 1
        %s349 = scalar_lea.sflag [#allocation4], %s348
        %s350 = sand.u32 %s97, 1
        %s351 = smul.addr %s350, 4
        %s352 = scalar_lea.vmem [#allocation8], %s351
        // Predicated region
        $region45: #{_forward.13} parent=31 // pred_check
          %p353 = pneg %p107
        $region46: #{_forward.13} parent=31 // pred_check_branch
          %355 = sbr.rel (%p353) target = $region48
        $region47: #{_forward.13} parent=31 // pred_region
          %s357 = ssub.s32 64, 64
          %358 = vsyncadd %s349, %s357
          %s359 = smul.addr %s21, 2
          %s360 = smul.addr %s359, 32
          %s361 = scalar_lea.hbm %s3, %s360
          %s363 = sshll.u32 %s352, 4
          %s364 = int_to_ptr.vmem [resolvable:$true] %s363
          %366 = dma.vmem_to_hbm [thread:$0]  %s364, 64, %s361, %s349
        $region48: #{_forward.13} parent=31 // pred_fallthru
          _
      $region32: #{_forward.13} parent=5 // pred_fallthru
        _
      %p367 = scmp.le.s32.totalorder 2, %s16
      // Predicated region
      $region49: #{_forward.13} parent=5 // pred_check
        %p368 = pneg %p367
      $region50: #{_forward.13} parent=5 // pred_check_branch
        %370 = sbr.rel (%p368) target = $region52
      $region51: #{_forward.13} parent=5 // pred_region
        %s371 = ssub.s32 %s16, 2
        // Predicated region
        $region53: #{_forward.13} parent=51 // pred_check
          %p372 = pneg %p113
        $region54: #{_forward.13} parent=51 // pred_check_branch
          %374 = sbr.rel (%p372) target = $region56
        $region55: #{_forward.13} parent=51 // pred_region
          %s375 = sand.u32 %s98, 1
          %s376 = scalar_lea.sflag [#allocation4], %s375
          %s377 = sand.u32 %s98, 1
          %s378 = smul.addr %s377, 4
          %s379 = scalar_lea.vmem [#allocation8], %s378
          %380 = dma.done %s376, 64
        $region56: #{_forward.13} parent=51 // pred_fallthru
          _
      $region52: #{_forward.13} parent=5 // pred_fallthru
        _
    $region6: #{_forward.13} parent=1 // loop_footer
      %s20 = sadd.s32 1, %s16
    $region7: #{_forward.13} parent=1 // loop_footer_branch
      %15 = sbr.rel target = $region3
    $region8: #{_forward.13} parent=1 // loop_exit
      _
    %381 = vsyncpa [#allocation3], 1
    %s382 = scalar_lea.sflag [#allocation3], 1
    %383 = vsyncpa %s382, 1
    %384 = vsyncpa [#allocation6], 1
    %385 = vsyncpa [#allocation4], 1
    %s386 = scalar_lea.sflag [#allocation4], 1
    %387 = vsyncpa %s386, 1

// kernel: _forward.14
$region0: #{_forward.14}
  #allocation0 [shape = 'u32[]', space=smem, size = 0x4, offset = 0x4, fixed_abs, tag = 'smem constant byte address 0x4 - core index']
  #allocation1 [shape = 'u32[144,128]{1,0:T(1,128)}', space=vmem, size = 0x12000, scoped, tag = 'internal scratch']
  %s0 = inlined_call_operand.hbm [shape: bf16[2,36,256], index: 0, kind: input, shape index: {}]
  %s1 = inlined_call_operand.hbm [shape: bf16[2,36], index: 1, kind: input, shape index: {}]
  %s2 = inlined_call_operand.hbm [shape: f32[2,1], index: 2, kind: input, shape index: {}]
  %s3 = inlined_call_operand.hbm [shape: bf16[2,2,256], index: 3, kind: output, shape index: {}]
  %s4 = sld [smem:[#allocation0]]
  $region57: #{_forward.14} parent=0
    _
  %s6 = ssub.s32 1, %s4
  %s7 = scalar_select 0, %s6, %s4
  $region1: #{_forward.14} parent=0
    #allocation2 [shape = 'u8[40960]{0}', space=vmem, size = 0xa000, scoped, tag = 'input window, operand 0']
    #allocation3 [shape = 's32[2]{0}', space=sflag, size = 0x8, scoped, tag = 'scoped memory for _forward.14']
    #allocation4 [shape = 's32[2]{0}', space=sflag, size = 0x8, scoped, tag = 'scoped memory for _forward.14']
    #allocation5 [shape = 'u8[512]{0}', space=vmem, size = 0x400, scoped, tag = 'input window, operand 1, single buffered']
    #allocation6 [shape = 's32[1]{0}', space=sflag, size = 0x4, scoped, tag = 'scoped memory for _forward.14']
    #allocation7 [shape = 'u8[1024]{0}', space=vmem, size = 0x400, scoped, tag = 'input window, operand 2, single buffered']
    #allocation8 [shape = 'u8[2048]{0}', space=vmem, size = 0x800, scoped, tag = 'output window, operand 0']
    %8 = vsyncpa [#allocation3], 0
    %s9 = scalar_lea.sflag [#allocation3], 1
    %10 = vsyncpa %s9, 0
    %11 = vsyncpa [#allocation6], 0
    %12 = vsyncpa [#allocation4], 0
    %s13 = scalar_lea.sflag [#allocation4], 1
    %14 = vsyncpa %s13, 0
    loop: start=0, step=1, limit=4
    $region2: #{_forward.14} parent=1 // loop_pre_header
      _
    $region3: #{_forward.14} parent=1 // loop_header
      %s16 = sphi 0, %s20
      %p17 = scmp.ge.s32.totalorder %s16, 4
      %s26 = sphi 0, %s28
      %s29 = sphi 0, %s26
      %s30 = sphi 0, %s29
      %s46 = sphi 0, %s30
      %s50 = sphi 0, %s50
      %s52 = sphi 0, %s50
      %s53 = sphi 0, %s52
      %s67 = sphi 0, %s53
      %s71 = sphi 0, %s71
      %s73 = sphi 0, %s71
      %s74 = sphi 0, %s73
      %s88 = sphi 0, %s74
      %s94 = sphi 0, %s96
      %s97 = sphi 0, %s94
      %s98 = sphi 0, %s97
      %s114 = sphi 0, %s98
    $region4: #{_forward.14} parent=1 // loop_header_branch
      %19 = sbr.rel (%p17) target = $region8
    $region5: #{_forward.14} parent=1 // loop_body
      %s21 = ssub.s32 %s16, 1
      %s22 = ssub.s32 %s16, 2
      %s23 = sadd.s32 %s16, 1
      %s24 = ssub.s32 %s16, %s23
      %p25 = scmp.eq.s32.totalorder %s24, 0
      %s27 = sadd.s32 %s26, 1
      %s28 = scalar_select %p25, %s26, %s27
      %p31 = pneg %p25
      %p32 = scmp.eq.s32.totalorder %s16, 1
      %p33 = por %p31, %p32
      %p34 = scmp.ne.s32.totalorder %s26, %s29
      %p35 = scmp.eq.s32.totalorder %s16, 0
      %p36 = por %p34, %p35
      %p37 = scmp.ne.s32.totalorder %s26, %s29
      %p38 = scmp.eq.s32.totalorder %s21, 1
      %p39 = por %p37, %p38
      %p40 = scmp.ne.s32.totalorder %s29, %s30
      %p41 = scmp.eq.s32.totalorder %s21, 0
      %p42 = por %p40, %p41
      %p43 = scmp.ne.s32.totalorder %s29, %s30
      %p44 = scmp.eq.s32.totalorder %s22, 1
      %p45 = por %p43, %p44
      %p47 = scmp.ne.s32.totalorder %s30, %s46
      %p48 = scmp.eq.s32.totalorder %s22, 0
      %p49 = por %p47, %p48
      %s51 = sadd.s32 %s50, 1
      %p54 = scmp.eq.s32.totalorder %s16, 1
      %p55 = scmp.ne.s32.totalorder %s50, %s52
      %p56 = scmp.eq.s32.totalorder %s16, 0
      %p57 = por %p55, %p56
      %p58 = scmp.ne.s32.totalorder %s50, %s52
      %p59 = scmp.eq.s32.totalorder %s21, 1
      %p60 = por %p58, %p59
      %p61 = scmp.ne.s32.totalorder %s52, %s53
      %p62 = scmp.eq.s32.totalorder %s21, 0
      %p63 = por %p61, %p62
      %p64 = scmp.ne.s32.totalorder %s52, %s53
      %p65 = scmp.eq.s32.totalorder %s22, 1
      %p66 = por %p64, %p65
      %p68 = scmp.ne.s32.totalorder %s53, %s67
      %p69 = scmp.eq.s32.totalorder %s22, 0
      %p70 = por %p68, %p69
      %s72 = sadd.s32 %s71, 1
      %p75 = scmp.eq.s32.totalorder %s16, 1
      %p76 = scmp.ne.s32.totalorder %s71, %s73
      %p77 = scmp.eq.s32.totalorder %s16, 0
      %p78 = por %p76, %p77
      %p79 = scmp.ne.s32.totalorder %s71, %s73
      %p80 = scmp.eq.s32.totalorder %s21, 1
      %p81 = por %p79, %p80
      %p82 = scmp.ne.s32.totalorder %s73, %s74
      %p83 = scmp.eq.s32.totalorder %s21, 0
      %p84 = por %p82, %p83
      %p85 = scmp.ne.s32.totalorder %s73, %s74
      %p86 = scmp.eq.s32.totalorder %s22, 1
      %p87 = por %p85, %p86
      %p89 = scmp.ne.s32.totalorder %s74, %s88
      %p90 = scmp.eq.s32.totalorder %s22, 0
      %p91 = por %p89, %p90
      %s92 = ssub.s32 %s16, %s23
      %p93 = scmp.eq.s32.totalorder %s92, 0
      %s95 = sadd.s32 %s94, 1
      %s96 = scalar_select %p93, %s94, %s95
      %p99 = pneg %p93
      %p100 = scmp.eq.s32.totalorder %s16, 1
      %p101 = por %p99, %p100
      %p102 = scmp.ne.s32.totalorder %s94, %s97
      %p103 = scmp.eq.s32.totalorder %s16, 0
      %p104 = por %p102, %p103
      %p105 = scmp.ne.s32.totalorder %s94, %s97
      %p106 = scmp.eq.s32.totalorder %s21, 1
      %p107 = por %p105, %p106
      %p108 = scmp.ne.s32.totalorder %s97, %s98
      %p109 = scmp.eq.s32.totalorder %s21, 0
      %p110 = por %p108, %p109
      %p111 = scmp.ne.s32.totalorder %s97, %s98
      %p112 = scmp.eq.s32.totalorder %s22, 1
      %p113 = por %p111, %p112
      %p115 = scmp.ne.s32.totalorder %s98, %s114
      %p116 = scmp.eq.s32.totalorder %s22, 0
      %p117 = por %p115, %p116
      %p118 = scmp.le.s32.totalorder 1, %s16
      %p119 = scmp.lt.s32.totalorder %s16, 3
      %p120 = pnand %p118, %p119
      %p121 = pneg %p120
      // Predicated region
      $region9: #{_forward.14} parent=5 // pred_check
        _
      $region10: #{_forward.14} parent=5 // pred_check_branch
        %123 = sbr.rel (%p120) target = $region12
      $region11: #{_forward.14} parent=5 // pred_region
        %s124 = ssub.s32 %s16, 1
        // Predicated region
        $region13: #{_forward.14} parent=11 // pred_check
          %p125 = pneg %p63
        $region14: #{_forward.14} parent=11 // pred_check_branch
          %127 = sbr.rel (%p125) target = $region16
        $region15: #{_forward.14} parent=11 // pred_region
          %s129 = ssub.s32 16, 16
          %130 = vsyncadd [#allocation6], %s129
          %s132 = sshll.u32 [#allocation5], 4
          %s133 = int_to_ptr.vmem [resolvable:$true] %s132
          %135 = dma.hbm_to_vmem [thread:$0]  %s1, 16, %s133, [#allocation6]
        $region16: #{_forward.14} parent=11 // pred_fallthru
          _
        // Predicated region
        $region17: #{_forward.14} parent=11 // pred_check
          %p136 = pneg %p84
        $region18: #{_forward.14} parent=11 // pred_check_branch
          %138 = sbr.rel (%p136) target = $region20
        $region19: #{_forward.14} parent=11 // pred_region
          %s140 = ssub.s32 32, 32
          %141 = vsyncadd [#allocation6], %s140
          %s143 = sshll.u32 [#allocation7], 4
          %s144 = int_to_ptr.vmem [resolvable:$true] %s143
          %146 = dma.hbm_to_vmem [thread:$0]  %s2, 32, %s144, [#allocation6]
        $region20: #{_forward.14} parent=11 // pred_fallthru
          _
      $region12: #{_forward.14} parent=5 // pred_fallthru
        _
      %p147 = scmp.lt.s32.totalorder %s16, 2
      // Predicated region
      $region21: #{_forward.14} parent=5 // pred_check
        %p148 = pneg %p147
      $region22: #{_forward.14} parent=5 // pred_check_branch
        %150 = sbr.rel (%p148) target = $region24
      $region23: #{_forward.14} parent=5 // pred_region
        // Predicated region
        $region25: #{_forward.14} parent=23 // pred_check
          %p151 = pneg %p36
        $region26: #{_forward.14} parent=23 // pred_check_branch
          %153 = sbr.rel (%p151) target = $region28
        $region27: #{_forward.14} parent=23 // pred_region
          %s154 = sand.u32 %s26, 1
          %s155 = scalar_lea.sflag [#allocation3], %s154
          %s156 = sand.u32 %s26, 1
          %s157 = smul.addr %s156, 40
          %s158 = scalar_lea.vmem [#allocation2], %s157
          %s160 = ssub.s32 640, 640
          %161 = vsyncadd %s155, %s160
          %s162 = smul.addr %s16, 10
          %s163 = smul.addr %s162, 64
          %s164 = scalar_lea.hbm %s0, %s163
          %s165 = sshll.u32 %s158, 4
          %s166 = int_to_ptr.vmem [resolvable:$true] %s165
          %171 = dma.hbm_to_vmem [thread:$0]  %s164, 640, %s166, %s155, 128, 128, 8
        $region28: #{_forward.14} parent=23 // pred_fallthru
          _
      $region24: #{_forward.14} parent=5 // pred_fallthru
        _
      %p172 = scmp.le.s32.totalorder 1, %s16
      %p173 = scmp.lt.s32.totalorder %s16, 3
      %p174 = pnand %p172, %p173
      %p175 = pneg %p174
      // Predicated region
      $region29: #{_forward.14} parent=5 // pred_check
        _
      $region30: #{_forward.14} parent=5 // pred_check_branch
        %177 = sbr.rel (%p174) target = $region32
      $region31: #{_forward.14} parent=5 // pred_region
        %s178 = ssub.s32 %s16, 1
        %s179 = sand.u32 %s29, 1
        %s180 = scalar_lea.sflag [#allocation3], %s179
        %s181 = sand.u32 %s29, 1
        %s182 = smul.addr %s181, 40
        %s183 = scalar_lea.vmem [#allocation2], %s182
        // Predicated region
        $region33: #{_forward.14} parent=31 // pred_check
          %p184 = pneg %p42
        $region34: #{_forward.14} parent=31 // pred_check_branch
          %186 = sbr.rel (%p184) target = $region36
        $region35: #{_forward.14} parent=31 // pred_region
          %187 = dma.done %s180, 640
        $region36: #{_forward.14} parent=31 // pred_fallthru
          _
        // Predicated region
        $region37: #{_forward.14} parent=31 // pred_check
          %p188 = pneg %p63
        $region38: #{_forward.14} parent=31 // pred_check_branch
          %190 = sbr.rel (%p188) target = $region40
        $region39: #{_forward.14} parent=31 // pred_region
          %191 = dma.done [#allocation6], 16
        $region40: #{_forward.14} parent=31 // pred_fallthru
          _
        // Predicated region
        $region41: #{_forward.14} parent=31 // pred_check
          %p192 = pneg %p84
        $region42: #{_forward.14} parent=31 // pred_check_branch
          %194 = sbr.rel (%p192) target = $region44
        $region43: #{_forward.14} parent=31 // pred_region
          %195 = dma.done [#allocation6], 32
        $region44: #{_forward.14} parent=31 // pred_fallthru
          _
        %s196 = sand.u32 %s29, 1
        %s197 = scalar_lea.sflag [#allocation3], %s196
        %s198 = sand.u32 %s29, 1
        %s199 = smul.addr %s198, 40
        %s200 = scalar_lea.vmem [#allocation2], %s199
        %p201 = pneg %p42
        %p202 = pneg %p39
        %p203 = pneg %p63
        %p204 = pneg %p60
        %p205 = pneg %p84
        %p206 = pneg %p81
        %p207 = pneg %p110
        %p208 = pneg %p107
        %s209 = sand.u32 %s97, 1
        %s210 = scalar_lea.sflag [#allocation4], %s209
        %s211 = sand.u32 %s97, 1
        %s212 = smul.addr %s211, 2
        %s213 = scalar_lea.vmem [#allocation8], %s212
        %v215 = vld [vmem:[#allocation5] sm:$0x1]
        %v216 = vld [vmem:[%s183] sm:$0xff]
        %v217 = vld [vmem:[%s183 + $0x8] sm:$0xff]
        %v218 = vld [vmem:[%s183 + $0x10] sm:$0xff]
        %v219 = vld [vmem:[%s183 + $0x18] sm:$0xff]
        %v220 = vld [vmem:[%s183 + $0x20] sm:$0x33]
        %v221 = vld [vmem:[#allocation7] sm:$0x3]
        %223 = vset.pattern.permute.xlu0 0
        %224 = vperm.xlu0 %223, %v221
        %v225 = vpop.permute.xlu0 %224
        %v232 = vunpack.c.l.b16 %v216
        %v233 = vunpack.c.h.b16 %v216
        %v234 = vunpack.c.l.b16 %v217
        %v235 = vunpack.c.h.b16 %v217
        %v236 = vunpack.c.l.b16 %v218
        %v237 = vunpack.c.h.b16 %v218
        %v238 = vunpack.c.l.b16 %v219
        %v239 = vunpack.c.h.b16 %v219
        %v240 = vunpack.c.l.b16 %v220
        %v241 = vunpack.c.h.b16 %v220
        %v242 = vpack.c.b16 %v234, %v232
        %v243 = vpack.c.b16 %v235, %v233
        %v244 = vpack.c.b16 %v238, %v236
        %v245 = vpack.c.b16 %v239, %v237
        %v246 = vpack.c.b16 %v240, %v240
        %v247 = vpack.c.b16 %v241, %v241
        %vm252 = vcmask 293888
        %v254 = vsel %vm252, %v215, 0
        %vm256 = vcmask 1041408
        %v258 = vsel %vm256, %v246, 0
        %v261 = vsel %vm256, %v247, 0
        %263 = vmatprep.subr.bf16.mxu0 %v243
        %264 = vmatpush1.bf16.msra.mxu0 %v242
        %265 = vmatprep.subr.bf16.mxu0 %v245
        %266 = vmatpush1.bf16.msra.mxu0 %v244
        %267 = vmatprep.subr.bf16.mxu0 %v261
        %268 = vmatpush1.bf16.msra.mxu0 %v258
        %269 = vmatprep.subr.bf16.mxu0 0
        %270 = vmatpush1.bf16.msra.mxu0 0
        %271 = vmatprep.subr.bf16.mxu0 0
        %272 = vmatpush1.bf16.msra.mxu0 0
        %273 = vmatprep.subr.bf16.mxu0 0
        %274 = vmatpush1.bf16.msra.mxu0 0
        %275 = vmatprep.subr.bf16.mxu0 0
        %276 = vmatpush1.bf16.msra.mxu0 0
        %277 = vmatprep.subr.bf16.mxu0 0
        %278 = vmatpush1.bf16.msra.mxu0 0
        %279 = vmatprep.subr.bf16.mxu0 0
        %280 = vmatpush1.bf16.msra.mxu0 0
        %281 = vmatprep.subr.bf16.mxu0 0
        %282 = vmatpush1.bf16.msra.mxu0 0
        %283 = vmatprep.subr.bf16.mxu0 0
        %284 = vmatpush1.bf16.msra.mxu0 0
        %285 = vmatprep.subr.bf16.mxu0 0
        %286 = vmatpush1.bf16.msra.mxu0 0
        %287 = vmatprep.subr.bf16.mxu0 0
        %288 = vmatpush1.bf16.msra.mxu0 0
        %289 = vmatprep.subr.bf16.mxu0 0
        %290 = vmatpush1.bf16.msra.mxu0 0
        %291 = vmatprep.subr.bf16.mxu0 0
        %292 = vmatpush1.bf16.msra.mxu0 0
        %293 = vmatprep.subr.bf16.mxu0 0
        %294 = vmatpush1.bf16.msra.mxu0 0
        %295 = vmatprep.mubr.bf16.mxu0 0
        %296 = vmatmul.mubr.bf16.gmra.mrb[0].mxu0 %v254
        %v297 = vpop.f32.mrb[0].mxu0
        %v298 = vadd.f32 %v225, %v297
        %v299 = vpop.f32.mrb[0].mxu0
        %v300 = vadd.f32 %v225, %v299
        %v301 = vpop.f32.mrb[0].mxu0
        %v302 = vpop.f32.mrb[0].mxu0
        %303 = vdwg.mxu0
        %vm304 = vcmp.gt.f32.partialorder %v298, 0.0
        %vm305 = vcmp.gt.f32.partialorder %v300, 0.0
        %v306 = vmul.f32 %v298, 0.01
        %v307 = vmul.f32 %v300, 0.01
        %v308 = vsel %vm304, %v298, %v306
        %v309 = vsel %vm305, %v300, %v307
        %v310 = vpack.c.bf16 %v308, %v308
        %v311 = vpack.c.bf16 %v309, %v309
        %v314 = vcombine.low %v310, %v311
        %v316 = vunpack.c.l.s4 1966171168
        %v317 = vunpack.c.0.s8 %v316
        %v318 = vlaneseq
        %v319 = vshrl.u32 %v318, 7
        %v320 = vsub.s32 %v317, %v319
        %v321 = vrot.slane %v314, %v320
        %v323 = vunpack.c.l.s4 1966171168
        %v324 = vunpack.c.0.s8 %v323
        %v325 = vlaneseq
        %v326 = vshrl.u32 %v325, 7
        %v327 = vsub.s32 %v324, %v326
        %v328 = vrot.slane %v321, %v327
        %330 = vst [vmem:[%s213] sm:$0x3] %v328
        %s331 = sand.u32 %s97, 1
        %s332 = scalar_lea.sflag [#allocation4], %s331
        %s333 = sand.u32 %s97, 1
        %s334 = smul.addr %s333, 2
        %s335 = scalar_lea.vmem [#allocation8], %s334
        // Predicated region
        $region45: #{_forward.14} parent=31 // pred_check
          %p336 = pneg %p107
        $region46: #{_forward.14} parent=31 // pred_check_branch
          %338 = sbr.rel (%p336) target = $region48
        $region47: #{_forward.14} parent=31 // pred_region
          %s340 = ssub.s32 32, 32
          %341 = vsyncadd %s332, %s340
          %s342 = smul.addr %s21, 2
          %s343 = smul.addr %s342, 16
          %s344 = scalar_lea.hbm %s3, %s343
          %s346 = sshll.u32 %s335, 4
          %s347 = int_to_ptr.vmem [resolvable:$true] %s346
          %349 = dma.vmem_to_hbm [thread:$0]  %s347, 32, %s344, %s332
        $region48: #{_forward.14} parent=31 // pred_fallthru
          _
      $region32: #{_forward.14} parent=5 // pred_fallthru
        _
      %p350 = scmp.le.s32.totalorder 2, %s16
      // Predicated region
      $region49: #{_forward.14} parent=5 // pred_check
        %p351 = pneg %p350
      $region50: #{_forward.14} parent=5 // pred_check_branch
        %353 = sbr.rel (%p351) target = $region52
      $region51: #{_forward.14} parent=5 // pred_region
        %s354 = ssub.s32 %s16, 2
        // Predicated region
        $region53: #{_forward.14} parent=51 // pred_check
          %p355 = pneg %p113
        $region54: #{_forward.14} parent=51 // pred_check_branch
          %357 = sbr.rel (%p355) target = $region56
        $region55: #{_forward.14} parent=51 // pred_region
          %s358 = sand.u32 %s98, 1
          %s359 = scalar_lea.sflag [#allocation4], %s358
          %s360 = sand.u32 %s98, 1
          %s361 = smul.addr %s360, 2
          %s362 = scalar_lea.vmem [#allocation8], %s361
          %363 = dma.done %s359, 32
        $region56: #{_forward.14} parent=51 // pred_fallthru
          _
      $region52: #{_forward.14} parent=5 // pred_fallthru
        _
    $region6: #{_forward.14} parent=1 // loop_footer
      %s20 = sadd.s32 1, %s16
    $region7: #{_forward.14} parent=1 // loop_footer_branch
      %15 = sbr.rel target = $region3
    $region8: #{_forward.14} parent=1 // loop_exit
      _
    %364 = vsyncpa [#allocation3], 1
    %s365 = scalar_lea.sflag [#allocation3], 1
    %366 = vsyncpa %s365, 1
    %367 = vsyncpa [#allocation6], 1
    %368 = vsyncpa [#allocation4], 1
    %s369 = scalar_lea.sflag [#allocation4], 1
    %370 = vsyncpa %s369, 1

// kernel: _forward.15
$region0: #{_forward.15}
  #allocation0 [shape = 'u32[]', space=smem, size = 0x4, offset = 0x4, fixed_abs, tag = 'smem constant byte address 0x4 - core index']
  #allocation1 [shape = 'u32[144,128]{1,0:T(1,128)}', space=vmem, size = 0x12000, scoped, tag = 'internal scratch']
  #allocation2 [shape = 'f32[1,1]{1,0:T(1,128)S(1)}', space=vmem, size = 0x200, scoped, tag = 'scoped memory for _forward.15']
  %s0 = inlined_call_operand.hbm [shape: bf16[2,18,256], index: 0, kind: input, shape index: {}]
  %s1 = inlined_call_operand.hbm [shape: bf16[1,18], index: 1, kind: input, shape index: {}]
  %s2 = inlined_call_operand.<no memory space> [shape: f32[1,1], index: 2, kind: input, shape index: {}]
  %s3 = inlined_call_operand.hbm [shape: bf16[2,1,256], index: 3, kind: output, shape index: {}]
  %s4 = sld [smem:[#allocation0]]
  $region53: #{_forward.15} parent=0
    _
  %s6 = ssub.s32 1, %s4
  %s7 = scalar_select 0, %s6, %s4
  %v8 = vstv %s2
  %9 = vst [vmem:[#allocation2] sm:$0x1] %v8
  $region1: #{_forward.15} parent=0
    #allocation3 [shape = 'u8[24576]{0}', space=vmem, size = 0x6000, scoped, tag = 'input window, operand 0']
    #allocation4 [shape = 's32[2]{0}', space=sflag, size = 0x8, scoped, tag = 'scoped memory for _forward.15']
    #allocation5 [shape = 's32[2]{0}', space=sflag, size = 0x8, scoped, tag = 'scoped memory for _forward.15']
    #allocation6 [shape = 'u8[512]{0}', space=vmem, size = 0x400, scoped, tag = 'input window, operand 1, single buffered']
    #allocation7 [shape = 's32[1]{0}', space=sflag, size = 0x4, scoped, tag = 'scoped memory for _forward.15']
    #allocation8 [shape = 'u8[2048]{0}', space=vmem, size = 0x800, scoped, tag = 'output window, operand 0']
    %10 = vsyncpa [#allocation4], 0
    %s11 = scalar_lea.sflag [#allocation4], 1
    %12 = vsyncpa %s11, 0
    %13 = vsyncpa [#allocation7], 0
    %14 = vsyncpa [#allocation5], 0
    %s15 = scalar_lea.sflag [#allocation5], 1
    %16 = vsyncpa %s15, 0
    loop: start=0, step=1, limit=4
    $region2: #{_forward.15} parent=1 // loop_pre_header
      _
    $region3: #{_forward.15} parent=1 // loop_header
      %s18 = sphi 0, %s22
      %p19 = scmp.ge.s32.totalorder %s18, 4
      %s28 = sphi 0, %s30
      %s31 = sphi 0, %s28
      %s32 = sphi 0, %s31
      %s48 = sphi 0, %s32
      %s52 = sphi 0, %s52
      %s54 = sphi 0, %s52
      %s55 = sphi 0, %s54
      %s69 = sphi 0, %s55
      %s73 = sphi 0, %s73
      %s75 = sphi 0, %s73
      %s76 = sphi 0, %s75
      %s90 = sphi 0, %s76
      %s96 = sphi 0, %s98
      %s99 = sphi 0, %s96
      %s100 = sphi 0, %s99
      %s116 = sphi 0, %s100
    $region4: #{_forward.15} parent=1 // loop_header_branch
      %21 = sbr.rel (%p19) target = $region8
    $region5: #{_forward.15} parent=1 // loop_body
      %s23 = ssub.s32 %s18, 1
      %s24 = ssub.s32 %s18, 2
      %s25 = sadd.s32 %s18, 1
      %s26 = ssub.s32 %s18, %s25
      %p27 = scmp.eq.s32.totalorder %s26, 0
      %s29 = sadd.s32 %s28, 1
      %s30 = scalar_select %p27, %s28, %s29
      %p33 = pneg %p27
      %p34 = scmp.eq.s32.totalorder %s18, 1
      %p35 = por %p33, %p34
      %p36 = scmp.ne.s32.totalorder %s28, %s31
      %p37 = scmp.eq.s32.totalorder %s18, 0
      %p38 = por %p36, %p37
      %p39 = scmp.ne.s32.totalorder %s28, %s31
      %p40 = scmp.eq.s32.totalorder %s23, 1
      %p41 = por %p39, %p40
      %p42 = scmp.ne.s32.totalorder %s31, %s32
      %p43 = scmp.eq.s32.totalorder %s23, 0
      %p44 = por %p42, %p43
      %p45 = scmp.ne.s32.totalorder %s31, %s32
      %p46 = scmp.eq.s32.totalorder %s24, 1
      %p47 = por %p45, %p46
      %p49 = scmp.ne.s32.totalorder %s32, %s48
      %p50 = scmp.eq.s32.totalorder %s24, 0
      %p51 = por %p49, %p50
      %s53 = sadd.s32 %s52, 1
      %p56 = scmp.eq.s32.totalorder %s18, 1
      %p57 = scmp.ne.s32.totalorder %s52, %s54
      %p58 = scmp.eq.s32.totalorder %s18, 0
      %p59 = por %p57, %p58
      %p60 = scmp.ne.s32.totalorder %s52, %s54
      %p61 = scmp.eq.s32.totalorder %s23, 1
      %p62 = por %p60, %p61
      %p63 = scmp.ne.s32.totalorder %s54, %s55
      %p64 = scmp.eq.s32.totalorder %s23, 0
      %p65 = por %p63, %p64
      %p66 = scmp.ne.s32.totalorder %s54, %s55
      %p67 = scmp.eq.s32.totalorder %s24, 1
      %p68 = por %p66, %p67
      %p70 = scmp.ne.s32.totalorder %s55, %s69
      %p71 = scmp.eq.s32.totalorder %s24, 0
      %p72 = por %p70, %p71
      %s74 = sadd.s32 %s73, 1
      %p77 = scmp.eq.s32.totalorder %s18, 1
      %p78 = scmp.ne.s32.totalorder %s73, %s75
      %p79 = scmp.eq.s32.totalorder %s18, 0
      %p80 = por %p78, %p79
      %p81 = scmp.ne.s32.totalorder %s73, %s75
      %p82 = scmp.eq.s32.totalorder %s23, 1
      %p83 = por %p81, %p82
      %p84 = scmp.ne.s32.totalorder %s75, %s76
      %p85 = scmp.eq.s32.totalorder %s23, 0
      %p86 = por %p84, %p85
      %p87 = scmp.ne.s32.totalorder %s75, %s76
      %p88 = scmp.eq.s32.totalorder %s24, 1
      %p89 = por %p87, %p88
      %p91 = scmp.ne.s32.totalorder %s76, %s90
      %p92 = scmp.eq.s32.totalorder %s24, 0
      %p93 = por %p91, %p92
      %s94 = ssub.s32 %s18, %s25
      %p95 = scmp.eq.s32.totalorder %s94, 0
      %s97 = sadd.s32 %s96, 1
      %s98 = scalar_select %p95, %s96, %s97
      %p101 = pneg %p95
      %p102 = scmp.eq.s32.totalorder %s18, 1
      %p103 = por %p101, %p102
      %p104 = scmp.ne.s32.totalorder %s96, %s99
      %p105 = scmp.eq.s32.totalorder %s18, 0
      %p106 = por %p104, %p105
      %p107 = scmp.ne.s32.totalorder %s96, %s99
      %p108 = scmp.eq.s32.totalorder %s23, 1
      %p109 = por %p107, %p108
      %p110 = scmp.ne.s32.totalorder %s99, %s100
      %p111 = scmp.eq.s32.totalorder %s23, 0
      %p112 = por %p110, %p111
      %p113 = scmp.ne.s32.totalorder %s99, %s100
      %p114 = scmp.eq.s32.totalorder %s24, 1
      %p115 = por %p113, %p114
      %p117 = scmp.ne.s32.totalorder %s100, %s116
      %p118 = scmp.eq.s32.totalorder %s24, 0
      %p119 = por %p117, %p118
      %p120 = scmp.le.s32.totalorder 1, %s18
      %p121 = scmp.lt.s32.totalorder %s18, 3
      %p122 = pnand %p120, %p121
      %p123 = pneg %p122
      // Predicated region
      $region9: #{_forward.15} parent=5 // pred_check
        _
      $region10: #{_forward.15} parent=5 // pred_check_branch
        %125 = sbr.rel (%p122) target = $region12
      $region11: #{_forward.15} parent=5 // pred_region
        %s126 = ssub.s32 %s18, 1
        // Predicated region
        $region13: #{_forward.15} parent=11 // pred_check
          %p127 = pneg %p65
        $region14: #{_forward.15} parent=11 // pred_check_branch
          %129 = sbr.rel (%p127) target = $region16
        $region15: #{_forward.15} parent=11 // pred_region
          %s131 = ssub.s32 16, 16
          %132 = vsyncadd [#allocation7], %s131
          %s134 = sshll.u32 [#allocation6], 4
          %s135 = int_to_ptr.vmem [resolvable:$true] %s134
          %137 = dma.hbm_to_vmem [thread:$0]  %s1, 16, %s135, [#allocation7]
        $region16: #{_forward.15} parent=11 // pred_fallthru
          _
        // Predicated region
        $region17: #{_forward.15} parent=11 // pred_check
          %p138 = pneg %p86
        $region18: #{_forward.15} parent=11 // pred_check_branch
          %140 = sbr.rel (%p138) target = $region20
        $region19: #{_forward.15} parent=11 // pred_region
          _
        $region20: #{_forward.15} parent=11 // pred_fallthru
          _
      $region12: #{_forward.15} parent=5 // pred_fallthru
        _
      %p141 = scmp.lt.s32.totalorder %s18, 2
      // Predicated region
      $region21: #{_forward.15} parent=5 // pred_check
        %p142 = pneg %p141
      $region22: #{_forward.15} parent=5 // pred_check_branch
        %144 = sbr.rel (%p142) target = $region24
      $region23: #{_forward.15} parent=5 // pred_region
        // Predicated region
        $region25: #{_forward.15} parent=23 // pred_check
          %p145 = pneg %p38
        $region26: #{_forward.15} parent=23 // pred_check_branch
          %147 = sbr.rel (%p145) target = $region28
        $region27: #{_forward.15} parent=23 // pred_region
          %s148 = sand.u32 %s28, 1
          %s149 = scalar_lea.sflag [#allocation4], %s148
          %s150 = sand.u32 %s28, 1
          %s151 = smul.addr %s150, 24
          %s152 = scalar_lea.vmem [#allocation3], %s151
          %s154 = ssub.s32 384, 384
          %155 = vsyncadd %s149, %s154
          %s156 = smul.addr %s18, 6
          %s157 = smul.addr %s156, 64
          %s158 = scalar_lea.hbm %s0, %s157
          %s159 = sshll.u32 %s152, 4
          %s160 = int_to_ptr.vmem [resolvable:$true] %s159
          %165 = dma.hbm_to_vmem [thread:$0]  %s158, 384, %s160, %s149, 128, 128, 8
        $region28: #{_forward.15} parent=23 // pred_fallthru
          _
      $region24: #{_forward.15} parent=5 // pred_fallthru
        _
      %p166 = scmp.le.s32.totalorder 1, %s18
      %p167 = scmp.lt.s32.totalorder %s18, 3
      %p168 = pnand %p166, %p167
      %p169 = pneg %p168
      // Predicated region
      $region29: #{_forward.15} parent=5 // pred_check
        _
      $region30: #{_forward.15} parent=5 // pred_check_branch
        %171 = sbr.rel (%p168) target = $region32
      $region31: #{_forward.15} parent=5 // pred_region
        %s172 = ssub.s32 %s18, 1
        %s173 = sand.u32 %s31, 1
        %s174 = scalar_lea.sflag [#allocation4], %s173
        %s175 = sand.u32 %s31, 1
        %s176 = smul.addr %s175, 24
        %s177 = scalar_lea.vmem [#allocation3], %s176
        // Predicated region
        $region33: #{_forward.15} parent=31 // pred_check
          %p178 = pneg %p44
        $region34: #{_forward.15} parent=31 // pred_check_branch
          %180 = sbr.rel (%p178) target = $region36
        $region35: #{_forward.15} parent=31 // pred_region
          %181 = dma.done %s174, 384
        $region36: #{_forward.15} parent=31 // pred_fallthru
          _
        // Predicated region
        $region37: #{_forward.15} parent=31 // pred_check
          %p182 = pneg %p65
        $region38: #{_forward.15} parent=31 // pred_check_branch
          %184 = sbr.rel (%p182) target = $region40
        $region39: #{_forward.15} parent=31 // pred_region
          %185 = dma.done [#allocation7], 16
        $region40: #{_forward.15} parent=31 // pred_fallthru
          _
        %s186 = sand.u32 %s31, 1
        %s187 = scalar_lea.sflag [#allocation4], %s186
        %s188 = sand.u32 %s31, 1
        %s189 = smul.addr %s188, 24
        %s190 = scalar_lea.vmem [#allocation3], %s189
        %p191 = pneg %p44
        %p192 = pneg %p41
        %p193 = pneg %p65
        %p194 = pneg %p62
        %p195 = pneg %p86
        %p196 = pneg %p83
        %p197 = pneg %p112
        %p198 = pneg %p109
        %s199 = sand.u32 %s99, 1
        %s200 = scalar_lea.sflag [#allocation5], %s199
        %s201 = sand.u32 %s99, 1
        %s202 = smul.addr %s201, 2
        %s203 = scalar_lea.vmem [#allocation8], %s202
        %v205 = vld [vmem:[#allocation6] sm:$0x1]
        %v206 = vld [vmem:[%s177] sm:$0xff]
        %v207 = vld [vmem:[%s177 + $0x8] sm:$0xff]
        %v208 = vld [vmem:[%s177 + $0x10] sm:$0x11]
        %v209 = vld [vmem:[#allocation2] sm:$0x1]
        %211 = vset.pattern.permute.xlu0 0
        %212 = vperm.xlu0 %211, %v209
        %v213 = vpop.permute.xlu0 %212
        %v215 = vlaneseq
        %v216 = vshrl.u32 %v215, 7
        %v217 = vsub.s32 0, %v216
        %v218 = vrot.slane %v213, %v217
        %v222 = vunpack.c.l.b16 %v206
        %v223 = vunpack.c.h.b16 %v206
        %v224 = vunpack.c.l.b16 %v207
        %v225 = vunpack.c.h.b16 %v207
        %v226 = vunpack.c.l.b16 %v208
        %v227 = vunpack.c.h.b16 %v208
        %v228 = vpack.c.b16 %v224, %v222
        %v229 = vpack.c.b16 %v225, %v223
        %v230 = vpack.c.b16 %v226, %v226
        %v231 = vpack.c.b16 %v227, %v227
        %vm234 = vcmask 146432
        %v236 = vsel %vm234, %v205, 0
        %vm238 = vcmask 1040384
        %v240 = vsel %vm238, %v230, 0
        %v243 = vsel %vm238, %v231, 0
        %245 = vmatprep.subr.bf16.mxu0 %v229
        %246 = vmatpush1.bf16.msra.mxu0 %v228
        %247 = vmatprep.subr.bf16.mxu0 %v243
        %248 = vmatpush1.bf16.msra.mxu0 %v240
        %249 = vmatprep.subr.bf16.mxu0 0
        %250 = vmatpush1.bf16.msra.mxu0 0
        %251 = vmatprep.subr.bf16.mxu0 0
        %252 = vmatpush1.bf16.msra.mxu0 0
        %253 = vmatprep.subr.bf16.mxu0 0
        %254 = vmatpush1.bf16.msra.mxu0 0
        %255 = vmatprep.subr.bf16.mxu0 0
        %256 = vmatpush1.bf16.msra.mxu0 0
        %257 = vmatprep.subr.bf16.mxu0 0
        %258 = vmatpush1.bf16.msra.mxu0 0
        %259 = vmatprep.subr.bf16.mxu0 0
        %260 = vmatpush1.bf16.msra.mxu0 0
        %261 = vmatprep.subr.bf16.mxu0 0
        %262 = vmatpush1.bf16.msra.mxu0 0
        %263 = vmatprep.subr.bf16.mxu0 0
        %264 = vmatpush1.bf16.msra.mxu0 0
        %265 = vmatprep.subr.bf16.mxu0 0
        %266 = vmatpush1.bf16.msra.mxu0 0
        %267 = vmatprep.subr.bf16.mxu0 0
        %268 = vmatpush1.bf16.msra.mxu0 0
        %269 = vmatprep.subr.bf16.mxu0 0
        %270 = vmatpush1.bf16.msra.mxu0 0
        %271 = vmatprep.subr.bf16.mxu0 0
        %272 = vmatpush1.bf16.msra.mxu0 0
        %273 = vmatprep.subr.bf16.mxu0 0
        %274 = vmatpush1.bf16.msra.mxu0 0
        %275 = vmatprep.subr.bf16.mxu0 0
        %276 = vmatpush1.bf16.msra.mxu0 0
        %277 = vmatprep.mubr.bf16.mxu0 0
        %278 = vmatmul.mubr.bf16.gmra.mrb[0].mxu0 %v236
        %v279 = vpop.f32.mrb[0].mxu0
        %v280 = vadd.f32 %v218, %v279
        %v281 = vpop.f32.mrb[0].mxu0
        %v282 = vadd.f32 %v218, %v281
        %v283 = vpop.f32.mrb[0].mxu0
        %v284 = vpop.f32.mrb[0].mxu0
        %285 = vdwg.mxu0
        %vm286 = vcmp.gt.f32.partialorder %v280, 0.0
        %vm287 = vcmp.gt.f32.partialorder %v282, 0.0
        %v288 = vmul.f32 %v280, 0.01
        %v289 = vmul.f32 %v282, 0.01
        %v290 = vsel %vm286, %v280, %v288
        %v291 = vsel %vm287, %v282, %v289
        %v292 = vpack.c.bf16 %v290, %v290
        %v293 = vpack.c.bf16 %v291, %v291
        %v296 = vcombine.low %v292, %v293
        %v298 = vunpack.c.l.s4 1966171168
        %v299 = vunpack.c.0.s8 %v298
        %v300 = vlaneseq
        %v301 = vshrl.u32 %v300, 7
        %v302 = vsub.s32 %v299, %v301
        %v303 = vrot.slane %v296, %v302
        %v305 = vunpack.c.l.s4 1966171168
        %v306 = vunpack.c.0.s8 %v305
        %v307 = vlaneseq
        %v308 = vshrl.u32 %v307, 7
        %v309 = vsub.s32 %v306, %v308
        %v310 = vrot.slane %v303, %v309
        %vm312 = vcmask 1040384
        %vm313 = vsmask.f32 256
        %vm314 = vmand %vm312, %vm313
        %vm315 = vcmask 1041409
        %vm316 = vsmask.f32 1280
        %vm317 = vmand %vm315, %vm316
        %vm318 = vmor %vm317, %vm314
        %v319 = vld [vmem:[%s203] sm:$0x3]
        %v320 = vsel %vm318, %v310, %v319
        %321 = vst [vmem:[%s203] sm:$0x3] %v320
        %s322 = sand.u32 %s99, 1
        %s323 = scalar_lea.sflag [#allocation5], %s322
        %s324 = sand.u32 %s99, 1
        %s325 = smul.addr %s324, 2
        %s326 = scalar_lea.vmem [#allocation8], %s325
        // Predicated region
        $region41: #{_forward.15} parent=31 // pred_check
          %p327 = pneg %p109
        $region42: #{_forward.15} parent=31 // pred_check_branch
          %329 = sbr.rel (%p327) target = $region44
        $region43: #{_forward.15} parent=31 // pred_region
          %s331 = ssub.s32 32, 32
          %332 = vsyncadd %s323, %s331
          %s333 = smul.addr %s23, 2
          %s334 = smul.addr %s333, 16
          %s335 = scalar_lea.hbm %s3, %s334
          %s337 = sshll.u32 %s326, 4
          %s338 = int_to_ptr.vmem [resolvable:$true] %s337
          %340 = dma.vmem_to_hbm [thread:$0]  %s338, 32, %s335, %s323
        $region44: #{_forward.15} parent=31 // pred_fallthru
          _
      $region32: #{_forward.15} parent=5 // pred_fallthru
        _
      %p341 = scmp.le.s32.totalorder 2, %s18
      // Predicated region
      $region45: #{_forward.15} parent=5 // pred_check
        %p342 = pneg %p341
      $region46: #{_forward.15} parent=5 // pred_check_branch
        %344 = sbr.rel (%p342) target = $region48
      $region47: #{_forward.15} parent=5 // pred_region
        %s345 = ssub.s32 %s18, 2
        // Predicated region
        $region49: #{_forward.15} parent=47 // pred_check
          %p346 = pneg %p115
        $region50: #{_forward.15} parent=47 // pred_check_branch
          %348 = sbr.rel (%p346) target = $region52
        $region51: #{_forward.15} parent=47 // pred_region
          %s349 = sand.u32 %s100, 1
          %s350 = scalar_lea.sflag [#allocation5], %s349
          %s351 = sand.u32 %s100, 1
          %s352 = smul.addr %s351, 2
          %s353 = scalar_lea.vmem [#allocation8], %s352
          %354 = dma.done %s350, 32
        $region52: #{_forward.15} parent=47 // pred_fallthru
          _
      $region48: #{_forward.15} parent=5 // pred_fallthru
        _
    $region6: #{_forward.15} parent=1 // loop_footer
      %s22 = sadd.s32 1, %s18
    $region7: #{_forward.15} parent=1 // loop_footer_branch
      %17 = sbr.rel target = $region3
    $region8: #{_forward.15} parent=1 // loop_exit
      _
    %355 = vsyncpa [#allocation4], 1
    %s356 = scalar_lea.sflag [#allocation4], 1
    %357 = vsyncpa %s356, 1
    %358 = vsyncpa [#allocation7], 1
    %359 = vsyncpa [#allocation5], 1
    %s360 = scalar_lea.sflag [#allocation5], 1
    %361 = vsyncpa %s360, 1

// kernel: _forward.16
$region0: #{_forward.16}
  #allocation0 [shape = 'u32[]', space=smem, size = 0x4, offset = 0x4, fixed_abs, tag = 'smem constant byte address 0x4 - core index']
  #allocation1 [shape = 'u32[144,128]{1,0:T(1,128)}', space=vmem, size = 0x12000, scoped, tag = 'internal scratch']
  #allocation2 [shape = 'f32[1,1]{1,0:T(1,128)S(1)}', space=vmem, size = 0x200, scoped, tag = 'scoped memory for _forward.16']
  %s0 = inlined_call_operand.hbm [shape: bf16[2,9,256], index: 0, kind: input, shape index: {}]
  %s1 = inlined_call_operand.hbm [shape: bf16[1,9], index: 1, kind: input, shape index: {}]
  %s2 = inlined_call_operand.<no memory space> [shape: f32[1,1], index: 2, kind: input, shape index: {}]
  %s3 = inlined_call_operand.hbm [shape: bf16[2,1,256], index: 3, kind: output, shape index: {}]
  %s4 = sld [smem:[#allocation0]]
  $region53: #{_forward.16} parent=0
    _
  %s6 = ssub.s32 1, %s4
  %s7 = scalar_select 0, %s6, %s4
  %v8 = vstv %s2
  %9 = vst [vmem:[#allocation2] sm:$0x1] %v8
  $region1: #{_forward.16} parent=0
    #allocation3 [shape = 'u8[16384]{0}', space=vmem, size = 0x4000, scoped, tag = 'input window, operand 0']
    #allocation4 [shape = 's32[2]{0}', space=sflag, size = 0x8, scoped, tag = 'scoped memory for _forward.16']
    #allocation5 [shape = 's32[2]{0}', space=sflag, size = 0x8, scoped, tag = 'scoped memory for _forward.16']
    #allocation6 [shape = 'u8[512]{0}', space=vmem, size = 0x400, scoped, tag = 'input window, operand 1, single buffered']
    #allocation7 [shape = 's32[1]{0}', space=sflag, size = 0x4, scoped, tag = 'scoped memory for _forward.16']
    #allocation8 [shape = 'u8[2048]{0}', space=vmem, size = 0x800, scoped, tag = 'output window, operand 0']
    %10 = vsyncpa [#allocation4], 0
    %s11 = scalar_lea.sflag [#allocation4], 1
    %12 = vsyncpa %s11, 0
    %13 = vsyncpa [#allocation7], 0
    %14 = vsyncpa [#allocation5], 0
    %s15 = scalar_lea.sflag [#allocation5], 1
    %16 = vsyncpa %s15, 0
    loop: start=0, step=1, limit=4
    $region2: #{_forward.16} parent=1 // loop_pre_header
      _
    $region3: #{_forward.16} parent=1 // loop_header
      %s18 = sphi 0, %s22
      %p19 = scmp.ge.s32.totalorder %s18, 4
      %s28 = sphi 0, %s30
      %s31 = sphi 0, %s28
      %s32 = sphi 0, %s31
      %s48 = sphi 0, %s32
      %s52 = sphi 0, %s52
      %s54 = sphi 0, %s52
      %s55 = sphi 0, %s54
      %s69 = sphi 0, %s55
      %s73 = sphi 0, %s73
      %s75 = sphi 0, %s73
      %s76 = sphi 0, %s75
      %s90 = sphi 0, %s76
      %s96 = sphi 0, %s98
      %s99 = sphi 0, %s96
      %s100 = sphi 0, %s99
      %s116 = sphi 0, %s100
    $region4: #{_forward.16} parent=1 // loop_header_branch
      %21 = sbr.rel (%p19) target = $region8
    $region5: #{_forward.16} parent=1 // loop_body
      %s23 = ssub.s32 %s18, 1
      %s24 = ssub.s32 %s18, 2
      %s25 = sadd.s32 %s18, 1
      %s26 = ssub.s32 %s18, %s25
      %p27 = scmp.eq.s32.totalorder %s26, 0
      %s29 = sadd.s32 %s28, 1
      %s30 = scalar_select %p27, %s28, %s29
      %p33 = pneg %p27
      %p34 = scmp.eq.s32.totalorder %s18, 1
      %p35 = por %p33, %p34
      %p36 = scmp.ne.s32.totalorder %s28, %s31
      %p37 = scmp.eq.s32.totalorder %s18, 0
      %p38 = por %p36, %p37
      %p39 = scmp.ne.s32.totalorder %s28, %s31
      %p40 = scmp.eq.s32.totalorder %s23, 1
      %p41 = por %p39, %p40
      %p42 = scmp.ne.s32.totalorder %s31, %s32
      %p43 = scmp.eq.s32.totalorder %s23, 0
      %p44 = por %p42, %p43
      %p45 = scmp.ne.s32.totalorder %s31, %s32
      %p46 = scmp.eq.s32.totalorder %s24, 1
      %p47 = por %p45, %p46
      %p49 = scmp.ne.s32.totalorder %s32, %s48
      %p50 = scmp.eq.s32.totalorder %s24, 0
      %p51 = por %p49, %p50
      %s53 = sadd.s32 %s52, 1
      %p56 = scmp.eq.s32.totalorder %s18, 1
      %p57 = scmp.ne.s32.totalorder %s52, %s54
      %p58 = scmp.eq.s32.totalorder %s18, 0
      %p59 = por %p57, %p58
      %p60 = scmp.ne.s32.totalorder %s52, %s54
      %p61 = scmp.eq.s32.totalorder %s23, 1
      %p62 = por %p60, %p61
      %p63 = scmp.ne.s32.totalorder %s54, %s55
      %p64 = scmp.eq.s32.totalorder %s23, 0
      %p65 = por %p63, %p64
      %p66 = scmp.ne.s32.totalorder %s54, %s55
      %p67 = scmp.eq.s32.totalorder %s24, 1
      %p68 = por %p66, %p67
      %p70 = scmp.ne.s32.totalorder %s55, %s69
      %p71 = scmp.eq.s32.totalorder %s24, 0
      %p72 = por %p70, %p71
      %s74 = sadd.s32 %s73, 1
      %p77 = scmp.eq.s32.totalorder %s18, 1
      %p78 = scmp.ne.s32.totalorder %s73, %s75
      %p79 = scmp.eq.s32.totalorder %s18, 0
      %p80 = por %p78, %p79
      %p81 = scmp.ne.s32.totalorder %s73, %s75
      %p82 = scmp.eq.s32.totalorder %s23, 1
      %p83 = por %p81, %p82
      %p84 = scmp.ne.s32.totalorder %s75, %s76
      %p85 = scmp.eq.s32.totalorder %s23, 0
      %p86 = por %p84, %p85
      %p87 = scmp.ne.s32.totalorder %s75, %s76
      %p88 = scmp.eq.s32.totalorder %s24, 1
      %p89 = por %p87, %p88
      %p91 = scmp.ne.s32.totalorder %s76, %s90
      %p92 = scmp.eq.s32.totalorder %s24, 0
      %p93 = por %p91, %p92
      %s94 = ssub.s32 %s18, %s25
      %p95 = scmp.eq.s32.totalorder %s94, 0
      %s97 = sadd.s32 %s96, 1
      %s98 = scalar_select %p95, %s96, %s97
      %p101 = pneg %p95
      %p102 = scmp.eq.s32.totalorder %s18, 1
      %p103 = por %p101, %p102
      %p104 = scmp.ne.s32.totalorder %s96, %s99
      %p105 = scmp.eq.s32.totalorder %s18, 0
      %p106 = por %p104, %p105
      %p107 = scmp.ne.s32.totalorder %s96, %s99
      %p108 = scmp.eq.s32.totalorder %s23, 1
      %p109 = por %p107, %p108
      %p110 = scmp.ne.s32.totalorder %s99, %s100
      %p111 = scmp.eq.s32.totalorder %s23, 0
      %p112 = por %p110, %p111
      %p113 = scmp.ne.s32.totalorder %s99, %s100
      %p114 = scmp.eq.s32.totalorder %s24, 1
      %p115 = por %p113, %p114
      %p117 = scmp.ne.s32.totalorder %s100, %s116
      %p118 = scmp.eq.s32.totalorder %s24, 0
      %p119 = por %p117, %p118
      %p120 = scmp.le.s32.totalorder 1, %s18
      %p121 = scmp.lt.s32.totalorder %s18, 3
      %p122 = pnand %p120, %p121
      %p123 = pneg %p122
      // Predicated region
      $region9: #{_forward.16} parent=5 // pred_check
        _
      $region10: #{_forward.16} parent=5 // pred_check_branch
        %125 = sbr.rel (%p122) target = $region12
      $region11: #{_forward.16} parent=5 // pred_region
        %s126 = ssub.s32 %s18, 1
        // Predicated region
        $region13: #{_forward.16} parent=11 // pred_check
          %p127 = pneg %p65
        $region14: #{_forward.16} parent=11 // pred_check_branch
          %129 = sbr.rel (%p127) target = $region16
        $region15: #{_forward.16} parent=11 // pred_region
          %s131 = ssub.s32 16, 16
          %132 = vsyncadd [#allocation7], %s131
          %s134 = sshll.u32 [#allocation6], 4
          %s135 = int_to_ptr.vmem [resolvable:$true] %s134
          %137 = dma.hbm_to_vmem [thread:$0]  %s1, 16, %s135, [#allocation7]
        $region16: #{_forward.16} parent=11 // pred_fallthru
          _
        // Predicated region
        $region17: #{_forward.16} parent=11 // pred_check
          %p138 = pneg %p86
        $region18: #{_forward.16} parent=11 // pred_check_branch
          %140 = sbr.rel (%p138) target = $region20
        $region19: #{_forward.16} parent=11 // pred_region
          _
        $region20: #{_forward.16} parent=11 // pred_fallthru
          _
      $region12: #{_forward.16} parent=5 // pred_fallthru
        _
      %p141 = scmp.lt.s32.totalorder %s18, 2
      // Predicated region
      $region21: #{_forward.16} parent=5 // pred_check
        %p142 = pneg %p141
      $region22: #{_forward.16} parent=5 // pred_check_branch
        %144 = sbr.rel (%p142) target = $region24
      $region23: #{_forward.16} parent=5 // pred_region
        // Predicated region
        $region25: #{_forward.16} parent=23 // pred_check
          %p145 = pneg %p38
        $region26: #{_forward.16} parent=23 // pred_check_branch
          %147 = sbr.rel (%p145) target = $region28
        $region27: #{_forward.16} parent=23 // pred_region
          %s148 = sand.u32 %s28, 1
          %s149 = scalar_lea.sflag [#allocation4], %s148
          %s150 = sand.u32 %s28, 1
          %s151 = smul.addr %s150, 16
          %s152 = scalar_lea.vmem [#allocation3], %s151
          %s154 = ssub.s32 256, 256
          %155 = vsyncadd %s149, %s154
          %s156 = smul.addr %s18, 4
          %s157 = smul.addr %s156, 64
          %s158 = scalar_lea.hbm %s0, %s157
          %s159 = sshll.u32 %s152, 4
          %s160 = int_to_ptr.vmem [resolvable:$true] %s159
          %165 = dma.hbm_to_vmem [thread:$0]  %s158, 256, %s160, %s149, 128, 128, 8
        $region28: #{_forward.16} parent=23 // pred_fallthru
          _
      $region24: #{_forward.16} parent=5 // pred_fallthru
        _
      %p166 = scmp.le.s32.totalorder 1, %s18
      %p167 = scmp.lt.s32.totalorder %s18, 3
      %p168 = pnand %p166, %p167
      %p169 = pneg %p168
      // Predicated region
      $region29: #{_forward.16} parent=5 // pred_check
        _
      $region30: #{_forward.16} parent=5 // pred_check_branch
        %171 = sbr.rel (%p168) target = $region32
      $region31: #{_forward.16} parent=5 // pred_region
        %s172 = ssub.s32 %s18, 1
        %s173 = sand.u32 %s31, 1
        %s174 = scalar_lea.sflag [#allocation4], %s173
        %s175 = sand.u32 %s31, 1
        %s176 = smul.addr %s175, 16
        %s177 = scalar_lea.vmem [#allocation3], %s176
        // Predicated region
        $region33: #{_forward.16} parent=31 // pred_check
          %p178 = pneg %p44
        $region34: #{_forward.16} parent=31 // pred_check_branch
          %180 = sbr.rel (%p178) target = $region36
        $region35: #{_forward.16} parent=31 // pred_region
          %181 = dma.done %s174, 256
        $region36: #{_forward.16} parent=31 // pred_fallthru
          _
        // Predicated region
        $region37: #{_forward.16} parent=31 // pred_check
          %p182 = pneg %p65
        $region38: #{_forward.16} parent=31 // pred_check_branch
          %184 = sbr.rel (%p182) target = $region40
        $region39: #{_forward.16} parent=31 // pred_region
          %185 = dma.done [#allocation7], 16
        $region40: #{_forward.16} parent=31 // pred_fallthru
          _
        %s186 = sand.u32 %s31, 1
        %s187 = scalar_lea.sflag [#allocation4], %s186
        %s188 = sand.u32 %s31, 1
        %s189 = smul.addr %s188, 16
        %s190 = scalar_lea.vmem [#allocation3], %s189
        %p191 = pneg %p44
        %p192 = pneg %p41
        %p193 = pneg %p65
        %p194 = pneg %p62
        %p195 = pneg %p86
        %p196 = pneg %p83
        %p197 = pneg %p112
        %p198 = pneg %p109
        %s199 = sand.u32 %s99, 1
        %s200 = scalar_lea.sflag [#allocation5], %s199
        %s201 = sand.u32 %s99, 1
        %s202 = smul.addr %s201, 2
        %s203 = scalar_lea.vmem [#allocation8], %s202
        %v205 = vld [vmem:[#allocation6] sm:$0x1]
        %v206 = vld [vmem:[%s177] sm:$0xff]
        %v207 = vld [vmem:[%s177 + $0x8] sm:$0x11]
        %v208 = vld [vmem:[#allocation2] sm:$0x1]
        %210 = vset.pattern.permute.xlu0 0
        %211 = vperm.xlu0 %210, %v208
        %v212 = vpop.permute.xlu0 %211
        %v214 = vlaneseq
        %v215 = vshrl.u32 %v214, 7
        %v216 = vsub.s32 0, %v215
        %v217 = vrot.slane %v212, %v216
        %v220 = vunpack.c.l.b16 %v206
        %v221 = vunpack.c.h.b16 %v206
        %v222 = vunpack.c.l.b16 %v207
        %v223 = vunpack.c.h.b16 %v207
        %v224 = vpack.c.b16 %v222, %v220
        %v225 = vpack.c.b16 %v223, %v221
        %vm226 = vcmask 72704
        %v228 = vsel %vm226, %v205, 0
        %vm230 = vcmask 1043456
        %vm231 = vcmask 1044480
        %v232 = vsel %vm230, 4294967295, 65535
        %v233 = vsel %vm231, %v232, 0
        %v235 = vand.u32 %v224, %v233
        %v238 = vand.u32 %v225, %v233
        %240 = vmatprep.subr.bf16.mxu0 %v238
        %241 = vmatpush1.bf16.msra.mxu0 %v235
        %242 = vmatprep.subr.bf16.mxu0 0
        %243 = vmatpush1.bf16.msra.mxu0 0
        %244 = vmatprep.subr.bf16.mxu0 0
        %245 = vmatpush1.bf16.msra.mxu0 0
        %246 = vmatprep.subr.bf16.mxu0 0
        %247 = vmatpush1.bf16.msra.mxu0 0
        %248 = vmatprep.subr.bf16.mxu0 0
        %249 = vmatpush1.bf16.msra.mxu0 0
        %250 = vmatprep.subr.bf16.mxu0 0
        %251 = vmatpush1.bf16.msra.mxu0 0
        %252 = vmatprep.subr.bf16.mxu0 0
        %253 = vmatpush1.bf16.msra.mxu0 0
        %254 = vmatprep.subr.bf16.mxu0 0
        %255 = vmatpush1.bf16.msra.mxu0 0
        %256 = vmatprep.subr.bf16.mxu0 0
        %257 = vmatpush1.bf16.msra.mxu0 0
        %258 = vmatprep.subr.bf16.mxu0 0
        %259 = vmatpush1.bf16.msra.mxu0 0
        %260 = vmatprep.subr.bf16.mxu0 0
        %261 = vmatpush1.bf16.msra.mxu0 0
        %262 = vmatprep.subr.bf16.mxu0 0
        %263 = vmatpush1.bf16.msra.mxu0 0
        %264 = vmatprep.subr.bf16.mxu0 0
        %265 = vmatpush1.bf16.msra.mxu0 0
        %266 = vmatprep.subr.bf16.mxu0 0
        %267 = vmatpush1.bf16.msra.mxu0 0
        %268 = vmatprep.subr.bf16.mxu0 0
        %269 = vmatpush1.bf16.msra.mxu0 0
        %270 = vmatprep.subr.bf16.mxu0 0
        %271 = vmatpush1.bf16.msra.mxu0 0
        %272 = vmatprep.mubr.bf16.mxu0 0
        %273 = vmatmul.mubr.bf16.gmra.mrb[0].mxu0 %v228
        %v274 = vpop.f32.mrb[0].mxu0
        %v275 = vadd.f32 %v217, %v274
        %v276 = vpop.f32.mrb[0].mxu0
        %v277 = vadd.f32 %v217, %v276
        %v278 = vpop.f32.mrb[0].mxu0
        %v279 = vpop.f32.mrb[0].mxu0
        %280 = vdwg.mxu0
        %vm281 = vcmp.gt.f32.partialorder %v275, 0.0
        %vm282 = vcmp.gt.f32.partialorder %v277, 0.0
        %v283 = vmul.f32 %v275, 0.01
        %v284 = vmul.f32 %v277, 0.01
        %v285 = vsel %vm281, %v275, %v283
        %v286 = vsel %vm282, %v277, %v284
        %v287 = vpack.c.bf16 %v285, %v285
        %v288 = vpack.c.bf16 %v286, %v286
        %v291 = vcombine.low %v287, %v288
        %v293 = vunpack.c.l.s4 1966171168
        %v294 = vunpack.c.0.s8 %v293
        %v295 = vlaneseq
        %v296 = vshrl.u32 %v295, 7
        %v297 = vsub.s32 %v294, %v296
        %v298 = vrot.slane %v291, %v297
        %v300 = vunpack.c.l.s4 1966171168
        %v301 = vunpack.c.0.s8 %v300
        %v302 = vlaneseq
        %v303 = vshrl.u32 %v302, 7
        %v304 = vsub.s32 %v301, %v303
        %v305 = vrot.slane %v298, %v304
        %vm307 = vcmask 1040384
        %vm308 = vsmask.f32 256
        %vm309 = vmand %vm307, %vm308
        %vm310 = vcmask 1041409
        %vm311 = vsmask.f32 1280
        %vm312 = vmand %vm310, %vm311
        %vm313 = vmor %vm312, %vm309
        %v314 = vld [vmem:[%s203] sm:$0x3]
        %v315 = vsel %vm313, %v305, %v314
        %316 = vst [vmem:[%s203] sm:$0x3] %v315
        %s317 = sand.u32 %s99, 1
        %s318 = scalar_lea.sflag [#allocation5], %s317
        %s319 = sand.u32 %s99, 1
        %s320 = smul.addr %s319, 2
        %s321 = scalar_lea.vmem [#allocation8], %s320
        // Predicated region
        $region41: #{_forward.16} parent=31 // pred_check
          %p322 = pneg %p109
        $region42: #{_forward.16} parent=31 // pred_check_branch
          %324 = sbr.rel (%p322) target = $region44
        $region43: #{_forward.16} parent=31 // pred_region
          %s326 = ssub.s32 32, 32
          %327 = vsyncadd %s318, %s326
          %s328 = smul.addr %s23, 2
          %s329 = smul.addr %s328, 16
          %s330 = scalar_lea.hbm %s3, %s329
          %s332 = sshll.u32 %s321, 4
          %s333 = int_to_ptr.vmem [resolvable:$true] %s332
          %335 = dma.vmem_to_hbm [thread:$0]  %s333, 32, %s330, %s318
        $region44: #{_forward.16} parent=31 // pred_fallthru
          _
      $region32: #{_forward.16} parent=5 // pred_fallthru
        _
      %p336 = scmp.le.s32.totalorder 2, %s18
      // Predicated region
      $region45: #{_forward.16} parent=5 // pred_check
        %p337 = pneg %p336
      $region46: #{_forward.16} parent=5 // pred_check_branch
        %339 = sbr.rel (%p337) target = $region48
      $region47: #{_forward.16} parent=5 // pred_region
        %s340 = ssub.s32 %s18, 2
        // Predicated region
        $region49: #{_forward.16} parent=47 // pred_check
          %p341 = pneg %p115
        $region50: #{_forward.16} parent=47 // pred_check_branch
          %343 = sbr.rel (%p341) target = $region52
        $region51: #{_forward.16} parent=47 // pred_region
          %s344 = sand.u32 %s100, 1
          %s345 = scalar_lea.sflag [#allocation5], %s344
          %s346 = sand.u32 %s100, 1
          %s347 = smul.addr %s346, 2
          %s348 = scalar_lea.vmem [#allocation8], %s347
          %349 = dma.done %s345, 32
        $region52: #{_forward.16} parent=47 // pred_fallthru
          _
      $region48: #{_forward.16} parent=5 // pred_fallthru
        _
    $region6: #{_forward.16} parent=1 // loop_footer
      %s22 = sadd.s32 1, %s18
    $region7: #{_forward.16} parent=1 // loop_footer_branch
      %17 = sbr.rel target = $region3
    $region8: #{_forward.16} parent=1 // loop_exit
      _
    %350 = vsyncpa [#allocation4], 1
    %s351 = scalar_lea.sflag [#allocation4], 1
    %352 = vsyncpa %s351, 1
    %353 = vsyncpa [#allocation7], 1
    %354 = vsyncpa [#allocation5], 1
    %s355 = scalar_lea.sflag [#allocation5], 1
    %356 = vsyncpa %s355, 1

// kernel: _forward.17
$region0: #{_forward.17}
  #allocation0 [shape = 'u32[]', space=smem, size = 0x4, offset = 0x4, fixed_abs, tag = 'smem constant byte address 0x4 - core index']
  #allocation1 [shape = 'u32[144,128]{1,0:T(1,128)}', space=vmem, size = 0x12000, scoped, tag = 'internal scratch']
  #allocation2 [shape = 'f32[1,1]{1,0:T(1,128)S(1)}', space=vmem, size = 0x200, scoped, tag = 'scoped memory for _forward.17']
  #allocation3 [shape = 'f32[1,1]{1,0:T(1,128)S(1)}', space=vmem, size = 0x200, scoped, tag = 'scoped memory for _forward.17']
  %s0 = inlined_call_operand.hbm [shape: bf16[2,64,256], index: 0, kind: input, shape index: {}]
  %s1 = inlined_call_operand.hbm [shape: bf16[2,32,256], index: 1, kind: input, shape index: {}]
  %s2 = inlined_call_operand.hbm [shape: bf16[2,16,256], index: 2, kind: input, shape index: {}]
  %s3 = inlined_call_operand.hbm [shape: bf16[2,16,256], index: 3, kind: input, shape index: {}]
  %s4 = inlined_call_operand.hbm [shape: bf16[128,128], index: 4, kind: input, shape index: {}]
  %s5 = inlined_call_operand.hbm [shape: f32[128,1], index: 5, kind: input, shape index: {}]
  %s6 = inlined_call_operand.hbm [shape: bf16[128,128], index: 6, kind: input, shape index: {}]
  %s7 = inlined_call_operand.hbm [shape: f32[128,1], index: 7, kind: input, shape index: {}]
  %s8 = inlined_call_operand.hbm [shape: bf16[1,128], index: 8, kind: input, shape index: {}]
  %s9 = inlined_call_operand.<no memory space> [shape: f32[1,1], index: 9, kind: input, shape index: {}]
  %s10 = inlined_call_operand.hbm [shape: bf16[1,128], index: 10, kind: input, shape index: {}]
  %s11 = inlined_call_operand.<no memory space> [shape: f32[1,1], index: 11, kind: input, shape index: {}]
  %s12 = inlined_call_operand.hbm [shape: f32[2,1,256], index: 12, kind: output, shape index: {}]
  %s13 = sld [smem:[#allocation0]]
  $region121: #{_forward.17} parent=0
    _
  %s15 = ssub.s32 1, %s13
  %s16 = scalar_select 0, %s15, %s13
  %v17 = vstv %s9
  %18 = vst [vmem:[#allocation2] sm:$0x1] %v17
  %v19 = vstv %s11
  %20 = vst [vmem:[#allocation3] sm:$0x1] %v19
  $region1: #{_forward.17} parent=0
    #allocation4 [shape = 'u8[65536]{0}', space=vmem, size = 0x10000, scoped, tag = 'input window, operand 0']
    #allocation5 [shape = 's32[2]{0}', space=sflag, size = 0x8, scoped, tag = 'scoped memory for _forward.17']
    #allocation6 [shape = 's32[2]{0}', space=sflag, size = 0x8, scoped, tag = 'scoped memory for _forward.17']
    #allocation7 [shape = 'u8[32768]{0}', space=vmem, size = 0x8000, scoped, tag = 'input window, operand 1']
    #allocation8 [shape = 's32[2]{0}', space=sflag, size = 0x8, scoped, tag = 'scoped memory for _forward.17']
    #allocation9 [shape = 'u8[16384]{0}', space=vmem, size = 0x4000, scoped, tag = 'input window, operand 2']
    #allocation10 [shape = 'u8[16384]{0}', space=vmem, size = 0x4000, scoped, tag = 'input window, operand 3']
    #allocation11 [shape = 's32[2]{0}', space=sflag, size = 0x8, scoped, tag = 'scoped memory for _forward.17']
    #allocation12 [shape = 'u8[32768]{0}', space=vmem, size = 0x8000, scoped, tag = 'input window, operand 4, single buffered']
    #allocation13 [shape = 'u8[65536]{0}', space=vmem, size = 0x10000, scoped, tag = 'input window, operand 5, single buffered']
    #allocation14 [shape = 's32[1]{0}', space=sflag, size = 0x4, scoped, tag = 'scoped memory for _forward.17']
    #allocation15 [shape = 'u8[32768]{0}', space=vmem, size = 0x8000, scoped, tag = 'input window, operand 6, single buffered']
    #allocation16 [shape = 'u8[65536]{0}', space=vmem, size = 0x10000, scoped, tag = 'input window, operand 7, single buffered']
    #allocation17 [shape = 's32[1]{0}', space=sflag, size = 0x4, scoped, tag = 'scoped memory for _forward.17']
    #allocation18 [shape = 'u8[512]{0}', space=vmem, size = 0x400, scoped, tag = 'input window, operand 8, single buffered']
    #allocation19 [shape = 'u8[512]{0}', space=vmem, size = 0x400, scoped, tag = 'input window, operand 10, single buffered']
    #allocation20 [shape = 's32[1]{0}', space=sflag, size = 0x4, scoped, tag = 'scoped memory for _forward.17']
    #allocation21 [shape = 'u8[2048]{0}', space=vmem, size = 0x800, scoped, tag = 'output window, operand 0']
    %21 = vsyncpa [#allocation5], 0
    %s22 = scalar_lea.sflag [#allocation5], 1
    %23 = vsyncpa %s22, 0
    %24 = vsyncpa [#allocation8], 0
    %s25 = scalar_lea.sflag [#allocation8], 1
    %26 = vsyncpa %s25, 0
    %27 = vsyncpa [#allocation11], 0
    %s28 = scalar_lea.sflag [#allocation11], 1
    %29 = vsyncpa %s28, 0
    %30 = vsyncpa [#allocation14], 0
    %31 = vsyncpa [#allocation17], 0
    %32 = vsyncpa [#allocation20], 0
    %33 = vsyncpa [#allocation6], 0
    %s34 = scalar_lea.sflag [#allocation6], 1
    %35 = vsyncpa %s34, 0
    loop: start=0, step=1, limit=4
    $region2: #{_forward.17} parent=1 // loop_pre_header
      _
    $region3: #{_forward.17} parent=1 // loop_header
      %s37 = sphi 0, %s41
      %p38 = scmp.ge.s32.totalorder %s37, 4
      %s44 = sphi 0, %s56
      %s45 = sphi 0, %s52
      %s46 = sphi 0, %s44
      %s47 = sphi 0, %s45
      %s48 = sphi 0, %s46
      %s49 = sphi 0, %s47
      %s61 = sphi 0, %s63
      %s64 = sphi 0, %s61
      %s65 = sphi 0, %s64
      %s81 = sphi 0, %s65
      %s89 = sphi 0, %s91
      %s92 = sphi 0, %s89
      %s93 = sphi 0, %s92
      %s109 = sphi 0, %s93
      %s117 = sphi 0, %s119
      %s120 = sphi 0, %s117
      %s121 = sphi 0, %s120
      %s137 = sphi 0, %s121
      %s145 = sphi 0, %s147
      %s148 = sphi 0, %s145
      %s149 = sphi 0, %s148
      %s165 = sphi 0, %s149
      %s169 = sphi 0, %s169
      %s171 = sphi 0, %s169
      %s172 = sphi 0, %s171
      %s186 = sphi 0, %s172
      %s190 = sphi 0, %s190
      %s192 = sphi 0, %s190
      %s193 = sphi 0, %s192
      %s207 = sphi 0, %s193
      %s211 = sphi 0, %s211
      %s213 = sphi 0, %s211
      %s214 = sphi 0, %s213
      %s228 = sphi 0, %s214
      %s232 = sphi 0, %s232
      %s234 = sphi 0, %s232
      %s235 = sphi 0, %s234
      %s249 = sphi 0, %s235
      %s253 = sphi 0, %s253
      %s255 = sphi 0, %s253
      %s256 = sphi 0, %s255
      %s270 = sphi 0, %s256
      %s274 = sphi 0, %s274
      %s276 = sphi 0, %s274
      %s277 = sphi 0, %s276
      %s291 = sphi 0, %s277
      %s295 = sphi 0, %s295
      %s297 = sphi 0, %s295
      %s298 = sphi 0, %s297
      %s312 = sphi 0, %s298
      %s316 = sphi 0, %s316
      %s318 = sphi 0, %s316
      %s319 = sphi 0, %s318
      %s333 = sphi 0, %s319
      %s341 = sphi 0, %s343
      %s344 = sphi 0, %s341
      %s345 = sphi 0, %s344
      %s361 = sphi 0, %s345
    $region4: #{_forward.17} parent=1 // loop_header_branch
      %40 = sbr.rel (%p38) target = $region8
    $region5: #{_forward.17} parent=1 // loop_body
      %s42 = ssub.s32 %s37, 1
      %s43 = ssub.s32 %s37, 2
      %s50 = sadd.s32 1, %s45
      %p51 = scmp.ge.s32.totalorder %s50, 1
      %s52 = scalar_select %p51, 0, %s50
      %s53 = sadd.s32 1, %s44
      %s54 = scalar_select %p51, %s53, %s44
      %p55 = scmp.ge.s32.totalorder %s54, 2
      %s56 = scalar_select %p55, 0, %s54
      %s57 = ssub.s32 %s44, %s56
      %s58 = ssub.s32 %s45, %s52
      %s59 = sor.u32 %s57, %s58
      %p60 = scmp.eq.s32.totalorder %s59, 0
      %s62 = sadd.s32 %s61, 1
      %s63 = scalar_select %p60, %s61, %s62
      %p66 = pneg %p60
      %p67 = scmp.eq.s32.totalorder %s37, 1
      %p68 = por %p66, %p67
      %p69 = scmp.ne.s32.totalorder %s61, %s64
      %p70 = scmp.eq.s32.totalorder %s37, 0
      %p71 = por %p69, %p70
      %p72 = scmp.ne.s32.totalorder %s61, %s64
      %p73 = scmp.eq.s32.totalorder %s42, 1
      %p74 = por %p72, %p73
      %p75 = scmp.ne.s32.totalorder %s64, %s65
      %p76 = scmp.eq.s32.totalorder %s42, 0
      %p77 = por %p75, %p76
      %p78 = scmp.ne.s32.totalorder %s64, %s65
      %p79 = scmp.eq.s32.totalorder %s43, 1
      %p80 = por %p78, %p79
      %p82 = scmp.ne.s32.totalorder %s65, %s81
      %p83 = scmp.eq.s32.totalorder %s43, 0
      %p84 = por %p82, %p83
      %s85 = ssub.s32 %s44, %s56
      %s86 = ssub.s32 %s45, %s52
      %s87 = sor.u32 %s85, %s86
      %p88 = scmp.eq.s32.totalorder %s87, 0
      %s90 = sadd.s32 %s89, 1
      %s91 = scalar_select %p88, %s89, %s90
      %p94 = pneg %p88
      %p95 = scmp.eq.s32.totalorder %s37, 1
      %p96 = por %p94, %p95
      %p97 = scmp.ne.s32.totalorder %s89, %s92
      %p98 = scmp.eq.s32.totalorder %s37, 0
      %p99 = por %p97, %p98
      %p100 = scmp.ne.s32.totalorder %s89, %s92
      %p101 = scmp.eq.s32.totalorder %s42, 1
      %p102 = por %p100, %p101
      %p103 = scmp.ne.s32.totalorder %s92, %s93
      %p104 = scmp.eq.s32.totalorder %s42, 0
      %p105 = por %p103, %p104
      %p106 = scmp.ne.s32.totalorder %s92, %s93
      %p107 = scmp.eq.s32.totalorder %s43, 1
      %p108 = por %p106, %p107
      %p110 = scmp.ne.s32.totalorder %s93, %s109
      %p111 = scmp.eq.s32.totalorder %s43, 0
      %p112 = por %p110, %p111
      %s113 = ssub.s32 %s44, %s56
      %s114 = ssub.s32 %s45, %s52
      %s115 = sor.u32 %s113, %s114
      %p116 = scmp.eq.s32.totalorder %s115, 0
      %s118 = sadd.s32 %s117, 1
      %s119 = scalar_select %p116, %s117, %s118
      %p122 = pneg %p116
      %p123 = scmp.eq.s32.totalorder %s37, 1
      %p124 = por %p122, %p123
      %p125 = scmp.ne.s32.totalorder %s117, %s120
      %p126 = scmp.eq.s32.totalorder %s37, 0
      %p127 = por %p125, %p126
      %p128 = scmp.ne.s32.totalorder %s117, %s120
      %p129 = scmp.eq.s32.totalorder %s42, 1
      %p130 = por %p128, %p129
      %p131 = scmp.ne.s32.totalorder %s120, %s121
      %p132 = scmp.eq.s32.totalorder %s42, 0
      %p133 = por %p131, %p132
      %p134 = scmp.ne.s32.totalorder %s120, %s121
      %p135 = scmp.eq.s32.totalorder %s43, 1
      %p136 = por %p134, %p135
      %p138 = scmp.ne.s32.totalorder %s121, %s137
      %p139 = scmp.eq.s32.totalorder %s43, 0
      %p140 = por %p138, %p139
      %s141 = ssub.s32 %s44, %s56
      %s142 = ssub.s32 %s45, %s52
      %s143 = sor.u32 %s141, %s142
      %p144 = scmp.eq.s32.totalorder %s143, 0
      %s146 = sadd.s32 %s145, 1
      %s147 = scalar_select %p144, %s145, %s146
      %p150 = pneg %p144
      %p151 = scmp.eq.s32.totalorder %s37, 1
      %p152 = por %p150, %p151
      %p153 = scmp.ne.s32.totalorder %s145, %s148
      %p154 = scmp.eq.s32.totalorder %s37, 0
      %p155 = por %p153, %p154
      %p156 = scmp.ne.s32.totalorder %s145, %s148
      %p157 = scmp.eq.s32.totalorder %s42, 1
      %p158 = por %p156, %p157
      %p159 = scmp.ne.s32.totalorder %s148, %s149
      %p160 = scmp.eq.s32.totalorder %s42, 0
      %p161 = por %p159, %p160
      %p162 = scmp.ne.s32.totalorder %s148, %s149
      %p163 = scmp.eq.s32.totalorder %s43, 1
      %p164 = por %p162, %p163
      %p166 = scmp.ne.s32.totalorder %s149, %s165
      %p167 = scmp.eq.s32.totalorder %s43, 0
      %p168 = por %p166, %p167
      %s170 = sadd.s32 %s169, 1
      %p173 = scmp.eq.s32.totalorder %s37, 1
      %p174 = scmp.ne.s32.totalorder %s169, %s171
      %p175 = scmp.eq.s32.totalorder %s37, 0
      %p176 = por %p174, %p175
      %p177 = scmp.ne.s32.totalorder %s169, %s171
      %p178 = scmp.eq.s32.totalorder %s42, 1
      %p179 = por %p177, %p178
      %p180 = scmp.ne.s32.totalorder %s171, %s172
      %p181 = scmp.eq.s32.totalorder %s42, 0
      %p182 = por %p180, %p181
      %p183 = scmp.ne.s32.totalorder %s171, %s172
      %p184 = scmp.eq.s32.totalorder %s43, 1
      %p185 = por %p183, %p184
      %p187 = scmp.ne.s32.totalorder %s172, %s186
      %p188 = scmp.eq.s32.totalorder %s43, 0
      %p189 = por %p187, %p188
      %s191 = sadd.s32 %s190, 1
      %p194 = scmp.eq.s32.totalorder %s37, 1
      %p195 = scmp.ne.s32.totalorder %s190, %s192
      %p196 = scmp.eq.s32.totalorder %s37, 0
      %p197 = por %p195, %p196
      %p198 = scmp.ne.s32.totalorder %s190, %s192
      %p199 = scmp.eq.s32.totalorder %s42, 1
      %p200 = por %p198, %p199
      %p201 = scmp.ne.s32.totalorder %s192, %s193
      %p202 = scmp.eq.s32.totalorder %s42, 0
      %p203 = por %p201, %p202
      %p204 = scmp.ne.s32.totalorder %s192, %s193
      %p205 = scmp.eq.s32.totalorder %s43, 1
      %p206 = por %p204, %p205
      %p208 = scmp.ne.s32.totalorder %s193, %s207
      %p209 = scmp.eq.s32.totalorder %s43, 0
      %p210 = por %p208, %p209
      %s212 = sadd.s32 %s211, 1
      %p215 = scmp.eq.s32.totalorder %s37, 1
      %p216 = scmp.ne.s32.totalorder %s211, %s213
      %p217 = scmp.eq.s32.totalorder %s37, 0
      %p218 = por %p216, %p217
      %p219 = scmp.ne.s32.totalorder %s211, %s213
      %p220 = scmp.eq.s32.totalorder %s42, 1
      %p221 = por %p219, %p220
      %p222 = scmp.ne.s32.totalorder %s213, %s214
      %p223 = scmp.eq.s32.totalorder %s42, 0
      %p224 = por %p222, %p223
      %p225 = scmp.ne.s32.totalorder %s213, %s214
      %p226 = scmp.eq.s32.totalorder %s43, 1
      %p227 = por %p225, %p226
      %p229 = scmp.ne.s32.totalorder %s214, %s228
      %p230 = scmp.eq.s32.totalorder %s43, 0
      %p231 = por %p229, %p230
      %s233 = sadd.s32 %s232, 1
      %p236 = scmp.eq.s32.totalorder %s37, 1
      %p237 = scmp.ne.s32.totalorder %s232, %s234
      %p238 = scmp.eq.s32.totalorder %s37, 0
      %p239 = por %p237, %p238
      %p240 = scmp.ne.s32.totalorder %s232, %s234
      %p241 = scmp.eq.s32.totalorder %s42, 1
      %p242 = por %p240, %p241
      %p243 = scmp.ne.s32.totalorder %s234, %s235
      %p244 = scmp.eq.s32.totalorder %s42, 0
      %p245 = por %p243, %p244
      %p246 = scmp.ne.s32.totalorder %s234, %s235
      %p247 = scmp.eq.s32.totalorder %s43, 1
      %p248 = por %p246, %p247
      %p250 = scmp.ne.s32.totalorder %s235, %s249
      %p251 = scmp.eq.s32.totalorder %s43, 0
      %p252 = por %p250, %p251
      %s254 = sadd.s32 %s253, 1
      %p257 = scmp.eq.s32.totalorder %s37, 1
      %p258 = scmp.ne.s32.totalorder %s253, %s255
      %p259 = scmp.eq.s32.totalorder %s37, 0
      %p260 = por %p258, %p259
      %p261 = scmp.ne.s32.totalorder %s253, %s255
      %p262 = scmp.eq.s32.totalorder %s42, 1
      %p263 = por %p261, %p262
      %p264 = scmp.ne.s32.totalorder %s255, %s256
      %p265 = scmp.eq.s32.totalorder %s42, 0
      %p266 = por %p264, %p265
      %p267 = scmp.ne.s32.totalorder %s255, %s256
      %p268 = scmp.eq.s32.totalorder %s43, 1
      %p269 = por %p267, %p268
      %p271 = scmp.ne.s32.totalorder %s256, %s270
      %p272 = scmp.eq.s32.totalorder %s43, 0
      %p273 = por %p271, %p272
      %s275 = sadd.s32 %s274, 1
      %p278 = scmp.eq.s32.totalorder %s37, 1
      %p279 = scmp.ne.s32.totalorder %s274, %s276
      %p280 = scmp.eq.s32.totalorder %s37, 0
      %p281 = por %p279, %p280
      %p282 = scmp.ne.s32.totalorder %s274, %s276
      %p283 = scmp.eq.s32.totalorder %s42, 1
      %p284 = por %p282, %p283
      %p285 = scmp.ne.s32.totalorder %s276, %s277
      %p286 = scmp.eq.s32.totalorder %s42, 0
      %p287 = por %p285, %p286
      %p288 = scmp.ne.s32.totalorder %s276, %s277
      %p289 = scmp.eq.s32.totalorder %s43, 1
      %p290 = por %p288, %p289
      %p292 = scmp.ne.s32.totalorder %s277, %s291
      %p293 = scmp.eq.s32.totalorder %s43, 0
      %p294 = por %p292, %p293
      %s296 = sadd.s32 %s295, 1
      %p299 = scmp.eq.s32.totalorder %s37, 1
      %p300 = scmp.ne.s32.totalorder %s295, %s297
      %p301 = scmp.eq.s32.totalorder %s37, 0
      %p302 = por %p300, %p301
      %p303 = scmp.ne.s32.totalorder %s295, %s297
      %p304 = scmp.eq.s32.totalorder %s42, 1
      %p305 = por %p303, %p304
      %p306 = scmp.ne.s32.totalorder %s297, %s298
      %p307 = scmp.eq.s32.totalorder %s42, 0
      %p308 = por %p306, %p307
      %p309 = scmp.ne.s32.totalorder %s297, %s298
      %p310 = scmp.eq.s32.totalorder %s43, 1
      %p311 = por %p309, %p310
      %p313 = scmp.ne.s32.totalorder %s298, %s312
      %p314 = scmp.eq.s32.totalorder %s43, 0
      %p315 = por %p313, %p314
      %s317 = sadd.s32 %s316, 1
      %p320 = scmp.eq.s32.totalorder %s37, 1
      %p321 = scmp.ne.s32.totalorder %s316, %s318
      %p322 = scmp.eq.s32.totalorder %s37, 0
      %p323 = por %p321, %p322
      %p324 = scmp.ne.s32.totalorder %s316, %s318
      %p325 = scmp.eq.s32.totalorder %s42, 1
      %p326 = por %p324, %p325
      %p327 = scmp.ne.s32.totalorder %s318, %s319
      %p328 = scmp.eq.s32.totalorder %s42, 0
      %p329 = por %p327, %p328
      %p330 = scmp.ne.s32.totalorder %s318, %s319
      %p331 = scmp.eq.s32.totalorder %s43, 1
      %p332 = por %p330, %p331
      %p334 = scmp.ne.s32.totalorder %s319, %s333
      %p335 = scmp.eq.s32.totalorder %s43, 0
      %p336 = por %p334, %p335
      %s337 = ssub.s32 %s44, %s56
      %s338 = ssub.s32 %s45, %s52
      %s339 = sor.u32 %s337, %s338
      %p340 = scmp.eq.s32.totalorder %s339, 0
      %s342 = sadd.s32 %s341, 1
      %s343 = scalar_select %p340, %s341, %s342
      %p346 = pneg %p340
      %p347 = scmp.eq.s32.totalorder %s37, 1
      %p348 = por %p346, %p347
      %p349 = scmp.ne.s32.totalorder %s341, %s344
      %p350 = scmp.eq.s32.totalorder %s37, 0
      %p351 = por %p349, %p350
      %p352 = scmp.ne.s32.totalorder %s341, %s344
      %p353 = scmp.eq.s32.totalorder %s42, 1
      %p354 = por %p352, %p353
      %p355 = scmp.ne.s32.totalorder %s344, %s345
      %p356 = scmp.eq.s32.totalorder %s42, 0
      %p357 = por %p355, %p356
      %p358 = scmp.ne.s32.totalorder %s344, %s345
      %p359 = scmp.eq.s32.totalorder %s43, 1
      %p360 = por %p358, %p359
      %p362 = scmp.ne.s32.totalorder %s345, %s361
      %p363 = scmp.eq.s32.totalorder %s43, 0
      %p364 = por %p362, %p363
      %p365 = scmp.le.s32.totalorder 1, %s37
      %p366 = scmp.lt.s32.totalorder %s37, 3
      %p367 = pnand %p365, %p366
      %p368 = pneg %p367
      // Predicated region
      $region9: #{_forward.17} parent=5 // pred_check
        _
      $region10: #{_forward.17} parent=5 // pred_check_branch
        %370 = sbr.rel (%p367) target = $region12
      $region11: #{_forward.17} parent=5 // pred_region
        %s371 = ssub.s32 %s37, 1
        // Predicated region
        $region13: #{_forward.17} parent=11 // pred_check
          %p372 = pneg %p182
        $region14: #{_forward.17} parent=11 // pred_check_branch
          %374 = sbr.rel (%p372) target = $region16
        $region15: #{_forward.17} parent=11 // pred_region
          %s376 = ssub.s32 1024, 1024
          %377 = vsyncadd [#allocation11], %s376
          %s378 = sshll.u32 [#allocation12], 4
          %s379 = int_to_ptr.vmem [resolvable:$true] %s378
          %384 = dma.hbm_to_vmem [thread:$0]  %s4, 1024, %s379, [#allocation11], 64, 64, 4
        $region16: #{_forward.17} parent=11 // pred_fallthru
          _
        // Predicated region
        $region17: #{_forward.17} parent=11 // pred_check
          %p385 = pneg %p203
        $region18: #{_forward.17} parent=11 // pred_check_branch
          %387 = sbr.rel (%p385) target = $region20
        $region19: #{_forward.17} parent=11 // pred_region
          %s389 = ssub.s32 2048, 2048
          %390 = vsyncadd [#allocation14], %s389
          %s391 = sshll.u32 [#allocation13], 4
          %s392 = int_to_ptr.vmem [resolvable:$true] %s391
          %397 = dma.hbm_to_vmem [thread:$0]  %s5, 2048, %s392, [#allocation14], 128, 128, 8
        $region20: #{_forward.17} parent=11 // pred_fallthru
          _
        // Predicated region
        $region21: #{_forward.17} parent=11 // pred_check
          %p398 = pneg %p224
        $region22: #{_forward.17} parent=11 // pred_check_branch
          %400 = sbr.rel (%p398) target = $region24
        $region23: #{_forward.17} parent=11 // pred_region
          %s402 = ssub.s32 1024, 1024
          %403 = vsyncadd [#allocation14], %s402
          %s404 = sshll.u32 [#allocation15], 4
          %s405 = int_to_ptr.vmem [resolvable:$true] %s404
          %410 = dma.hbm_to_vmem [thread:$0]  %s6, 1024, %s405, [#allocation14], 64, 64, 4
        $region24: #{_forward.17} parent=11 // pred_fallthru
          _
        // Predicated region
        $region25: #{_forward.17} parent=11 // pred_check
          %p411 = pneg %p245
        $region26: #{_forward.17} parent=11 // pred_check_branch
          %413 = sbr.rel (%p411) target = $region28
        $region27: #{_forward.17} parent=11 // pred_region
          %s415 = ssub.s32 2048, 2048
          %416 = vsyncadd [#allocation17], %s415
          %s417 = sshll.u32 [#allocation16], 4
          %s418 = int_to_ptr.vmem [resolvable:$true] %s417
          %423 = dma.hbm_to_vmem [thread:$0]  %s7, 2048, %s418, [#allocation17], 128, 128, 8
        $region28: #{_forward.17} parent=11 // pred_fallthru
          _
        // Predicated region
        $region29: #{_forward.17} parent=11 // pred_check
          %p424 = pneg %p266
        $region30: #{_forward.17} parent=11 // pred_check_branch
          %426 = sbr.rel (%p424) target = $region32
        $region31: #{_forward.17} parent=11 // pred_region
          %s428 = ssub.s32 16, 16
          %429 = vsyncadd [#allocation17], %s428
          %s431 = sshll.u32 [#allocation18], 4
          %s432 = int_to_ptr.vmem [resolvable:$true] %s431
          %434 = dma.hbm_to_vmem [thread:$0]  %s8, 16, %s432, [#allocation17]
        $region32: #{_forward.17} parent=11 // pred_fallthru
          _
        // Predicated region
        $region33: #{_forward.17} parent=11 // pred_check
          %p435 = pneg %p287
        $region34: #{_forward.17} parent=11 // pred_check_branch
          %437 = sbr.rel (%p435) target = $region36
        $region35: #{_forward.17} parent=11 // pred_region
          _
        $region36: #{_forward.17} parent=11 // pred_fallthru
          _
        // Predicated region
        $region37: #{_forward.17} parent=11 // pred_check
          %p438 = pneg %p308
        $region38: #{_forward.17} parent=11 // pred_check_branch
          %440 = sbr.rel (%p438) target = $region40
        $region39: #{_forward.17} parent=11 // pred_region
          %s442 = ssub.s32 16, 16
          %443 = vsyncadd [#allocation20], %s442
          %s445 = sshll.u32 [#allocation19], 4
          %s446 = int_to_ptr.vmem [resolvable:$true] %s445
          %448 = dma.hbm_to_vmem [thread:$0]  %s10, 16, %s446, [#allocation20]
        $region40: #{_forward.17} parent=11 // pred_fallthru
          _
        // Predicated region
        $region41: #{_forward.17} parent=11 // pred_check
          %p449 = pneg %p329
        $region42: #{_forward.17} parent=11 // pred_check_branch
          %451 = sbr.rel (%p449) target = $region44
        $region43: #{_forward.17} parent=11 // pred_region
          _
        $region44: #{_forward.17} parent=11 // pred_fallthru
          _
      $region12: #{_forward.17} parent=5 // pred_fallthru
        _
      %p452 = scmp.lt.s32.totalorder %s37, 2
      // Predicated region
      $region45: #{_forward.17} parent=5 // pred_check
        %p453 = pneg %p452
      $region46: #{_forward.17} parent=5 // pred_check_branch
        %455 = sbr.rel (%p453) target = $region48
      $region47: #{_forward.17} parent=5 // pred_region
        // Predicated region
        $region49: #{_forward.17} parent=47 // pred_check
          %p456 = pneg %p71
        $region50: #{_forward.17} parent=47 // pred_check_branch
          %458 = sbr.rel (%p456) target = $region52
        $region51: #{_forward.17} parent=47 // pred_region
          %s459 = sand.u32 %s61, 1
          %s460 = scalar_lea.sflag [#allocation5], %s459
          %s461 = sand.u32 %s61, 1
          %s462 = smul.addr %s461, 64
          %s463 = scalar_lea.vmem [#allocation4], %s462
          %s464 = smul.u32 2, %s45
          %s466 = ssub.s32 1024, 1024
          %467 = vsyncadd %s460, %s466
          %s468 = smul.addr %s44, 16
          %s469 = sadd.s32 %s464, %s468
          %s470 = smul.addr %s469, 64
          %s471 = scalar_lea.hbm %s0, %s470
          %s472 = sshll.u32 %s463, 4
          %s473 = int_to_ptr.vmem [resolvable:$true] %s472
          %478 = dma.hbm_to_vmem [thread:$0]  %s471, 1024, %s473, %s460, 128, 128, 8
        $region52: #{_forward.17} parent=47 // pred_fallthru
          _
        // Predicated region
        $region53: #{_forward.17} parent=47 // pred_check
          %p479 = pneg %p99
        $region54: #{_forward.17} parent=47 // pred_check_branch
          %481 = sbr.rel (%p479) target = $region56
        $region55: #{_forward.17} parent=47 // pred_region
          %s482 = sand.u32 %s37, 1
          %s483 = scalar_lea.sflag [#allocation8], %s482
          %s484 = sand.u32 %s89, 1
          %s485 = smul.addr %s484, 32
          %s486 = scalar_lea.vmem [#allocation7], %s485
          %s487 = smul.u32 2, %s45
          %s489 = ssub.s32 512, 512
          %490 = vsyncadd %s483, %s489
          %s491 = smul.addr %s44, 8
          %s492 = sadd.s32 %s487, %s491
          %s493 = smul.addr %s492, 64
          %s494 = scalar_lea.hbm %s1, %s493
          %s495 = sshll.u32 %s486, 4
          %s496 = int_to_ptr.vmem [resolvable:$true] %s495
          %501 = dma.hbm_to_vmem [thread:$0]  %s494, 512, %s496, %s483, 128, 128, 8
        $region56: #{_forward.17} parent=47 // pred_fallthru
          _
        // Predicated region
        $region57: #{_forward.17} parent=47 // pred_check
          %p502 = pneg %p127
        $region58: #{_forward.17} parent=47 // pred_check_branch
          %504 = sbr.rel (%p502) target = $region60
        $region59: #{_forward.17} parent=47 // pred_region
          %s505 = sand.u32 %s37, 1
          %s506 = scalar_lea.sflag [#allocation8], %s505
          %s507 = sand.u32 %s117, 1
          %s508 = smul.addr %s507, 16
          %s509 = scalar_lea.vmem [#allocation9], %s508
          %s510 = smul.u32 2, %s45
          %s512 = ssub.s32 256, 256
          %513 = vsyncadd %s506, %s512
          %s514 = smul.addr %s44, 4
          %s515 = sadd.s32 %s510, %s514
          %s516 = smul.addr %s515, 64
          %s517 = scalar_lea.hbm %s2, %s516
          %s518 = sshll.u32 %s509, 4
          %s519 = int_to_ptr.vmem [resolvable:$true] %s518
          %524 = dma.hbm_to_vmem [thread:$0]  %s517, 256, %s519, %s506, 128, 128, 8
        $region60: #{_forward.17} parent=47 // pred_fallthru
          _
        // Predicated region
        $region61: #{_forward.17} parent=47 // pred_check
          %p525 = pneg %p155
        $region62: #{_forward.17} parent=47 // pred_check_branch
          %527 = sbr.rel (%p525) target = $region64
        $region63: #{_forward.17} parent=47 // pred_region
          %s528 = sand.u32 %s37, 1
          %s529 = scalar_lea.sflag [#allocation11], %s528
          %s530 = sand.u32 %s145, 1
          %s531 = smul.addr %s530, 16
          %s532 = scalar_lea.vmem [#allocation10], %s531
          %s533 = smul.u32 2, %s45
          %s535 = ssub.s32 256, 256
          %536 = vsyncadd %s529, %s535
          %s537 = smul.addr %s44, 4
          %s538 = sadd.s32 %s533, %s537
          %s539 = smul.addr %s538, 64
          %s540 = scalar_lea.hbm %s3, %s539
          %s541 = sshll.u32 %s532, 4
          %s542 = int_to_ptr.vmem [resolvable:$true] %s541
          %547 = dma.hbm_to_vmem [thread:$0]  %s540, 256, %s542, %s529, 128, 128, 8
        $region64: #{_forward.17} parent=47 // pred_fallthru
          _
      $region48: #{_forward.17} parent=5 // pred_fallthru
        _
      %p548 = scmp.le.s32.totalorder 1, %s37
      %p549 = scmp.lt.s32.totalorder %s37, 3
      %p550 = pnand %p548, %p549
      %p551 = pneg %p550
      // Predicated region
      $region65: #{_forward.17} parent=5 // pred_check
        _
      $region66: #{_forward.17} parent=5 // pred_check_branch
        %553 = sbr.rel (%p550) target = $region68
      $region67: #{_forward.17} parent=5 // pred_region
        %s554 = ssub.s32 %s37, 1
        %s555 = sand.u32 %s64, 1
        %s556 = scalar_lea.sflag [#allocation5], %s555
        %s557 = sand.u32 %s64, 1
        %s558 = smul.addr %s557, 64
        %s559 = scalar_lea.vmem [#allocation4], %s558
        // Predicated region
        $region69: #{_forward.17} parent=67 // pred_check
          %p560 = pneg %p77
        $region70: #{_forward.17} parent=67 // pred_check_branch
          %562 = sbr.rel (%p560) target = $region72
        $region71: #{_forward.17} parent=67 // pred_region
          %563 = dma.done %s556, 1024
        $region72: #{_forward.17} parent=67 // pred_fallthru
          _
        %s564 = sand.u32 %s42, 1
        %s565 = scalar_lea.sflag [#allocation8], %s564
        %s566 = sand.u32 %s92, 1
        %s567 = smul.addr %s566, 32
        %s568 = scalar_lea.vmem [#allocation7], %s567
        // Predicated region
        $region73: #{_forward.17} parent=67 // pred_check
          %p569 = pneg %p105
        $region74: #{_forward.17} parent=67 // pred_check_branch
          %571 = sbr.rel (%p569) target = $region76
        $region75: #{_forward.17} parent=67 // pred_region
          %572 = dma.done %s565, 512
        $region76: #{_forward.17} parent=67 // pred_fallthru
          _
        %s573 = sand.u32 %s42, 1
        %s574 = scalar_lea.sflag [#allocation8], %s573
        %s575 = sand.u32 %s120, 1
        %s576 = smul.addr %s575, 16
        %s577 = scalar_lea.vmem [#allocation9], %s576
        // Predicated region
        $region77: #{_forward.17} parent=67 // pred_check
          %p578 = pneg %p133
        $region78: #{_forward.17} parent=67 // pred_check_branch
          %580 = sbr.rel (%p578) target = $region80
        $region79: #{_forward.17} parent=67 // pred_region
          %581 = dma.done %s574, 256
        $region80: #{_forward.17} parent=67 // pred_fallthru
          _
        %s582 = sand.u32 %s42, 1
        %s583 = scalar_lea.sflag [#allocation11], %s582
        %s584 = sand.u32 %s148, 1
        %s585 = smul.addr %s584, 16
        %s586 = scalar_lea.vmem [#allocation10], %s585
        // Predicated region
        $region81: #{_forward.17} parent=67 // pred_check
          %p587 = pneg %p161
        $region82: #{_forward.17} parent=67 // pred_check_branch
          %589 = sbr.rel (%p587) target = $region84
        $region83: #{_forward.17} parent=67 // pred_region
          %590 = dma.done %s583, 256
        $region84: #{_forward.17} parent=67 // pred_fallthru
          _
        // Predicated region
        $region85: #{_forward.17} parent=67 // pred_check
          %p591 = pneg %p182
        $region86: #{_forward.17} parent=67 // pred_check_branch
          %593 = sbr.rel (%p591) target = $region88
        $region87: #{_forward.17} parent=67 // pred_region
          %594 = dma.done [#allocation11], 1024
        $region88: #{_forward.17} parent=67 // pred_fallthru
          _
        // Predicated region
        $region89: #{_forward.17} parent=67 // pred_check
          %p595 = pneg %p203
        $region90: #{_forward.17} parent=67 // pred_check_branch
          %597 = sbr.rel (%p595) target = $region92
        $region91: #{_forward.17} parent=67 // pred_region
          %598 = dma.done [#allocation14], 2048
        $region92: #{_forward.17} parent=67 // pred_fallthru
          _
        // Predicated region
        $region93: #{_forward.17} parent=67 // pred_check
          %p599 = pneg %p224
        $region94: #{_forward.17} parent=67 // pred_check_branch
          %601 = sbr.rel (%p599) target = $region96
        $region95: #{_forward.17} parent=67 // pred_region
          %602 = dma.done [#allocation14], 1024
        $region96: #{_forward.17} parent=67 // pred_fallthru
          _
        // Predicated region
        $region97: #{_forward.17} parent=67 // pred_check
          %p603 = pneg %p245
        $region98: #{_forward.17} parent=67 // pred_check_branch
          %605 = sbr.rel (%p603) target = $region100
        $region99: #{_forward.17} parent=67 // pred_region
          %606 = dma.done [#allocation17], 2048
        $region100: #{_forward.17} parent=67 // pred_fallthru
          _
        // Predicated region
        $region101: #{_forward.17} parent=67 // pred_check
          %p607 = pneg %p266
        $region102: #{_forward.17} parent=67 // pred_check_branch
          %609 = sbr.rel (%p607) target = $region104
        $region103: #{_forward.17} parent=67 // pred_region
          %610 = dma.done [#allocation17], 16
        $region104: #{_forward.17} parent=67 // pred_fallthru
          _
        // Predicated region
        $region105: #{_forward.17} parent=67 // pred_check
          %p611 = pneg %p308
        $region106: #{_forward.17} parent=67 // pred_check_branch
          %613 = sbr.rel (%p611) target = $region108
        $region107: #{_forward.17} parent=67 // pred_region
          %614 = dma.done [#allocation20], 16
        $region108: #{_forward.17} parent=67 // pred_fallthru
          _
        %s615 = sand.u32 %s64, 1
        %s616 = scalar_lea.sflag [#allocation5], %s615
        %s617 = sand.u32 %s64, 1
        %s618 = smul.addr %s617, 64
        %s619 = scalar_lea.vmem [#allocation4], %s618
        %p620 = pneg %p77
        %p621 = pneg %p74
        %s622 = sand.u32 %s42, 1
        %s623 = scalar_lea.sflag [#allocation8], %s622
        %s624 = sand.u32 %s92, 1
        %s625 = smul.addr %s624, 32
        %s626 = scalar_lea.vmem [#allocation7], %s625
        %p627 = pneg %p105
        %p628 = pneg %p102
        %s629 = sand.u32 %s42, 1
        %s630 = scalar_lea.sflag [#allocation8], %s629
        %s631 = sand.u32 %s120, 1
        %s632 = smul.addr %s631, 16
        %s633 = scalar_lea.vmem [#allocation9], %s632
        %p634 = pneg %p133
        %p635 = pneg %p130
        %s636 = sand.u32 %s42, 1
        %s637 = scalar_lea.sflag [#allocation11], %s636
        %s638 = sand.u32 %s148, 1
        %s639 = smul.addr %s638, 16
        %s640 = scalar_lea.vmem [#allocation10], %s639
        %p641 = pneg %p161
        %p642 = pneg %p158
        %p643 = pneg %p182
        %p644 = pneg %p179
        %p645 = pneg %p203
        %p646 = pneg %p200
        %p647 = pneg %p224
        %p648 = pneg %p221
        %p649 = pneg %p245
        %p650 = pneg %p242
        %p651 = pneg %p266
        %p652 = pneg %p263
        %p653 = pneg %p287
        %p654 = pneg %p284
        %p655 = pneg %p308
        %p656 = pneg %p305
        %p657 = pneg %p329
        %p658 = pneg %p326
        %p659 = pneg %p357
        %p660 = pneg %p354
        %s661 = sand.u32 %s344, 1
        %s662 = scalar_lea.sflag [#allocation6], %s661
        %s663 = sand.u32 %s344, 1
        %s664 = smul.addr %s663, 2
        %s665 = scalar_lea.vmem [#allocation21], %s664
        %s666 = smul.u32 2, %s47
        %s667 = smul.u32 2, %s47
        %s668 = smul.u32 2, %s47
        %s669 = smul.u32 2, %s47
        %s670 = smul.u32 2, %s47
        %v672 = vld [vmem:[#allocation13] sm:$0xff]
        %v673 = vld [vmem:[#allocation13 + $0x8] sm:$0xff]
        %v674 = vld [vmem:[#allocation13 + $0x10] sm:$0xff]
        %v675 = vld [vmem:[#allocation13 + $0x18] sm:$0xff]
        %v676 = vld [vmem:[#allocation13 + $0x20] sm:$0xff]
        %v677 = vld [vmem:[#allocation13 + $0x28] sm:$0xff]
        %v678 = vld [vmem:[#allocation13 + $0x30] sm:$0xff]
        %v679 = vld [vmem:[#allocation13 + $0x38] sm:$0xff]
        %v680 = vld [vmem:[#allocation13 + $0x40] sm:$0xff]
        %v681 = vld [vmem:[#allocation13 + $0x48] sm:$0xff]
        %v682 = vld [vmem:[#allocation13 + $0x50] sm:$0xff]
        %v683 = vld [vmem:[#allocation13 + $0x58] sm:$0xff]
        %v684 = vld [vmem:[#allocation13 + $0x60] sm:$0xff]
        %v685 = vld [vmem:[#allocation13 + $0x68] sm:$0xff]
        %v686 = vld [vmem:[#allocation13 + $0x70] sm:$0xff]
        %v687 = vld [vmem:[#allocation13 + $0x78] sm:$0xff]
        %v688 = vld [vmem:[#allocation12] sm:$0xf]
        %v689 = vld [vmem:[#allocation12 + $0x4] sm:$0xf]
        %v690 = vld [vmem:[#allocation12 + $0x8] sm:$0xf]
        %v691 = vld [vmem:[#allocation12 + $0xc] sm:$0xf]
        %v692 = vld [vmem:[#allocation12 + $0x10] sm:$0xf]
        %v693 = vld [vmem:[#allocation12 + $0x14] sm:$0xf]
        %v694 = vld [vmem:[#allocation12 + $0x18] sm:$0xf]
        %v695 = vld [vmem:[#allocation12 + $0x1c] sm:$0xf]
        %v696 = vld [vmem:[#allocation12 + $0x20] sm:$0xf]
        %v697 = vld [vmem:[#allocation12 + $0x24] sm:$0xf]
        %v698 = vld [vmem:[#allocation12 + $0x28] sm:$0xf]
        %v699 = vld [vmem:[#allocation12 + $0x2c] sm:$0xf]
        %v700 = vld [vmem:[#allocation12 + $0x30] sm:$0xf]
        %v701 = vld [vmem:[#allocation12 + $0x34] sm:$0xf]
        %v702 = vld [vmem:[#allocation12 + $0x38] sm:$0xf]
        %v703 = vld [vmem:[#allocation12 + $0x3c] sm:$0xf]
        %v704 = vld [vmem:[%s559] sm:$0xff]
        %v705 = vld [vmem:[%s559 + $0x8] sm:$0xff]
        %v706 = vld [vmem:[%s559 + $0x10] sm:$0xff]
        %v707 = vld [vmem:[%s559 + $0x18] sm:$0xff]
        %v708 = vld [vmem:[%s559 + $0x20] sm:$0xff]
        %v709 = vld [vmem:[%s559 + $0x28] sm:$0xff]
        %v710 = vld [vmem:[%s559 + $0x30] sm:$0xff]
        %v711 = vld [vmem:[%s559 + $0x38] sm:$0xff]
        %v728 = vunpack.c.l.b16 %v688
        %v729 = vunpack.c.l.b16 %v689
        %v730 = vunpack.c.l.b16 %v690
        %v731 = vunpack.c.l.b16 %v691
        %v732 = vunpack.c.l.b16 %v692
        %v733 = vunpack.c.l.b16 %v693
        %v734 = vunpack.c.l.b16 %v694
        %v735 = vunpack.c.l.b16 %v695
        %v736 = vunpack.c.l.b16 %v696
        %v737 = vunpack.c.l.b16 %v697
        %v738 = vunpack.c.l.b16 %v698
        %v739 = vunpack.c.l.b16 %v699
        %v740 = vunpack.c.l.b16 %v700
        %v741 = vunpack.c.l.b16 %v701
        %v742 = vunpack.c.l.b16 %v702
        %v743 = vunpack.c.l.b16 %v703
        %v744 = vpack.c.b16 %v729, %v728
        %v745 = vpack.c.b16 %v731, %v730
        %v746 = vpack.c.b16 %v733, %v732
        %v747 = vpack.c.b16 %v735, %v734
        %v748 = vpack.c.b16 %v737, %v736
        %v749 = vpack.c.b16 %v739, %v738
        %v750 = vpack.c.b16 %v741, %v740
        %v751 = vpack.c.b16 %v743, %v742
        %v760 = vunpack.c.l.b16 %v704
        %v761 = vunpack.c.h.b16 %v704
        %v762 = vunpack.c.l.b16 %v705
        %v763 = vunpack.c.h.b16 %v705
        %v764 = vunpack.c.l.b16 %v706
        %v765 = vunpack.c.h.b16 %v706
        %v766 = vunpack.c.l.b16 %v707
        %v767 = vunpack.c.h.b16 %v707
        %v768 = vunpack.c.l.b16 %v708
        %v769 = vunpack.c.h.b16 %v708
        %v770 = vunpack.c.l.b16 %v709
        %v771 = vunpack.c.h.b16 %v709
        %v772 = vunpack.c.l.b16 %v710
        %v773 = vunpack.c.h.b16 %v710
        %v774 = vunpack.c.l.b16 %v711
        %v775 = vunpack.c.h.b16 %v711
        %v776 = vpack.c.b16 %v762, %v760
        %v777 = vpack.c.b16 %v763, %v761
        %v778 = vpack.c.b16 %v766, %v764
        %v779 = vpack.c.b16 %v767, %v765
        %v780 = vpack.c.b16 %v770, %v768
        %v781 = vpack.c.b16 %v771, %v769
        %v782 = vpack.c.b16 %v774, %v772
        %v783 = vpack.c.b16 %v775, %v773
        %vm792 = vcmask 523264
        %v794 = vsel %vm792, %v744, 0
        %v797 = vsel %vm792, %v745, 0
        %v800 = vsel %vm792, %v746, 0
        %v803 = vsel %vm792, %v747, 0
        %v806 = vsel %vm792, %v748, 0
        %v809 = vsel %vm792, %v749, 0
        %v812 = vsel %vm792, %v750, 0
        %v815 = vsel %vm792, %v751, 0
        %817 = vmatprep.subr.bf16.mxu0 %v777
        %818 = vmatpush1.bf16.msra.mxu0 %v776
        %819 = vmatprep.subr.bf16.mxu0 %v779
        %820 = vmatpush1.bf16.msra.mxu0 %v778
        %821 = vmatprep.subr.bf16.mxu0 %v781
        %822 = vmatpush1.bf16.msra.mxu0 %v780
        %823 = vmatprep.subr.bf16.mxu0 %v783
        %824 = vmatpush1.bf16.msra.mxu0 %v782
        %825 = vmatprep.subr.bf16.mxu0 0
        %826 = vmatpush1.bf16.msra.mxu0 0
        %827 = vmatprep.subr.bf16.mxu0 0
        %828 = vmatpush1.bf16.msra.mxu0 0
        %829 = vmatprep.subr.bf16.mxu0 0
        %830 = vmatpush1.bf16.msra.mxu0 0
        %831 = vmatprep.subr.bf16.mxu0 0
        %832 = vmatpush1.bf16.msra.mxu0 0
        %833 = vmatprep.subr.bf16.mxu0 0
        %834 = vmatpush1.bf16.msra.mxu0 0
        %835 = vmatprep.subr.bf16.mxu0 0
        %836 = vmatpush1.bf16.msra.mxu0 0
        %837 = vmatprep.subr.bf16.mxu0 0
        %838 = vmatpush1.bf16.msra.mxu0 0
        %839 = vmatprep.subr.bf16.mxu0 0
        %840 = vmatpush1.bf16.msra.mxu0 0
        %841 = vmatprep.subr.bf16.mxu0 0
        %842 = vmatpush1.bf16.msra.mxu0 0
        %843 = vmatprep.subr.bf16.mxu0 0
        %844 = vmatpush1.bf16.msra.mxu0 0
        %845 = vmatprep.subr.bf16.mxu0 0
        %846 = vmatpush1.bf16.msra.mxu0 0
        %847 = vmatprep.subr.bf16.mxu0 0
        %848 = vmatpush1.bf16.msra.mxu0 0
        %849 = vmatprep.mubr.bf16.mxu0 0
        %850 = vmatmul.mubr.bf16.gmra.mrb[0].mxu0 %v794
        %v851 = vpop.f32.mrb[0].mxu0
        %v852 = vadd.f32 0.0, %v851
        %v853 = vpop.f32.mrb[0].mxu0
        %v854 = vadd.f32 0.0, %v853
        %v855 = vpop.f32.mrb[0].mxu0
        %v856 = vadd.f32 0.0, %v855
        %v857 = vpop.f32.mrb[0].mxu0
        %v858 = vadd.f32 0.0, %v857
        %859 = vmatprep.mubr.bf16.mxu0 0
        %860 = vmatmul.mubr.bf16.gmra.mrb[0].mxu0 %v797
        %v861 = vpop.f32.mrb[0].mxu0
        %v862 = vadd.f32 0.0, %v861
        %v863 = vpop.f32.mrb[0].mxu0
        %v864 = vadd.f32 0.0, %v863
        %v865 = vpop.f32.mrb[0].mxu0
        %v866 = vadd.f32 0.0, %v865
        %v867 = vpop.f32.mrb[0].mxu0
        %v868 = vadd.f32 0.0, %v867
        %869 = vmatprep.mubr.bf16.mxu0 0
        %870 = vmatmul.mubr.bf16.gmra.mrb[0].mxu0 %v800
        %v871 = vpop.f32.mrb[0].mxu0
        %v872 = vadd.f32 0.0, %v871
        %v873 = vpop.f32.mrb[0].mxu0
        %v874 = vadd.f32 0.0, %v873
        %v875 = vpop.f32.mrb[0].mxu0
        %v876 = vadd.f32 0.0, %v875
        %v877 = vpop.f32.mrb[0].mxu0
        %v878 = vadd.f32 0.0, %v877
        %879 = vmatprep.mubr.bf16.mxu0 0
        %880 = vmatmul.mubr.bf16.gmra.mrb[0].mxu0 %v803
        %v881 = vpop.f32.mrb[0].mxu0
        %v882 = vadd.f32 0.0, %v881
        %v883 = vpop.f32.mrb[0].mxu0
        %v884 = vadd.f32 0.0, %v883
        %v885 = vpop.f32.mrb[0].mxu0
        %v886 = vadd.f32 0.0, %v885
        %v887 = vpop.f32.mrb[0].mxu0
        %v888 = vadd.f32 0.0, %v887
        %889 = vmatprep.mubr.bf16.mxu0 0
        %890 = vmatmul.mubr.bf16.gmra.mrb[0].mxu0 %v806
        %v891 = vpop.f32.mrb[0].mxu0
        %v892 = vadd.f32 0.0, %v891
        %v893 = vpop.f32.mrb[0].mxu0
        %v894 = vadd.f32 0.0, %v893
        %v895 = vpop.f32.mrb[0].mxu0
        %v896 = vadd.f32 0.0, %v895
        %v897 = vpop.f32.mrb[0].mxu0
        %v898 = vadd.f32 0.0, %v897
        %899 = vmatprep.mubr.bf16.mxu0 0
        %900 = vmatmul.mubr.bf16.gmra.mrb[0].mxu0 %v809
        %v901 = vpop.f32.mrb[0].mxu0
        %v902 = vadd.f32 0.0, %v901
        %v903 = vpop.f32.mrb[0].mxu0
        %v904 = vadd.f32 0.0, %v903
        %v905 = vpop.f32.mrb[0].mxu0
        %v906 = vadd.f32 0.0, %v905
        %v907 = vpop.f32.mrb[0].mxu0
        %v908 = vadd.f32 0.0, %v907
        %909 = vmatprep.mubr.bf16.mxu0 0
        %910 = vmatmul.mubr.bf16.gmra.mrb[0].mxu0 %v812
        %v911 = vpop.f32.mrb[0].mxu0
        %v912 = vadd.f32 0.0, %v911
        %v913 = vpop.f32.mrb[0].mxu0
        %v914 = vadd.f32 0.0, %v913
        %v915 = vpop.f32.mrb[0].mxu0
        %v916 = vadd.f32 0.0, %v915
        %v917 = vpop.f32.mrb[0].mxu0
        %v918 = vadd.f32 0.0, %v917
        %919 = vmatprep.mubr.bf16.mxu0 0
        %920 = vmatmul.mubr.bf16.gmra.mrb[0].mxu0 %v815
        %v921 = vpop.f32.mrb[0].mxu0
        %v922 = vadd.f32 0.0, %v921
        %v923 = vpop.f32.mrb[0].mxu0
        %v924 = vadd.f32 0.0, %v923
        %v925 = vpop.f32.mrb[0].mxu0
        %v926 = vadd.f32 0.0, %v925
        %v927 = vpop.f32.mrb[0].mxu0
        %v928 = vadd.f32 0.0, %v927
        %929 = vdwg.mxu0
        %931 = vset.pattern.permute.xlu0 0
        %932 = vperm.xlu0 %931, %v672
        %v933 = vpop.permute.xlu0 %932
        %936 = vset.pattern.permute.xlu0 0
        %937 = vperm.xlu0 %936, %v673
        %v938 = vpop.permute.xlu0 %937
        %941 = vset.pattern.permute.xlu0 0
        %942 = vperm.xlu0 %941, %v674
        %v943 = vpop.permute.xlu0 %942
        %946 = vset.pattern.permute.xlu0 0
        %947 = vperm.xlu0 %946, %v675
        %v948 = vpop.permute.xlu0 %947
        %951 = vset.pattern.permute.xlu0 0
        %952 = vperm.xlu0 %951, %v676
        %v953 = vpop.permute.xlu0 %952
        %956 = vset.pattern.permute.xlu0 0
        %957 = vperm.xlu0 %956, %v677
        %v958 = vpop.permute.xlu0 %957
        %961 = vset.pattern.permute.xlu0 0
        %962 = vperm.xlu0 %961, %v678
        %v963 = vpop.permute.xlu0 %962
        %966 = vset.pattern.permute.xlu0 0
        %967 = vperm.xlu0 %966, %v679
        %v968 = vpop.permute.xlu0 %967
        %971 = vset.pattern.permute.xlu0 0
        %972 = vperm.xlu0 %971, %v680
        %v973 = vpop.permute.xlu0 %972
        %976 = vset.pattern.permute.xlu0 0
        %977 = vperm.xlu0 %976, %v681
        %v978 = vpop.permute.xlu0 %977
        %981 = vset.pattern.permute.xlu0 0
        %982 = vperm.xlu0 %981, %v682
        %v983 = vpop.permute.xlu0 %982
        %986 = vset.pattern.permute.xlu0 0
        %987 = vperm.xlu0 %986, %v683
        %v988 = vpop.permute.xlu0 %987
        %991 = vset.pattern.permute.xlu0 0
        %992 = vperm.xlu0 %991, %v684
        %v993 = vpop.permute.xlu0 %992
        %996 = vset.pattern.permute.xlu0 0
        %997 = vperm.xlu0 %996, %v685
        %v998 = vpop.permute.xlu0 %997
        %1001 = vset.pattern.permute.xlu0 0
        %1002 = vperm.xlu0 %1001, %v686
        %v1003 = vpop.permute.xlu0 %1002
        %1006 = vset.pattern.permute.xlu0 0
        %1007 = vperm.xlu0 %1006, %v687
        %v1008 = vpop.permute.xlu0 %1007
        %v1010 = vadd.f32 %v933, %v852
        %v1011 = vadd.f32 %v933, %v854
        %v1012 = vadd.f32 %v938, %v856
        %v1013 = vadd.f32 %v938, %v858
        %v1014 = vadd.f32 %v943, %v862
        %v1015 = vadd.f32 %v943, %v864
        %v1016 = vadd.f32 %v948, %v866
        %v1017 = vadd.f32 %v948, %v868
        %v1018 = vadd.f32 %v953, %v872
        %v1019 = vadd.f32 %v953, %v874
        %v1020 = vadd.f32 %v958, %v876
        %v1021 = vadd.f32 %v958, %v878
        %v1022 = vadd.f32 %v963, %v882
        %v1023 = vadd.f32 %v963, %v884
        %v1024 = vadd.f32 %v968, %v886
        %v1025 = vadd.f32 %v968, %v888
        %v1026 = vadd.f32 %v973, %v892
        %v1027 = vadd.f32 %v973, %v894
        %v1028 = vadd.f32 %v978, %v896
        %v1029 = vadd.f32 %v978, %v898
        %v1030 = vadd.f32 %v983, %v902
        %v1031 = vadd.f32 %v983, %v904
        %v1032 = vadd.f32 %v988, %v906
        %v1033 = vadd.f32 %v988, %v908
        %v1034 = vadd.f32 %v993, %v912
        %v1035 = vadd.f32 %v993, %v914
        %v1036 = vadd.f32 %v998, %v916
        %v1037 = vadd.f32 %v998, %v918
        %v1038 = vadd.f32 %v1003, %v922
        %v1039 = vadd.f32 %v1003, %v924
        %v1040 = vadd.f32 %v1008, %v926
        %v1041 = vadd.f32 %v1008, %v928
        %v1042 = vld [vmem:[%s568] sm:$0xff]
        %v1043 = vld [vmem:[%s568 + $0x8] sm:$0xff]
        %v1044 = vld [vmem:[%s568 + $0x10] sm:$0xff]
        %v1045 = vld [vmem:[%s568 + $0x18] sm:$0xff]
        %1046 = vrot.lane.b32.xlu0 %v744, 64
        %v1047 = vpop.permute.xlu0 %1046
        %1048 = vrot.lane.b32.xlu0 %v745, 64
        %v1049 = vpop.permute.xlu0 %1048
        %1050 = vrot.lane.b32.xlu0 %v746, 64
        %v1051 = vpop.permute.xlu0 %1050
        %1052 = vrot.lane.b32.xlu0 %v747, 64
        %v1053 = vpop.permute.xlu0 %1052
        %1054 = vrot.lane.b32.xlu0 %v748, 64
        %v1055 = vpop.permute.xlu0 %1054
        %1056 = vrot.lane.b32.xlu0 %v749, 64
        %v1057 = vpop.permute.xlu0 %1056
        %1058 = vrot.lane.b32.xlu0 %v750, 64
        %v1059 = vpop.permute.xlu0 %1058
        %1060 = vrot.lane.b32.xlu0 %v751, 64
        %v1061 = vpop.permute.xlu0 %1060
        %v1066 = vunpack.c.l.b16 %v1042
        %v1067 = vunpack.c.h.b16 %v1042
        %v1068 = vunpack.c.l.b16 %v1043
        %v1069 = vunpack.c.h.b16 %v1043
        %v1070 = vunpack.c.l.b16 %v1044
        %v1071 = vunpack.c.h.b16 %v1044
        %v1072 = vunpack.c.l.b16 %v1045
        %v1073 = vunpack.c.h.b16 %v1045
        %v1074 = vpack.c.b16 %v1068, %v1066
        %v1075 = vpack.c.b16 %v1069, %v1067
        %v1076 = vpack.c.b16 %v1072, %v1070
        %v1077 = vpack.c.b16 %v1073, %v1071
        %vm1082 = vcmask 261120
        %v1084 = vsel %vm1082, %v1047, 0
        %v1087 = vsel %vm1082, %v1049, 0
        %v1090 = vsel %vm1082, %v1051, 0
        %v1093 = vsel %vm1082, %v1053, 0
        %v1096 = vsel %vm1082, %v1055, 0
        %v1099 = vsel %vm1082, %v1057, 0
        %v1102 = vsel %vm1082, %v1059, 0
        %v1105 = vsel %vm1082, %v1061, 0
        %1107 = vmatprep.subr.bf16.mxu0 %v1075
        %1108 = vmatpush1.bf16.msra.mxu0 %v1074
        %1109 = vmatprep.subr.bf16.mxu0 %v1077
        %1110 = vmatpush1.bf16.msra.mxu0 %v1076
        %1111 = vmatprep.subr.bf16.mxu0 0
        %1112 = vmatpush1.bf16.msra.mxu0 0
        %1113 = vmatprep.subr.bf16.mxu0 0
        %1114 = vmatpush1.bf16.msra.mxu0 0
        %1115 = vmatprep.subr.bf16.mxu0 0
        %1116 = vmatpush1.bf16.msra.mxu0 0
        %1117 = vmatprep.subr.bf16.mxu0 0
        %1118 = vmatpush1.bf16.msra.mxu0 0
        %1119 = vmatprep.subr.bf16.mxu0 0
        %1120 = vmatpush1.bf16.msra.mxu0 0
        %1121 = vmatprep.subr.bf16.mxu0 0
        %1122 = vmatpush1.bf16.msra.mxu0 0
        %1123 = vmatprep.subr.bf16.mxu0 0
        %1124 = vmatpush1.bf16.msra.mxu0 0
        %1125 = vmatprep.subr.bf16.mxu0 0
        %1126 = vmatpush1.bf16.msra.mxu0 0
        %1127 = vmatprep.subr.bf16.mxu0 0
        %1128 = vmatpush1.bf16.msra.mxu0 0
        %1129 = vmatprep.subr.bf16.mxu0 0
        %1130 = vmatpush1.bf16.msra.mxu0 0
        %1131 = vmatprep.subr.bf16.mxu0 0
        %1132 = vmatpush1.bf16.msra.mxu0 0
        %1133 = vmatprep.subr.bf16.mxu0 0
        %1134 = vmatpush1.bf16.msra.mxu0 0
        %1135 = vmatprep.subr.bf16.mxu0 0
        %1136 = vmatpush1.bf16.msra.mxu0 0
        %1137 = vmatprep.subr.bf16.mxu0 0
        %1138 = vmatpush1.bf16.msra.mxu0 0
        %1139 = vmatprep.mubr.bf16.mxu0 0
        %1140 = vmatmul.mubr.bf16.gmra.mrb[0].mxu0 %v1084
        %v1141 = vpop.f32.mrb[0].mxu0
        %v1142 = vadd.f32 0.0, %v1141
        %v1143 = vpop.f32.mrb[0].mxu0
        %v1144 = vadd.f32 0.0, %v1143
        %v1145 = vpop.f32.mrb[0].mxu0
        %v1146 = vadd.f32 0.0, %v1145
        %v1147 = vpop.f32.mrb[0].mxu0
        %v1148 = vadd.f32 0.0, %v1147
        %1149 = vmatprep.mubr.bf16.mxu0 0
        %1150 = vmatmul.mubr.bf16.gmra.mrb[0].mxu0 %v1087
        %v1151 = vpop.f32.mrb[0].mxu0
        %v1152 = vadd.f32 0.0, %v1151
        %v1153 = vpop.f32.mrb[0].mxu0
        %v1154 = vadd.f32 0.0, %v1153
        %v1155 = vpop.f32.mrb[0].mxu0
        %v1156 = vadd.f32 0.0, %v1155
        %v1157 = vpop.f32.mrb[0].mxu0
        %v1158 = vadd.f32 0.0, %v1157
        %1159 = vmatprep.mubr.bf16.mxu0 0
        %1160 = vmatmul.mubr.bf16.gmra.mrb[0].mxu0 %v1090
        %v1161 = vpop.f32.mrb[0].mxu0
        %v1162 = vadd.f32 0.0, %v1161
        %v1163 = vpop.f32.mrb[0].mxu0
        %v1164 = vadd.f32 0.0, %v1163
        %v1165 = vpop.f32.mrb[0].mxu0
        %v1166 = vadd.f32 0.0, %v1165
        %v1167 = vpop.f32.mrb[0].mxu0
        %v1168 = vadd.f32 0.0, %v1167
        %1169 = vmatprep.mubr.bf16.mxu0 0
        %1170 = vmatmul.mubr.bf16.gmra.mrb[0].mxu0 %v1093
        %v1171 = vpop.f32.mrb[0].mxu0
        %v1172 = vadd.f32 0.0, %v1171
        %v1173 = vpop.f32.mrb[0].mxu0
        %v1174 = vadd.f32 0.0, %v1173
        %v1175 = vpop.f32.mrb[0].mxu0
        %v1176 = vadd.f32 0.0, %v1175
        %v1177 = vpop.f32.mrb[0].mxu0
        %v1178 = vadd.f32 0.0, %v1177
        %1179 = vmatprep.mubr.bf16.mxu0 0
        %1180 = vmatmul.mubr.bf16.gmra.mrb[0].mxu0 %v1096
        %v1181 = vpop.f32.mrb[0].mxu0
        %v1182 = vadd.f32 0.0, %v1181
        %v1183 = vpop.f32.mrb[0].mxu0
        %v1184 = vadd.f32 0.0, %v1183
        %v1185 = vpop.f32.mrb[0].mxu0
        %v1186 = vadd.f32 0.0, %v1185
        %v1187 = vpop.f32.mrb[0].mxu0
        %v1188 = vadd.f32 0.0, %v1187
        %1189 = vmatprep.mubr.bf16.mxu0 0
        %1190 = vmatmul.mubr.bf16.gmra.mrb[0].mxu0 %v1099
        %v1191 = vpop.f32.mrb[0].mxu0
        %v1192 = vadd.f32 0.0, %v1191
        %v1193 = vpop.f32.mrb[0].mxu0
        %v1194 = vadd.f32 0.0, %v1193
        %v1195 = vpop.f32.mrb[0].mxu0
        %v1196 = vadd.f32 0.0, %v1195
        %v1197 = vpop.f32.mrb[0].mxu0
        %v1198 = vadd.f32 0.0, %v1197
        %1199 = vmatprep.mubr.bf16.mxu0 0
        %1200 = vmatmul.mubr.bf16.gmra.mrb[0].mxu0 %v1102
        %v1201 = vpop.f32.mrb[0].mxu0
        %v1202 = vadd.f32 0.0, %v1201
        %v1203 = vpop.f32.mrb[0].mxu0
        %v1204 = vadd.f32 0.0, %v1203
        %v1205 = vpop.f32.mrb[0].mxu0
        %v1206 = vadd.f32 0.0, %v1205
        %v1207 = vpop.f32.mrb[0].mxu0
        %v1208 = vadd.f32 0.0, %v1207
        %1209 = vmatprep.mubr.bf16.mxu0 0
        %1210 = vmatmul.mubr.bf16.gmra.mrb[0].mxu0 %v1105
        %v1211 = vpop.f32.mrb[0].mxu0
        %v1212 = vadd.f32 0.0, %v1211
        %v1213 = vpop.f32.mrb[0].mxu0
        %v1214 = vadd.f32 0.0, %v1213
        %v1215 = vpop.f32.mrb[0].mxu0
        %v1216 = vadd.f32 0.0, %v1215
        %v1217 = vpop.f32.mrb[0].mxu0
        %v1218 = vadd.f32 0.0, %v1217
        %1219 = vdwg.mxu0
        %v1220 = vadd.f32 %v1010, %v1142
        %v1221 = vadd.f32 %v1011, %v1144
        %v1222 = vadd.f32 %v1012, %v1146
        %v1223 = vadd.f32 %v1013, %v1148
        %v1224 = vadd.f32 %v1014, %v1152
        %v1225 = vadd.f32 %v1015, %v1154
        %v1226 = vadd.f32 %v1016, %v1156
        %v1227 = vadd.f32 %v1017, %v1158
        %v1228 = vadd.f32 %v1018, %v1162
        %v1229 = vadd.f32 %v1019, %v1164
        %v1230 = vadd.f32 %v1020, %v1166
        %v1231 = vadd.f32 %v1021, %v1168
        %v1232 = vadd.f32 %v1022, %v1172
        %v1233 = vadd.f32 %v1023, %v1174
        %v1234 = vadd.f32 %v1024, %v1176
        %v1235 = vadd.f32 %v1025, %v1178
        %v1236 = vadd.f32 %v1026, %v1182
        %v1237 = vadd.f32 %v1027, %v1184
        %v1238 = vadd.f32 %v1028, %v1186
        %v1239 = vadd.f32 %v1029, %v1188
        %v1240 = vadd.f32 %v1030, %v1192
        %v1241 = vadd.f32 %v1031, %v1194
        %v1242 = vadd.f32 %v1032, %v1196
        %v1243 = vadd.f32 %v1033, %v1198
        %v1244 = vadd.f32 %v1034, %v1202
        %v1245 = vadd.f32 %v1035, %v1204
        %v1246 = vadd.f32 %v1036, %v1206
        %v1247 = vadd.f32 %v1037, %v1208
        %v1248 = vadd.f32 %v1038, %v1212
        %v1249 = vadd.f32 %v1039, %v1214
        %v1250 = vadd.f32 %v1040, %v1216
        %v1251 = vadd.f32 %v1041, %v1218
        %v1252 = vld [vmem:[%s577] sm:$0xff]
        %v1253 = vld [vmem:[%s577 + $0x8] sm:$0xff]
        %1254 = vrot.lane.b32.xlu0 %v744, 32
        %v1255 = vpop.permute.xlu0 %1254
        %1256 = vrot.lane.b32.xlu0 %v745, 32
        %v1257 = vpop.permute.xlu0 %1256
        %1258 = vrot.lane.b32.xlu0 %v746, 32
        %v1259 = vpop.permute.xlu0 %1258
        %1260 = vrot.lane.b32.xlu0 %v747, 32
        %v1261 = vpop.permute.xlu0 %1260
        %1262 = vrot.lane.b32.xlu0 %v748, 32
        %v1263 = vpop.permute.xlu0 %1262
        %1264 = vrot.lane.b32.xlu0 %v749, 32
        %v1265 = vpop.permute.xlu0 %1264
        %1266 = vrot.lane.b32.xlu0 %v750, 32
        %v1267 = vpop.permute.xlu0 %1266
        %1268 = vrot.lane.b32.xlu0 %v751, 32
        %v1269 = vpop.permute.xlu0 %1268
        %v1272 = vunpack.c.l.b16 %v1252
        %v1273 = vunpack.c.h.b16 %v1252
        %v1274 = vunpack.c.l.b16 %v1253
        %v1275 = vunpack.c.h.b16 %v1253
        %v1276 = vpack.c.b16 %v1274, %v1272
        %v1277 = vpack.c.b16 %v1275, %v1273
        %vm1280 = vcmask 130048
        %v1282 = vsel %vm1280, %v1255, 0
        %v1285 = vsel %vm1280, %v1257, 0
        %v1288 = vsel %vm1280, %v1259, 0
        %v1291 = vsel %vm1280, %v1261, 0
        %v1294 = vsel %vm1280, %v1263, 0
        %v1297 = vsel %vm1280, %v1265, 0
        %v1300 = vsel %vm1280, %v1267, 0
        %v1303 = vsel %vm1280, %v1269, 0
        %1305 = vmatprep.subr.bf16.mxu0 %v1277
        %1306 = vmatpush1.bf16.msra.mxu0 %v1276
        %1307 = vmatprep.subr.bf16.mxu0 0
        %1308 = vmatpush1.bf16.msra.mxu0 0
        %1309 = vmatprep.subr.bf16.mxu0 0
        %1310 = vmatpush1.bf16.msra.mxu0 0
        %1311 = vmatprep.subr.bf16.mxu0 0
        %1312 = vmatpush1.bf16.msra.mxu0 0
        %1313 = vmatprep.subr.bf16.mxu0 0
        %1314 = vmatpush1.bf16.msra.mxu0 0
        %1315 = vmatprep.subr.bf16.mxu0 0
        %1316 = vmatpush1.bf16.msra.mxu0 0
        %1317 = vmatprep.subr.bf16.mxu0 0
        %1318 = vmatpush1.bf16.msra.mxu0 0
        %1319 = vmatprep.subr.bf16.mxu0 0
        %1320 = vmatpush1.bf16.msra.mxu0 0
        %1321 = vmatprep.subr.bf16.mxu0 0
        %1322 = vmatpush1.bf16.msra.mxu0 0
        %1323 = vmatprep.subr.bf16.mxu0 0
        %1324 = vmatpush1.bf16.msra.mxu0 0
        %1325 = vmatprep.subr.bf16.mxu0 0
        %1326 = vmatpush1.bf16.msra.mxu0 0
        %1327 = vmatprep.subr.bf16.mxu0 0
        %1328 = vmatpush1.bf16.msra.mxu0 0
        %1329 = vmatprep.subr.bf16.mxu0 0
        %1330 = vmatpush1.bf16.msra.mxu0 0
        %1331 = vmatprep.subr.bf16.mxu0 0
        %1332 = vmatpush1.bf16.msra.mxu0 0
        %1333 = vmatprep.subr.bf16.mxu0 0
        %1334 = vmatpush1.bf16.msra.mxu0 0
        %1335 = vmatprep.subr.bf16.mxu0 0
        %1336 = vmatpush1.bf16.msra.mxu0 0
        %1337 = vmatprep.mubr.bf16.mxu0 0
        %1338 = vmatmul.mubr.bf16.gmra.mrb[0].mxu0 %v1282
        %v1339 = vpop.f32.mrb[0].mxu0
        %v1340 = vadd.f32 0.0, %v1339
        %v1341 = vpop.f32.mrb[0].mxu0
        %v1342 = vadd.f32 0.0, %v1341
        %v1343 = vpop.f32.mrb[0].mxu0
        %v1344 = vadd.f32 0.0, %v1343
        %v1345 = vpop.f32.mrb[0].mxu0
        %v1346 = vadd.f32 0.0, %v1345
        %1347 = vmatprep.mubr.bf16.mxu0 0
        %1348 = vmatmul.mubr.bf16.gmra.mrb[0].mxu0 %v1285
        %v1349 = vpop.f32.mrb[0].mxu0
        %v1350 = vadd.f32 0.0, %v1349
        %v1351 = vpop.f32.mrb[0].mxu0
        %v1352 = vadd.f32 0.0, %v1351
        %v1353 = vpop.f32.mrb[0].mxu0
        %v1354 = vadd.f32 0.0, %v1353
        %v1355 = vpop.f32.mrb[0].mxu0
        %v1356 = vadd.f32 0.0, %v1355
        %1357 = vmatprep.mubr.bf16.mxu0 0
        %1358 = vmatmul.mubr.bf16.gmra.mrb[0].mxu0 %v1288
        %v1359 = vpop.f32.mrb[0].mxu0
        %v1360 = vadd.f32 0.0, %v1359
        %v1361 = vpop.f32.mrb[0].mxu0
        %v1362 = vadd.f32 0.0, %v1361
        %v1363 = vpop.f32.mrb[0].mxu0
        %v1364 = vadd.f32 0.0, %v1363
        %v1365 = vpop.f32.mrb[0].mxu0
        %v1366 = vadd.f32 0.0, %v1365
        %1367 = vmatprep.mubr.bf16.mxu0 0
        %1368 = vmatmul.mubr.bf16.gmra.mrb[0].mxu0 %v1291
        %v1369 = vpop.f32.mrb[0].mxu0
        %v1370 = vadd.f32 0.0, %v1369
        %v1371 = vpop.f32.mrb[0].mxu0
        %v1372 = vadd.f32 0.0, %v1371
        %v1373 = vpop.f32.mrb[0].mxu0
        %v1374 = vadd.f32 0.0, %v1373
        %v1375 = vpop.f32.mrb[0].mxu0
        %v1376 = vadd.f32 0.0, %v1375
        %1377 = vmatprep.mubr.bf16.mxu0 0
        %1378 = vmatmul.mubr.bf16.gmra.mrb[0].mxu0 %v1294
        %v1379 = vpop.f32.mrb[0].mxu0
        %v1380 = vadd.f32 0.0, %v1379
        %v1381 = vpop.f32.mrb[0].mxu0
        %v1382 = vadd.f32 0.0, %v1381
        %v1383 = vpop.f32.mrb[0].mxu0
        %v1384 = vadd.f32 0.0, %v1383
        %v1385 = vpop.f32.mrb[0].mxu0
        %v1386 = vadd.f32 0.0, %v1385
        %1387 = vmatprep.mubr.bf16.mxu0 0
        %1388 = vmatmul.mubr.bf16.gmra.mrb[0].mxu0 %v1297
        %v1389 = vpop.f32.mrb[0].mxu0
        %v1390 = vadd.f32 0.0, %v1389
        %v1391 = vpop.f32.mrb[0].mxu0
        %v1392 = vadd.f32 0.0, %v1391
        %v1393 = vpop.f32.mrb[0].mxu0
        %v1394 = vadd.f32 0.0, %v1393
        %v1395 = vpop.f32.mrb[0].mxu0
        %v1396 = vadd.f32 0.0, %v1395
        %1397 = vmatprep.mubr.bf16.mxu0 0
        %1398 = vmatmul.mubr.bf16.gmra.mrb[0].mxu0 %v1300
        %v1399 = vpop.f32.mrb[0].mxu0
        %v1400 = vadd.f32 0.0, %v1399
        %v1401 = vpop.f32.mrb[0].mxu0
        %v1402 = vadd.f32 0.0, %v1401
        %v1403 = vpop.f32.mrb[0].mxu0
        %v1404 = vadd.f32 0.0, %v1403
        %v1405 = vpop.f32.mrb[0].mxu0
        %v1406 = vadd.f32 0.0, %v1405
        %1407 = vmatprep.mubr.bf16.mxu0 0
        %1408 = vmatmul.mubr.bf16.gmra.mrb[0].mxu0 %v1303
        %v1409 = vpop.f32.mrb[0].mxu0
        %v1410 = vadd.f32 0.0, %v1409
        %v1411 = vpop.f32.mrb[0].mxu0
        %v1412 = vadd.f32 0.0, %v1411
        %v1413 = vpop.f32.mrb[0].mxu0
        %v1414 = vadd.f32 0.0, %v1413
        %v1415 = vpop.f32.mrb[0].mxu0
        %v1416 = vadd.f32 0.0, %v1415
        %1417 = vdwg.mxu0
        %v1418 = vadd.f32 %v1220, %v1340
        %v1419 = vadd.f32 %v1221, %v1342
        %v1420 = vadd.f32 %v1222, %v1344
        %v1421 = vadd.f32 %v1223, %v1346
        %v1422 = vadd.f32 %v1224, %v1350
        %v1423 = vadd.f32 %v1225, %v1352
        %v1424 = vadd.f32 %v1226, %v1354
        %v1425 = vadd.f32 %v1227, %v1356
        %v1426 = vadd.f32 %v1228, %v1360
        %v1427 = vadd.f32 %v1229, %v1362
        %v1428 = vadd.f32 %v1230, %v1364
        %v1429 = vadd.f32 %v1231, %v1366
        %v1430 = vadd.f32 %v1232, %v1370
        %v1431 = vadd.f32 %v1233, %v1372
        %v1432 = vadd.f32 %v1234, %v1374
        %v1433 = vadd.f32 %v1235, %v1376
        %v1434 = vadd.f32 %v1236, %v1380
        %v1435 = vadd.f32 %v1237, %v1382
        %v1436 = vadd.f32 %v1238, %v1384
        %v1437 = vadd.f32 %v1239, %v1386
        %v1438 = vadd.f32 %v1240, %v1390
        %v1439 = vadd.f32 %v1241, %v1392
        %v1440 = vadd.f32 %v1242, %v1394
        %v1441 = vadd.f32 %v1243, %v1396
        %v1442 = vadd.f32 %v1244, %v1400
        %v1443 = vadd.f32 %v1245, %v1402
        %v1444 = vadd.f32 %v1246, %v1404
        %v1445 = vadd.f32 %v1247, %v1406
        %v1446 = vadd.f32 %v1248, %v1410
        %v1447 = vadd.f32 %v1249, %v1412
        %v1448 = vadd.f32 %v1250, %v1414
        %v1449 = vadd.f32 %v1251, %v1416
        %v1450 = vld [vmem:[%s586] sm:$0xff]
        %v1451 = vld [vmem:[%s586 + $0x8] sm:$0xff]
        %1452 = vrot.lane.b32.xlu0 %v744, 16
        %v1453 = vpop.permute.xlu0 %1452
        %1454 = vrot.lane.b32.xlu0 %v745, 16
        %v1455 = vpop.permute.xlu0 %1454
        %1456 = vrot.lane.b32.xlu0 %v746, 16
        %v1457 = vpop.permute.xlu0 %1456
        %1458 = vrot.lane.b32.xlu0 %v747, 16
        %v1459 = vpop.permute.xlu0 %1458
        %1460 = vrot.lane.b32.xlu0 %v748, 16
        %v1461 = vpop.permute.xlu0 %1460
        %1462 = vrot.lane.b32.xlu0 %v749, 16
        %v1463 = vpop.permute.xlu0 %1462
        %1464 = vrot.lane.b32.xlu0 %v750, 16
        %v1465 = vpop.permute.xlu0 %1464
        %1466 = vrot.lane.b32.xlu0 %v751, 16
        %v1467 = vpop.permute.xlu0 %1466
        %v1470 = vunpack.c.l.b16 %v1450
        %v1471 = vunpack.c.h.b16 %v1450
        %v1472 = vunpack.c.l.b16 %v1451
        %v1473 = vunpack.c.h.b16 %v1451
        %v1474 = vpack.c.b16 %v1472, %v1470
        %v1475 = vpack.c.b16 %v1473, %v1471
        %v1479 = vsel %vm1280, %v1453, 0
        %v1482 = vsel %vm1280, %v1455, 0
        %v1485 = vsel %vm1280, %v1457, 0
        %v1488 = vsel %vm1280, %v1459, 0
        %v1491 = vsel %vm1280, %v1461, 0
        %v1494 = vsel %vm1280, %v1463, 0
        %v1497 = vsel %vm1280, %v1465, 0
        %v1500 = vsel %vm1280, %v1467, 0
        %1502 = vmatprep.subr.bf16.mxu0 %v1475
        %1503 = vmatpush1.bf16.msra.mxu0 %v1474
        %1504 = vmatprep.subr.bf16.mxu0 0
        %1505 = vmatpush1.bf16.msra.mxu0 0
        %1506 = vmatprep.subr.bf16.mxu0 0
        %1507 = vmatpush1.bf16.msra.mxu0 0
        %1508 = vmatprep.subr.bf16.mxu0 0
        %1509 = vmatpush1.bf16.msra.mxu0 0
        %1510 = vmatprep.subr.bf16.mxu0 0
        %1511 = vmatpush1.bf16.msra.mxu0 0
        %1512 = vmatprep.subr.bf16.mxu0 0
        %1513 = vmatpush1.bf16.msra.mxu0 0
        %1514 = vmatprep.subr.bf16.mxu0 0
        %1515 = vmatpush1.bf16.msra.mxu0 0
        %1516 = vmatprep.subr.bf16.mxu0 0
        %1517 = vmatpush1.bf16.msra.mxu0 0
        %1518 = vmatprep.subr.bf16.mxu0 0
        %1519 = vmatpush1.bf16.msra.mxu0 0
        %1520 = vmatprep.subr.bf16.mxu0 0
        %1521 = vmatpush1.bf16.msra.mxu0 0
        %1522 = vmatprep.subr.bf16.mxu0 0
        %1523 = vmatpush1.bf16.msra.mxu0 0
        %1524 = vmatprep.subr.bf16.mxu0 0
        %1525 = vmatpush1.bf16.msra.mxu0 0
        %1526 = vmatprep.subr.bf16.mxu0 0
        %1527 = vmatpush1.bf16.msra.mxu0 0
        %1528 = vmatprep.subr.bf16.mxu0 0
        %1529 = vmatpush1.bf16.msra.mxu0 0
        %1530 = vmatprep.subr.bf16.mxu0 0
        %1531 = vmatpush1.bf16.msra.mxu0 0
        %1532 = vmatprep.subr.bf16.mxu0 0
        %1533 = vmatpush1.bf16.msra.mxu0 0
        %1534 = vmatprep.mubr.bf16.mxu0 0
        %1535 = vmatmul.mubr.bf16.gmra.mrb[0].mxu0 %v1479
        %v1536 = vpop.f32.mrb[0].mxu0
        %v1537 = vadd.f32 0.0, %v1536
        %v1538 = vpop.f32.mrb[0].mxu0
        %v1539 = vadd.f32 0.0, %v1538
        %v1540 = vpop.f32.mrb[0].mxu0
        %v1541 = vadd.f32 0.0, %v1540
        %v1542 = vpop.f32.mrb[0].mxu0
        %v1543 = vadd.f32 0.0, %v1542
        %1544 = vmatprep.mubr.bf16.mxu0 0
        %1545 = vmatmul.mubr.bf16.gmra.mrb[0].mxu0 %v1482
        %v1546 = vpop.f32.mrb[0].mxu0
        %v1547 = vadd.f32 0.0, %v1546
        %v1548 = vpop.f32.mrb[0].mxu0
        %v1549 = vadd.f32 0.0, %v1548
        %v1550 = vpop.f32.mrb[0].mxu0
        %v1551 = vadd.f32 0.0, %v1550
        %v1552 = vpop.f32.mrb[0].mxu0
        %v1553 = vadd.f32 0.0, %v1552
        %1554 = vmatprep.mubr.bf16.mxu0 0
        %1555 = vmatmul.mubr.bf16.gmra.mrb[0].mxu0 %v1485
        %v1556 = vpop.f32.mrb[0].mxu0
        %v1557 = vadd.f32 0.0, %v1556
        %v1558 = vpop.f32.mrb[0].mxu0
        %v1559 = vadd.f32 0.0, %v1558
        %v1560 = vpop.f32.mrb[0].mxu0
        %v1561 = vadd.f32 0.0, %v1560
        %v1562 = vpop.f32.mrb[0].mxu0
        %v1563 = vadd.f32 0.0, %v1562
        %1564 = vmatprep.mubr.bf16.mxu0 0
        %1565 = vmatmul.mubr.bf16.gmra.mrb[0].mxu0 %v1488
        %v1566 = vpop.f32.mrb[0].mxu0
        %v1567 = vadd.f32 0.0, %v1566
        %v1568 = vpop.f32.mrb[0].mxu0
        %v1569 = vadd.f32 0.0, %v1568
        %v1570 = vpop.f32.mrb[0].mxu0
        %v1571 = vadd.f32 0.0, %v1570
        %v1572 = vpop.f32.mrb[0].mxu0
        %v1573 = vadd.f32 0.0, %v1572
        %1574 = vmatprep.mubr.bf16.mxu0 0
        %1575 = vmatmul.mubr.bf16.gmra.mrb[0].mxu0 %v1491
        %v1576 = vpop.f32.mrb[0].mxu0
        %v1577 = vadd.f32 0.0, %v1576
        %v1578 = vpop.f32.mrb[0].mxu0
        %v1579 = vadd.f32 0.0, %v1578
        %v1580 = vpop.f32.mrb[0].mxu0
        %v1581 = vadd.f32 0.0, %v1580
        %v1582 = vpop.f32.mrb[0].mxu0
        %v1583 = vadd.f32 0.0, %v1582
        %1584 = vmatprep.mubr.bf16.mxu0 0
        %1585 = vmatmul.mubr.bf16.gmra.mrb[0].mxu0 %v1494
        %v1586 = vpop.f32.mrb[0].mxu0
        %v1587 = vadd.f32 0.0, %v1586
        %v1588 = vpop.f32.mrb[0].mxu0
        %v1589 = vadd.f32 0.0, %v1588
        %v1590 = vpop.f32.mrb[0].mxu0
        %v1591 = vadd.f32 0.0, %v1590
        %v1592 = vpop.f32.mrb[0].mxu0
        %v1593 = vadd.f32 0.0, %v1592
        %1594 = vmatprep.mubr.bf16.mxu0 0
        %1595 = vmatmul.mubr.bf16.gmra.mrb[0].mxu0 %v1497
        %v1596 = vpop.f32.mrb[0].mxu0
        %v1597 = vadd.f32 0.0, %v1596
        %v1598 = vpop.f32.mrb[0].mxu0
        %v1599 = vadd.f32 0.0, %v1598
        %v1600 = vpop.f32.mrb[0].mxu0
        %v1601 = vadd.f32 0.0, %v1600
        %v1602 = vpop.f32.mrb[0].mxu0
        %v1603 = vadd.f32 0.0, %v1602
        %1604 = vmatprep.mubr.bf16.mxu0 0
        %1605 = vmatmul.mubr.bf16.gmra.mrb[0].mxu0 %v1500
        %v1606 = vpop.f32.mrb[0].mxu0
        %v1607 = vadd.f32 0.0, %v1606
        %v1608 = vpop.f32.mrb[0].mxu0
        %v1609 = vadd.f32 0.0, %v1608
        %v1610 = vpop.f32.mrb[0].mxu0
        %v1611 = vadd.f32 0.0, %v1610
        %v1612 = vpop.f32.mrb[0].mxu0
        %v1613 = vadd.f32 0.0, %v1612
        %1614 = vdwg.mxu0
        %v1615 = vadd.f32 %v1418, %v1537
        %v1616 = vadd.f32 %v1419, %v1539
        %v1617 = vadd.f32 %v1420, %v1541
        %v1618 = vadd.f32 %v1421, %v1543
        %v1619 = vadd.f32 %v1422, %v1547
        %v1620 = vadd.f32 %v1423, %v1549
        %v1621 = vadd.f32 %v1424, %v1551
        %v1622 = vadd.f32 %v1425, %v1553
        %v1623 = vadd.f32 %v1426, %v1557
        %v1624 = vadd.f32 %v1427, %v1559
        %v1625 = vadd.f32 %v1428, %v1561
        %v1626 = vadd.f32 %v1429, %v1563
        %v1627 = vadd.f32 %v1430, %v1567
        %v1628 = vadd.f32 %v1431, %v1569
        %v1629 = vadd.f32 %v1432, %v1571
        %v1630 = vadd.f32 %v1433, %v1573
        %v1631 = vadd.f32 %v1434, %v1577
        %v1632 = vadd.f32 %v1435, %v1579
        %v1633 = vadd.f32 %v1436, %v1581
        %v1634 = vadd.f32 %v1437, %v1583
        %v1635 = vadd.f32 %v1438, %v1587
        %v1636 = vadd.f32 %v1439, %v1589
        %v1637 = vadd.f32 %v1440, %v1591
        %v1638 = vadd.f32 %v1441, %v1593
        %v1639 = vadd.f32 %v1442, %v1597
        %v1640 = vadd.f32 %v1443, %v1599
        %v1641 = vadd.f32 %v1444, %v1601
        %v1642 = vadd.f32 %v1445, %v1603
        %v1643 = vadd.f32 %v1446, %v1607
        %v1644 = vadd.f32 %v1447, %v1609
        %v1645 = vadd.f32 %v1448, %v1611
        %v1646 = vadd.f32 %v1449, %v1613
        %vm1647 = vcmp.gt.f32.partialorder %v1615, 0.0
        %vm1648 = vcmp.gt.f32.partialorder %v1616, 0.0
        %vm1649 = vcmp.gt.f32.partialorder %v1617, 0.0
        %vm1650 = vcmp.gt.f32.partialorder %v1618, 0.0
        %vm1651 = vcmp.gt.f32.partialorder %v1619, 0.0
        %vm1652 = vcmp.gt.f32.partialorder %v1620, 0.0
        %vm1653 = vcmp.gt.f32.partialorder %v1621, 0.0
        %vm1654 = vcmp.gt.f32.partialorder %v1622, 0.0
        %vm1655 = vcmp.gt.f32.partialorder %v1623, 0.0
        %vm1656 = vcmp.gt.f32.partialorder %v1624, 0.0
        %vm1657 = vcmp.gt.f32.partialorder %v1625, 0.0
        %vm1658 = vcmp.gt.f32.partialorder %v1626, 0.0
        %vm1659 = vcmp.gt.f32.partialorder %v1627, 0.0
        %vm1660 = vcmp.gt.f32.partialorder %v1628, 0.0
        %vm1661 = vcmp.gt.f32.partialorder %v1629, 0.0
        %vm1662 = vcmp.gt.f32.partialorder %v1630, 0.0
        %vm1663 = vcmp.gt.f32.partialorder %v1631, 0.0
        %vm1664 = vcmp.gt.f32.partialorder %v1632, 0.0
        %vm1665 = vcmp.gt.f32.partialorder %v1633, 0.0
        %vm1666 = vcmp.gt.f32.partialorder %v1634, 0.0
        %vm1667 = vcmp.gt.f32.partialorder %v1635, 0.0
        %vm1668 = vcmp.gt.f32.partialorder %v1636, 0.0
        %vm1669 = vcmp.gt.f32.partialorder %v1637, 0.0
        %vm1670 = vcmp.gt.f32.partialorder %v1638, 0.0
        %vm1671 = vcmp.gt.f32.partialorder %v1639, 0.0
        %vm1672 = vcmp.gt.f32.partialorder %v1640, 0.0
        %vm1673 = vcmp.gt.f32.partialorder %v1641, 0.0
        %vm1674 = vcmp.gt.f32.partialorder %v1642, 0.0
        %vm1675 = vcmp.gt.f32.partialorder %v1643, 0.0
        %vm1676 = vcmp.gt.f32.partialorder %v1644, 0.0
        %vm1677 = vcmp.gt.f32.partialorder %v1645, 0.0
        %vm1678 = vcmp.gt.f32.partialorder %v1646, 0.0
        %v1679 = vmul.f32 %v1615, 0.01
        %v1680 = vmul.f32 %v1616, 0.01
        %v1681 = vmul.f32 %v1617, 0.01
        %v1682 = vmul.f32 %v1618, 0.01
        %v1683 = vmul.f32 %v1619, 0.01
        %v1684 = vmul.f32 %v1620, 0.01
        %v1685 = vmul.f32 %v1621, 0.01
        %v1686 = vmul.f32 %v1622, 0.01
        %v1687 = vmul.f32 %v1623, 0.01
        %v1688 = vmul.f32 %v1624, 0.01
        %v1689 = vmul.f32 %v1625, 0.01
        %v1690 = vmul.f32 %v1626, 0.01
        %v1691 = vmul.f32 %v1627, 0.01
        %v1692 = vmul.f32 %v1628, 0.01
        %v1693 = vmul.f32 %v1629, 0.01
        %v1694 = vmul.f32 %v1630, 0.01
        %v1695 = vmul.f32 %v1631, 0.01
        %v1696 = vmul.f32 %v1632, 0.01
        %v1697 = vmul.f32 %v1633, 0.01
        %v1698 = vmul.f32 %v1634, 0.01
        %v1699 = vmul.f32 %v1635, 0.01
        %v1700 = vmul.f32 %v1636, 0.01
        %v1701 = vmul.f32 %v1637, 0.01
        %v1702 = vmul.f32 %v1638, 0.01
        %v1703 = vmul.f32 %v1639, 0.01
        %v1704 = vmul.f32 %v1640, 0.01
        %v1705 = vmul.f32 %v1641, 0.01
        %v1706 = vmul.f32 %v1642, 0.01
        %v1707 = vmul.f32 %v1643, 0.01
        %v1708 = vmul.f32 %v1644, 0.01
        %v1709 = vmul.f32 %v1645, 0.01
        %v1710 = vmul.f32 %v1646, 0.01
        %v1711 = vsel %vm1647, %v1615, %v1679
        %v1712 = vsel %vm1648, %v1616, %v1680
        %v1713 = vsel %vm1649, %v1617, %v1681
        %v1714 = vsel %vm1650, %v1618, %v1682
        %v1715 = vsel %vm1651, %v1619, %v1683
        %v1716 = vsel %vm1652, %v1620, %v1684
        %v1717 = vsel %vm1653, %v1621, %v1685
        %v1718 = vsel %vm1654, %v1622, %v1686
        %v1719 = vsel %vm1655, %v1623, %v1687
        %v1720 = vsel %vm1656, %v1624, %v1688
        %v1721 = vsel %vm1657, %v1625, %v1689
        %v1722 = vsel %vm1658, %v1626, %v1690
        %v1723 = vsel %vm1659, %v1627, %v1691
        %v1724 = vsel %vm1660, %v1628, %v1692
        %v1725 = vsel %vm1661, %v1629, %v1693
        %v1726 = vsel %vm1662, %v1630, %v1694
        %v1727 = vsel %vm1663, %v1631, %v1695
        %v1728 = vsel %vm1664, %v1632, %v1696
        %v1729 = vsel %vm1665, %v1633, %v1697
        %v1730 = vsel %vm1666, %v1634, %v1698
        %v1731 = vsel %vm1667, %v1635, %v1699
        %v1732 = vsel %vm1668, %v1636, %v1700
        %v1733 = vsel %vm1669, %v1637, %v1701
        %v1734 = vsel %vm1670, %v1638, %v1702
        %v1735 = vsel %vm1671, %v1639, %v1703
        %v1736 = vsel %vm1672, %v1640, %v1704
        %v1737 = vsel %vm1673, %v1641, %v1705
        %v1738 = vsel %vm1674, %v1642, %v1706
        %v1739 = vsel %vm1675, %v1643, %v1707
        %v1740 = vsel %vm1676, %v1644, %v1708
        %v1741 = vsel %vm1677, %v1645, %v1709
        %v1742 = vsel %vm1678, %v1646, %v1710
        %v1743 = vld [vmem:[#allocation15] sm:$0xf]
        %v1744 = vld [vmem:[#allocation15 + $0x4] sm:$0xf]
        %v1745 = vld [vmem:[#allocation15 + $0x8] sm:$0xf]
        %v1746 = vld [vmem:[#allocation15 + $0xc] sm:$0xf]
        %v1747 = vld [vmem:[#allocation15 + $0x10] sm:$0xf]
        %v1748 = vld [vmem:[#allocation15 + $0x14] sm:$0xf]
        %v1749 = vld [vmem:[#allocation15 + $0x18] sm:$0xf]
        %v1750 = vld [vmem:[#allocation15 + $0x1c] sm:$0xf]
        %v1751 = vld [vmem:[#allocation15 + $0x20] sm:$0xf]
        %v1752 = vld [vmem:[#allocation15 + $0x24] sm:$0xf]
        %v1753 = vld [vmem:[#allocation15 + $0x28] sm:$0xf]
        %v1754 = vld [vmem:[#allocation15 + $0x2c] sm:$0xf]
        %v1755 = vld [vmem:[#allocation15 + $0x30] sm:$0xf]
        %v1756 = vld [vmem:[#allocation15 + $0x34] sm:$0xf]
        %v1757 = vld [vmem:[#allocation15 + $0x38] sm:$0xf]
        %v1758 = vld [vmem:[#allocation15 + $0x3c] sm:$0xf]
        %v1759 = vpack.c.bf16 %v1713, %v1711
        %v1760 = vpack.c.bf16 %v1714, %v1712
        %v1761 = vpack.c.bf16 %v1717, %v1715
        %v1762 = vpack.c.bf16 %v1718, %v1716
        %v1763 = vpack.c.bf16 %v1721, %v1719
        %v1764 = vpack.c.bf16 %v1722, %v1720
        %v1765 = vpack.c.bf16 %v1725, %v1723
        %v1766 = vpack.c.bf16 %v1726, %v1724
        %v1767 = vpack.c.bf16 %v1729, %v1727
        %v1768 = vpack.c.bf16 %v1730, %v1728
        %v1769 = vpack.c.bf16 %v1733, %v1731
        %v1770 = vpack.c.bf16 %v1734, %v1732
        %v1771 = vpack.c.bf16 %v1737, %v1735
        %v1772 = vpack.c.bf16 %v1738, %v1736
        %v1773 = vpack.c.bf16 %v1741, %v1739
        %v1774 = vpack.c.bf16 %v1742, %v1740
        %v1775 = vld [vmem:[#allocation16] sm:$0xff]
        %v1776 = vld [vmem:[#allocation16 + $0x8] sm:$0xff]
        %v1777 = vld [vmem:[#allocation16 + $0x10] sm:$0xff]
        %v1778 = vld [vmem:[#allocation16 + $0x18] sm:$0xff]
        %v1779 = vld [vmem:[#allocation16 + $0x20] sm:$0xff]
        %v1780 = vld [vmem:[#allocation16 + $0x28] sm:$0xff]
        %v1781 = vld [vmem:[#allocation16 + $0x30] sm:$0xff]
        %v1782 = vld [vmem:[#allocation16 + $0x38] sm:$0xff]
        %v1783 = vld [vmem:[#allocation16 + $0x40] sm:$0xff]
        %v1784 = vld [vmem:[#allocation16 + $0x48] sm:$0xff]
        %v1785 = vld [vmem:[#allocation16 + $0x50] sm:$0xff]
        %v1786 = vld [vmem:[#allocation16 + $0x58] sm:$0xff]
        %v1787 = vld [vmem:[#allocation16 + $0x60] sm:$0xff]
        %v1788 = vld [vmem:[#allocation16 + $0x68] sm:$0xff]
        %v1789 = vld [vmem:[#allocation16 + $0x70] sm:$0xff]
        %v1790 = vld [vmem:[#allocation16 + $0x78] sm:$0xff]
        %1792 = vset.pattern.permute.xlu0 0
        %1793 = vperm.xlu0 %1792, %v1775
        %v1794 = vpop.permute.xlu0 %1793
        %1797 = vset.pattern.permute.xlu0 0
        %1798 = vperm.xlu0 %1797, %v1776
        %v1799 = vpop.permute.xlu0 %1798
        %1802 = vset.pattern.permute.xlu0 0
        %1803 = vperm.xlu0 %1802, %v1777
        %v1804 = vpop.permute.xlu0 %1803
        %1807 = vset.pattern.permute.xlu0 0
        %1808 = vperm.xlu0 %1807, %v1778
        %v1809 = vpop.permute.xlu0 %1808
        %1812 = vset.pattern.permute.xlu0 0
        %1813 = vperm.xlu0 %1812, %v1779
        %v1814 = vpop.permute.xlu0 %1813
        %1817 = vset.pattern.permute.xlu0 0
        %1818 = vperm.xlu0 %1817, %v1780
        %v1819 = vpop.permute.xlu0 %1818
        %1822 = vset.pattern.permute.xlu0 0
        %1823 = vperm.xlu0 %1822, %v1781
        %v1824 = vpop.permute.xlu0 %1823
        %1827 = vset.pattern.permute.xlu0 0
        %1828 = vperm.xlu0 %1827, %v1782
        %v1829 = vpop.permute.xlu0 %1828
        %1832 = vset.pattern.permute.xlu0 0
        %1833 = vperm.xlu0 %1832, %v1783
        %v1834 = vpop.permute.xlu0 %1833
        %1837 = vset.pattern.permute.xlu0 0
        %1838 = vperm.xlu0 %1837, %v1784
        %v1839 = vpop.permute.xlu0 %1838
        %1842 = vset.pattern.permute.xlu0 0
        %1843 = vperm.xlu0 %1842, %v1785
        %v1844 = vpop.permute.xlu0 %1843
        %1847 = vset.pattern.permute.xlu0 0
        %1848 = vperm.xlu0 %1847, %v1786
        %v1849 = vpop.permute.xlu0 %1848
        %1852 = vset.pattern.permute.xlu0 0
        %1853 = vperm.xlu0 %1852, %v1787
        %v1854 = vpop.permute.xlu0 %1853
        %1857 = vset.pattern.permute.xlu0 0
        %1858 = vperm.xlu0 %1857, %v1788
        %v1859 = vpop.permute.xlu0 %1858
        %1862 = vset.pattern.permute.xlu0 0
        %1863 = vperm.xlu0 %1862, %v1789
        %v1864 = vpop.permute.xlu0 %1863
        %1867 = vset.pattern.permute.xlu0 0
        %1868 = vperm.xlu0 %1867, %v1790
        %v1869 = vpop.permute.xlu0 %1868
        %v1887 = vunpack.c.l.b16 %v1743
        %v1888 = vunpack.c.l.b16 %v1744
        %v1889 = vunpack.c.l.b16 %v1745
        %v1890 = vunpack.c.l.b16 %v1746
        %v1891 = vunpack.c.l.b16 %v1747
        %v1892 = vunpack.c.l.b16 %v1748
        %v1893 = vunpack.c.l.b16 %v1749
        %v1894 = vunpack.c.l.b16 %v1750
        %v1895 = vunpack.c.l.b16 %v1751
        %v1896 = vunpack.c.l.b16 %v1752
        %v1897 = vunpack.c.l.b16 %v1753
        %v1898 = vunpack.c.l.b16 %v1754
        %v1899 = vunpack.c.l.b16 %v1755
        %v1900 = vunpack.c.l.b16 %v1756
        %v1901 = vunpack.c.l.b16 %v1757
        %v1902 = vunpack.c.l.b16 %v1758
        %v1903 = vpack.c.b16 %v1888, %v1887
        %v1904 = vpack.c.b16 %v1890, %v1889
        %v1905 = vpack.c.b16 %v1892, %v1891
        %v1906 = vpack.c.b16 %v1894, %v1893
        %v1907 = vpack.c.b16 %v1896, %v1895
        %v1908 = vpack.c.b16 %v1898, %v1897
        %v1909 = vpack.c.b16 %v1900, %v1899
        %v1910 = vpack.c.b16 %v1902, %v1901
        %1919 = vmatprep.subr.bf16.mxu0 %v1760
        %1920 = vmatpush1.bf16.msra.mxu0 %v1759
        %1921 = vmatprep.subr.bf16.mxu0 %v1762
        %1922 = vmatpush1.bf16.msra.mxu0 %v1761
        %1923 = vmatprep.subr.bf16.mxu0 %v1764
        %1924 = vmatpush1.bf16.msra.mxu0 %v1763
        %1925 = vmatprep.subr.bf16.mxu0 %v1766
        %1926 = vmatpush1.bf16.msra.mxu0 %v1765
        %1927 = vmatprep.subr.bf16.mxu0 %v1768
        %1928 = vmatpush1.bf16.msra.mxu0 %v1767
        %1929 = vmatprep.subr.bf16.mxu0 %v1770
        %1930 = vmatpush1.bf16.msra.mxu0 %v1769
        %1931 = vmatprep.subr.bf16.mxu0 %v1772
        %1932 = vmatpush1.bf16.msra.mxu0 %v1771
        %1933 = vmatprep.subr.bf16.mxu0 %v1774
        %1934 = vmatpush1.bf16.msra.mxu0 %v1773
        %1935 = vmatprep.subr.bf16.mxu0 0
        %1936 = vmatpush1.bf16.msra.mxu0 0
        %1937 = vmatprep.subr.bf16.mxu0 0
        %1938 = vmatpush1.bf16.msra.mxu0 0
        %1939 = vmatprep.subr.bf16.mxu0 0
        %1940 = vmatpush1.bf16.msra.mxu0 0
        %1941 = vmatprep.subr.bf16.mxu0 0
        %1942 = vmatpush1.bf16.msra.mxu0 0
        %1943 = vmatprep.subr.bf16.mxu0 0
        %1944 = vmatpush1.bf16.msra.mxu0 0
        %1945 = vmatprep.subr.bf16.mxu0 0
        %1946 = vmatpush1.bf16.msra.mxu0 0
        %1947 = vmatprep.subr.bf16.mxu0 0
        %1948 = vmatpush1.bf16.msra.mxu0 0
        %1949 = vmatprep.subr.bf16.mxu0 0
        %1950 = vmatpush1.bf16.msra.mxu0 0
        %1951 = vmatprep.mubr.bf16.mxu0 0
        %1952 = vmatmul.mubr.bf16.gmra.mrb[0].mxu0 %v1903
        %v1953 = vpop.f32.mrb[0].mxu0
        %v1954 = vadd.f32 %v1794, %v1953
        %v1955 = vpop.f32.mrb[0].mxu0
        %v1956 = vadd.f32 %v1794, %v1955
        %v1957 = vpop.f32.mrb[0].mxu0
        %v1958 = vadd.f32 %v1799, %v1957
        %v1959 = vpop.f32.mrb[0].mxu0
        %v1960 = vadd.f32 %v1799, %v1959
        %1961 = vmatprep.mubr.bf16.mxu0 0
        %1962 = vmatmul.mubr.bf16.gmra.mrb[0].mxu0 %v1904
        %v1963 = vpop.f32.mrb[0].mxu0
        %v1964 = vadd.f32 %v1804, %v1963
        %v1965 = vpop.f32.mrb[0].mxu0
        %v1966 = vadd.f32 %v1804, %v1965
        %v1967 = vpop.f32.mrb[0].mxu0
        %v1968 = vadd.f32 %v1809, %v1967
        %v1969 = vpop.f32.mrb[0].mxu0
        %v1970 = vadd.f32 %v1809, %v1969
        %1971 = vmatprep.mubr.bf16.mxu0 0
        %1972 = vmatmul.mubr.bf16.gmra.mrb[0].mxu0 %v1905
        %v1973 = vpop.f32.mrb[0].mxu0
        %v1974 = vadd.f32 %v1814, %v1973
        %v1975 = vpop.f32.mrb[0].mxu0
        %v1976 = vadd.f32 %v1814, %v1975
        %v1977 = vpop.f32.mrb[0].mxu0
        %v1978 = vadd.f32 %v1819, %v1977
        %v1979 = vpop.f32.mrb[0].mxu0
        %v1980 = vadd.f32 %v1819, %v1979
        %1981 = vmatprep.mubr.bf16.mxu0 0
        %1982 = vmatmul.mubr.bf16.gmra.mrb[0].mxu0 %v1906
        %v1983 = vpop.f32.mrb[0].mxu0
        %v1984 = vadd.f32 %v1824, %v1983
        %v1985 = vpop.f32.mrb[0].mxu0
        %v1986 = vadd.f32 %v1824, %v1985
        %v1987 = vpop.f32.mrb[0].mxu0
        %v1988 = vadd.f32 %v1829, %v1987
        %v1989 = vpop.f32.mrb[0].mxu0
        %v1990 = vadd.f32 %v1829, %v1989
        %1991 = vmatprep.mubr.bf16.mxu0 0
        %1992 = vmatmul.mubr.bf16.gmra.mrb[0].mxu0 %v1907
        %v1993 = vpop.f32.mrb[0].mxu0
        %v1994 = vadd.f32 %v1834, %v1993
        %v1995 = vpop.f32.mrb[0].mxu0
        %v1996 = vadd.f32 %v1834, %v1995
        %v1997 = vpop.f32.mrb[0].mxu0
        %v1998 = vadd.f32 %v1839, %v1997
        %v1999 = vpop.f32.mrb[0].mxu0
        %v2000 = vadd.f32 %v1839, %v1999
        %2001 = vmatprep.mubr.bf16.mxu0 0
        %2002 = vmatmul.mubr.bf16.gmra.mrb[0].mxu0 %v1908
        %v2003 = vpop.f32.mrb[0].mxu0
        %v2004 = vadd.f32 %v1844, %v2003
        %v2005 = vpop.f32.mrb[0].mxu0
        %v2006 = vadd.f32 %v1844, %v2005
        %v2007 = vpop.f32.mrb[0].mxu0
        %v2008 = vadd.f32 %v1849, %v2007
        %v2009 = vpop.f32.mrb[0].mxu0
        %v2010 = vadd.f32 %v1849, %v2009
        %2011 = vmatprep.mubr.bf16.mxu0 0
        %2012 = vmatmul.mubr.bf16.gmra.mrb[0].mxu0 %v1909
        %v2013 = vpop.f32.mrb[0].mxu0
        %v2014 = vadd.f32 %v1854, %v2013
        %v2015 = vpop.f32.mrb[0].mxu0
        %v2016 = vadd.f32 %v1854, %v2015
        %v2017 = vpop.f32.mrb[0].mxu0
        %v2018 = vadd.f32 %v1859, %v2017
        %v2019 = vpop.f32.mrb[0].mxu0
        %v2020 = vadd.f32 %v1859, %v2019
        %2021 = vmatprep.mubr.bf16.mxu0 0
        %2022 = vmatmul.mubr.bf16.gmra.mrb[0].mxu0 %v1910
        %v2023 = vpop.f32.mrb[0].mxu0
        %v2024 = vadd.f32 %v1864, %v2023
        %v2025 = vpop.f32.mrb[0].mxu0
        %v2026 = vadd.f32 %v1864, %v2025
        %v2027 = vpop.f32.mrb[0].mxu0
        %v2028 = vadd.f32 %v1869, %v2027
        %v2029 = vpop.f32.mrb[0].mxu0
        %v2030 = vadd.f32 %v1869, %v2029
        %2031 = vdwg.mxu0
        %vm2032 = vcmp.gt.f32.partialorder %v1954, 0.0
        %vm2033 = vcmp.gt.f32.partialorder %v1956, 0.0
        %vm2034 = vcmp.gt.f32.partialorder %v1958, 0.0
        %vm2035 = vcmp.gt.f32.partialorder %v1960, 0.0
        %vm2036 = vcmp.gt.f32.partialorder %v1964, 0.0
        %vm2037 = vcmp.gt.f32.partialorder %v1966, 0.0
        %vm2038 = vcmp.gt.f32.partialorder %v1968, 0.0
        %vm2039 = vcmp.gt.f32.partialorder %v1970, 0.0
        %vm2040 = vcmp.gt.f32.partialorder %v1974, 0.0
        %vm2041 = vcmp.gt.f32.partialorder %v1976, 0.0
        %vm2042 = vcmp.gt.f32.partialorder %v1978, 0.0
        %vm2043 = vcmp.gt.f32.partialorder %v1980, 0.0
        %vm2044 = vcmp.gt.f32.partialorder %v1984, 0.0
        %vm2045 = vcmp.gt.f32.partialorder %v1986, 0.0
        %vm2046 = vcmp.gt.f32.partialorder %v1988, 0.0
        %vm2047 = vcmp.gt.f32.partialorder %v1990, 0.0
        %vm2048 = vcmp.gt.f32.partialorder %v1994, 0.0
        %vm2049 = vcmp.gt.f32.partialorder %v1996, 0.0
        %vm2050 = vcmp.gt.f32.partialorder %v1998, 0.0
        %vm2051 = vcmp.gt.f32.partialorder %v2000, 0.0
        %vm2052 = vcmp.gt.f32.partialorder %v2004, 0.0
        %vm2053 = vcmp.gt.f32.partialorder %v2006, 0.0
        %vm2054 = vcmp.gt.f32.partialorder %v2008, 0.0
        %vm2055 = vcmp.gt.f32.partialorder %v2010, 0.0
        %vm2056 = vcmp.gt.f32.partialorder %v2014, 0.0
        %vm2057 = vcmp.gt.f32.partialorder %v2016, 0.0
        %vm2058 = vcmp.gt.f32.partialorder %v2018, 0.0
        %vm2059 = vcmp.gt.f32.partialorder %v2020, 0.0
        %vm2060 = vcmp.gt.f32.partialorder %v2024, 0.0
        %vm2061 = vcmp.gt.f32.partialorder %v2026, 0.0
        %vm2062 = vcmp.gt.f32.partialorder %v2028, 0.0
        %vm2063 = vcmp.gt.f32.partialorder %v2030, 0.0
        %v2064 = vmul.f32 %v1954, 0.01
        %v2065 = vmul.f32 %v1956, 0.01
        %v2066 = vmul.f32 %v1958, 0.01
        %v2067 = vmul.f32 %v1960, 0.01
        %v2068 = vmul.f32 %v1964, 0.01
        %v2069 = vmul.f32 %v1966, 0.01
        %v2070 = vmul.f32 %v1968, 0.01
        %v2071 = vmul.f32 %v1970, 0.01
        %v2072 = vmul.f32 %v1974, 0.01
        %v2073 = vmul.f32 %v1976, 0.01
        %v2074 = vmul.f32 %v1978, 0.01
        %v2075 = vmul.f32 %v1980, 0.01
        %v2076 = vmul.f32 %v1984, 0.01
        %v2077 = vmul.f32 %v1986, 0.01
        %v2078 = vmul.f32 %v1988, 0.01
        %v2079 = vmul.f32 %v1990, 0.01
        %v2080 = vmul.f32 %v1994, 0.01
        %v2081 = vmul.f32 %v1996, 0.01
        %v2082 = vmul.f32 %v1998, 0.01
        %v2083 = vmul.f32 %v2000, 0.01
        %v2084 = vmul.f32 %v2004, 0.01
        %v2085 = vmul.f32 %v2006, 0.01
        %v2086 = vmul.f32 %v2008, 0.01
        %v2087 = vmul.f32 %v2010, 0.01
        %v2088 = vmul.f32 %v2014, 0.01
        %v2089 = vmul.f32 %v2016, 0.01
        %v2090 = vmul.f32 %v2018, 0.01
        %v2091 = vmul.f32 %v2020, 0.01
        %v2092 = vmul.f32 %v2024, 0.01
        %v2093 = vmul.f32 %v2026, 0.01
        %v2094 = vmul.f32 %v2028, 0.01
        %v2095 = vmul.f32 %v2030, 0.01
        %v2096 = vsel %vm2032, %v1954, %v2064
        %v2097 = vsel %vm2033, %v1956, %v2065
        %v2098 = vsel %vm2034, %v1958, %v2066
        %v2099 = vsel %vm2035, %v1960, %v2067
        %v2100 = vsel %vm2036, %v1964, %v2068
        %v2101 = vsel %vm2037, %v1966, %v2069
        %v2102 = vsel %vm2038, %v1968, %v2070
        %v2103 = vsel %vm2039, %v1970, %v2071
        %v2104 = vsel %vm2040, %v1974, %v2072
        %v2105 = vsel %vm2041, %v1976, %v2073
        %v2106 = vsel %vm2042, %v1978, %v2074
        %v2107 = vsel %vm2043, %v1980, %v2075
        %v2108 = vsel %vm2044, %v1984, %v2076
        %v2109 = vsel %vm2045, %v1986, %v2077
        %v2110 = vsel %vm2046, %v1988, %v2078
        %v2111 = vsel %vm2047, %v1990, %v2079
        %v2112 = vsel %vm2048, %v1994, %v2080
        %v2113 = vsel %vm2049, %v1996, %v2081
        %v2114 = vsel %vm2050, %v1998, %v2082
        %v2115 = vsel %vm2051, %v2000, %v2083
        %v2116 = vsel %vm2052, %v2004, %v2084
        %v2117 = vsel %vm2053, %v2006, %v2085
        %v2118 = vsel %vm2054, %v2008, %v2086
        %v2119 = vsel %vm2055, %v2010, %v2087
        %v2120 = vsel %vm2056, %v2014, %v2088
        %v2121 = vsel %vm2057, %v2016, %v2089
        %v2122 = vsel %vm2058, %v2018, %v2090
        %v2123 = vsel %vm2059, %v2020, %v2091
        %v2124 = vsel %vm2060, %v2024, %v2092
        %v2125 = vsel %vm2061, %v2026, %v2093
        %v2126 = vsel %vm2062, %v2028, %v2094
        %v2127 = vsel %vm2063, %v2030, %v2095
        %v2128 = vadd.f32 %v1711, %v2096
        %v2129 = vadd.f32 %v1712, %v2097
        %v2130 = vadd.f32 %v1713, %v2098
        %v2131 = vadd.f32 %v1714, %v2099
        %v2132 = vadd.f32 %v1715, %v2100
        %v2133 = vadd.f32 %v1716, %v2101
        %v2134 = vadd.f32 %v1717, %v2102
        %v2135 = vadd.f32 %v1718, %v2103
        %v2136 = vadd.f32 %v1719, %v2104
        %v2137 = vadd.f32 %v1720, %v2105
        %v2138 = vadd.f32 %v1721, %v2106
        %v2139 = vadd.f32 %v1722, %v2107
        %v2140 = vadd.f32 %v1723, %v2108
        %v2141 = vadd.f32 %v1724, %v2109
        %v2142 = vadd.f32 %v1725, %v2110
        %v2143 = vadd.f32 %v1726, %v2111
        %v2144 = vadd.f32 %v1727, %v2112
        %v2145 = vadd.f32 %v1728, %v2113
        %v2146 = vadd.f32 %v1729, %v2114
        %v2147 = vadd.f32 %v1730, %v2115
        %v2148 = vadd.f32 %v1731, %v2116
        %v2149 = vadd.f32 %v1732, %v2117
        %v2150 = vadd.f32 %v1733, %v2118
        %v2151 = vadd.f32 %v1734, %v2119
        %v2152 = vadd.f32 %v1735, %v2120
        %v2153 = vadd.f32 %v1736, %v2121
        %v2154 = vadd.f32 %v1737, %v2122
        %v2155 = vadd.f32 %v1738, %v2123
        %v2156 = vadd.f32 %v1739, %v2124
        %v2157 = vadd.f32 %v1740, %v2125
        %v2158 = vadd.f32 %v1741, %v2126
        %v2159 = vadd.f32 %v1742, %v2127
        %v2160 = vld [vmem:[#allocation18] sm:$0x1]
        %v2161 = vpack.c.bf16 %v2098, %v2096
        %v2162 = vpack.c.bf16 %v2099, %v2097
        %v2163 = vpack.c.bf16 %v2102, %v2100
        %v2164 = vpack.c.bf16 %v2103, %v2101
        %v2165 = vpack.c.bf16 %v2106, %v2104
        %v2166 = vpack.c.bf16 %v2107, %v2105
        %v2167 = vpack.c.bf16 %v2110, %v2108
        %v2168 = vpack.c.bf16 %v2111, %v2109
        %v2169 = vpack.c.bf16 %v2114, %v2112
        %v2170 = vpack.c.bf16 %v2115, %v2113
        %v2171 = vpack.c.bf16 %v2118, %v2116
        %v2172 = vpack.c.bf16 %v2119, %v2117
        %v2173 = vpack.c.bf16 %v2122, %v2120
        %v2174 = vpack.c.bf16 %v2123, %v2121
        %v2175 = vpack.c.bf16 %v2126, %v2124
        %v2176 = vpack.c.bf16 %v2127, %v2125
        %v2177 = vld [vmem:[#allocation2] sm:$0x1]
        %2179 = vset.pattern.permute.xlu0 0
        %2180 = vperm.xlu0 %2179, %v2177
        %v2181 = vpop.permute.xlu0 %2180
        %v2183 = vlaneseq
        %v2184 = vshrl.u32 %v2183, 7
        %v2185 = vsub.s32 0, %v2184
        %v2186 = vrot.slane %v2181, %v2185
        %2187 = vmatprep.subr.bf16.mxu0 %v2162
        %2188 = vmatpush1.bf16.msra.mxu0 %v2161
        %2189 = vmatprep.subr.bf16.mxu0 %v2164
        %2190 = vmatpush1.bf16.msra.mxu0 %v2163
        %2191 = vmatprep.subr.bf16.mxu0 %v2166
        %2192 = vmatpush1.bf16.msra.mxu0 %v2165
        %2193 = vmatprep.subr.bf16.mxu0 %v2168
        %2194 = vmatpush1.bf16.msra.mxu0 %v2167
        %2195 = vmatprep.subr.bf16.mxu0 %v2170
        %2196 = vmatpush1.bf16.msra.mxu0 %v2169
        %2197 = vmatprep.subr.bf16.mxu0 %v2172
        %2198 = vmatpush1.bf16.msra.mxu0 %v2171
        %2199 = vmatprep.subr.bf16.mxu0 %v2174
        %2200 = vmatpush1.bf16.msra.mxu0 %v2173
        %2201 = vmatprep.subr.bf16.mxu0 %v2176
        %2202 = vmatpush1.bf16.msra.mxu0 %v2175
        %2203 = vmatprep.subr.bf16.mxu0 0
        %2204 = vmatpush1.bf16.msra.mxu0 0
        %2205 = vmatprep.subr.bf16.mxu0 0
        %2206 = vmatpush1.bf16.msra.mxu0 0
        %2207 = vmatprep.subr.bf16.mxu0 0
        %2208 = vmatpush1.bf16.msra.mxu0 0
        %2209 = vmatprep.subr.bf16.mxu0 0
        %2210 = vmatpush1.bf16.msra.mxu0 0
        %2211 = vmatprep.subr.bf16.mxu0 0
        %2212 = vmatpush1.bf16.msra.mxu0 0
        %2213 = vmatprep.subr.bf16.mxu0 0
        %2214 = vmatpush1.bf16.msra.mxu0 0
        %2215 = vmatprep.subr.bf16.mxu0 0
        %2216 = vmatpush1.bf16.msra.mxu0 0
        %2217 = vmatprep.subr.bf16.mxu0 0
        %2218 = vmatpush1.bf16.msra.mxu0 0
        %2219 = vmatprep.mubr.bf16.mxu0 0
        %2220 = vmatmul.mubr.bf16.gmra.mrb[0].mxu0 %v2160
        %v2221 = vpop.f32.mrb[0].mxu0
        %v2222 = vadd.f32 %v2186, %v2221
        %v2223 = vpop.f32.mrb[0].mxu0
        %v2224 = vadd.f32 %v2186, %v2223
        %v2225 = vpop.f32.mrb[0].mxu0
        %v2226 = vpop.f32.mrb[0].mxu0
        %2227 = vdwg.mxu0
        %vm2228 = vcmp.gt.f32.partialorder %v2222, 0.0
        %vm2229 = vcmp.gt.f32.partialorder %v2224, 0.0
        %v2230 = vmul.f32 %v2222, 0.01
        %v2231 = vmul.f32 %v2224, 0.01
        %v2232 = vsel %vm2228, %v2222, %v2230
        %v2233 = vsel %vm2229, %v2224, %v2231
        %v2234 = vlaneseq
        %v2235 = vshrl.u32 %v2234, 7
        %v2236 = vsub.s32 0, %v2235
        %v2237 = vrot.slane %v2232, %v2236
        %v2238 = vlaneseq
        %v2239 = vshrl.u32 %v2238, 7
        %v2240 = vsub.s32 0, %v2239
        %v2241 = vrot.slane %v2233, %v2240
        %v2242 = vadd.f32 %v2128, %v2237
        %v2243 = vadd.f32 %v2129, %v2241
        %v2244 = vadd.f32 %v2130, %v2237
        %v2245 = vadd.f32 %v2131, %v2241
        %v2246 = vadd.f32 %v2132, %v2237
        %v2247 = vadd.f32 %v2133, %v2241
        %v2248 = vadd.f32 %v2134, %v2237
        %v2249 = vadd.f32 %v2135, %v2241
        %v2250 = vadd.f32 %v2136, %v2237
        %v2251 = vadd.f32 %v2137, %v2241
        %v2252 = vadd.f32 %v2138, %v2237
        %v2253 = vadd.f32 %v2139, %v2241
        %v2254 = vadd.f32 %v2140, %v2237
        %v2255 = vadd.f32 %v2141, %v2241
        %v2256 = vadd.f32 %v2142, %v2237
        %v2257 = vadd.f32 %v2143, %v2241
        %v2258 = vadd.f32 %v2144, %v2237
        %v2259 = vadd.f32 %v2145, %v2241
        %v2260 = vadd.f32 %v2146, %v2237
        %v2261 = vadd.f32 %v2147, %v2241
        %v2262 = vadd.f32 %v2148, %v2237
        %v2263 = vadd.f32 %v2149, %v2241
        %v2264 = vadd.f32 %v2150, %v2237
        %v2265 = vadd.f32 %v2151, %v2241
        %v2266 = vadd.f32 %v2152, %v2237
        %v2267 = vadd.f32 %v2153, %v2241
        %v2268 = vadd.f32 %v2154, %v2237
        %v2269 = vadd.f32 %v2155, %v2241
        %v2270 = vadd.f32 %v2156, %v2237
        %v2271 = vadd.f32 %v2157, %v2241
        %v2272 = vadd.f32 %v2158, %v2237
        %v2273 = vadd.f32 %v2159, %v2241
        %v2274 = vld [vmem:[#allocation19] sm:$0x1]
        %v2275 = vpack.c.bf16 %v2244, %v2242
        %v2276 = vpack.c.bf16 %v2245, %v2243
        %v2277 = vpack.c.bf16 %v2248, %v2246
        %v2278 = vpack.c.bf16 %v2249, %v2247
        %v2279 = vpack.c.bf16 %v2252, %v2250
        %v2280 = vpack.c.bf16 %v2253, %v2251
        %v2281 = vpack.c.bf16 %v2256, %v2254
        %v2282 = vpack.c.bf16 %v2257, %v2255
        %v2283 = vpack.c.bf16 %v2260, %v2258
        %v2284 = vpack.c.bf16 %v2261, %v2259
        %v2285 = vpack.c.bf16 %v2264, %v2262
        %v2286 = vpack.c.bf16 %v2265, %v2263
        %v2287 = vpack.c.bf16 %v2268, %v2266
        %v2288 = vpack.c.bf16 %v2269, %v2267
        %v2289 = vpack.c.bf16 %v2272, %v2270
        %v2290 = vpack.c.bf16 %v2273, %v2271
        %v2291 = vld [vmem:[#allocation3] sm:$0x1]
        %2293 = vset.pattern.permute.xlu0 0
        %2294 = vperm.xlu0 %2293, %v2291
        %v2295 = vpop.permute.xlu0 %2294
        %v2297 = vlaneseq
        %v2298 = vshrl.u32 %v2297, 7
        %v2299 = vsub.s32 0, %v2298
        %v2300 = vrot.slane %v2295, %v2299
        %2301 = vmatprep.subr.bf16.mxu0 %v2276
        %2302 = vmatpush1.bf16.msra.mxu0 %v2275
        %2303 = vmatprep.subr.bf16.mxu0 %v2278
        %2304 = vmatpush1.bf16.msra.mxu0 %v2277
        %2305 = vmatprep.subr.bf16.mxu0 %v2280
        %2306 = vmatpush1.bf16.msra.mxu0 %v2279
        %2307 = vmatprep.subr.bf16.mxu0 %v2282
        %2308 = vmatpush1.bf16.msra.mxu0 %v2281
        %2309 = vmatprep.subr.bf16.mxu0 %v2284
        %2310 = vmatpush1.bf16.msra.mxu0 %v2283
        %2311 = vmatprep.subr.bf16.mxu0 %v2286
        %2312 = vmatpush1.bf16.msra.mxu0 %v2285
        %2313 = vmatprep.subr.bf16.mxu0 %v2288
        %2314 = vmatpush1.bf16.msra.mxu0 %v2287
        %2315 = vmatprep.subr.bf16.mxu0 %v2290
        %2316 = vmatpush1.bf16.msra.mxu0 %v2289
        %2317 = vmatprep.subr.bf16.mxu0 0
        %2318 = vmatpush1.bf16.msra.mxu0 0
        %2319 = vmatprep.subr.bf16.mxu0 0
        %2320 = vmatpush1.bf16.msra.mxu0 0
        %2321 = vmatprep.subr.bf16.mxu0 0
        %2322 = vmatpush1.bf16.msra.mxu0 0
        %2323 = vmatprep.subr.bf16.mxu0 0
        %2324 = vmatpush1.bf16.msra.mxu0 0
        %2325 = vmatprep.subr.bf16.mxu0 0
        %2326 = vmatpush1.bf16.msra.mxu0 0
        %2327 = vmatprep.subr.bf16.mxu0 0
        %2328 = vmatpush1.bf16.msra.mxu0 0
        %2329 = vmatprep.subr.bf16.mxu0 0
        %2330 = vmatpush1.bf16.msra.mxu0 0
        %2331 = vmatprep.subr.bf16.mxu0 0
        %2332 = vmatpush1.bf16.msra.mxu0 0
        %2333 = vmatprep.mubr.bf16.mxu0 0
        %2334 = vmatmul.mubr.bf16.gmra.mrb[0].mxu0 %v2274
        %v2335 = vpop.f32.mrb[0].mxu0
        %v2336 = vadd.f32 %v2300, %v2335
        %v2337 = vpop.f32.mrb[0].mxu0
        %v2338 = vadd.f32 %v2300, %v2337
        %v2339 = vpop.f32.mrb[0].mxu0
        %v2340 = vpop.f32.mrb[0].mxu0
        %2341 = vdwg.mxu0
        %v2344 = vcombine.low %v2336, %v2338
        %v2346 = vunpack.c.l.s4 1966171168
        %v2347 = vunpack.c.0.s8 %v2346
        %v2348 = vlaneseq
        %v2349 = vshrl.u32 %v2348, 7
        %v2350 = vsub.s32 %v2347, %v2349
        %v2351 = vrot.slane %v2344, %v2350
        %v2353 = vunpack.c.l.s4 1966171168
        %v2354 = vunpack.c.0.s8 %v2353
        %v2355 = vlaneseq
        %v2356 = vshrl.u32 %v2355, 7
        %v2357 = vsub.s32 %v2354, %v2356
        %v2358 = vrot.slane %v2351, %v2357
        %v2360 = vlaneseq
        %vm2361 = vcmp.ge.s32.totalorder %v2360, 0
        %vm2362 = vcmp.lt.s32.totalorder %v2360, 256
        %vm2363 = vmand %vm2361, %vm2362
        %2364 = vst.msk [vmem:[%s665] sm:$0x3] %vm2363, %v2358
        %s2365 = sand.u32 %s344, 1
        %s2366 = scalar_lea.sflag [#allocation6], %s2365
        %s2367 = sand.u32 %s344, 1
        %s2368 = smul.addr %s2367, 2
        %s2369 = scalar_lea.vmem [#allocation21], %s2368
        // Predicated region
        $region109: #{_forward.17} parent=67 // pred_check
          %p2370 = pneg %p354
        $region110: #{_forward.17} parent=67 // pred_check_branch
          %2372 = sbr.rel (%p2370) target = $region112
        $region111: #{_forward.17} parent=67 // pred_region
          %s2373 = smul.u32 2, %s47
          %s2375 = ssub.s32 32, 32
          %2376 = vsyncadd %s2366, %s2375
          %s2377 = smul.addr %s46, 2
          %s2378 = sadd.s32 %s2373, %s2377
          %s2379 = smul.addr %s2378, 16
          %s2380 = scalar_lea.hbm %s12, %s2379
          %s2382 = sshll.u32 %s2369, 4
          %s2383 = int_to_ptr.vmem [resolvable:$true] %s2382
          %2385 = dma.vmem_to_hbm [thread:$0]  %s2383, 32, %s2380, %s2366
        $region112: #{_forward.17} parent=67 // pred_fallthru
          _
      $region68: #{_forward.17} parent=5 // pred_fallthru
        _
      %p2386 = scmp.le.s32.totalorder 2, %s37
      // Predicated region
      $region113: #{_forward.17} parent=5 // pred_check
        %p2387 = pneg %p2386
      $region114: #{_forward.17} parent=5 // pred_check_branch
        %2389 = sbr.rel (%p2387) target = $region116
      $region115: #{_forward.17} parent=5 // pred_region
        %s2390 = ssub.s32 %s37, 2
        // Predicated region
        $region117: #{_forward.17} parent=115 // pred_check
          %p2391 = pneg %p360
        $region118: #{_forward.17} parent=115 // pred_check_branch
          %2393 = sbr.rel (%p2391) target = $region120
        $region119: #{_forward.17} parent=115 // pred_region
          %s2394 = sand.u32 %s345, 1
          %s2395 = scalar_lea.sflag [#allocation6], %s2394
          %s2396 = sand.u32 %s345, 1
          %s2397 = smul.addr %s2396, 2
          %s2398 = scalar_lea.vmem [#allocation21], %s2397
          %2399 = dma.done %s2395, 32
        $region120: #{_forward.17} parent=115 // pred_fallthru
          _
      $region116: #{_forward.17} parent=5 // pred_fallthru
        _
    $region6: #{_forward.17} parent=1 // loop_footer
      %s41 = sadd.s32 1, %s37
    $region7: #{_forward.17} parent=1 // loop_footer_branch
      %36 = sbr.rel target = $region3
    $region8: #{_forward.17} parent=1 // loop_exit
      _
    %2400 = vsyncpa [#allocation5], 1
    %s2401 = scalar_lea.sflag [#allocation5], 1
    %2402 = vsyncpa %s2401, 1
    %2403 = vsyncpa [#allocation8], 1
    %s2404 = scalar_lea.sflag [#allocation8], 1
    %2405 = vsyncpa %s2404, 1
    %2406 = vsyncpa [#allocation11], 1
    %s2407 = scalar_lea.sflag [#allocation11], 1
    %2408 = vsyncpa %s2407, 1
    %2409 = vsyncpa [#allocation14], 1
    %2410 = vsyncpa [#allocation17], 1
    %2411 = vsyncpa [#allocation20], 1
    %2412 = vsyncpa [#allocation6], 1
    %s2413 = scalar_lea.sflag [#allocation6], 1
    %2414 = vsyncpa %s2413, 1

</llo_original>
